<compile_context>
chip_gen: v6e
topology: v6e:2x2x1
jax: 0.10.0
libtpu: 0.0.40
codegen_flags: <defaults>
</compile_context>

<pallas_src>
import functools

import numpy as np
import jax
import jax.numpy as jnp
from jax.experimental import pallas as pl
from jax.experimental.pallas import tpu as pltpu


def _cbam_kernel(wconv_ref, x_ref, w1_ref, w2_ref, out_ref,
                 pools_ref, gate_ref, pad_ref, rolled_ref,
                 *, C, H, W, K):
    # wconv_ref: (2*K*K,) SMEM scalars
    # x_ref / out_ref: (C, H, W) VMEM blocks (one batch element)
    # w1_ref: (hidden, C); w2_ref: (C, hidden)
    # pools_ref: (C, 2) scratch; gate_ref: (C, 1) scratch
    # pad_ref: (2, H+2P, W+2P) scratch; rolled_ref: (2*K, H+2P, W+2P) scratch
    P = K // 2
    H2 = H + 2 * P
    W2 = W + 2 * P

    # ---- 1) per-channel spatial max / avg pools -> pools_ref ---------------
    for c in range(C):
        xc = x_ref[c]                                              # (H, W)
        pools_ref[c:c + 1, 0:1] = jnp.max(xc, axis=(0, 1), keepdims=True)
        pools_ref[c:c + 1, 1:2] = jnp.mean(xc, axis=(0, 1), keepdims=True)

    # ---- 2) shared-MLP channel gate: one fused matmul chain -----------------
    pools = pools_ref[...]                                         # (C, 2)
    h = jnp.maximum(
        jnp.dot(w1_ref[...], pools, preferred_element_type=jnp.float32), 0.0)
    g2 = jnp.dot(w2_ref[...], h, preferred_element_type=jnp.float32)   # (C, 2)
    gate_ref[...] = jax.nn.sigmoid(jnp.sum(g2, axis=1, keepdims=True))  # (C, 1)

    # ---- 3) channel gating + channel-wise max / mean maps -------------------
    mmax = jnp.full((H, W), -jnp.inf, jnp.float32)
    msum = jnp.zeros((H, W), jnp.float32)
    for c in range(C):
        chx = x_ref[c] * gate_ref[c:c + 1, :]                      # (H, W)
        out_ref[c] = chx            # stage channel_out in the resident out block
        mmax = jnp.maximum(mmax, chx)
        msum = msum + chx
    mmean = msum * (1.0 / C)

    # ---- 4) zero-padded maps + hoisted lane shifts --------------------------
    # Halo-only zeroing, every step (see header comment for why no pid==0 guard).
    for c in range(2):
        pad_ref[c, 0:P, :] = jnp.zeros((P, W2), jnp.float32)
        pad_ref[c, P + H:H2, :] = jnp.zeros((P, W2), jnp.float32)
        pad_ref[c, :, 0:P] = jnp.zeros((H2, P), jnp.float32)
        pad_ref[c, :, P + W:W2] = jnp.zeros((H2, P), jnp.float32)
    pad_ref[0, P:P + H, P:P + W] = mmax
    pad_ref[1, P:P + H, P:P + W] = mmean

    # Build 2*K lane-shifted copies once: rolled[c*K+j][r, x] = pad[c][r, x+j].
    # (One lane shift per (channel, j) instead of one per conv tap: 14 vs 98.)
    for c in range(2):
        for j in range(K):
            rolled_ref[c * K + j, :, 0:W2 - j] = pad_ref[c, :, j:W2]

    # ---- 5) 7x7 conv: sublane-offset loads + scalar FMA only ----------------
    acc = jnp.zeros((H, W), jnp.float32)
    for c in range(2):
        for i in range(K):
            for j in range(K):
                w = wconv_ref[c * K * K + i * K + j]               # SMEM scalar
                acc = acc + w * rolled_ref[c * K + j, i:i + H, 0:W]
    sa = jax.nn.sigmoid(acc)                                        # (H, W)

    # ---- 6) apply the spatial gate to the staged channel_out ----------------
    for c in range(C):
        out_ref[c] = out_ref[c] * sa


def cbam_forward(x, w1, w2, wconv):
    """x: (B, C, H, W) f32; w1: (hidden, C); w2: (C, hidden); wconv: (1, 2, K, K)."""
    B, C, H, W = x.shape
    hidden = w1.shape[0]
    K = wconv.shape[-1]
    P = K // 2
    H2, W2 = H + 2 * P, W + 2 * P

    wconv_flat = wconv.reshape(-1).astype(jnp.float32)   # (2*K*K,) -> SMEM scalars

    kernel = functools.partial(_cbam_kernel, C=C, H=H, W=W, K=K)
    return pl.pallas_call(
        kernel,
        out_shape=jax.ShapeDtypeStruct((B, C, H, W), jnp.float32),
        grid=(B,),
        in_specs=[
            pl.BlockSpec(memory_space=pltpu.MemorySpace.SMEM),       # conv weights
            pl.BlockSpec((None, C, H, W), lambda b: (b, 0, 0, 0)),   # x (NCHW)
            pl.BlockSpec((hidden, C), lambda b: (0, 0)),             # w1
            pl.BlockSpec((C, hidden), lambda b: (0, 0)),             # w2
        ],
        out_specs=pl.BlockSpec((None, C, H, W), lambda b: (b, 0, 0, 0)),
        scratch_shapes=[
            pltpu.VMEM((C, 2), jnp.float32),        # stacked max/avg pools
            pltpu.VMEM((C, 1), jnp.float32),        # channel gate
            pltpu.VMEM((2, H2, W2), jnp.float32),   # zero-padded maps
            pltpu.VMEM((2 * K, H2, W2), jnp.float32),  # lane-shifted map slabs
        ],
        compiler_params=pltpu.CompilerParams(
            dimension_semantics=("parallel",),
            vmem_limit_bytes=32 * 1024 * 1024),
    )(wconv_flat, x, w1, w2)


# ----------------------------- Pure-JAX reference ----------------------------
def cbam_ref(x, w1, w2, wconv):
    K = wconv.shape[-1]
    maxp = jnp.max(x, axis=(2, 3))
    avgp = jnp.mean(x, axis=(2, 3))

    def mlp(v):
        h = jnp.maximum(jnp.dot(v, w1.T), 0.0)
        return jnp.dot(h, w2.T)

    ch = jax.nn.sigmoid(mlp(maxp) + mlp(avgp))
    chx = x * ch[:, :, None, None]
    maxo = jnp.max(chx, axis=1, keepdims=True)
    meano = jnp.mean(chx, axis=1, keepdims=True)
    cat = jnp.concatenate([maxo, meano], axis=1)
    conv = jax.lax.conv_general_dilated(
        cat, wconv, window_strides=(1, 1),
        padding=((K // 2, K // 2), (K // 2, K // 2)),
        dimension_numbers=("NCHW", "OIHW", "NCHW"),
        precision=jax.lax.Precision.HIGHEST)
    sa = jax.nn.sigmoid(conv)
    return sa * chx


if __name__ == "__main__":
    # Note: reduction=16 requires in_channel >= 16; use C=32 -> hidden=2.
    B, C, H, W = 2, 32, 16, 16
    reduction, K = 16, 7
    hidden = C // reduction

    key = jax.random.PRNGKey(0)
    kx, k1, k2, kc = jax.random.split(key, 4)
    x = jax.random.normal(kx, (B, C, H, W), jnp.float32)
    w1 = jax.random.normal(k1, (hidden, C), jnp.float32) * 0.1    # Linear(C -> C//r), no bias
    w2 = jax.random.normal(k2, (C, hidden), jnp.float32) * 0.1    # Linear(C//r -> C), no bias
    wconv = jax.random.normal(kc, (1, 2, K, K), jnp.float32) * 0.1  # Conv2d(2->1, 7x7), no bias

    out = cbam_forward(x, w1, w2, wconv)
    out = jax.block_until_ready(out)

    ref = cbam_ref(x, w1, w2, wconv)
    np.testing.assert_allclose(np.asarray(out), np.asarray(ref), rtol=5e-3, atol=5e-3)
    print("KERNEL_OK")
</pallas_src>

<mosaic_0001>
module attributes {stable_mosaic.version = 11 : i64} {
  func.func @_cbam_kernel(%arg0: i32, %arg1: memref<98xf32, #tpu.memory_space<smem>>, %arg2: memref<1x32x16x16xf32, #tpu.memory_space<vmem>>, %arg3: memref<2x32xf32, #tpu.memory_space<vmem>>, %arg4: memref<32x2xf32, #tpu.memory_space<vmem>>, %arg5: memref<1x32x16x16xf32, #tpu.memory_space<vmem>>, %arg6: memref<32x2xf32, #tpu.memory_space<vmem>>, %arg7: memref<32x1xf32, #tpu.memory_space<vmem>>, %arg8: memref<2x22x22xf32, #tpu.memory_space<vmem>>, %arg9: memref<14x22x22xf32, #tpu.memory_space<vmem>>) attributes {dimension_semantics = [#tpu.dimension_semantics<parallel>], iteration_bounds = array<i64: 2>, scalar_prefetch = 0 : i64, scratch_operands = 4 : i64, tpu.core_type = #tpu.core_type<tc>, window_params = [{transform_indices = @transform_0, window_bounds = array<i64: 98>}, {transform_indices = @transform_1, window_bounds = array<i64: 1, 32, 16, 16>}, {pipeline_mode = #tpu.pipeline_mode<synchronous>, transform_indices = @transform_2, window_bounds = array<i64: 2, 32>}, {pipeline_mode = #tpu.pipeline_mode<synchronous>, transform_indices = @transform_3, window_bounds = array<i64: 32, 2>}, {transform_indices = @transform_4, window_bounds = array<i64: 1, 32, 16, 16>}]} {
    %c0 = arith.constant 0 : index
    %c0_0 = arith.constant 0 : index
    %c0_1 = arith.constant 0 : index
    %c0_2 = arith.constant 0 : index
    %0 = vector.load %arg2[%c0, %c0_0, %c0_1, %c0_2] : memref<1x32x16x16xf32, #tpu.memory_space<vmem>>, vector<1x1x16x16xf32>
    %1 = vector.shape_cast %0 : vector<1x1x16x16xf32> to vector<16x16xf32>
    %2 = vector.shape_cast %1 : vector<16x16xf32> to vector<1x16x16xf32>
    %cst = arith.constant dense<0xFF800000> : vector<1xf32>
    %3 = vector.multi_reduction <maximumf>, %2, %cst [1, 2] : vector<1x16x16xf32> to vector<1xf32>
    %4 = vector.shape_cast %3 : vector<1xf32> to vector<1x1x1xf32>
    %5 = vector.extract %4[0, 0, 0] : f32 from vector<1x1x1xf32>
    %6 = vector.broadcast %5 : f32 to vector<1x1xf32>
    %c0_3 = arith.constant 0 : index
    %c0_4 = arith.constant 0 : index
    %7 = vector.load %arg6[%c0_3, %c0_4] : memref<32x2xf32, #tpu.memory_space<vmem>>, vector<1x1xf32>
    tpu.vector_store %arg6[%c0_3, %c0_4], %6 {strides = array<i32>} : memref<32x2xf32, #tpu.memory_space<vmem>>, vector<1x1xf32>,
    %8 = vector.shape_cast %1 : vector<16x16xf32> to vector<1x16x16xf32>
    %cst_5 = arith.constant dense<0.000000e+00> : vector<1xf32>
    %9 = vector.multi_reduction <add>, %8, %cst_5 [1, 2] : vector<1x16x16xf32> to vector<1xf32>
    %10 = vector.shape_cast %9 : vector<1xf32> to vector<1x1x1xf32>
    %11 = vector.extract %10[0, 0, 0] : f32 from vector<1x1x1xf32>
    %12 = vector.broadcast %11 : f32 to vector<1x1xf32>
    %cst_6 = arith.constant 2.560000e+02 : f32
    %13 = vector.broadcast %cst_6 : f32 to vector<1x1xf32>
    %14 = arith.divf %12, %13 : vector<1x1xf32>
    %c0_7 = arith.constant 0 : index
    %c1 = arith.constant 1 : index
    %15 = vector.load %arg6[%c0_7, %c1] : memref<32x2xf32, #tpu.memory_space<vmem>>, vector<1x1xf32>
    tpu.vector_store %arg6[%c0_7, %c1], %14 {strides = array<i32>} : memref<32x2xf32, #tpu.memory_space<vmem>>, vector<1x1xf32>,
    %c0_8 = arith.constant 0 : index
    %c1_9 = arith.constant 1 : index
    %c0_10 = arith.constant 0 : index
    %c0_11 = arith.constant 0 : index
    %16 = vector.load %arg2[%c0_8, %c1_9, %c0_10, %c0_11] : memref<1x32x16x16xf32, #tpu.memory_space<vmem>>, vector<1x1x16x16xf32>
    %17 = vector.shape_cast %16 : vector<1x1x16x16xf32> to vector<16x16xf32>
    %18 = vector.shape_cast %17 : vector<16x16xf32> to vector<1x16x16xf32>
    %cst_12 = arith.constant dense<0xFF800000> : vector<1xf32>
    %19 = vector.multi_reduction <maximumf>, %18, %cst_12 [1, 2] : vector<1x16x16xf32> to vector<1xf32>
    %20 = vector.shape_cast %19 : vector<1xf32> to vector<1x1x1xf32>
    %21 = vector.extract %20[0, 0, 0] : f32 from vector<1x1x1xf32>
    %22 = vector.broadcast %21 : f32 to vector<1x1xf32>
    %c1_13 = arith.constant 1 : index
    %c0_14 = arith.constant 0 : index
    %23 = vector.load %arg6[%c1_13, %c0_14] : memref<32x2xf32, #tpu.memory_space<vmem>>, vector<1x1xf32>
    tpu.vector_store %arg6[%c1_13, %c0_14], %22 {strides = array<i32>} : memref<32x2xf32, #tpu.memory_space<vmem>>, vector<1x1xf32>,
    %24 = vector.shape_cast %17 : vector<16x16xf32> to vector<1x16x16xf32>
    %cst_15 = arith.constant dense<0.000000e+00> : vector<1xf32>
    %25 = vector.multi_reduction <add>, %24, %cst_15 [1, 2] : vector<1x16x16xf32> to vector<1xf32>
    %26 = vector.shape_cast %25 : vector<1xf32> to vector<1x1x1xf32>
    %27 = vector.extract %26[0, 0, 0] : f32 from vector<1x1x1xf32>
    %28 = vector.broadcast %27 : f32 to vector<1x1xf32>
    %cst_16 = arith.constant 2.560000e+02 : f32
    %29 = vector.broadcast %cst_16 : f32 to vector<1x1xf32>
    %30 = arith.divf %28, %29 : vector<1x1xf32>
    %c1_17 = arith.constant 1 : index
    %c1_18 = arith.constant 1 : index
    %31 = vector.load %arg6[%c1_17, %c1_18] : memref<32x2xf32, #tpu.memory_space<vmem>>, vector<1x1xf32>
    tpu.vector_store %arg6[%c1_17, %c1_18], %30 {strides = array<i32>} : memref<32x2xf32, #tpu.memory_space<vmem>>, vector<1x1xf32>,
    %c0_19 = arith.constant 0 : index
    %c2 = arith.constant 2 : index
    %c0_20 = arith.constant 0 : index
    %c0_21 = arith.constant 0 : index
    %32 = vector.load %arg2[%c0_19, %c2, %c0_20, %c0_21] : memref<1x32x16x16xf32, #tpu.memory_space<vmem>>, vector<1x1x16x16xf32>
    %33 = vector.shape_cast %32 : vector<1x1x16x16xf32> to vector<16x16xf32>
    %34 = vector.shape_cast %33 : vector<16x16xf32> to vector<1x16x16xf32>
    %cst_22 = arith.constant dense<0xFF800000> : vector<1xf32>
    %35 = vector.multi_reduction <maximumf>, %34, %cst_22 [1, 2] : vector<1x16x16xf32> to vector<1xf32>
    %36 = vector.shape_cast %35 : vector<1xf32> to vector<1x1x1xf32>
    %37 = vector.extract %36[0, 0, 0] : f32 from vector<1x1x1xf32>
    %38 = vector.broadcast %37 : f32 to vector<1x1xf32>
    %c2_23 = arith.constant 2 : index
    %c0_24 = arith.constant 0 : index
    %39 = vector.load %arg6[%c2_23, %c0_24] : memref<32x2xf32, #tpu.memory_space<vmem>>, vector<1x1xf32>
    tpu.vector_store %arg6[%c2_23, %c0_24], %38 {strides = array<i32>} : memref<32x2xf32, #tpu.memory_space<vmem>>, vector<1x1xf32>,
    %40 = vector.shape_cast %33 : vector<16x16xf32> to vector<1x16x16xf32>
    %cst_25 = arith.constant dense<0.000000e+00> : vector<1xf32>
    %41 = vector.multi_reduction <add>, %40, %cst_25 [1, 2] : vector<1x16x16xf32> to vector<1xf32>
    %42 = vector.shape_cast %41 : vector<1xf32> to vector<1x1x1xf32>
    %43 = vector.extract %42[0, 0, 0] : f32 from vector<1x1x1xf32>
    %44 = vector.broadcast %43 : f32 to vector<1x1xf32>
    %cst_26 = arith.constant 2.560000e+02 : f32
    %45 = vector.broadcast %cst_26 : f32 to vector<1x1xf32>
    %46 = arith.divf %44, %45 : vector<1x1xf32>
    %c2_27 = arith.constant 2 : index
    %c1_28 = arith.constant 1 : index
    %47 = vector.load %arg6[%c2_27, %c1_28] : memref<32x2xf32, #tpu.memory_space<vmem>>, vector<1x1xf32>
    tpu.vector_store %arg6[%c2_27, %c1_28], %46 {strides = array<i32>} : memref<32x2xf32, #tpu.memory_space<vmem>>, vector<1x1xf32>,
    %c0_29 = arith.constant 0 : index
    %c3 = arith.constant 3 : index
    %c0_30 = arith.constant 0 : index
    %c0_31 = arith.constant 0 : index
    %48 = vector.load %arg2[%c0_29, %c3, %c0_30, %c0_31] : memref<1x32x16x16xf32, #tpu.memory_space<vmem>>, vector<1x1x16x16xf32>
    %49 = vector.shape_cast %48 : vector<1x1x16x16xf32> to vector<16x16xf32>
    %50 = vector.shape_cast %49 : vector<16x16xf32> to vector<1x16x16xf32>
    %cst_32 = arith.constant dense<0xFF800000> : vector<1xf32>
    %51 = vector.multi_reduction <maximumf>, %50, %cst_32 [1, 2] : vector<1x16x16xf32> to vector<1xf32>
    %52 = vector.shape_cast %51 : vector<1xf32> to vector<1x1x1xf32>
    %53 = vector.extract %52[0, 0, 0] : f32 from vector<1x1x1xf32>
    %54 = vector.broadcast %53 : f32 to vector<1x1xf32>
    %c3_33 = arith.constant 3 : index
    %c0_34 = arith.constant 0 : index
    %55 = vector.load %arg6[%c3_33, %c0_34] : memref<32x2xf32, #tpu.memory_space<vmem>>, vector<1x1xf32>
    tpu.vector_store %arg6[%c3_33, %c0_34], %54 {strides = array<i32>} : memref<32x2xf32, #tpu.memory_space<vmem>>, vector<1x1xf32>,
    %56 = vector.shape_cast %49 : vector<16x16xf32> to vector<1x16x16xf32>
    %cst_35 = arith.constant dense<0.000000e+00> : vector<1xf32>
    %57 = vector.multi_reduction <add>, %56, %cst_35 [1, 2] : vector<1x16x16xf32> to vector<1xf32>
    %58 = vector.shape_cast %57 : vector<1xf32> to vector<1x1x1xf32>
    %59 = vector.extract %58[0, 0, 0] : f32 from vector<1x1x1xf32>
    %60 = vector.broadcast %59 : f32 to vector<1x1xf32>
    %cst_36 = arith.constant 2.560000e+02 : f32
    %61 = vector.broadcast %cst_36 : f32 to vector<1x1xf32>
    %62 = arith.divf %60, %61 : vector<1x1xf32>
    %c3_37 = arith.constant 3 : index
    %c1_38 = arith.constant 1 : index
    %63 = vector.load %arg6[%c3_37, %c1_38] : memref<32x2xf32, #tpu.memory_space<vmem>>, vector<1x1xf32>
    tpu.vector_store %arg6[%c3_37, %c1_38], %62 {strides = array<i32>} : memref<32x2xf32, #tpu.memory_space<vmem>>, vector<1x1xf32>,
    %c0_39 = arith.constant 0 : index
    %c4 = arith.constant 4 : index
    %c0_40 = arith.constant 0 : index
    %c0_41 = arith.constant 0 : index
    %64 = vector.load %arg2[%c0_39, %c4, %c0_40, %c0_41] : memref<1x32x16x16xf32, #tpu.memory_space<vmem>>, vector<1x1x16x16xf32>
    %65 = vector.shape_cast %64 : vector<1x1x16x16xf32> to vector<16x16xf32>
    %66 = vector.shape_cast %65 : vector<16x16xf32> to vector<1x16x16xf32>
    %cst_42 = arith.constant dense<0xFF800000> : vector<1xf32>
    %67 = vector.multi_reduction <maximumf>, %66, %cst_42 [1, 2] : vector<1x16x16xf32> to vector<1xf32>
    %68 = vector.shape_cast %67 : vector<1xf32> to vector<1x1x1xf32>
    %69 = vector.extract %68[0, 0, 0] : f32 from vector<1x1x1xf32>
    %70 = vector.broadcast %69 : f32 to vector<1x1xf32>
    %c4_43 = arith.constant 4 : index
    %c0_44 = arith.constant 0 : index
    %71 = vector.load %arg6[%c4_43, %c0_44] : memref<32x2xf32, #tpu.memory_space<vmem>>, vector<1x1xf32>
    tpu.vector_store %arg6[%c4_43, %c0_44], %70 {strides = array<i32>} : memref<32x2xf32, #tpu.memory_space<vmem>>, vector<1x1xf32>,
    %72 = vector.shape_cast %65 : vector<16x16xf32> to vector<1x16x16xf32>
    %cst_45 = arith.constant dense<0.000000e+00> : vector<1xf32>
    %73 = vector.multi_reduction <add>, %72, %cst_45 [1, 2] : vector<1x16x16xf32> to vector<1xf32>
    %74 = vector.shape_cast %73 : vector<1xf32> to vector<1x1x1xf32>
    %75 = vector.extract %74[0, 0, 0] : f32 from vector<1x1x1xf32>
    %76 = vector.broadcast %75 : f32 to vector<1x1xf32>
    %cst_46 = arith.constant 2.560000e+02 : f32
    %77 = vector.broadcast %cst_46 : f32 to vector<1x1xf32>
    %78 = arith.divf %76, %77 : vector<1x1xf32>
    %c4_47 = arith.constant 4 : index
    %c1_48 = arith.constant 1 : index
    %79 = vector.load %arg6[%c4_47, %c1_48] : memref<32x2xf32, #tpu.memory_space<vmem>>, vector<1x1xf32>
    tpu.vector_store %arg6[%c4_47, %c1_48], %78 {strides = array<i32>} : memref<32x2xf32, #tpu.memory_space<vmem>>, vector<1x1xf32>,
    %c0_49 = arith.constant 0 : index
    %c5 = arith.constant 5 : index
    %c0_50 = arith.constant 0 : index
    %c0_51 = arith.constant 0 : index
    %80 = vector.load %arg2[%c0_49, %c5, %c0_50, %c0_51] : memref<1x32x16x16xf32, #tpu.memory_space<vmem>>, vector<1x1x16x16xf32>
    %81 = vector.shape_cast %80 : vector<1x1x16x16xf32> to vector<16x16xf32>
    %82 = vector.shape_cast %81 : vector<16x16xf32> to vector<1x16x16xf32>
    %cst_52 = arith.constant dense<0xFF800000> : vector<1xf32>
    %83 = vector.multi_reduction <maximumf>, %82, %cst_52 [1, 2] : vector<1x16x16xf32> to vector<1xf32>
    %84 = vector.shape_cast %83 : vector<1xf32> to vector<1x1x1xf32>
    %85 = vector.extract %84[0, 0, 0] : f32 from vector<1x1x1xf32>
    %86 = vector.broadcast %85 : f32 to vector<1x1xf32>
    %c5_53 = arith.constant 5 : index
    %c0_54 = arith.constant 0 : index
    %87 = vector.load %arg6[%c5_53, %c0_54] : memref<32x2xf32, #tpu.memory_space<vmem>>, vector<1x1xf32>
    tpu.vector_store %arg6[%c5_53, %c0_54], %86 {strides = array<i32>} : memref<32x2xf32, #tpu.memory_space<vmem>>, vector<1x1xf32>,
    %88 = vector.shape_cast %81 : vector<16x16xf32> to vector<1x16x16xf32>
    %cst_55 = arith.constant dense<0.000000e+00> : vector<1xf32>
    %89 = vector.multi_reduction <add>, %88, %cst_55 [1, 2] : vector<1x16x16xf32> to vector<1xf32>
    %90 = vector.shape_cast %89 : vector<1xf32> to vector<1x1x1xf32>
    %91 = vector.extract %90[0, 0, 0] : f32 from vector<1x1x1xf32>
    %92 = vector.broadcast %91 : f32 to vector<1x1xf32>
    %cst_56 = arith.constant 2.560000e+02 : f32
    %93 = vector.broadcast %cst_56 : f32 to vector<1x1xf32>
    %94 = arith.divf %92, %93 : vector<1x1xf32>
    %c5_57 = arith.constant 5 : index
    %c1_58 = arith.constant 1 : index
    %95 = vector.load %arg6[%c5_57, %c1_58] : memref<32x2xf32, #tpu.memory_space<vmem>>, vector<1x1xf32>
    tpu.vector_store %arg6[%c5_57, %c1_58], %94 {strides = array<i32>} : memref<32x2xf32, #tpu.memory_space<vmem>>, vector<1x1xf32>,
    %c0_59 = arith.constant 0 : index
    %c6 = arith.constant 6 : index
    %c0_60 = arith.constant 0 : index
    %c0_61 = arith.constant 0 : index
    %96 = vector.load %arg2[%c0_59, %c6, %c0_60, %c0_61] : memref<1x32x16x16xf32, #tpu.memory_space<vmem>>, vector<1x1x16x16xf32>
    %97 = vector.shape_cast %96 : vector<1x1x16x16xf32> to vector<16x16xf32>
    %98 = vector.shape_cast %97 : vector<16x16xf32> to vector<1x16x16xf32>
    %cst_62 = arith.constant dense<0xFF800000> : vector<1xf32>
    %99 = vector.multi_reduction <maximumf>, %98, %cst_62 [1, 2] : vector<1x16x16xf32> to vector<1xf32>
    %100 = vector.shape_cast %99 : vector<1xf32> to vector<1x1x1xf32>
    %101 = vector.extract %100[0, 0, 0] : f32 from vector<1x1x1xf32>
    %102 = vector.broadcast %101 : f32 to vector<1x1xf32>
    %c6_63 = arith.constant 6 : index
    %c0_64 = arith.constant 0 : index
    %103 = vector.load %arg6[%c6_63, %c0_64] : memref<32x2xf32, #tpu.memory_space<vmem>>, vector<1x1xf32>
    tpu.vector_store %arg6[%c6_63, %c0_64], %102 {strides = array<i32>} : memref<32x2xf32, #tpu.memory_space<vmem>>, vector<1x1xf32>,
    %104 = vector.shape_cast %97 : vector<16x16xf32> to vector<1x16x16xf32>
    %cst_65 = arith.constant dense<0.000000e+00> : vector<1xf32>
    %105 = vector.multi_reduction <add>, %104, %cst_65 [1, 2] : vector<1x16x16xf32> to vector<1xf32>
    %106 = vector.shape_cast %105 : vector<1xf32> to vector<1x1x1xf32>
    %107 = vector.extract %106[0, 0, 0] : f32 from vector<1x1x1xf32>
    %108 = vector.broadcast %107 : f32 to vector<1x1xf32>
    %cst_66 = arith.constant 2.560000e+02 : f32
    %109 = vector.broadcast %cst_66 : f32 to vector<1x1xf32>
    %110 = arith.divf %108, %109 : vector<1x1xf32>
    %c6_67 = arith.constant 6 : index
    %c1_68 = arith.constant 1 : index
    %111 = vector.load %arg6[%c6_67, %c1_68] : memref<32x2xf32, #tpu.memory_space<vmem>>, vector<1x1xf32>
    tpu.vector_store %arg6[%c6_67, %c1_68], %110 {strides = array<i32>} : memref<32x2xf32, #tpu.memory_space<vmem>>, vector<1x1xf32>,
    %c0_69 = arith.constant 0 : index
    %c7 = arith.constant 7 : index
    %c0_70 = arith.constant 0 : index
    %c0_71 = arith.constant 0 : index
    %112 = vector.load %arg2[%c0_69, %c7, %c0_70, %c0_71] : memref<1x32x16x16xf32, #tpu.memory_space<vmem>>, vector<1x1x16x16xf32>
    %113 = vector.shape_cast %112 : vector<1x1x16x16xf32> to vector<16x16xf32>
    %114 = vector.shape_cast %113 : vector<16x16xf32> to vector<1x16x16xf32>
    %cst_72 = arith.constant dense<0xFF800000> : vector<1xf32>
    %115 = vector.multi_reduction <maximumf>, %114, %cst_72 [1, 2] : vector<1x16x16xf32> to vector<1xf32>
    %116 = vector.shape_cast %115 : vector<1xf32> to vector<1x1x1xf32>
    %117 = vector.extract %116[0, 0, 0] : f32 from vector<1x1x1xf32>
    %118 = vector.broadcast %117 : f32 to vector<1x1xf32>
    %c7_73 = arith.constant 7 : index
    %c0_74 = arith.constant 0 : index
    %119 = vector.load %arg6[%c7_73, %c0_74] : memref<32x2xf32, #tpu.memory_space<vmem>>, vector<1x1xf32>
    tpu.vector_store %arg6[%c7_73, %c0_74], %118 {strides = array<i32>} : memref<32x2xf32, #tpu.memory_space<vmem>>, vector<1x1xf32>,
    %120 = vector.shape_cast %113 : vector<16x16xf32> to vector<1x16x16xf32>
    %cst_75 = arith.constant dense<0.000000e+00> : vector<1xf32>
    %121 = vector.multi_reduction <add>, %120, %cst_75 [1, 2] : vector<1x16x16xf32> to vector<1xf32>
    %122 = vector.shape_cast %121 : vector<1xf32> to vector<1x1x1xf32>
    %123 = vector.extract %122[0, 0, 0] : f32 from vector<1x1x1xf32>
    %124 = vector.broadcast %123 : f32 to vector<1x1xf32>
    %cst_76 = arith.constant 2.560000e+02 : f32
    %125 = vector.broadcast %cst_76 : f32 to vector<1x1xf32>
    %126 = arith.divf %124, %125 : vector<1x1xf32>
    %c7_77 = arith.constant 7 : index
    %c1_78 = arith.constant 1 : index
    %127 = vector.load %arg6[%c7_77, %c1_78] : memref<32x2xf32, #tpu.memory_space<vmem>>, vector<1x1xf32>
    tpu.vector_store %arg6[%c7_77, %c1_78], %126 {strides = array<i32>} : memref<32x2xf32, #tpu.memory_space<vmem>>, vector<1x1xf32>,
    %c0_79 = arith.constant 0 : index
    %c8 = arith.constant 8 : index
    %c0_80 = arith.constant 0 : index
    %c0_81 = arith.constant 0 : index
    %128 = vector.load %arg2[%c0_79, %c8, %c0_80, %c0_81] : memref<1x32x16x16xf32, #tpu.memory_space<vmem>>, vector<1x1x16x16xf32>
    %129 = vector.shape_cast %128 : vector<1x1x16x16xf32> to vector<16x16xf32>
    %130 = vector.shape_cast %129 : vector<16x16xf32> to vector<1x16x16xf32>
    %cst_82 = arith.constant dense<0xFF800000> : vector<1xf32>
    %131 = vector.multi_reduction <maximumf>, %130, %cst_82 [1, 2] : vector<1x16x16xf32> to vector<1xf32>
    %132 = vector.shape_cast %131 : vector<1xf32> to vector<1x1x1xf32>
    %133 = vector.extract %132[0, 0, 0] : f32 from vector<1x1x1xf32>
    %134 = vector.broadcast %133 : f32 to vector<1x1xf32>
    %c8_83 = arith.constant 8 : index
    %c0_84 = arith.constant 0 : index
    %135 = vector.load %arg6[%c8_83, %c0_84] : memref<32x2xf32, #tpu.memory_space<vmem>>, vector<1x1xf32>
    tpu.vector_store %arg6[%c8_83, %c0_84], %134 {strides = array<i32>} : memref<32x2xf32, #tpu.memory_space<vmem>>, vector<1x1xf32>,
    %136 = vector.shape_cast %129 : vector<16x16xf32> to vector<1x16x16xf32>
    %cst_85 = arith.constant dense<0.000000e+00> : vector<1xf32>
    %137 = vector.multi_reduction <add>, %136, %cst_85 [1, 2] : vector<1x16x16xf32> to vector<1xf32>
    %138 = vector.shape_cast %137 : vector<1xf32> to vector<1x1x1xf32>
    %139 = vector.extract %138[0, 0, 0] : f32 from vector<1x1x1xf32>
    %140 = vector.broadcast %139 : f32 to vector<1x1xf32>
    %cst_86 = arith.constant 2.560000e+02 : f32
    %141 = vector.broadcast %cst_86 : f32 to vector<1x1xf32>
    %142 = arith.divf %140, %141 : vector<1x1xf32>
    %c8_87 = arith.constant 8 : index
    %c1_88 = arith.constant 1 : index
    %143 = vector.load %arg6[%c8_87, %c1_88] : memref<32x2xf32, #tpu.memory_space<vmem>>, vector<1x1xf32>
    tpu.vector_store %arg6[%c8_87, %c1_88], %142 {strides = array<i32>} : memref<32x2xf32, #tpu.memory_space<vmem>>, vector<1x1xf32>,
    %c0_89 = arith.constant 0 : index
    %c9 = arith.constant 9 : index
    %c0_90 = arith.constant 0 : index
    %c0_91 = arith.constant 0 : index
    %144 = vector.load %arg2[%c0_89, %c9, %c0_90, %c0_91] : memref<1x32x16x16xf32, #tpu.memory_space<vmem>>, vector<1x1x16x16xf32>
    %145 = vector.shape_cast %144 : vector<1x1x16x16xf32> to vector<16x16xf32>
    %146 = vector.shape_cast %145 : vector<16x16xf32> to vector<1x16x16xf32>
    %cst_92 = arith.constant dense<0xFF800000> : vector<1xf32>
    %147 = vector.multi_reduction <maximumf>, %146, %cst_92 [1, 2] : vector<1x16x16xf32> to vector<1xf32>
    %148 = vector.shape_cast %147 : vector<1xf32> to vector<1x1x1xf32>
    %149 = vector.extract %148[0, 0, 0] : f32 from vector<1x1x1xf32>
    %150 = vector.broadcast %149 : f32 to vector<1x1xf32>
    %c9_93 = arith.constant 9 : index
    %c0_94 = arith.constant 0 : index
    %151 = vector.load %arg6[%c9_93, %c0_94] : memref<32x2xf32, #tpu.memory_space<vmem>>, vector<1x1xf32>
    tpu.vector_store %arg6[%c9_93, %c0_94], %150 {strides = array<i32>} : memref<32x2xf32, #tpu.memory_space<vmem>>, vector<1x1xf32>,
    %152 = vector.shape_cast %145 : vector<16x16xf32> to vector<1x16x16xf32>
    %cst_95 = arith.constant dense<0.000000e+00> : vector<1xf32>
    %153 = vector.multi_reduction <add>, %152, %cst_95 [1, 2] : vector<1x16x16xf32> to vector<1xf32>
    %154 = vector.shape_cast %153 : vector<1xf32> to vector<1x1x1xf32>
    %155 = vector.extract %154[0, 0, 0] : f32 from vector<1x1x1xf32>
    %156 = vector.broadcast %155 : f32 to vector<1x1xf32>
    %cst_96 = arith.constant 2.560000e+02 : f32
    %157 = vector.broadcast %cst_96 : f32 to vector<1x1xf32>
    %158 = arith.divf %156, %157 : vector<1x1xf32>
    %c9_97 = arith.constant 9 : index
    %c1_98 = arith.constant 1 : index
    %159 = vector.load %arg6[%c9_97, %c1_98] : memref<32x2xf32, #tpu.memory_space<vmem>>, vector<1x1xf32>
    tpu.vector_store %arg6[%c9_97, %c1_98], %158 {strides = array<i32>} : memref<32x2xf32, #tpu.memory_space<vmem>>, vector<1x1xf32>,
    %c0_99 = arith.constant 0 : index
    %c10 = arith.constant 10 : index
    %c0_100 = arith.constant 0 : index
    %c0_101 = arith.constant 0 : index
    %160 = vector.load %arg2[%c0_99, %c10, %c0_100, %c0_101] : memref<1x32x16x16xf32, #tpu.memory_space<vmem>>, vector<1x1x16x16xf32>
    %161 = vector.shape_cast %160 : vector<1x1x16x16xf32> to vector<16x16xf32>
    %162 = vector.shape_cast %161 : vector<16x16xf32> to vector<1x16x16xf32>
    %cst_102 = arith.constant dense<0xFF800000> : vector<1xf32>
    %163 = vector.multi_reduction <maximumf>, %162, %cst_102 [1, 2] : vector<1x16x16xf32> to vector<1xf32>
    %164 = vector.shape_cast %163 : vector<1xf32> to vector<1x1x1xf32>
    %165 = vector.extract %164[0, 0, 0] : f32 from vector<1x1x1xf32>
    %166 = vector.broadcast %165 : f32 to vector<1x1xf32>
    %c10_103 = arith.constant 10 : index
    %c0_104 = arith.constant 0 : index
    %167 = vector.load %arg6[%c10_103, %c0_104] : memref<32x2xf32, #tpu.memory_space<vmem>>, vector<1x1xf32>
    tpu.vector_store %arg6[%c10_103, %c0_104], %166 {strides = array<i32>} : memref<32x2xf32, #tpu.memory_space<vmem>>, vector<1x1xf32>,
    %168 = vector.shape_cast %161 : vector<16x16xf32> to vector<1x16x16xf32>
    %cst_105 = arith.constant dense<0.000000e+00> : vector<1xf32>
    %169 = vector.multi_reduction <add>, %168, %cst_105 [1, 2] : vector<1x16x16xf32> to vector<1xf32>
    %170 = vector.shape_cast %169 : vector<1xf32> to vector<1x1x1xf32>
    %171 = vector.extract %170[0, 0, 0] : f32 from vector<1x1x1xf32>
    %172 = vector.broadcast %171 : f32 to vector<1x1xf32>
    %cst_106 = arith.constant 2.560000e+02 : f32
    %173 = vector.broadcast %cst_106 : f32 to vector<1x1xf32>
    %174 = arith.divf %172, %173 : vector<1x1xf32>
    %c10_107 = arith.constant 10 : index
    %c1_108 = arith.constant 1 : index
    %175 = vector.load %arg6[%c10_107, %c1_108] : memref<32x2xf32, #tpu.memory_space<vmem>>, vector<1x1xf32>
    tpu.vector_store %arg6[%c10_107, %c1_108], %174 {strides = array<i32>} : memref<32x2xf32, #tpu.memory_space<vmem>>, vector<1x1xf32>,
    %c0_109 = arith.constant 0 : index
    %c11 = arith.constant 11 : index
    %c0_110 = arith.constant 0 : index
    %c0_111 = arith.constant 0 : index
    %176 = vector.load %arg2[%c0_109, %c11, %c0_110, %c0_111] : memref<1x32x16x16xf32, #tpu.memory_space<vmem>>, vector<1x1x16x16xf32>
    %177 = vector.shape_cast %176 : vector<1x1x16x16xf32> to vector<16x16xf32>
    %178 = vector.shape_cast %177 : vector<16x16xf32> to vector<1x16x16xf32>
    %cst_112 = arith.constant dense<0xFF800000> : vector<1xf32>
    %179 = vector.multi_reduction <maximumf>, %178, %cst_112 [1, 2] : vector<1x16x16xf32> to vector<1xf32>
    %180 = vector.shape_cast %179 : vector<1xf32> to vector<1x1x1xf32>
    %181 = vector.extract %180[0, 0, 0] : f32 from vector<1x1x1xf32>
    %182 = vector.broadcast %181 : f32 to vector<1x1xf32>
    %c11_113 = arith.constant 11 : index
    %c0_114 = arith.constant 0 : index
    %183 = vector.load %arg6[%c11_113, %c0_114] : memref<32x2xf32, #tpu.memory_space<vmem>>, vector<1x1xf32>
    tpu.vector_store %arg6[%c11_113, %c0_114], %182 {strides = array<i32>} : memref<32x2xf32, #tpu.memory_space<vmem>>, vector<1x1xf32>,
    %184 = vector.shape_cast %177 : vector<16x16xf32> to vector<1x16x16xf32>
    %cst_115 = arith.constant dense<0.000000e+00> : vector<1xf32>
    %185 = vector.multi_reduction <add>, %184, %cst_115 [1, 2] : vector<1x16x16xf32> to vector<1xf32>
    %186 = vector.shape_cast %185 : vector<1xf32> to vector<1x1x1xf32>
    %187 = vector.extract %186[0, 0, 0] : f32 from vector<1x1x1xf32>
    %188 = vector.broadcast %187 : f32 to vector<1x1xf32>
    %cst_116 = arith.constant 2.560000e+02 : f32
    %189 = vector.broadcast %cst_116 : f32 to vector<1x1xf32>
    %190 = arith.divf %188, %189 : vector<1x1xf32>
    %c11_117 = arith.constant 11 : index
    %c1_118 = arith.constant 1 : index
    %191 = vector.load %arg6[%c11_117, %c1_118] : memref<32x2xf32, #tpu.memory_space<vmem>>, vector<1x1xf32>
    tpu.vector_store %arg6[%c11_117, %c1_118], %190 {strides = array<i32>} : memref<32x2xf32, #tpu.memory_space<vmem>>, vector<1x1xf32>,
    %c0_119 = arith.constant 0 : index
    %c12 = arith.constant 12 : index
    %c0_120 = arith.constant 0 : index
    %c0_121 = arith.constant 0 : index
    %192 = vector.load %arg2[%c0_119, %c12, %c0_120, %c0_121] : memref<1x32x16x16xf32, #tpu.memory_space<vmem>>, vector<1x1x16x16xf32>
    %193 = vector.shape_cast %192 : vector<1x1x16x16xf32> to vector<16x16xf32>
    %194 = vector.shape_cast %193 : vector<16x16xf32> to vector<1x16x16xf32>
    %cst_122 = arith.constant dense<0xFF800000> : vector<1xf32>
    %195 = vector.multi_reduction <maximumf>, %194, %cst_122 [1, 2] : vector<1x16x16xf32> to vector<1xf32>
    %196 = vector.shape_cast %195 : vector<1xf32> to vector<1x1x1xf32>
    %197 = vector.extract %196[0, 0, 0] : f32 from vector<1x1x1xf32>
    %198 = vector.broadcast %197 : f32 to vector<1x1xf32>
    %c12_123 = arith.constant 12 : index
    %c0_124 = arith.constant 0 : index
    %199 = vector.load %arg6[%c12_123, %c0_124] : memref<32x2xf32, #tpu.memory_space<vmem>>, vector<1x1xf32>
    tpu.vector_store %arg6[%c12_123, %c0_124], %198 {strides = array<i32>} : memref<32x2xf32, #tpu.memory_space<vmem>>, vector<1x1xf32>,
    %200 = vector.shape_cast %193 : vector<16x16xf32> to vector<1x16x16xf32>
    %cst_125 = arith.constant dense<0.000000e+00> : vector<1xf32>
    %201 = vector.multi_reduction <add>, %200, %cst_125 [1, 2] : vector<1x16x16xf32> to vector<1xf32>
    %202 = vector.shape_cast %201 : vector<1xf32> to vector<1x1x1xf32>
    %203 = vector.extract %202[0, 0, 0] : f32 from vector<1x1x1xf32>
    %204 = vector.broadcast %203 : f32 to vector<1x1xf32>
    %cst_126 = arith.constant 2.560000e+02 : f32
    %205 = vector.broadcast %cst_126 : f32 to vector<1x1xf32>
    %206 = arith.divf %204, %205 : vector<1x1xf32>
    %c12_127 = arith.constant 12 : index
    %c1_128 = arith.constant 1 : index
    %207 = vector.load %arg6[%c12_127, %c1_128] : memref<32x2xf32, #tpu.memory_space<vmem>>, vector<1x1xf32>
    tpu.vector_store %arg6[%c12_127, %c1_128], %206 {strides = array<i32>} : memref<32x2xf32, #tpu.memory_space<vmem>>, vector<1x1xf32>,
    %c0_129 = arith.constant 0 : index
    %c13 = arith.constant 13 : index
    %c0_130 = arith.constant 0 : index
    %c0_131 = arith.constant 0 : index
    %208 = vector.load %arg2[%c0_129, %c13, %c0_130, %c0_131] : memref<1x32x16x16xf32, #tpu.memory_space<vmem>>, vector<1x1x16x16xf32>
    %209 = vector.shape_cast %208 : vector<1x1x16x16xf32> to vector<16x16xf32>
    %210 = vector.shape_cast %209 : vector<16x16xf32> to vector<1x16x16xf32>
    %cst_132 = arith.constant dense<0xFF800000> : vector<1xf32>
    %211 = vector.multi_reduction <maximumf>, %210, %cst_132 [1, 2] : vector<1x16x16xf32> to vector<1xf32>
    %212 = vector.shape_cast %211 : vector<1xf32> to vector<1x1x1xf32>
    %213 = vector.extract %212[0, 0, 0] : f32 from vector<1x1x1xf32>
    %214 = vector.broadcast %213 : f32 to vector<1x1xf32>
    %c13_133 = arith.constant 13 : index
    %c0_134 = arith.constant 0 : index
    %215 = vector.load %arg6[%c13_133, %c0_134] : memref<32x2xf32, #tpu.memory_space<vmem>>, vector<1x1xf32>
    tpu.vector_store %arg6[%c13_133, %c0_134], %214 {strides = array<i32>} : memref<32x2xf32, #tpu.memory_space<vmem>>, vector<1x1xf32>,
    %216 = vector.shape_cast %209 : vector<16x16xf32> to vector<1x16x16xf32>
    %cst_135 = arith.constant dense<0.000000e+00> : vector<1xf32>
    %217 = vector.multi_reduction <add>, %216, %cst_135 [1, 2] : vector<1x16x16xf32> to vector<1xf32>
    %218 = vector.shape_cast %217 : vector<1xf32> to vector<1x1x1xf32>
    %219 = vector.extract %218[0, 0, 0] : f32 from vector<1x1x1xf32>
    %220 = vector.broadcast %219 : f32 to vector<1x1xf32>
    %cst_136 = arith.constant 2.560000e+02 : f32
    %221 = vector.broadcast %cst_136 : f32 to vector<1x1xf32>
    %222 = arith.divf %220, %221 : vector<1x1xf32>
    %c13_137 = arith.constant 13 : index
    %c1_138 = arith.constant 1 : index
    %223 = vector.load %arg6[%c13_137, %c1_138] : memref<32x2xf32, #tpu.memory_space<vmem>>, vector<1x1xf32>
    tpu.vector_store %arg6[%c13_137, %c1_138], %222 {strides = array<i32>} : memref<32x2xf32, #tpu.memory_space<vmem>>, vector<1x1xf32>,
    %c0_139 = arith.constant 0 : index
    %c14 = arith.constant 14 : index
    %c0_140 = arith.constant 0 : index
    %c0_141 = arith.constant 0 : index
    %224 = vector.load %arg2[%c0_139, %c14, %c0_140, %c0_141] : memref<1x32x16x16xf32, #tpu.memory_space<vmem>>, vector<1x1x16x16xf32>
    %225 = vector.shape_cast %224 : vector<1x1x16x16xf32> to vector<16x16xf32>
    %226 = vector.shape_cast %225 : vector<16x16xf32> to vector<1x16x16xf32>
    %cst_142 = arith.constant dense<0xFF800000> : vector<1xf32>
    %227 = vector.multi_reduction <maximumf>, %226, %cst_142 [1, 2] : vector<1x16x16xf32> to vector<1xf32>
    %228 = vector.shape_cast %227 : vector<1xf32> to vector<1x1x1xf32>
    %229 = vector.extract %228[0, 0, 0] : f32 from vector<1x1x1xf32>
    %230 = vector.broadcast %229 : f32 to vector<1x1xf32>
    %c14_143 = arith.constant 14 : index
    %c0_144 = arith.constant 0 : index
    %231 = vector.load %arg6[%c14_143, %c0_144] : memref<32x2xf32, #tpu.memory_space<vmem>>, vector<1x1xf32>
    tpu.vector_store %arg6[%c14_143, %c0_144], %230 {strides = array<i32>} : memref<32x2xf32, #tpu.memory_space<vmem>>, vector<1x1xf32>,
    %232 = vector.shape_cast %225 : vector<16x16xf32> to vector<1x16x16xf32>
    %cst_145 = arith.constant dense<0.000000e+00> : vector<1xf32>
    %233 = vector.multi_reduction <add>, %232, %cst_145 [1, 2] : vector<1x16x16xf32> to vector<1xf32>
    %234 = vector.shape_cast %233 : vector<1xf32> to vector<1x1x1xf32>
    %235 = vector.extract %234[0, 0, 0] : f32 from vector<1x1x1xf32>
    %236 = vector.broadcast %235 : f32 to vector<1x1xf32>
    %cst_146 = arith.constant 2.560000e+02 : f32
    %237 = vector.broadcast %cst_146 : f32 to vector<1x1xf32>
    %238 = arith.divf %236, %237 : vector<1x1xf32>
    %c14_147 = arith.constant 14 : index
    %c1_148 = arith.constant 1 : index
    %239 = vector.load %arg6[%c14_147, %c1_148] : memref<32x2xf32, #tpu.memory_space<vmem>>, vector<1x1xf32>
    tpu.vector_store %arg6[%c14_147, %c1_148], %238 {strides = array<i32>} : memref<32x2xf32, #tpu.memory_space<vmem>>, vector<1x1xf32>,
    %c0_149 = arith.constant 0 : index
    %c15 = arith.constant 15 : index
    %c0_150 = arith.constant 0 : index
    %c0_151 = arith.constant 0 : index
    %240 = vector.load %arg2[%c0_149, %c15, %c0_150, %c0_151] : memref<1x32x16x16xf32, #tpu.memory_space<vmem>>, vector<1x1x16x16xf32>
    %241 = vector.shape_cast %240 : vector<1x1x16x16xf32> to vector<16x16xf32>
    %242 = vector.shape_cast %241 : vector<16x16xf32> to vector<1x16x16xf32>
    %cst_152 = arith.constant dense<0xFF800000> : vector<1xf32>
    %243 = vector.multi_reduction <maximumf>, %242, %cst_152 [1, 2] : vector<1x16x16xf32> to vector<1xf32>
    %244 = vector.shape_cast %243 : vector<1xf32> to vector<1x1x1xf32>
    %245 = vector.extract %244[0, 0, 0] : f32 from vector<1x1x1xf32>
    %246 = vector.broadcast %245 : f32 to vector<1x1xf32>
    %c15_153 = arith.constant 15 : index
    %c0_154 = arith.constant 0 : index
    %247 = vector.load %arg6[%c15_153, %c0_154] : memref<32x2xf32, #tpu.memory_space<vmem>>, vector<1x1xf32>
    tpu.vector_store %arg6[%c15_153, %c0_154], %246 {strides = array<i32>} : memref<32x2xf32, #tpu.memory_space<vmem>>, vector<1x1xf32>,
    %248 = vector.shape_cast %241 : vector<16x16xf32> to vector<1x16x16xf32>
    %cst_155 = arith.constant dense<0.000000e+00> : vector<1xf32>
    %249 = vector.multi_reduction <add>, %248, %cst_155 [1, 2] : vector<1x16x16xf32> to vector<1xf32>
    %250 = vector.shape_cast %249 : vector<1xf32> to vector<1x1x1xf32>
    %251 = vector.extract %250[0, 0, 0] : f32 from vector<1x1x1xf32>
    %252 = vector.broadcast %251 : f32 to vector<1x1xf32>
    %cst_156 = arith.constant 2.560000e+02 : f32
    %253 = vector.broadcast %cst_156 : f32 to vector<1x1xf32>
    %254 = arith.divf %252, %253 : vector<1x1xf32>
    %c15_157 = arith.constant 15 : index
    %c1_158 = arith.constant 1 : index
    %255 = vector.load %arg6[%c15_157, %c1_158] : memref<32x2xf32, #tpu.memory_space<vmem>>, vector<1x1xf32>
    tpu.vector_store %arg6[%c15_157, %c1_158], %254 {strides = array<i32>} : memref<32x2xf32, #tpu.memory_space<vmem>>, vector<1x1xf32>,
    %c0_159 = arith.constant 0 : index
    %c16 = arith.constant 16 : index
    %c0_160 = arith.constant 0 : index
    %c0_161 = arith.constant 0 : index
    %256 = vector.load %arg2[%c0_159, %c16, %c0_160, %c0_161] : memref<1x32x16x16xf32, #tpu.memory_space<vmem>>, vector<1x1x16x16xf32>
    %257 = vector.shape_cast %256 : vector<1x1x16x16xf32> to vector<16x16xf32>
    %258 = vector.shape_cast %257 : vector<16x16xf32> to vector<1x16x16xf32>
    %cst_162 = arith.constant dense<0xFF800000> : vector<1xf32>
    %259 = vector.multi_reduction <maximumf>, %258, %cst_162 [1, 2] : vector<1x16x16xf32> to vector<1xf32>
    %260 = vector.shape_cast %259 : vector<1xf32> to vector<1x1x1xf32>
    %261 = vector.extract %260[0, 0, 0] : f32 from vector<1x1x1xf32>
    %262 = vector.broadcast %261 : f32 to vector<1x1xf32>
    %c16_163 = arith.constant 16 : index
    %c0_164 = arith.constant 0 : index
    %263 = vector.load %arg6[%c16_163, %c0_164] : memref<32x2xf32, #tpu.memory_space<vmem>>, vector<1x1xf32>
    tpu.vector_store %arg6[%c16_163, %c0_164], %262 {strides = array<i32>} : memref<32x2xf32, #tpu.memory_space<vmem>>, vector<1x1xf32>,
    %264 = vector.shape_cast %257 : vector<16x16xf32> to vector<1x16x16xf32>
    %cst_165 = arith.constant dense<0.000000e+00> : vector<1xf32>
    %265 = vector.multi_reduction <add>, %264, %cst_165 [1, 2] : vector<1x16x16xf32> to vector<1xf32>
    %266 = vector.shape_cast %265 : vector<1xf32> to vector<1x1x1xf32>
    %267 = vector.extract %266[0, 0, 0] : f32 from vector<1x1x1xf32>
    %268 = vector.broadcast %267 : f32 to vector<1x1xf32>
    %cst_166 = arith.constant 2.560000e+02 : f32
    %269 = vector.broadcast %cst_166 : f32 to vector<1x1xf32>
    %270 = arith.divf %268, %269 : vector<1x1xf32>
    %c16_167 = arith.constant 16 : index
    %c1_168 = arith.constant 1 : index
    %271 = vector.load %arg6[%c16_167, %c1_168] : memref<32x2xf32, #tpu.memory_space<vmem>>, vector<1x1xf32>
    tpu.vector_store %arg6[%c16_167, %c1_168], %270 {strides = array<i32>} : memref<32x2xf32, #tpu.memory_space<vmem>>, vector<1x1xf32>,
    %c0_169 = arith.constant 0 : index
    %c17 = arith.constant 17 : index
    %c0_170 = arith.constant 0 : index
    %c0_171 = arith.constant 0 : index
    %272 = vector.load %arg2[%c0_169, %c17, %c0_170, %c0_171] : memref<1x32x16x16xf32, #tpu.memory_space<vmem>>, vector<1x1x16x16xf32>
    %273 = vector.shape_cast %272 : vector<1x1x16x16xf32> to vector<16x16xf32>
    %274 = vector.shape_cast %273 : vector<16x16xf32> to vector<1x16x16xf32>
    %cst_172 = arith.constant dense<0xFF800000> : vector<1xf32>
    %275 = vector.multi_reduction <maximumf>, %274, %cst_172 [1, 2] : vector<1x16x16xf32> to vector<1xf32>
    %276 = vector.shape_cast %275 : vector<1xf32> to vector<1x1x1xf32>
    %277 = vector.extract %276[0, 0, 0] : f32 from vector<1x1x1xf32>
    %278 = vector.broadcast %277 : f32 to vector<1x1xf32>
    %c17_173 = arith.constant 17 : index
    %c0_174 = arith.constant 0 : index
    %279 = vector.load %arg6[%c17_173, %c0_174] : memref<32x2xf32, #tpu.memory_space<vmem>>, vector<1x1xf32>
    tpu.vector_store %arg6[%c17_173, %c0_174], %278 {strides = array<i32>} : memref<32x2xf32, #tpu.memory_space<vmem>>, vector<1x1xf32>,
    %280 = vector.shape_cast %273 : vector<16x16xf32> to vector<1x16x16xf32>
    %cst_175 = arith.constant dense<0.000000e+00> : vector<1xf32>
    %281 = vector.multi_reduction <add>, %280, %cst_175 [1, 2] : vector<1x16x16xf32> to vector<1xf32>
    %282 = vector.shape_cast %281 : vector<1xf32> to vector<1x1x1xf32>
    %283 = vector.extract %282[0, 0, 0] : f32 from vector<1x1x1xf32>
    %284 = vector.broadcast %283 : f32 to vector<1x1xf32>
    %cst_176 = arith.constant 2.560000e+02 : f32
    %285 = vector.broadcast %cst_176 : f32 to vector<1x1xf32>
    %286 = arith.divf %284, %285 : vector<1x1xf32>
    %c17_177 = arith.constant 17 : index
    %c1_178 = arith.constant 1 : index
    %287 = vector.load %arg6[%c17_177, %c1_178] : memref<32x2xf32, #tpu.memory_space<vmem>>, vector<1x1xf32>
    tpu.vector_store %arg6[%c17_177, %c1_178], %286 {strides = array<i32>} : memref<32x2xf32, #tpu.memory_space<vmem>>, vector<1x1xf32>,
    %c0_179 = arith.constant 0 : index
    %c18 = arith.constant 18 : index
    %c0_180 = arith.constant 0 : index
    %c0_181 = arith.constant 0 : index
    %288 = vector.load %arg2[%c0_179, %c18, %c0_180, %c0_181] : memref<1x32x16x16xf32, #tpu.memory_space<vmem>>, vector<1x1x16x16xf32>
    %289 = vector.shape_cast %288 : vector<1x1x16x16xf32> to vector<16x16xf32>
    %290 = vector.shape_cast %289 : vector<16x16xf32> to vector<1x16x16xf32>
    %cst_182 = arith.constant dense<0xFF800000> : vector<1xf32>
    %291 = vector.multi_reduction <maximumf>, %290, %cst_182 [1, 2] : vector<1x16x16xf32> to vector<1xf32>
    %292 = vector.shape_cast %291 : vector<1xf32> to vector<1x1x1xf32>
    %293 = vector.extract %292[0, 0, 0] : f32 from vector<1x1x1xf32>
    %294 = vector.broadcast %293 : f32 to vector<1x1xf32>
    %c18_183 = arith.constant 18 : index
    %c0_184 = arith.constant 0 : index
    %295 = vector.load %arg6[%c18_183, %c0_184] : memref<32x2xf32, #tpu.memory_space<vmem>>, vector<1x1xf32>
    tpu.vector_store %arg6[%c18_183, %c0_184], %294 {strides = array<i32>} : memref<32x2xf32, #tpu.memory_space<vmem>>, vector<1x1xf32>,
    %296 = vector.shape_cast %289 : vector<16x16xf32> to vector<1x16x16xf32>
    %cst_185 = arith.constant dense<0.000000e+00> : vector<1xf32>
    %297 = vector.multi_reduction <add>, %296, %cst_185 [1, 2] : vector<1x16x16xf32> to vector<1xf32>
    %298 = vector.shape_cast %297 : vector<1xf32> to vector<1x1x1xf32>
    %299 = vector.extract %298[0, 0, 0] : f32 from vector<1x1x1xf32>
    %300 = vector.broadcast %299 : f32 to vector<1x1xf32>
    %cst_186 = arith.constant 2.560000e+02 : f32
    %301 = vector.broadcast %cst_186 : f32 to vector<1x1xf32>
    %302 = arith.divf %300, %301 : vector<1x1xf32>
    %c18_187 = arith.constant 18 : index
    %c1_188 = arith.constant 1 : index
    %303 = vector.load %arg6[%c18_187, %c1_188] : memref<32x2xf32, #tpu.memory_space<vmem>>, vector<1x1xf32>
    tpu.vector_store %arg6[%c18_187, %c1_188], %302 {strides = array<i32>} : memref<32x2xf32, #tpu.memory_space<vmem>>, vector<1x1xf32>,
    %c0_189 = arith.constant 0 : index
    %c19 = arith.constant 19 : index
    %c0_190 = arith.constant 0 : index
    %c0_191 = arith.constant 0 : index
    %304 = vector.load %arg2[%c0_189, %c19, %c0_190, %c0_191] : memref<1x32x16x16xf32, #tpu.memory_space<vmem>>, vector<1x1x16x16xf32>
    %305 = vector.shape_cast %304 : vector<1x1x16x16xf32> to vector<16x16xf32>
    %306 = vector.shape_cast %305 : vector<16x16xf32> to vector<1x16x16xf32>
    %cst_192 = arith.constant dense<0xFF800000> : vector<1xf32>
    %307 = vector.multi_reduction <maximumf>, %306, %cst_192 [1, 2] : vector<1x16x16xf32> to vector<1xf32>
    %308 = vector.shape_cast %307 : vector<1xf32> to vector<1x1x1xf32>
    %309 = vector.extract %308[0, 0, 0] : f32 from vector<1x1x1xf32>
    %310 = vector.broadcast %309 : f32 to vector<1x1xf32>
    %c19_193 = arith.constant 19 : index
    %c0_194 = arith.constant 0 : index
    %311 = vector.load %arg6[%c19_193, %c0_194] : memref<32x2xf32, #tpu.memory_space<vmem>>, vector<1x1xf32>
    tpu.vector_store %arg6[%c19_193, %c0_194], %310 {strides = array<i32>} : memref<32x2xf32, #tpu.memory_space<vmem>>, vector<1x1xf32>,
    %312 = vector.shape_cast %305 : vector<16x16xf32> to vector<1x16x16xf32>
    %cst_195 = arith.constant dense<0.000000e+00> : vector<1xf32>
    %313 = vector.multi_reduction <add>, %312, %cst_195 [1, 2] : vector<1x16x16xf32> to vector<1xf32>
    %314 = vector.shape_cast %313 : vector<1xf32> to vector<1x1x1xf32>
    %315 = vector.extract %314[0, 0, 0] : f32 from vector<1x1x1xf32>
    %316 = vector.broadcast %315 : f32 to vector<1x1xf32>
    %cst_196 = arith.constant 2.560000e+02 : f32
    %317 = vector.broadcast %cst_196 : f32 to vector<1x1xf32>
    %318 = arith.divf %316, %317 : vector<1x1xf32>
    %c19_197 = arith.constant 19 : index
    %c1_198 = arith.constant 1 : index
    %319 = vector.load %arg6[%c19_197, %c1_198] : memref<32x2xf32, #tpu.memory_space<vmem>>, vector<1x1xf32>
    tpu.vector_store %arg6[%c19_197, %c1_198], %318 {strides = array<i32>} : memref<32x2xf32, #tpu.memory_space<vmem>>, vector<1x1xf32>,
    %c0_199 = arith.constant 0 : index
    %c20 = arith.constant 20 : index
    %c0_200 = arith.constant 0 : index
    %c0_201 = arith.constant 0 : index
    %320 = vector.load %arg2[%c0_199, %c20, %c0_200, %c0_201] : memref<1x32x16x16xf32, #tpu.memory_space<vmem>>, vector<1x1x16x16xf32>
    %321 = vector.shape_cast %320 : vector<1x1x16x16xf32> to vector<16x16xf32>
    %322 = vector.shape_cast %321 : vector<16x16xf32> to vector<1x16x16xf32>
    %cst_202 = arith.constant dense<0xFF800000> : vector<1xf32>
    %323 = vector.multi_reduction <maximumf>, %322, %cst_202 [1, 2] : vector<1x16x16xf32> to vector<1xf32>
    %324 = vector.shape_cast %323 : vector<1xf32> to vector<1x1x1xf32>
    %325 = vector.extract %324[0, 0, 0] : f32 from vector<1x1x1xf32>
    %326 = vector.broadcast %325 : f32 to vector<1x1xf32>
    %c20_203 = arith.constant 20 : index
    %c0_204 = arith.constant 0 : index
    %327 = vector.load %arg6[%c20_203, %c0_204] : memref<32x2xf32, #tpu.memory_space<vmem>>, vector<1x1xf32>
    tpu.vector_store %arg6[%c20_203, %c0_204], %326 {strides = array<i32>} : memref<32x2xf32, #tpu.memory_space<vmem>>, vector<1x1xf32>,
    %328 = vector.shape_cast %321 : vector<16x16xf32> to vector<1x16x16xf32>
    %cst_205 = arith.constant dense<0.000000e+00> : vector<1xf32>
    %329 = vector.multi_reduction <add>, %328, %cst_205 [1, 2] : vector<1x16x16xf32> to vector<1xf32>
    %330 = vector.shape_cast %329 : vector<1xf32> to vector<1x1x1xf32>
    %331 = vector.extract %330[0, 0, 0] : f32 from vector<1x1x1xf32>
    %332 = vector.broadcast %331 : f32 to vector<1x1xf32>
    %cst_206 = arith.constant 2.560000e+02 : f32
    %333 = vector.broadcast %cst_206 : f32 to vector<1x1xf32>
    %334 = arith.divf %332, %333 : vector<1x1xf32>
    %c20_207 = arith.constant 20 : index
    %c1_208 = arith.constant 1 : index
    %335 = vector.load %arg6[%c20_207, %c1_208] : memref<32x2xf32, #tpu.memory_space<vmem>>, vector<1x1xf32>
    tpu.vector_store %arg6[%c20_207, %c1_208], %334 {strides = array<i32>} : memref<32x2xf32, #tpu.memory_space<vmem>>, vector<1x1xf32>,
    %c0_209 = arith.constant 0 : index
    %c21 = arith.constant 21 : index
    %c0_210 = arith.constant 0 : index
    %c0_211 = arith.constant 0 : index
    %336 = vector.load %arg2[%c0_209, %c21, %c0_210, %c0_211] : memref<1x32x16x16xf32, #tpu.memory_space<vmem>>, vector<1x1x16x16xf32>
    %337 = vector.shape_cast %336 : vector<1x1x16x16xf32> to vector<16x16xf32>
    %338 = vector.shape_cast %337 : vector<16x16xf32> to vector<1x16x16xf32>
    %cst_212 = arith.constant dense<0xFF800000> : vector<1xf32>
    %339 = vector.multi_reduction <maximumf>, %338, %cst_212 [1, 2] : vector<1x16x16xf32> to vector<1xf32>
    %340 = vector.shape_cast %339 : vector<1xf32> to vector<1x1x1xf32>
    %341 = vector.extract %340[0, 0, 0] : f32 from vector<1x1x1xf32>
    %342 = vector.broadcast %341 : f32 to vector<1x1xf32>
    %c21_213 = arith.constant 21 : index
    %c0_214 = arith.constant 0 : index
    %343 = vector.load %arg6[%c21_213, %c0_214] : memref<32x2xf32, #tpu.memory_space<vmem>>, vector<1x1xf32>
    tpu.vector_store %arg6[%c21_213, %c0_214], %342 {strides = array<i32>} : memref<32x2xf32, #tpu.memory_space<vmem>>, vector<1x1xf32>,
    %344 = vector.shape_cast %337 : vector<16x16xf32> to vector<1x16x16xf32>
    %cst_215 = arith.constant dense<0.000000e+00> : vector<1xf32>
    %345 = vector.multi_reduction <add>, %344, %cst_215 [1, 2] : vector<1x16x16xf32> to vector<1xf32>
    %346 = vector.shape_cast %345 : vector<1xf32> to vector<1x1x1xf32>
    %347 = vector.extract %346[0, 0, 0] : f32 from vector<1x1x1xf32>
    %348 = vector.broadcast %347 : f32 to vector<1x1xf32>
    %cst_216 = arith.constant 2.560000e+02 : f32
    %349 = vector.broadcast %cst_216 : f32 to vector<1x1xf32>
    %350 = arith.divf %348, %349 : vector<1x1xf32>
    %c21_217 = arith.constant 21 : index
    %c1_218 = arith.constant 1 : index
    %351 = vector.load %arg6[%c21_217, %c1_218] : memref<32x2xf32, #tpu.memory_space<vmem>>, vector<1x1xf32>
    tpu.vector_store %arg6[%c21_217, %c1_218], %350 {strides = array<i32>} : memref<32x2xf32, #tpu.memory_space<vmem>>, vector<1x1xf32>,
    %c0_219 = arith.constant 0 : index
    %c22 = arith.constant 22 : index
    %c0_220 = arith.constant 0 : index
    %c0_221 = arith.constant 0 : index
    %352 = vector.load %arg2[%c0_219, %c22, %c0_220, %c0_221] : memref<1x32x16x16xf32, #tpu.memory_space<vmem>>, vector<1x1x16x16xf32>
    %353 = vector.shape_cast %352 : vector<1x1x16x16xf32> to vector<16x16xf32>
    %354 = vector.shape_cast %353 : vector<16x16xf32> to vector<1x16x16xf32>
    %cst_222 = arith.constant dense<0xFF800000> : vector<1xf32>
    %355 = vector.multi_reduction <maximumf>, %354, %cst_222 [1, 2] : vector<1x16x16xf32> to vector<1xf32>
    %356 = vector.shape_cast %355 : vector<1xf32> to vector<1x1x1xf32>
    %357 = vector.extract %356[0, 0, 0] : f32 from vector<1x1x1xf32>
    %358 = vector.broadcast %357 : f32 to vector<1x1xf32>
    %c22_223 = arith.constant 22 : index
    %c0_224 = arith.constant 0 : index
    %359 = vector.load %arg6[%c22_223, %c0_224] : memref<32x2xf32, #tpu.memory_space<vmem>>, vector<1x1xf32>
    tpu.vector_store %arg6[%c22_223, %c0_224], %358 {strides = array<i32>} : memref<32x2xf32, #tpu.memory_space<vmem>>, vector<1x1xf32>,
    %360 = vector.shape_cast %353 : vector<16x16xf32> to vector<1x16x16xf32>
    %cst_225 = arith.constant dense<0.000000e+00> : vector<1xf32>
    %361 = vector.multi_reduction <add>, %360, %cst_225 [1, 2] : vector<1x16x16xf32> to vector<1xf32>
    %362 = vector.shape_cast %361 : vector<1xf32> to vector<1x1x1xf32>
    %363 = vector.extract %362[0, 0, 0] : f32 from vector<1x1x1xf32>
    %364 = vector.broadcast %363 : f32 to vector<1x1xf32>
    %cst_226 = arith.constant 2.560000e+02 : f32
    %365 = vector.broadcast %cst_226 : f32 to vector<1x1xf32>
    %366 = arith.divf %364, %365 : vector<1x1xf32>
    %c22_227 = arith.constant 22 : index
    %c1_228 = arith.constant 1 : index
    %367 = vector.load %arg6[%c22_227, %c1_228] : memref<32x2xf32, #tpu.memory_space<vmem>>, vector<1x1xf32>
    tpu.vector_store %arg6[%c22_227, %c1_228], %366 {strides = array<i32>} : memref<32x2xf32, #tpu.memory_space<vmem>>, vector<1x1xf32>,
    %c0_229 = arith.constant 0 : index
    %c23 = arith.constant 23 : index
    %c0_230 = arith.constant 0 : index
    %c0_231 = arith.constant 0 : index
    %368 = vector.load %arg2[%c0_229, %c23, %c0_230, %c0_231] : memref<1x32x16x16xf32, #tpu.memory_space<vmem>>, vector<1x1x16x16xf32>
    %369 = vector.shape_cast %368 : vector<1x1x16x16xf32> to vector<16x16xf32>
    %370 = vector.shape_cast %369 : vector<16x16xf32> to vector<1x16x16xf32>
    %cst_232 = arith.constant dense<0xFF800000> : vector<1xf32>
    %371 = vector.multi_reduction <maximumf>, %370, %cst_232 [1, 2] : vector<1x16x16xf32> to vector<1xf32>
    %372 = vector.shape_cast %371 : vector<1xf32> to vector<1x1x1xf32>
    %373 = vector.extract %372[0, 0, 0] : f32 from vector<1x1x1xf32>
    %374 = vector.broadcast %373 : f32 to vector<1x1xf32>
    %c23_233 = arith.constant 23 : index
    %c0_234 = arith.constant 0 : index
    %375 = vector.load %arg6[%c23_233, %c0_234] : memref<32x2xf32, #tpu.memory_space<vmem>>, vector<1x1xf32>
    tpu.vector_store %arg6[%c23_233, %c0_234], %374 {strides = array<i32>} : memref<32x2xf32, #tpu.memory_space<vmem>>, vector<1x1xf32>,
    %376 = vector.shape_cast %369 : vector<16x16xf32> to vector<1x16x16xf32>
    %cst_235 = arith.constant dense<0.000000e+00> : vector<1xf32>
    %377 = vector.multi_reduction <add>, %376, %cst_235 [1, 2] : vector<1x16x16xf32> to vector<1xf32>
    %378 = vector.shape_cast %377 : vector<1xf32> to vector<1x1x1xf32>
    %379 = vector.extract %378[0, 0, 0] : f32 from vector<1x1x1xf32>
    %380 = vector.broadcast %379 : f32 to vector<1x1xf32>
    %cst_236 = arith.constant 2.560000e+02 : f32
    %381 = vector.broadcast %cst_236 : f32 to vector<1x1xf32>
    %382 = arith.divf %380, %381 : vector<1x1xf32>
    %c23_237 = arith.constant 23 : index
    %c1_238 = arith.constant 1 : index
    %383 = vector.load %arg6[%c23_237, %c1_238] : memref<32x2xf32, #tpu.memory_space<vmem>>, vector<1x1xf32>
    tpu.vector_store %arg6[%c23_237, %c1_238], %382 {strides = array<i32>} : memref<32x2xf32, #tpu.memory_space<vmem>>, vector<1x1xf32>,
    %c0_239 = arith.constant 0 : index
    %c24 = arith.constant 24 : index
    %c0_240 = arith.constant 0 : index
    %c0_241 = arith.constant 0 : index
    %384 = vector.load %arg2[%c0_239, %c24, %c0_240, %c0_241] : memref<1x32x16x16xf32, #tpu.memory_space<vmem>>, vector<1x1x16x16xf32>
    %385 = vector.shape_cast %384 : vector<1x1x16x16xf32> to vector<16x16xf32>
    %386 = vector.shape_cast %385 : vector<16x16xf32> to vector<1x16x16xf32>
    %cst_242 = arith.constant dense<0xFF800000> : vector<1xf32>
    %387 = vector.multi_reduction <maximumf>, %386, %cst_242 [1, 2] : vector<1x16x16xf32> to vector<1xf32>
    %388 = vector.shape_cast %387 : vector<1xf32> to vector<1x1x1xf32>
    %389 = vector.extract %388[0, 0, 0] : f32 from vector<1x1x1xf32>
    %390 = vector.broadcast %389 : f32 to vector<1x1xf32>
    %c24_243 = arith.constant 24 : index
    %c0_244 = arith.constant 0 : index
    %391 = vector.load %arg6[%c24_243, %c0_244] : memref<32x2xf32, #tpu.memory_space<vmem>>, vector<1x1xf32>
    tpu.vector_store %arg6[%c24_243, %c0_244], %390 {strides = array<i32>} : memref<32x2xf32, #tpu.memory_space<vmem>>, vector<1x1xf32>,
    %392 = vector.shape_cast %385 : vector<16x16xf32> to vector<1x16x16xf32>
    %cst_245 = arith.constant dense<0.000000e+00> : vector<1xf32>
    %393 = vector.multi_reduction <add>, %392, %cst_245 [1, 2] : vector<1x16x16xf32> to vector<1xf32>
    %394 = vector.shape_cast %393 : vector<1xf32> to vector<1x1x1xf32>
    %395 = vector.extract %394[0, 0, 0] : f32 from vector<1x1x1xf32>
    %396 = vector.broadcast %395 : f32 to vector<1x1xf32>
    %cst_246 = arith.constant 2.560000e+02 : f32
    %397 = vector.broadcast %cst_246 : f32 to vector<1x1xf32>
    %398 = arith.divf %396, %397 : vector<1x1xf32>
    %c24_247 = arith.constant 24 : index
    %c1_248 = arith.constant 1 : index
    %399 = vector.load %arg6[%c24_247, %c1_248] : memref<32x2xf32, #tpu.memory_space<vmem>>, vector<1x1xf32>
    tpu.vector_store %arg6[%c24_247, %c1_248], %398 {strides = array<i32>} : memref<32x2xf32, #tpu.memory_space<vmem>>, vector<1x1xf32>,
    %c0_249 = arith.constant 0 : index
    %c25 = arith.constant 25 : index
    %c0_250 = arith.constant 0 : index
    %c0_251 = arith.constant 0 : index
    %400 = vector.load %arg2[%c0_249, %c25, %c0_250, %c0_251] : memref<1x32x16x16xf32, #tpu.memory_space<vmem>>, vector<1x1x16x16xf32>
    %401 = vector.shape_cast %400 : vector<1x1x16x16xf32> to vector<16x16xf32>
    %402 = vector.shape_cast %401 : vector<16x16xf32> to vector<1x16x16xf32>
    %cst_252 = arith.constant dense<0xFF800000> : vector<1xf32>
    %403 = vector.multi_reduction <maximumf>, %402, %cst_252 [1, 2] : vector<1x16x16xf32> to vector<1xf32>
    %404 = vector.shape_cast %403 : vector<1xf32> to vector<1x1x1xf32>
    %405 = vector.extract %404[0, 0, 0] : f32 from vector<1x1x1xf32>
    %406 = vector.broadcast %405 : f32 to vector<1x1xf32>
    %c25_253 = arith.constant 25 : index
    %c0_254 = arith.constant 0 : index
    %407 = vector.load %arg6[%c25_253, %c0_254] : memref<32x2xf32, #tpu.memory_space<vmem>>, vector<1x1xf32>
    tpu.vector_store %arg6[%c25_253, %c0_254], %406 {strides = array<i32>} : memref<32x2xf32, #tpu.memory_space<vmem>>, vector<1x1xf32>,
    %408 = vector.shape_cast %401 : vector<16x16xf32> to vector<1x16x16xf32>
    %cst_255 = arith.constant dense<0.000000e+00> : vector<1xf32>
    %409 = vector.multi_reduction <add>, %408, %cst_255 [1, 2] : vector<1x16x16xf32> to vector<1xf32>
    %410 = vector.shape_cast %409 : vector<1xf32> to vector<1x1x1xf32>
    %411 = vector.extract %410[0, 0, 0] : f32 from vector<1x1x1xf32>
    %412 = vector.broadcast %411 : f32 to vector<1x1xf32>
    %cst_256 = arith.constant 2.560000e+02 : f32
    %413 = vector.broadcast %cst_256 : f32 to vector<1x1xf32>
    %414 = arith.divf %412, %413 : vector<1x1xf32>
    %c25_257 = arith.constant 25 : index
    %c1_258 = arith.constant 1 : index
    %415 = vector.load %arg6[%c25_257, %c1_258] : memref<32x2xf32, #tpu.memory_space<vmem>>, vector<1x1xf32>
    tpu.vector_store %arg6[%c25_257, %c1_258], %414 {strides = array<i32>} : memref<32x2xf32, #tpu.memory_space<vmem>>, vector<1x1xf32>,
    %c0_259 = arith.constant 0 : index
    %c26 = arith.constant 26 : index
    %c0_260 = arith.constant 0 : index
    %c0_261 = arith.constant 0 : index
    %416 = vector.load %arg2[%c0_259, %c26, %c0_260, %c0_261] : memref<1x32x16x16xf32, #tpu.memory_space<vmem>>, vector<1x1x16x16xf32>
    %417 = vector.shape_cast %416 : vector<1x1x16x16xf32> to vector<16x16xf32>
    %418 = vector.shape_cast %417 : vector<16x16xf32> to vector<1x16x16xf32>
    %cst_262 = arith.constant dense<0xFF800000> : vector<1xf32>
    %419 = vector.multi_reduction <maximumf>, %418, %cst_262 [1, 2] : vector<1x16x16xf32> to vector<1xf32>
    %420 = vector.shape_cast %419 : vector<1xf32> to vector<1x1x1xf32>
    %421 = vector.extract %420[0, 0, 0] : f32 from vector<1x1x1xf32>
    %422 = vector.broadcast %421 : f32 to vector<1x1xf32>
    %c26_263 = arith.constant 26 : index
    %c0_264 = arith.constant 0 : index
    %423 = vector.load %arg6[%c26_263, %c0_264] : memref<32x2xf32, #tpu.memory_space<vmem>>, vector<1x1xf32>
    tpu.vector_store %arg6[%c26_263, %c0_264], %422 {strides = array<i32>} : memref<32x2xf32, #tpu.memory_space<vmem>>, vector<1x1xf32>,
    %424 = vector.shape_cast %417 : vector<16x16xf32> to vector<1x16x16xf32>
    %cst_265 = arith.constant dense<0.000000e+00> : vector<1xf32>
    %425 = vector.multi_reduction <add>, %424, %cst_265 [1, 2] : vector<1x16x16xf32> to vector<1xf32>
    %426 = vector.shape_cast %425 : vector<1xf32> to vector<1x1x1xf32>
    %427 = vector.extract %426[0, 0, 0] : f32 from vector<1x1x1xf32>
    %428 = vector.broadcast %427 : f32 to vector<1x1xf32>
    %cst_266 = arith.constant 2.560000e+02 : f32
    %429 = vector.broadcast %cst_266 : f32 to vector<1x1xf32>
    %430 = arith.divf %428, %429 : vector<1x1xf32>
    %c26_267 = arith.constant 26 : index
    %c1_268 = arith.constant 1 : index
    %431 = vector.load %arg6[%c26_267, %c1_268] : memref<32x2xf32, #tpu.memory_space<vmem>>, vector<1x1xf32>
    tpu.vector_store %arg6[%c26_267, %c1_268], %430 {strides = array<i32>} : memref<32x2xf32, #tpu.memory_space<vmem>>, vector<1x1xf32>,
    %c0_269 = arith.constant 0 : index
    %c27 = arith.constant 27 : index
    %c0_270 = arith.constant 0 : index
    %c0_271 = arith.constant 0 : index
    %432 = vector.load %arg2[%c0_269, %c27, %c0_270, %c0_271] : memref<1x32x16x16xf32, #tpu.memory_space<vmem>>, vector<1x1x16x16xf32>
    %433 = vector.shape_cast %432 : vector<1x1x16x16xf32> to vector<16x16xf32>
    %434 = vector.shape_cast %433 : vector<16x16xf32> to vector<1x16x16xf32>
    %cst_272 = arith.constant dense<0xFF800000> : vector<1xf32>
    %435 = vector.multi_reduction <maximumf>, %434, %cst_272 [1, 2] : vector<1x16x16xf32> to vector<1xf32>
    %436 = vector.shape_cast %435 : vector<1xf32> to vector<1x1x1xf32>
    %437 = vector.extract %436[0, 0, 0] : f32 from vector<1x1x1xf32>
    %438 = vector.broadcast %437 : f32 to vector<1x1xf32>
    %c27_273 = arith.constant 27 : index
    %c0_274 = arith.constant 0 : index
    %439 = vector.load %arg6[%c27_273, %c0_274] : memref<32x2xf32, #tpu.memory_space<vmem>>, vector<1x1xf32>
    tpu.vector_store %arg6[%c27_273, %c0_274], %438 {strides = array<i32>} : memref<32x2xf32, #tpu.memory_space<vmem>>, vector<1x1xf32>,
    %440 = vector.shape_cast %433 : vector<16x16xf32> to vector<1x16x16xf32>
    %cst_275 = arith.constant dense<0.000000e+00> : vector<1xf32>
    %441 = vector.multi_reduction <add>, %440, %cst_275 [1, 2] : vector<1x16x16xf32> to vector<1xf32>
    %442 = vector.shape_cast %441 : vector<1xf32> to vector<1x1x1xf32>
    %443 = vector.extract %442[0, 0, 0] : f32 from vector<1x1x1xf32>
    %444 = vector.broadcast %443 : f32 to vector<1x1xf32>
    %cst_276 = arith.constant 2.560000e+02 : f32
    %445 = vector.broadcast %cst_276 : f32 to vector<1x1xf32>
    %446 = arith.divf %444, %445 : vector<1x1xf32>
    %c27_277 = arith.constant 27 : index
    %c1_278 = arith.constant 1 : index
    %447 = vector.load %arg6[%c27_277, %c1_278] : memref<32x2xf32, #tpu.memory_space<vmem>>, vector<1x1xf32>
    tpu.vector_store %arg6[%c27_277, %c1_278], %446 {strides = array<i32>} : memref<32x2xf32, #tpu.memory_space<vmem>>, vector<1x1xf32>,
    %c0_279 = arith.constant 0 : index
    %c28 = arith.constant 28 : index
    %c0_280 = arith.constant 0 : index
    %c0_281 = arith.constant 0 : index
    %448 = vector.load %arg2[%c0_279, %c28, %c0_280, %c0_281] : memref<1x32x16x16xf32, #tpu.memory_space<vmem>>, vector<1x1x16x16xf32>
    %449 = vector.shape_cast %448 : vector<1x1x16x16xf32> to vector<16x16xf32>
    %450 = vector.shape_cast %449 : vector<16x16xf32> to vector<1x16x16xf32>
    %cst_282 = arith.constant dense<0xFF800000> : vector<1xf32>
    %451 = vector.multi_reduction <maximumf>, %450, %cst_282 [1, 2] : vector<1x16x16xf32> to vector<1xf32>
    %452 = vector.shape_cast %451 : vector<1xf32> to vector<1x1x1xf32>
    %453 = vector.extract %452[0, 0, 0] : f32 from vector<1x1x1xf32>
    %454 = vector.broadcast %453 : f32 to vector<1x1xf32>
    %c28_283 = arith.constant 28 : index
    %c0_284 = arith.constant 0 : index
    %455 = vector.load %arg6[%c28_283, %c0_284] : memref<32x2xf32, #tpu.memory_space<vmem>>, vector<1x1xf32>
    tpu.vector_store %arg6[%c28_283, %c0_284], %454 {strides = array<i32>} : memref<32x2xf32, #tpu.memory_space<vmem>>, vector<1x1xf32>,
    %456 = vector.shape_cast %449 : vector<16x16xf32> to vector<1x16x16xf32>
    %cst_285 = arith.constant dense<0.000000e+00> : vector<1xf32>
    %457 = vector.multi_reduction <add>, %456, %cst_285 [1, 2] : vector<1x16x16xf32> to vector<1xf32>
    %458 = vector.shape_cast %457 : vector<1xf32> to vector<1x1x1xf32>
    %459 = vector.extract %458[0, 0, 0] : f32 from vector<1x1x1xf32>
    %460 = vector.broadcast %459 : f32 to vector<1x1xf32>
    %cst_286 = arith.constant 2.560000e+02 : f32
    %461 = vector.broadcast %cst_286 : f32 to vector<1x1xf32>
    %462 = arith.divf %460, %461 : vector<1x1xf32>
    %c28_287 = arith.constant 28 : index
    %c1_288 = arith.constant 1 : index
    %463 = vector.load %arg6[%c28_287, %c1_288] : memref<32x2xf32, #tpu.memory_space<vmem>>, vector<1x1xf32>
    tpu.vector_store %arg6[%c28_287, %c1_288], %462 {strides = array<i32>} : memref<32x2xf32, #tpu.memory_space<vmem>>, vector<1x1xf32>,
    %c0_289 = arith.constant 0 : index
    %c29 = arith.constant 29 : index
    %c0_290 = arith.constant 0 : index
    %c0_291 = arith.constant 0 : index
    %464 = vector.load %arg2[%c0_289, %c29, %c0_290, %c0_291] : memref<1x32x16x16xf32, #tpu.memory_space<vmem>>, vector<1x1x16x16xf32>
    %465 = vector.shape_cast %464 : vector<1x1x16x16xf32> to vector<16x16xf32>
    %466 = vector.shape_cast %465 : vector<16x16xf32> to vector<1x16x16xf32>
    %cst_292 = arith.constant dense<0xFF800000> : vector<1xf32>
    %467 = vector.multi_reduction <maximumf>, %466, %cst_292 [1, 2] : vector<1x16x16xf32> to vector<1xf32>
    %468 = vector.shape_cast %467 : vector<1xf32> to vector<1x1x1xf32>
    %469 = vector.extract %468[0, 0, 0] : f32 from vector<1x1x1xf32>
    %470 = vector.broadcast %469 : f32 to vector<1x1xf32>
    %c29_293 = arith.constant 29 : index
    %c0_294 = arith.constant 0 : index
    %471 = vector.load %arg6[%c29_293, %c0_294] : memref<32x2xf32, #tpu.memory_space<vmem>>, vector<1x1xf32>
    tpu.vector_store %arg6[%c29_293, %c0_294], %470 {strides = array<i32>} : memref<32x2xf32, #tpu.memory_space<vmem>>, vector<1x1xf32>,
    %472 = vector.shape_cast %465 : vector<16x16xf32> to vector<1x16x16xf32>
    %cst_295 = arith.constant dense<0.000000e+00> : vector<1xf32>
    %473 = vector.multi_reduction <add>, %472, %cst_295 [1, 2] : vector<1x16x16xf32> to vector<1xf32>
    %474 = vector.shape_cast %473 : vector<1xf32> to vector<1x1x1xf32>
    %475 = vector.extract %474[0, 0, 0] : f32 from vector<1x1x1xf32>
    %476 = vector.broadcast %475 : f32 to vector<1x1xf32>
    %cst_296 = arith.constant 2.560000e+02 : f32
    %477 = vector.broadcast %cst_296 : f32 to vector<1x1xf32>
    %478 = arith.divf %476, %477 : vector<1x1xf32>
    %c29_297 = arith.constant 29 : index
    %c1_298 = arith.constant 1 : index
    %479 = vector.load %arg6[%c29_297, %c1_298] : memref<32x2xf32, #tpu.memory_space<vmem>>, vector<1x1xf32>
    tpu.vector_store %arg6[%c29_297, %c1_298], %478 {strides = array<i32>} : memref<32x2xf32, #tpu.memory_space<vmem>>, vector<1x1xf32>,
    %c0_299 = arith.constant 0 : index
    %c30 = arith.constant 30 : index
    %c0_300 = arith.constant 0 : index
    %c0_301 = arith.constant 0 : index
    %480 = vector.load %arg2[%c0_299, %c30, %c0_300, %c0_301] : memref<1x32x16x16xf32, #tpu.memory_space<vmem>>, vector<1x1x16x16xf32>
    %481 = vector.shape_cast %480 : vector<1x1x16x16xf32> to vector<16x16xf32>
    %482 = vector.shape_cast %481 : vector<16x16xf32> to vector<1x16x16xf32>
    %cst_302 = arith.constant dense<0xFF800000> : vector<1xf32>
    %483 = vector.multi_reduction <maximumf>, %482, %cst_302 [1, 2] : vector<1x16x16xf32> to vector<1xf32>
    %484 = vector.shape_cast %483 : vector<1xf32> to vector<1x1x1xf32>
    %485 = vector.extract %484[0, 0, 0] : f32 from vector<1x1x1xf32>
    %486 = vector.broadcast %485 : f32 to vector<1x1xf32>
    %c30_303 = arith.constant 30 : index
    %c0_304 = arith.constant 0 : index
    %487 = vector.load %arg6[%c30_303, %c0_304] : memref<32x2xf32, #tpu.memory_space<vmem>>, vector<1x1xf32>
    tpu.vector_store %arg6[%c30_303, %c0_304], %486 {strides = array<i32>} : memref<32x2xf32, #tpu.memory_space<vmem>>, vector<1x1xf32>,
    %488 = vector.shape_cast %481 : vector<16x16xf32> to vector<1x16x16xf32>
    %cst_305 = arith.constant dense<0.000000e+00> : vector<1xf32>
    %489 = vector.multi_reduction <add>, %488, %cst_305 [1, 2] : vector<1x16x16xf32> to vector<1xf32>
    %490 = vector.shape_cast %489 : vector<1xf32> to vector<1x1x1xf32>
    %491 = vector.extract %490[0, 0, 0] : f32 from vector<1x1x1xf32>
    %492 = vector.broadcast %491 : f32 to vector<1x1xf32>
    %cst_306 = arith.constant 2.560000e+02 : f32
    %493 = vector.broadcast %cst_306 : f32 to vector<1x1xf32>
    %494 = arith.divf %492, %493 : vector<1x1xf32>
    %c30_307 = arith.constant 30 : index
    %c1_308 = arith.constant 1 : index
    %495 = vector.load %arg6[%c30_307, %c1_308] : memref<32x2xf32, #tpu.memory_space<vmem>>, vector<1x1xf32>
    tpu.vector_store %arg6[%c30_307, %c1_308], %494 {strides = array<i32>} : memref<32x2xf32, #tpu.memory_space<vmem>>, vector<1x1xf32>,
    %c0_309 = arith.constant 0 : index
    %c31 = arith.constant 31 : index
    %c0_310 = arith.constant 0 : index
    %c0_311 = arith.constant 0 : index
    %496 = vector.load %arg2[%c0_309, %c31, %c0_310, %c0_311] : memref<1x32x16x16xf32, #tpu.memory_space<vmem>>, vector<1x1x16x16xf32>
    %497 = vector.shape_cast %496 : vector<1x1x16x16xf32> to vector<16x16xf32>
    %498 = vector.shape_cast %497 : vector<16x16xf32> to vector<1x16x16xf32>
    %cst_312 = arith.constant dense<0xFF800000> : vector<1xf32>
    %499 = vector.multi_reduction <maximumf>, %498, %cst_312 [1, 2] : vector<1x16x16xf32> to vector<1xf32>
    %500 = vector.shape_cast %499 : vector<1xf32> to vector<1x1x1xf32>
    %501 = vector.extract %500[0, 0, 0] : f32 from vector<1x1x1xf32>
    %502 = vector.broadcast %501 : f32 to vector<1x1xf32>
    %c31_313 = arith.constant 31 : index
    %c0_314 = arith.constant 0 : index
    %503 = vector.load %arg6[%c31_313, %c0_314] : memref<32x2xf32, #tpu.memory_space<vmem>>, vector<1x1xf32>
    tpu.vector_store %arg6[%c31_313, %c0_314], %502 {strides = array<i32>} : memref<32x2xf32, #tpu.memory_space<vmem>>, vector<1x1xf32>,
    %504 = vector.shape_cast %497 : vector<16x16xf32> to vector<1x16x16xf32>
    %cst_315 = arith.constant dense<0.000000e+00> : vector<1xf32>
    %505 = vector.multi_reduction <add>, %504, %cst_315 [1, 2] : vector<1x16x16xf32> to vector<1xf32>
    %506 = vector.shape_cast %505 : vector<1xf32> to vector<1x1x1xf32>
    %507 = vector.extract %506[0, 0, 0] : f32 from vector<1x1x1xf32>
    %508 = vector.broadcast %507 : f32 to vector<1x1xf32>
    %cst_316 = arith.constant 2.560000e+02 : f32
    %509 = vector.broadcast %cst_316 : f32 to vector<1x1xf32>
    %510 = arith.divf %508, %509 : vector<1x1xf32>
    %c31_317 = arith.constant 31 : index
    %c1_318 = arith.constant 1 : index
    %511 = vector.load %arg6[%c31_317, %c1_318] : memref<32x2xf32, #tpu.memory_space<vmem>>, vector<1x1xf32>
    tpu.vector_store %arg6[%c31_317, %c1_318], %510 {strides = array<i32>} : memref<32x2xf32, #tpu.memory_space<vmem>>, vector<1x1xf32>,
    %c0_319 = arith.constant 0 : index
    %c0_320 = arith.constant 0 : index
    %512 = vector.load %arg6[%c0_319, %c0_320] : memref<32x2xf32, #tpu.memory_space<vmem>>, vector<32x2xf32>
    %c0_321 = arith.constant 0 : index
    %c0_322 = arith.constant 0 : index
    %513 = vector.load %arg3[%c0_321, %c0_322] : memref<2x32xf32, #tpu.memory_space<vmem>>, vector<2x32xf32>
    %cst_323 = arith.constant dense<0.000000e+00> : vector<2x2xf32>
    %514 = tpu.matmul %513, %512, %cst_323 {dimension_numbers = #tpu.dot_dimension_numbers<[1], [0], [0], [1], [0, 0, 1, 1], [], []>} : vector<2x32xf32>, vector<32x2xf32>, vector<2x2xf32> -> vector<2x2xf32>
    %cst_324 = arith.constant 0.000000e+00 : f32
    %515 = vector.broadcast %cst_324 : f32 to vector<2x2xf32>
    %516 = arith.maximumf %514, %515 : vector<2x2xf32>
    %c0_325 = arith.constant 0 : index
    %c0_326 = arith.constant 0 : index
    %517 = vector.load %arg4[%c0_325, %c0_326] : memref<32x2xf32, #tpu.memory_space<vmem>>, vector<32x2xf32>
    %cst_327 = arith.constant dense<0.000000e+00> : vector<32x2xf32>
    %518 = tpu.matmul %517, %516, %cst_327 {dimension_numbers = #tpu.dot_dimension_numbers<[1], [0], [0], [1], [0, 0, 1, 1], [], []>} : vector<32x2xf32>, vector<2x2xf32>, vector<32x2xf32> -> vector<32x2xf32>
    %cst_328 = arith.constant dense<0.000000e+00> : vector<32xf32>
    %519 = vector.multi_reduction <add>, %518, %cst_328 [1] : vector<32x2xf32> to vector<32xf32>
    %520 = vector.shape_cast %519 : vector<32xf32> to vector<32x1xf32>
    %521 = arith.negf %520 : vector<32x1xf32>
    %522 = math.exp %521 : vector<32x1xf32>
    %cst_329 = arith.constant 1.000000e+00 : f32
    %523 = vector.broadcast %cst_329 : f32 to vector<32x1xf32>
    %524 = arith.addf %523, %522 : vector<32x1xf32>
    %525 = arith.divf %523, %524 : vector<32x1xf32>
    %c0_330 = arith.constant 0 : index
    %c0_331 = arith.constant 0 : index
    %526 = vector.load %arg7[%c0_330, %c0_331] : memref<32x1xf32, #tpu.memory_space<vmem>>, vector<32x1xf32>
    tpu.vector_store %arg7[%c0_330, %c0_331], %525 {strides = array<i32>} : memref<32x1xf32, #tpu.memory_space<vmem>>, vector<32x1xf32>,
    %cst_332 = arith.constant 0xFF800000 : f32
    %527 = vector.broadcast %cst_332 : f32 to vector<16x16xf32>
    %cst_333 = arith.constant 0.000000e+00 : f32
    %528 = vector.broadcast %cst_333 : f32 to vector<16x16xf32>
    %c0_334 = arith.constant 0 : index
    %c0_335 = arith.constant 0 : index
    %c0_336 = arith.constant 0 : index
    %c0_337 = arith.constant 0 : index
    %529 = vector.load %arg2[%c0_334, %c0_335, %c0_336, %c0_337] : memref<1x32x16x16xf32, #tpu.memory_space<vmem>>, vector<1x1x16x16xf32>
    %530 = vector.shape_cast %529 : vector<1x1x16x16xf32> to vector<16x16xf32>
    %c0_338 = arith.constant 0 : index
    %c0_339 = arith.constant 0 : index
    %531 = vector.load %arg7[%c0_338, %c0_339] : memref<32x1xf32, #tpu.memory_space<vmem>>, vector<1x1xf32>
    %532 = vector.broadcast %531 : vector<1x1xf32> to vector<16x16xf32>
    %533 = arith.mulf %530, %532 : vector<16x16xf32>
    %c0_340 = arith.constant 0 : index
    %c0_341 = arith.constant 0 : index
    %c0_342 = arith.constant 0 : index
    %c0_343 = arith.constant 0 : index
    %534 = vector.load %arg5[%c0_340, %c0_341, %c0_342, %c0_343] : memref<1x32x16x16xf32, #tpu.memory_space<vmem>>, vector<1x1x16x16xf32>
    %535 = vector.shape_cast %534 : vector<1x1x16x16xf32> to vector<16x16xf32>
    %536 = vector.shape_cast %533 : vector<16x16xf32> to vector<1x1x16x16xf32>
    tpu.vector_store %arg5[%c0_340, %c0_341, %c0_342, %c0_343], %536 {strides = array<i32>} : memref<1x32x16x16xf32, #tpu.memory_space<vmem>>, vector<1x1x16x16xf32>,
    %537 = arith.maximumf %527, %533 : vector<16x16xf32>
    %538 = arith.addf %528, %533 : vector<16x16xf32>
    %c0_344 = arith.constant 0 : index
    %c1_345 = arith.constant 1 : index
    %c0_346 = arith.constant 0 : index
    %c0_347 = arith.constant 0 : index
    %539 = vector.load %arg2[%c0_344, %c1_345, %c0_346, %c0_347] : memref<1x32x16x16xf32, #tpu.memory_space<vmem>>, vector<1x1x16x16xf32>
    %540 = vector.shape_cast %539 : vector<1x1x16x16xf32> to vector<16x16xf32>
    %c1_348 = arith.constant 1 : index
    %c0_349 = arith.constant 0 : index
    %541 = vector.load %arg7[%c1_348, %c0_349] : memref<32x1xf32, #tpu.memory_space<vmem>>, vector<1x1xf32>
    %542 = vector.broadcast %541 : vector<1x1xf32> to vector<16x16xf32>
    %543 = arith.mulf %540, %542 : vector<16x16xf32>
    %c0_350 = arith.constant 0 : index
    %c1_351 = arith.constant 1 : index
    %c0_352 = arith.constant 0 : index
    %c0_353 = arith.constant 0 : index
    %544 = vector.load %arg5[%c0_350, %c1_351, %c0_352, %c0_353] : memref<1x32x16x16xf32, #tpu.memory_space<vmem>>, vector<1x1x16x16xf32>
    %545 = vector.shape_cast %544 : vector<1x1x16x16xf32> to vector<16x16xf32>
    %546 = vector.shape_cast %543 : vector<16x16xf32> to vector<1x1x16x16xf32>
    tpu.vector_store %arg5[%c0_350, %c1_351, %c0_352, %c0_353], %546 {strides = array<i32>} : memref<1x32x16x16xf32, #tpu.memory_space<vmem>>, vector<1x1x16x16xf32>,
    %547 = arith.maximumf %537, %543 : vector<16x16xf32>
    %548 = arith.addf %538, %543 : vector<16x16xf32>
    %c0_354 = arith.constant 0 : index
    %c2_355 = arith.constant 2 : index
    %c0_356 = arith.constant 0 : index
    %c0_357 = arith.constant 0 : index
    %549 = vector.load %arg2[%c0_354, %c2_355, %c0_356, %c0_357] : memref<1x32x16x16xf32, #tpu.memory_space<vmem>>, vector<1x1x16x16xf32>
    %550 = vector.shape_cast %549 : vector<1x1x16x16xf32> to vector<16x16xf32>
    %c2_358 = arith.constant 2 : index
    %c0_359 = arith.constant 0 : index
    %551 = vector.load %arg7[%c2_358, %c0_359] : memref<32x1xf32, #tpu.memory_space<vmem>>, vector<1x1xf32>
    %552 = vector.broadcast %551 : vector<1x1xf32> to vector<16x16xf32>
    %553 = arith.mulf %550, %552 : vector<16x16xf32>
    %c0_360 = arith.constant 0 : index
    %c2_361 = arith.constant 2 : index
    %c0_362 = arith.constant 0 : index
    %c0_363 = arith.constant 0 : index
    %554 = vector.load %arg5[%c0_360, %c2_361, %c0_362, %c0_363] : memref<1x32x16x16xf32, #tpu.memory_space<vmem>>, vector<1x1x16x16xf32>
    %555 = vector.shape_cast %554 : vector<1x1x16x16xf32> to vector<16x16xf32>
    %556 = vector.shape_cast %553 : vector<16x16xf32> to vector<1x1x16x16xf32>
    tpu.vector_store %arg5[%c0_360, %c2_361, %c0_362, %c0_363], %556 {strides = array<i32>} : memref<1x32x16x16xf32, #tpu.memory_space<vmem>>, vector<1x1x16x16xf32>,
    %557 = arith.maximumf %547, %553 : vector<16x16xf32>
    %558 = arith.addf %548, %553 : vector<16x16xf32>
    %c0_364 = arith.constant 0 : index
    %c3_365 = arith.constant 3 : index
    %c0_366 = arith.constant 0 : index
    %c0_367 = arith.constant 0 : index
    %559 = vector.load %arg2[%c0_364, %c3_365, %c0_366, %c0_367] : memref<1x32x16x16xf32, #tpu.memory_space<vmem>>, vector<1x1x16x16xf32>
    %560 = vector.shape_cast %559 : vector<1x1x16x16xf32> to vector<16x16xf32>
    %c3_368 = arith.constant 3 : index
    %c0_369 = arith.constant 0 : index
    %561 = vector.load %arg7[%c3_368, %c0_369] : memref<32x1xf32, #tpu.memory_space<vmem>>, vector<1x1xf32>
    %562 = vector.broadcast %561 : vector<1x1xf32> to vector<16x16xf32>
    %563 = arith.mulf %560, %562 : vector<16x16xf32>
    %c0_370 = arith.constant 0 : index
    %c3_371 = arith.constant 3 : index
    %c0_372 = arith.constant 0 : index
    %c0_373 = arith.constant 0 : index
    %564 = vector.load %arg5[%c0_370, %c3_371, %c0_372, %c0_373] : memref<1x32x16x16xf32, #tpu.memory_space<vmem>>, vector<1x1x16x16xf32>
    %565 = vector.shape_cast %564 : vector<1x1x16x16xf32> to vector<16x16xf32>
    %566 = vector.shape_cast %563 : vector<16x16xf32> to vector<1x1x16x16xf32>
    tpu.vector_store %arg5[%c0_370, %c3_371, %c0_372, %c0_373], %566 {strides = array<i32>} : memref<1x32x16x16xf32, #tpu.memory_space<vmem>>, vector<1x1x16x16xf32>,
    %567 = arith.maximumf %557, %563 : vector<16x16xf32>
    %568 = arith.addf %558, %563 : vector<16x16xf32>
    %c0_374 = arith.constant 0 : index
    %c4_375 = arith.constant 4 : index
    %c0_376 = arith.constant 0 : index
    %c0_377 = arith.constant 0 : index
    %569 = vector.load %arg2[%c0_374, %c4_375, %c0_376, %c0_377] : memref<1x32x16x16xf32, #tpu.memory_space<vmem>>, vector<1x1x16x16xf32>
    %570 = vector.shape_cast %569 : vector<1x1x16x16xf32> to vector<16x16xf32>
    %c4_378 = arith.constant 4 : index
    %c0_379 = arith.constant 0 : index
    %571 = vector.load %arg7[%c4_378, %c0_379] : memref<32x1xf32, #tpu.memory_space<vmem>>, vector<1x1xf32>
    %572 = vector.broadcast %571 : vector<1x1xf32> to vector<16x16xf32>
    %573 = arith.mulf %570, %572 : vector<16x16xf32>
    %c0_380 = arith.constant 0 : index
    %c4_381 = arith.constant 4 : index
    %c0_382 = arith.constant 0 : index
    %c0_383 = arith.constant 0 : index
    %574 = vector.load %arg5[%c0_380, %c4_381, %c0_382, %c0_383] : memref<1x32x16x16xf32, #tpu.memory_space<vmem>>, vector<1x1x16x16xf32>
    %575 = vector.shape_cast %574 : vector<1x1x16x16xf32> to vector<16x16xf32>
    %576 = vector.shape_cast %573 : vector<16x16xf32> to vector<1x1x16x16xf32>
    tpu.vector_store %arg5[%c0_380, %c4_381, %c0_382, %c0_383], %576 {strides = array<i32>} : memref<1x32x16x16xf32, #tpu.memory_space<vmem>>, vector<1x1x16x16xf32>,
    %577 = arith.maximumf %567, %573 : vector<16x16xf32>
    %578 = arith.addf %568, %573 : vector<16x16xf32>
    %c0_384 = arith.constant 0 : index
    %c5_385 = arith.constant 5 : index
    %c0_386 = arith.constant 0 : index
    %c0_387 = arith.constant 0 : index
    %579 = vector.load %arg2[%c0_384, %c5_385, %c0_386, %c0_387] : memref<1x32x16x16xf32, #tpu.memory_space<vmem>>, vector<1x1x16x16xf32>
    %580 = vector.shape_cast %579 : vector<1x1x16x16xf32> to vector<16x16xf32>
    %c5_388 = arith.constant 5 : index
    %c0_389 = arith.constant 0 : index
    %581 = vector.load %arg7[%c5_388, %c0_389] : memref<32x1xf32, #tpu.memory_space<vmem>>, vector<1x1xf32>
    %582 = vector.broadcast %581 : vector<1x1xf32> to vector<16x16xf32>
    %583 = arith.mulf %580, %582 : vector<16x16xf32>
    %c0_390 = arith.constant 0 : index
    %c5_391 = arith.constant 5 : index
    %c0_392 = arith.constant 0 : index
    %c0_393 = arith.constant 0 : index
    %584 = vector.load %arg5[%c0_390, %c5_391, %c0_392, %c0_393] : memref<1x32x16x16xf32, #tpu.memory_space<vmem>>, vector<1x1x16x16xf32>
    %585 = vector.shape_cast %584 : vector<1x1x16x16xf32> to vector<16x16xf32>
    %586 = vector.shape_cast %583 : vector<16x16xf32> to vector<1x1x16x16xf32>
    tpu.vector_store %arg5[%c0_390, %c5_391, %c0_392, %c0_393], %586 {strides = array<i32>} : memref<1x32x16x16xf32, #tpu.memory_space<vmem>>, vector<1x1x16x16xf32>,
    %587 = arith.maximumf %577, %583 : vector<16x16xf32>
    %588 = arith.addf %578, %583 : vector<16x16xf32>
    %c0_394 = arith.constant 0 : index
    %c6_395 = arith.constant 6 : index
    %c0_396 = arith.constant 0 : index
    %c0_397 = arith.constant 0 : index
    %589 = vector.load %arg2[%c0_394, %c6_395, %c0_396, %c0_397] : memref<1x32x16x16xf32, #tpu.memory_space<vmem>>, vector<1x1x16x16xf32>
    %590 = vector.shape_cast %589 : vector<1x1x16x16xf32> to vector<16x16xf32>
    %c6_398 = arith.constant 6 : index
    %c0_399 = arith.constant 0 : index
    %591 = vector.load %arg7[%c6_398, %c0_399] : memref<32x1xf32, #tpu.memory_space<vmem>>, vector<1x1xf32>
    %592 = vector.broadcast %591 : vector<1x1xf32> to vector<16x16xf32>
    %593 = arith.mulf %590, %592 : vector<16x16xf32>
    %c0_400 = arith.constant 0 : index
    %c6_401 = arith.constant 6 : index
    %c0_402 = arith.constant 0 : index
    %c0_403 = arith.constant 0 : index
    %594 = vector.load %arg5[%c0_400, %c6_401, %c0_402, %c0_403] : memref<1x32x16x16xf32, #tpu.memory_space<vmem>>, vector<1x1x16x16xf32>
    %595 = vector.shape_cast %594 : vector<1x1x16x16xf32> to vector<16x16xf32>
    %596 = vector.shape_cast %593 : vector<16x16xf32> to vector<1x1x16x16xf32>
    tpu.vector_store %arg5[%c0_400, %c6_401, %c0_402, %c0_403], %596 {strides = array<i32>} : memref<1x32x16x16xf32, #tpu.memory_space<vmem>>, vector<1x1x16x16xf32>,
    %597 = arith.maximumf %587, %593 : vector<16x16xf32>
    %598 = arith.addf %588, %593 : vector<16x16xf32>
    %c0_404 = arith.constant 0 : index
    %c7_405 = arith.constant 7 : index
    %c0_406 = arith.constant 0 : index
    %c0_407 = arith.constant 0 : index
    %599 = vector.load %arg2[%c0_404, %c7_405, %c0_406, %c0_407] : memref<1x32x16x16xf32, #tpu.memory_space<vmem>>, vector<1x1x16x16xf32>
    %600 = vector.shape_cast %599 : vector<1x1x16x16xf32> to vector<16x16xf32>
    %c7_408 = arith.constant 7 : index
    %c0_409 = arith.constant 0 : index
    %601 = vector.load %arg7[%c7_408, %c0_409] : memref<32x1xf32, #tpu.memory_space<vmem>>, vector<1x1xf32>
    %602 = vector.broadcast %601 : vector<1x1xf32> to vector<16x16xf32>
    %603 = arith.mulf %600, %602 : vector<16x16xf32>
    %c0_410 = arith.constant 0 : index
    %c7_411 = arith.constant 7 : index
    %c0_412 = arith.constant 0 : index
    %c0_413 = arith.constant 0 : index
    %604 = vector.load %arg5[%c0_410, %c7_411, %c0_412, %c0_413] : memref<1x32x16x16xf32, #tpu.memory_space<vmem>>, vector<1x1x16x16xf32>
    %605 = vector.shape_cast %604 : vector<1x1x16x16xf32> to vector<16x16xf32>
    %606 = vector.shape_cast %603 : vector<16x16xf32> to vector<1x1x16x16xf32>
    tpu.vector_store %arg5[%c0_410, %c7_411, %c0_412, %c0_413], %606 {strides = array<i32>} : memref<1x32x16x16xf32, #tpu.memory_space<vmem>>, vector<1x1x16x16xf32>,
    %607 = arith.maximumf %597, %603 : vector<16x16xf32>
    %608 = arith.addf %598, %603 : vector<16x16xf32>
    %c0_414 = arith.constant 0 : index
    %c8_415 = arith.constant 8 : index
    %c0_416 = arith.constant 0 : index
    %c0_417 = arith.constant 0 : index
    %609 = vector.load %arg2[%c0_414, %c8_415, %c0_416, %c0_417] : memref<1x32x16x16xf32, #tpu.memory_space<vmem>>, vector<1x1x16x16xf32>
    %610 = vector.shape_cast %609 : vector<1x1x16x16xf32> to vector<16x16xf32>
    %c8_418 = arith.constant 8 : index
    %c0_419 = arith.constant 0 : index
    %611 = vector.load %arg7[%c8_418, %c0_419] : memref<32x1xf32, #tpu.memory_space<vmem>>, vector<1x1xf32>
    %612 = vector.broadcast %611 : vector<1x1xf32> to vector<16x16xf32>
    %613 = arith.mulf %610, %612 : vector<16x16xf32>
    %c0_420 = arith.constant 0 : index
    %c8_421 = arith.constant 8 : index
    %c0_422 = arith.constant 0 : index
    %c0_423 = arith.constant 0 : index
    %614 = vector.load %arg5[%c0_420, %c8_421, %c0_422, %c0_423] : memref<1x32x16x16xf32, #tpu.memory_space<vmem>>, vector<1x1x16x16xf32>
    %615 = vector.shape_cast %614 : vector<1x1x16x16xf32> to vector<16x16xf32>
    %616 = vector.shape_cast %613 : vector<16x16xf32> to vector<1x1x16x16xf32>
    tpu.vector_store %arg5[%c0_420, %c8_421, %c0_422, %c0_423], %616 {strides = array<i32>} : memref<1x32x16x16xf32, #tpu.memory_space<vmem>>, vector<1x1x16x16xf32>,
    %617 = arith.maximumf %607, %613 : vector<16x16xf32>
    %618 = arith.addf %608, %613 : vector<16x16xf32>
    %c0_424 = arith.constant 0 : index
    %c9_425 = arith.constant 9 : index
    %c0_426 = arith.constant 0 : index
    %c0_427 = arith.constant 0 : index
    %619 = vector.load %arg2[%c0_424, %c9_425, %c0_426, %c0_427] : memref<1x32x16x16xf32, #tpu.memory_space<vmem>>, vector<1x1x16x16xf32>
    %620 = vector.shape_cast %619 : vector<1x1x16x16xf32> to vector<16x16xf32>
    %c9_428 = arith.constant 9 : index
    %c0_429 = arith.constant 0 : index
    %621 = vector.load %arg7[%c9_428, %c0_429] : memref<32x1xf32, #tpu.memory_space<vmem>>, vector<1x1xf32>
    %622 = vector.broadcast %621 : vector<1x1xf32> to vector<16x16xf32>
    %623 = arith.mulf %620, %622 : vector<16x16xf32>
    %c0_430 = arith.constant 0 : index
    %c9_431 = arith.constant 9 : index
    %c0_432 = arith.constant 0 : index
    %c0_433 = arith.constant 0 : index
    %624 = vector.load %arg5[%c0_430, %c9_431, %c0_432, %c0_433] : memref<1x32x16x16xf32, #tpu.memory_space<vmem>>, vector<1x1x16x16xf32>
    %625 = vector.shape_cast %624 : vector<1x1x16x16xf32> to vector<16x16xf32>
    %626 = vector.shape_cast %623 : vector<16x16xf32> to vector<1x1x16x16xf32>
    tpu.vector_store %arg5[%c0_430, %c9_431, %c0_432, %c0_433], %626 {strides = array<i32>} : memref<1x32x16x16xf32, #tpu.memory_space<vmem>>, vector<1x1x16x16xf32>,
    %627 = arith.maximumf %617, %623 : vector<16x16xf32>
    %628 = arith.addf %618, %623 : vector<16x16xf32>
    %c0_434 = arith.constant 0 : index
    %c10_435 = arith.constant 10 : index
    %c0_436 = arith.constant 0 : index
    %c0_437 = arith.constant 0 : index
    %629 = vector.load %arg2[%c0_434, %c10_435, %c0_436, %c0_437] : memref<1x32x16x16xf32, #tpu.memory_space<vmem>>, vector<1x1x16x16xf32>
    %630 = vector.shape_cast %629 : vector<1x1x16x16xf32> to vector<16x16xf32>
    %c10_438 = arith.constant 10 : index
    %c0_439 = arith.constant 0 : index
    %631 = vector.load %arg7[%c10_438, %c0_439] : memref<32x1xf32, #tpu.memory_space<vmem>>, vector<1x1xf32>
    %632 = vector.broadcast %631 : vector<1x1xf32> to vector<16x16xf32>
    %633 = arith.mulf %630, %632 : vector<16x16xf32>
    %c0_440 = arith.constant 0 : index
    %c10_441 = arith.constant 10 : index
    %c0_442 = arith.constant 0 : index
    %c0_443 = arith.constant 0 : index
    %634 = vector.load %arg5[%c0_440, %c10_441, %c0_442, %c0_443] : memref<1x32x16x16xf32, #tpu.memory_space<vmem>>, vector<1x1x16x16xf32>
    %635 = vector.shape_cast %634 : vector<1x1x16x16xf32> to vector<16x16xf32>
    %636 = vector.shape_cast %633 : vector<16x16xf32> to vector<1x1x16x16xf32>
    tpu.vector_store %arg5[%c0_440, %c10_441, %c0_442, %c0_443], %636 {strides = array<i32>} : memref<1x32x16x16xf32, #tpu.memory_space<vmem>>, vector<1x1x16x16xf32>,
    %637 = arith.maximumf %627, %633 : vector<16x16xf32>
    %638 = arith.addf %628, %633 : vector<16x16xf32>
    %c0_444 = arith.constant 0 : index
    %c11_445 = arith.constant 11 : index
    %c0_446 = arith.constant 0 : index
    %c0_447 = arith.constant 0 : index
    %639 = vector.load %arg2[%c0_444, %c11_445, %c0_446, %c0_447] : memref<1x32x16x16xf32, #tpu.memory_space<vmem>>, vector<1x1x16x16xf32>
    %640 = vector.shape_cast %639 : vector<1x1x16x16xf32> to vector<16x16xf32>
    %c11_448 = arith.constant 11 : index
    %c0_449 = arith.constant 0 : index
    %641 = vector.load %arg7[%c11_448, %c0_449] : memref<32x1xf32, #tpu.memory_space<vmem>>, vector<1x1xf32>
    %642 = vector.broadcast %641 : vector<1x1xf32> to vector<16x16xf32>
    %643 = arith.mulf %640, %642 : vector<16x16xf32>
    %c0_450 = arith.constant 0 : index
    %c11_451 = arith.constant 11 : index
    %c0_452 = arith.constant 0 : index
    %c0_453 = arith.constant 0 : index
    %644 = vector.load %arg5[%c0_450, %c11_451, %c0_452, %c0_453] : memref<1x32x16x16xf32, #tpu.memory_space<vmem>>, vector<1x1x16x16xf32>
    %645 = vector.shape_cast %644 : vector<1x1x16x16xf32> to vector<16x16xf32>
    %646 = vector.shape_cast %643 : vector<16x16xf32> to vector<1x1x16x16xf32>
    tpu.vector_store %arg5[%c0_450, %c11_451, %c0_452, %c0_453], %646 {strides = array<i32>} : memref<1x32x16x16xf32, #tpu.memory_space<vmem>>, vector<1x1x16x16xf32>,
    %647 = arith.maximumf %637, %643 : vector<16x16xf32>
    %648 = arith.addf %638, %643 : vector<16x16xf32>
    %c0_454 = arith.constant 0 : index
    %c12_455 = arith.constant 12 : index
    %c0_456 = arith.constant 0 : index
    %c0_457 = arith.constant 0 : index
    %649 = vector.load %arg2[%c0_454, %c12_455, %c0_456, %c0_457] : memref<1x32x16x16xf32, #tpu.memory_space<vmem>>, vector<1x1x16x16xf32>
    %650 = vector.shape_cast %649 : vector<1x1x16x16xf32> to vector<16x16xf32>
    %c12_458 = arith.constant 12 : index
    %c0_459 = arith.constant 0 : index
    %651 = vector.load %arg7[%c12_458, %c0_459] : memref<32x1xf32, #tpu.memory_space<vmem>>, vector<1x1xf32>
    %652 = vector.broadcast %651 : vector<1x1xf32> to vector<16x16xf32>
    %653 = arith.mulf %650, %652 : vector<16x16xf32>
    %c0_460 = arith.constant 0 : index
    %c12_461 = arith.constant 12 : index
    %c0_462 = arith.constant 0 : index
    %c0_463 = arith.constant 0 : index
    %654 = vector.load %arg5[%c0_460, %c12_461, %c0_462, %c0_463] : memref<1x32x16x16xf32, #tpu.memory_space<vmem>>, vector<1x1x16x16xf32>
    %655 = vector.shape_cast %654 : vector<1x1x16x16xf32> to vector<16x16xf32>
    %656 = vector.shape_cast %653 : vector<16x16xf32> to vector<1x1x16x16xf32>
    tpu.vector_store %arg5[%c0_460, %c12_461, %c0_462, %c0_463], %656 {strides = array<i32>} : memref<1x32x16x16xf32, #tpu.memory_space<vmem>>, vector<1x1x16x16xf32>,
    %657 = arith.maximumf %647, %653 : vector<16x16xf32>
    %658 = arith.addf %648, %653 : vector<16x16xf32>
    %c0_464 = arith.constant 0 : index
    %c13_465 = arith.constant 13 : index
    %c0_466 = arith.constant 0 : index
    %c0_467 = arith.constant 0 : index
    %659 = vector.load %arg2[%c0_464, %c13_465, %c0_466, %c0_467] : memref<1x32x16x16xf32, #tpu.memory_space<vmem>>, vector<1x1x16x16xf32>
    %660 = vector.shape_cast %659 : vector<1x1x16x16xf32> to vector<16x16xf32>
    %c13_468 = arith.constant 13 : index
    %c0_469 = arith.constant 0 : index
    %661 = vector.load %arg7[%c13_468, %c0_469] : memref<32x1xf32, #tpu.memory_space<vmem>>, vector<1x1xf32>
    %662 = vector.broadcast %661 : vector<1x1xf32> to vector<16x16xf32>
    %663 = arith.mulf %660, %662 : vector<16x16xf32>
    %c0_470 = arith.constant 0 : index
    %c13_471 = arith.constant 13 : index
    %c0_472 = arith.constant 0 : index
    %c0_473 = arith.constant 0 : index
    %664 = vector.load %arg5[%c0_470, %c13_471, %c0_472, %c0_473] : memref<1x32x16x16xf32, #tpu.memory_space<vmem>>, vector<1x1x16x16xf32>
    %665 = vector.shape_cast %664 : vector<1x1x16x16xf32> to vector<16x16xf32>
    %666 = vector.shape_cast %663 : vector<16x16xf32> to vector<1x1x16x16xf32>
    tpu.vector_store %arg5[%c0_470, %c13_471, %c0_472, %c0_473], %666 {strides = array<i32>} : memref<1x32x16x16xf32, #tpu.memory_space<vmem>>, vector<1x1x16x16xf32>,
    %667 = arith.maximumf %657, %663 : vector<16x16xf32>
    %668 = arith.addf %658, %663 : vector<16x16xf32>
    %c0_474 = arith.constant 0 : index
    %c14_475 = arith.constant 14 : index
    %c0_476 = arith.constant 0 : index
    %c0_477 = arith.constant 0 : index
    %669 = vector.load %arg2[%c0_474, %c14_475, %c0_476, %c0_477] : memref<1x32x16x16xf32, #tpu.memory_space<vmem>>, vector<1x1x16x16xf32>
    %670 = vector.shape_cast %669 : vector<1x1x16x16xf32> to vector<16x16xf32>
    %c14_478 = arith.constant 14 : index
    %c0_479 = arith.constant 0 : index
    %671 = vector.load %arg7[%c14_478, %c0_479] : memref<32x1xf32, #tpu.memory_space<vmem>>, vector<1x1xf32>
    %672 = vector.broadcast %671 : vector<1x1xf32> to vector<16x16xf32>
    %673 = arith.mulf %670, %672 : vector<16x16xf32>
    %c0_480 = arith.constant 0 : index
    %c14_481 = arith.constant 14 : index
    %c0_482 = arith.constant 0 : index
    %c0_483 = arith.constant 0 : index
    %674 = vector.load %arg5[%c0_480, %c14_481, %c0_482, %c0_483] : memref<1x32x16x16xf32, #tpu.memory_space<vmem>>, vector<1x1x16x16xf32>
    %675 = vector.shape_cast %674 : vector<1x1x16x16xf32> to vector<16x16xf32>
    %676 = vector.shape_cast %673 : vector<16x16xf32> to vector<1x1x16x16xf32>
    tpu.vector_store %arg5[%c0_480, %c14_481, %c0_482, %c0_483], %676 {strides = array<i32>} : memref<1x32x16x16xf32, #tpu.memory_space<vmem>>, vector<1x1x16x16xf32>,
    %677 = arith.maximumf %667, %673 : vector<16x16xf32>
    %678 = arith.addf %668, %673 : vector<16x16xf32>
    %c0_484 = arith.constant 0 : index
    %c15_485 = arith.constant 15 : index
    %c0_486 = arith.constant 0 : index
    %c0_487 = arith.constant 0 : index
    %679 = vector.load %arg2[%c0_484, %c15_485, %c0_486, %c0_487] : memref<1x32x16x16xf32, #tpu.memory_space<vmem>>, vector<1x1x16x16xf32>
    %680 = vector.shape_cast %679 : vector<1x1x16x16xf32> to vector<16x16xf32>
    %c15_488 = arith.constant 15 : index
    %c0_489 = arith.constant 0 : index
    %681 = vector.load %arg7[%c15_488, %c0_489] : memref<32x1xf32, #tpu.memory_space<vmem>>, vector<1x1xf32>
    %682 = vector.broadcast %681 : vector<1x1xf32> to vector<16x16xf32>
    %683 = arith.mulf %680, %682 : vector<16x16xf32>
    %c0_490 = arith.constant 0 : index
    %c15_491 = arith.constant 15 : index
    %c0_492 = arith.constant 0 : index
    %c0_493 = arith.constant 0 : index
    %684 = vector.load %arg5[%c0_490, %c15_491, %c0_492, %c0_493] : memref<1x32x16x16xf32, #tpu.memory_space<vmem>>, vector<1x1x16x16xf32>
    %685 = vector.shape_cast %684 : vector<1x1x16x16xf32> to vector<16x16xf32>
    %686 = vector.shape_cast %683 : vector<16x16xf32> to vector<1x1x16x16xf32>
    tpu.vector_store %arg5[%c0_490, %c15_491, %c0_492, %c0_493], %686 {strides = array<i32>} : memref<1x32x16x16xf32, #tpu.memory_space<vmem>>, vector<1x1x16x16xf32>,
    %687 = arith.maximumf %677, %683 : vector<16x16xf32>
    %688 = arith.addf %678, %683 : vector<16x16xf32>
    %c0_494 = arith.constant 0 : index
    %c16_495 = arith.constant 16 : index
    %c0_496 = arith.constant 0 : index
    %c0_497 = arith.constant 0 : index
    %689 = vector.load %arg2[%c0_494, %c16_495, %c0_496, %c0_497] : memref<1x32x16x16xf32, #tpu.memory_space<vmem>>, vector<1x1x16x16xf32>
    %690 = vector.shape_cast %689 : vector<1x1x16x16xf32> to vector<16x16xf32>
    %c16_498 = arith.constant 16 : index
    %c0_499 = arith.constant 0 : index
    %691 = vector.load %arg7[%c16_498, %c0_499] : memref<32x1xf32, #tpu.memory_space<vmem>>, vector<1x1xf32>
    %692 = vector.broadcast %691 : vector<1x1xf32> to vector<16x16xf32>
    %693 = arith.mulf %690, %692 : vector<16x16xf32>
    %c0_500 = arith.constant 0 : index
    %c16_501 = arith.constant 16 : index
    %c0_502 = arith.constant 0 : index
    %c0_503 = arith.constant 0 : index
    %694 = vector.load %arg5[%c0_500, %c16_501, %c0_502, %c0_503] : memref<1x32x16x16xf32, #tpu.memory_space<vmem>>, vector<1x1x16x16xf32>
    %695 = vector.shape_cast %694 : vector<1x1x16x16xf32> to vector<16x16xf32>
    %696 = vector.shape_cast %693 : vector<16x16xf32> to vector<1x1x16x16xf32>
    tpu.vector_store %arg5[%c0_500, %c16_501, %c0_502, %c0_503], %696 {strides = array<i32>} : memref<1x32x16x16xf32, #tpu.memory_space<vmem>>, vector<1x1x16x16xf32>,
    %697 = arith.maximumf %687, %693 : vector<16x16xf32>
    %698 = arith.addf %688, %693 : vector<16x16xf32>
    %c0_504 = arith.constant 0 : index
    %c17_505 = arith.constant 17 : index
    %c0_506 = arith.constant 0 : index
    %c0_507 = arith.constant 0 : index
    %699 = vector.load %arg2[%c0_504, %c17_505, %c0_506, %c0_507] : memref<1x32x16x16xf32, #tpu.memory_space<vmem>>, vector<1x1x16x16xf32>
    %700 = vector.shape_cast %699 : vector<1x1x16x16xf32> to vector<16x16xf32>
    %c17_508 = arith.constant 17 : index
    %c0_509 = arith.constant 0 : index
    %701 = vector.load %arg7[%c17_508, %c0_509] : memref<32x1xf32, #tpu.memory_space<vmem>>, vector<1x1xf32>
    %702 = vector.broadcast %701 : vector<1x1xf32> to vector<16x16xf32>
    %703 = arith.mulf %700, %702 : vector<16x16xf32>
    %c0_510 = arith.constant 0 : index
    %c17_511 = arith.constant 17 : index
    %c0_512 = arith.constant 0 : index
    %c0_513 = arith.constant 0 : index
    %704 = vector.load %arg5[%c0_510, %c17_511, %c0_512, %c0_513] : memref<1x32x16x16xf32, #tpu.memory_space<vmem>>, vector<1x1x16x16xf32>
    %705 = vector.shape_cast %704 : vector<1x1x16x16xf32> to vector<16x16xf32>
    %706 = vector.shape_cast %703 : vector<16x16xf32> to vector<1x1x16x16xf32>
    tpu.vector_store %arg5[%c0_510, %c17_511, %c0_512, %c0_513], %706 {strides = array<i32>} : memref<1x32x16x16xf32, #tpu.memory_space<vmem>>, vector<1x1x16x16xf32>,
    %707 = arith.maximumf %697, %703 : vector<16x16xf32>
    %708 = arith.addf %698, %703 : vector<16x16xf32>
    %c0_514 = arith.constant 0 : index
    %c18_515 = arith.constant 18 : index
    %c0_516 = arith.constant 0 : index
    %c0_517 = arith.constant 0 : index
    %709 = vector.load %arg2[%c0_514, %c18_515, %c0_516, %c0_517] : memref<1x32x16x16xf32, #tpu.memory_space<vmem>>, vector<1x1x16x16xf32>
    %710 = vector.shape_cast %709 : vector<1x1x16x16xf32> to vector<16x16xf32>
    %c18_518 = arith.constant 18 : index
    %c0_519 = arith.constant 0 : index
    %711 = vector.load %arg7[%c18_518, %c0_519] : memref<32x1xf32, #tpu.memory_space<vmem>>, vector<1x1xf32>
    %712 = vector.broadcast %711 : vector<1x1xf32> to vector<16x16xf32>
    %713 = arith.mulf %710, %712 : vector<16x16xf32>
    %c0_520 = arith.constant 0 : index
    %c18_521 = arith.constant 18 : index
    %c0_522 = arith.constant 0 : index
    %c0_523 = arith.constant 0 : index
    %714 = vector.load %arg5[%c0_520, %c18_521, %c0_522, %c0_523] : memref<1x32x16x16xf32, #tpu.memory_space<vmem>>, vector<1x1x16x16xf32>
    %715 = vector.shape_cast %714 : vector<1x1x16x16xf32> to vector<16x16xf32>
    %716 = vector.shape_cast %713 : vector<16x16xf32> to vector<1x1x16x16xf32>
    tpu.vector_store %arg5[%c0_520, %c18_521, %c0_522, %c0_523], %716 {strides = array<i32>} : memref<1x32x16x16xf32, #tpu.memory_space<vmem>>, vector<1x1x16x16xf32>,
    %717 = arith.maximumf %707, %713 : vector<16x16xf32>
    %718 = arith.addf %708, %713 : vector<16x16xf32>
    %c0_524 = arith.constant 0 : index
    %c19_525 = arith.constant 19 : index
    %c0_526 = arith.constant 0 : index
    %c0_527 = arith.constant 0 : index
    %719 = vector.load %arg2[%c0_524, %c19_525, %c0_526, %c0_527] : memref<1x32x16x16xf32, #tpu.memory_space<vmem>>, vector<1x1x16x16xf32>
    %720 = vector.shape_cast %719 : vector<1x1x16x16xf32> to vector<16x16xf32>
    %c19_528 = arith.constant 19 : index
    %c0_529 = arith.constant 0 : index
    %721 = vector.load %arg7[%c19_528, %c0_529] : memref<32x1xf32, #tpu.memory_space<vmem>>, vector<1x1xf32>
    %722 = vector.broadcast %721 : vector<1x1xf32> to vector<16x16xf32>
    %723 = arith.mulf %720, %722 : vector<16x16xf32>
    %c0_530 = arith.constant 0 : index
    %c19_531 = arith.constant 19 : index
    %c0_532 = arith.constant 0 : index
    %c0_533 = arith.constant 0 : index
    %724 = vector.load %arg5[%c0_530, %c19_531, %c0_532, %c0_533] : memref<1x32x16x16xf32, #tpu.memory_space<vmem>>, vector<1x1x16x16xf32>
    %725 = vector.shape_cast %724 : vector<1x1x16x16xf32> to vector<16x16xf32>
    %726 = vector.shape_cast %723 : vector<16x16xf32> to vector<1x1x16x16xf32>
    tpu.vector_store %arg5[%c0_530, %c19_531, %c0_532, %c0_533], %726 {strides = array<i32>} : memref<1x32x16x16xf32, #tpu.memory_space<vmem>>, vector<1x1x16x16xf32>,
    %727 = arith.maximumf %717, %723 : vector<16x16xf32>
    %728 = arith.addf %718, %723 : vector<16x16xf32>
    %c0_534 = arith.constant 0 : index
    %c20_535 = arith.constant 20 : index
    %c0_536 = arith.constant 0 : index
    %c0_537 = arith.constant 0 : index
    %729 = vector.load %arg2[%c0_534, %c20_535, %c0_536, %c0_537] : memref<1x32x16x16xf32, #tpu.memory_space<vmem>>, vector<1x1x16x16xf32>
    %730 = vector.shape_cast %729 : vector<1x1x16x16xf32> to vector<16x16xf32>
    %c20_538 = arith.constant 20 : index
    %c0_539 = arith.constant 0 : index
    %731 = vector.load %arg7[%c20_538, %c0_539] : memref<32x1xf32, #tpu.memory_space<vmem>>, vector<1x1xf32>
    %732 = vector.broadcast %731 : vector<1x1xf32> to vector<16x16xf32>
    %733 = arith.mulf %730, %732 : vector<16x16xf32>
    %c0_540 = arith.constant 0 : index
    %c20_541 = arith.constant 20 : index
    %c0_542 = arith.constant 0 : index
    %c0_543 = arith.constant 0 : index
    %734 = vector.load %arg5[%c0_540, %c20_541, %c0_542, %c0_543] : memref<1x32x16x16xf32, #tpu.memory_space<vmem>>, vector<1x1x16x16xf32>
    %735 = vector.shape_cast %734 : vector<1x1x16x16xf32> to vector<16x16xf32>
    %736 = vector.shape_cast %733 : vector<16x16xf32> to vector<1x1x16x16xf32>
    tpu.vector_store %arg5[%c0_540, %c20_541, %c0_542, %c0_543], %736 {strides = array<i32>} : memref<1x32x16x16xf32, #tpu.memory_space<vmem>>, vector<1x1x16x16xf32>,
    %737 = arith.maximumf %727, %733 : vector<16x16xf32>
    %738 = arith.addf %728, %733 : vector<16x16xf32>
    %c0_544 = arith.constant 0 : index
    %c21_545 = arith.constant 21 : index
    %c0_546 = arith.constant 0 : index
    %c0_547 = arith.constant 0 : index
    %739 = vector.load %arg2[%c0_544, %c21_545, %c0_546, %c0_547] : memref<1x32x16x16xf32, #tpu.memory_space<vmem>>, vector<1x1x16x16xf32>
    %740 = vector.shape_cast %739 : vector<1x1x16x16xf32> to vector<16x16xf32>
    %c21_548 = arith.constant 21 : index
    %c0_549 = arith.constant 0 : index
    %741 = vector.load %arg7[%c21_548, %c0_549] : memref<32x1xf32, #tpu.memory_space<vmem>>, vector<1x1xf32>
    %742 = vector.broadcast %741 : vector<1x1xf32> to vector<16x16xf32>
    %743 = arith.mulf %740, %742 : vector<16x16xf32>
    %c0_550 = arith.constant 0 : index
    %c21_551 = arith.constant 21 : index
    %c0_552 = arith.constant 0 : index
    %c0_553 = arith.constant 0 : index
    %744 = vector.load %arg5[%c0_550, %c21_551, %c0_552, %c0_553] : memref<1x32x16x16xf32, #tpu.memory_space<vmem>>, vector<1x1x16x16xf32>
    %745 = vector.shape_cast %744 : vector<1x1x16x16xf32> to vector<16x16xf32>
    %746 = vector.shape_cast %743 : vector<16x16xf32> to vector<1x1x16x16xf32>
    tpu.vector_store %arg5[%c0_550, %c21_551, %c0_552, %c0_553], %746 {strides = array<i32>} : memref<1x32x16x16xf32, #tpu.memory_space<vmem>>, vector<1x1x16x16xf32>,
    %747 = arith.maximumf %737, %743 : vector<16x16xf32>
    %748 = arith.addf %738, %743 : vector<16x16xf32>
    %c0_554 = arith.constant 0 : index
    %c22_555 = arith.constant 22 : index
    %c0_556 = arith.constant 0 : index
    %c0_557 = arith.constant 0 : index
    %749 = vector.load %arg2[%c0_554, %c22_555, %c0_556, %c0_557] : memref<1x32x16x16xf32, #tpu.memory_space<vmem>>, vector<1x1x16x16xf32>
    %750 = vector.shape_cast %749 : vector<1x1x16x16xf32> to vector<16x16xf32>
    %c22_558 = arith.constant 22 : index
    %c0_559 = arith.constant 0 : index
    %751 = vector.load %arg7[%c22_558, %c0_559] : memref<32x1xf32, #tpu.memory_space<vmem>>, vector<1x1xf32>
    %752 = vector.broadcast %751 : vector<1x1xf32> to vector<16x16xf32>
    %753 = arith.mulf %750, %752 : vector<16x16xf32>
    %c0_560 = arith.constant 0 : index
    %c22_561 = arith.constant 22 : index
    %c0_562 = arith.constant 0 : index
    %c0_563 = arith.constant 0 : index
    %754 = vector.load %arg5[%c0_560, %c22_561, %c0_562, %c0_563] : memref<1x32x16x16xf32, #tpu.memory_space<vmem>>, vector<1x1x16x16xf32>
    %755 = vector.shape_cast %754 : vector<1x1x16x16xf32> to vector<16x16xf32>
    %756 = vector.shape_cast %753 : vector<16x16xf32> to vector<1x1x16x16xf32>
    tpu.vector_store %arg5[%c0_560, %c22_561, %c0_562, %c0_563], %756 {strides = array<i32>} : memref<1x32x16x16xf32, #tpu.memory_space<vmem>>, vector<1x1x16x16xf32>,
    %757 = arith.maximumf %747, %753 : vector<16x16xf32>
    %758 = arith.addf %748, %753 : vector<16x16xf32>
    %c0_564 = arith.constant 0 : index
    %c23_565 = arith.constant 23 : index
    %c0_566 = arith.constant 0 : index
    %c0_567 = arith.constant 0 : index
    %759 = vector.load %arg2[%c0_564, %c23_565, %c0_566, %c0_567] : memref<1x32x16x16xf32, #tpu.memory_space<vmem>>, vector<1x1x16x16xf32>
    %760 = vector.shape_cast %759 : vector<1x1x16x16xf32> to vector<16x16xf32>
    %c23_568 = arith.constant 23 : index
    %c0_569 = arith.constant 0 : index
    %761 = vector.load %arg7[%c23_568, %c0_569] : memref<32x1xf32, #tpu.memory_space<vmem>>, vector<1x1xf32>
    %762 = vector.broadcast %761 : vector<1x1xf32> to vector<16x16xf32>
    %763 = arith.mulf %760, %762 : vector<16x16xf32>
    %c0_570 = arith.constant 0 : index
    %c23_571 = arith.constant 23 : index
    %c0_572 = arith.constant 0 : index
    %c0_573 = arith.constant 0 : index
    %764 = vector.load %arg5[%c0_570, %c23_571, %c0_572, %c0_573] : memref<1x32x16x16xf32, #tpu.memory_space<vmem>>, vector<1x1x16x16xf32>
    %765 = vector.shape_cast %764 : vector<1x1x16x16xf32> to vector<16x16xf32>
    %766 = vector.shape_cast %763 : vector<16x16xf32> to vector<1x1x16x16xf32>
    tpu.vector_store %arg5[%c0_570, %c23_571, %c0_572, %c0_573], %766 {strides = array<i32>} : memref<1x32x16x16xf32, #tpu.memory_space<vmem>>, vector<1x1x16x16xf32>,
    %767 = arith.maximumf %757, %763 : vector<16x16xf32>
    %768 = arith.addf %758, %763 : vector<16x16xf32>
    %c0_574 = arith.constant 0 : index
    %c24_575 = arith.constant 24 : index
    %c0_576 = arith.constant 0 : index
    %c0_577 = arith.constant 0 : index
    %769 = vector.load %arg2[%c0_574, %c24_575, %c0_576, %c0_577] : memref<1x32x16x16xf32, #tpu.memory_space<vmem>>, vector<1x1x16x16xf32>
    %770 = vector.shape_cast %769 : vector<1x1x16x16xf32> to vector<16x16xf32>
    %c24_578 = arith.constant 24 : index
    %c0_579 = arith.constant 0 : index
    %771 = vector.load %arg7[%c24_578, %c0_579] : memref<32x1xf32, #tpu.memory_space<vmem>>, vector<1x1xf32>
    %772 = vector.broadcast %771 : vector<1x1xf32> to vector<16x16xf32>
    %773 = arith.mulf %770, %772 : vector<16x16xf32>
    %c0_580 = arith.constant 0 : index
    %c24_581 = arith.constant 24 : index
    %c0_582 = arith.constant 0 : index
    %c0_583 = arith.constant 0 : index
    %774 = vector.load %arg5[%c0_580, %c24_581, %c0_582, %c0_583] : memref<1x32x16x16xf32, #tpu.memory_space<vmem>>, vector<1x1x16x16xf32>
    %775 = vector.shape_cast %774 : vector<1x1x16x16xf32> to vector<16x16xf32>
    %776 = vector.shape_cast %773 : vector<16x16xf32> to vector<1x1x16x16xf32>
    tpu.vector_store %arg5[%c0_580, %c24_581, %c0_582, %c0_583], %776 {strides = array<i32>} : memref<1x32x16x16xf32, #tpu.memory_space<vmem>>, vector<1x1x16x16xf32>,
    %777 = arith.maximumf %767, %773 : vector<16x16xf32>
    %778 = arith.addf %768, %773 : vector<16x16xf32>
    %c0_584 = arith.constant 0 : index
    %c25_585 = arith.constant 25 : index
    %c0_586 = arith.constant 0 : index
    %c0_587 = arith.constant 0 : index
    %779 = vector.load %arg2[%c0_584, %c25_585, %c0_586, %c0_587] : memref<1x32x16x16xf32, #tpu.memory_space<vmem>>, vector<1x1x16x16xf32>
    %780 = vector.shape_cast %779 : vector<1x1x16x16xf32> to vector<16x16xf32>
    %c25_588 = arith.constant 25 : index
    %c0_589 = arith.constant 0 : index
    %781 = vector.load %arg7[%c25_588, %c0_589] : memref<32x1xf32, #tpu.memory_space<vmem>>, vector<1x1xf32>
    %782 = vector.broadcast %781 : vector<1x1xf32> to vector<16x16xf32>
    %783 = arith.mulf %780, %782 : vector<16x16xf32>
    %c0_590 = arith.constant 0 : index
    %c25_591 = arith.constant 25 : index
    %c0_592 = arith.constant 0 : index
    %c0_593 = arith.constant 0 : index
    %784 = vector.load %arg5[%c0_590, %c25_591, %c0_592, %c0_593] : memref<1x32x16x16xf32, #tpu.memory_space<vmem>>, vector<1x1x16x16xf32>
    %785 = vector.shape_cast %784 : vector<1x1x16x16xf32> to vector<16x16xf32>
    %786 = vector.shape_cast %783 : vector<16x16xf32> to vector<1x1x16x16xf32>
    tpu.vector_store %arg5[%c0_590, %c25_591, %c0_592, %c0_593], %786 {strides = array<i32>} : memref<1x32x16x16xf32, #tpu.memory_space<vmem>>, vector<1x1x16x16xf32>,
    %787 = arith.maximumf %777, %783 : vector<16x16xf32>
    %788 = arith.addf %778, %783 : vector<16x16xf32>
    %c0_594 = arith.constant 0 : index
    %c26_595 = arith.constant 26 : index
    %c0_596 = arith.constant 0 : index
    %c0_597 = arith.constant 0 : index
    %789 = vector.load %arg2[%c0_594, %c26_595, %c0_596, %c0_597] : memref<1x32x16x16xf32, #tpu.memory_space<vmem>>, vector<1x1x16x16xf32>
    %790 = vector.shape_cast %789 : vector<1x1x16x16xf32> to vector<16x16xf32>
    %c26_598 = arith.constant 26 : index
    %c0_599 = arith.constant 0 : index
    %791 = vector.load %arg7[%c26_598, %c0_599] : memref<32x1xf32, #tpu.memory_space<vmem>>, vector<1x1xf32>
    %792 = vector.broadcast %791 : vector<1x1xf32> to vector<16x16xf32>
    %793 = arith.mulf %790, %792 : vector<16x16xf32>
    %c0_600 = arith.constant 0 : index
    %c26_601 = arith.constant 26 : index
    %c0_602 = arith.constant 0 : index
    %c0_603 = arith.constant 0 : index
    %794 = vector.load %arg5[%c0_600, %c26_601, %c0_602, %c0_603] : memref<1x32x16x16xf32, #tpu.memory_space<vmem>>, vector<1x1x16x16xf32>
    %795 = vector.shape_cast %794 : vector<1x1x16x16xf32> to vector<16x16xf32>
    %796 = vector.shape_cast %793 : vector<16x16xf32> to vector<1x1x16x16xf32>
    tpu.vector_store %arg5[%c0_600, %c26_601, %c0_602, %c0_603], %796 {strides = array<i32>} : memref<1x32x16x16xf32, #tpu.memory_space<vmem>>, vector<1x1x16x16xf32>,
    %797 = arith.maximumf %787, %793 : vector<16x16xf32>
    %798 = arith.addf %788, %793 : vector<16x16xf32>
    %c0_604 = arith.constant 0 : index
    %c27_605 = arith.constant 27 : index
    %c0_606 = arith.constant 0 : index
    %c0_607 = arith.constant 0 : index
    %799 = vector.load %arg2[%c0_604, %c27_605, %c0_606, %c0_607] : memref<1x32x16x16xf32, #tpu.memory_space<vmem>>, vector<1x1x16x16xf32>
    %800 = vector.shape_cast %799 : vector<1x1x16x16xf32> to vector<16x16xf32>
    %c27_608 = arith.constant 27 : index
    %c0_609 = arith.constant 0 : index
    %801 = vector.load %arg7[%c27_608, %c0_609] : memref<32x1xf32, #tpu.memory_space<vmem>>, vector<1x1xf32>
    %802 = vector.broadcast %801 : vector<1x1xf32> to vector<16x16xf32>
    %803 = arith.mulf %800, %802 : vector<16x16xf32>
    %c0_610 = arith.constant 0 : index
    %c27_611 = arith.constant 27 : index
    %c0_612 = arith.constant 0 : index
    %c0_613 = arith.constant 0 : index
    %804 = vector.load %arg5[%c0_610, %c27_611, %c0_612, %c0_613] : memref<1x32x16x16xf32, #tpu.memory_space<vmem>>, vector<1x1x16x16xf32>
    %805 = vector.shape_cast %804 : vector<1x1x16x16xf32> to vector<16x16xf32>
    %806 = vector.shape_cast %803 : vector<16x16xf32> to vector<1x1x16x16xf32>
    tpu.vector_store %arg5[%c0_610, %c27_611, %c0_612, %c0_613], %806 {strides = array<i32>} : memref<1x32x16x16xf32, #tpu.memory_space<vmem>>, vector<1x1x16x16xf32>,
    %807 = arith.maximumf %797, %803 : vector<16x16xf32>
    %808 = arith.addf %798, %803 : vector<16x16xf32>
    %c0_614 = arith.constant 0 : index
    %c28_615 = arith.constant 28 : index
    %c0_616 = arith.constant 0 : index
    %c0_617 = arith.constant 0 : index
    %809 = vector.load %arg2[%c0_614, %c28_615, %c0_616, %c0_617] : memref<1x32x16x16xf32, #tpu.memory_space<vmem>>, vector<1x1x16x16xf32>
    %810 = vector.shape_cast %809 : vector<1x1x16x16xf32> to vector<16x16xf32>
    %c28_618 = arith.constant 28 : index
    %c0_619 = arith.constant 0 : index
    %811 = vector.load %arg7[%c28_618, %c0_619] : memref<32x1xf32, #tpu.memory_space<vmem>>, vector<1x1xf32>
    %812 = vector.broadcast %811 : vector<1x1xf32> to vector<16x16xf32>
    %813 = arith.mulf %810, %812 : vector<16x16xf32>
    %c0_620 = arith.constant 0 : index
    %c28_621 = arith.constant 28 : index
    %c0_622 = arith.constant 0 : index
    %c0_623 = arith.constant 0 : index
    %814 = vector.load %arg5[%c0_620, %c28_621, %c0_622, %c0_623] : memref<1x32x16x16xf32, #tpu.memory_space<vmem>>, vector<1x1x16x16xf32>
    %815 = vector.shape_cast %814 : vector<1x1x16x16xf32> to vector<16x16xf32>
    %816 = vector.shape_cast %813 : vector<16x16xf32> to vector<1x1x16x16xf32>
    tpu.vector_store %arg5[%c0_620, %c28_621, %c0_622, %c0_623], %816 {strides = array<i32>} : memref<1x32x16x16xf32, #tpu.memory_space<vmem>>, vector<1x1x16x16xf32>,
    %817 = arith.maximumf %807, %813 : vector<16x16xf32>
    %818 = arith.addf %808, %813 : vector<16x16xf32>
    %c0_624 = arith.constant 0 : index
    %c29_625 = arith.constant 29 : index
    %c0_626 = arith.constant 0 : index
    %c0_627 = arith.constant 0 : index
    %819 = vector.load %arg2[%c0_624, %c29_625, %c0_626, %c0_627] : memref<1x32x16x16xf32, #tpu.memory_space<vmem>>, vector<1x1x16x16xf32>
    %820 = vector.shape_cast %819 : vector<1x1x16x16xf32> to vector<16x16xf32>
    %c29_628 = arith.constant 29 : index
    %c0_629 = arith.constant 0 : index
    %821 = vector.load %arg7[%c29_628, %c0_629] : memref<32x1xf32, #tpu.memory_space<vmem>>, vector<1x1xf32>
    %822 = vector.broadcast %821 : vector<1x1xf32> to vector<16x16xf32>
    %823 = arith.mulf %820, %822 : vector<16x16xf32>
    %c0_630 = arith.constant 0 : index
    %c29_631 = arith.constant 29 : index
    %c0_632 = arith.constant 0 : index
    %c0_633 = arith.constant 0 : index
    %824 = vector.load %arg5[%c0_630, %c29_631, %c0_632, %c0_633] : memref<1x32x16x16xf32, #tpu.memory_space<vmem>>, vector<1x1x16x16xf32>
    %825 = vector.shape_cast %824 : vector<1x1x16x16xf32> to vector<16x16xf32>
    %826 = vector.shape_cast %823 : vector<16x16xf32> to vector<1x1x16x16xf32>
    tpu.vector_store %arg5[%c0_630, %c29_631, %c0_632, %c0_633], %826 {strides = array<i32>} : memref<1x32x16x16xf32, #tpu.memory_space<vmem>>, vector<1x1x16x16xf32>,
    %827 = arith.maximumf %817, %823 : vector<16x16xf32>
    %828 = arith.addf %818, %823 : vector<16x16xf32>
    %c0_634 = arith.constant 0 : index
    %c30_635 = arith.constant 30 : index
    %c0_636 = arith.constant 0 : index
    %c0_637 = arith.constant 0 : index
    %829 = vector.load %arg2[%c0_634, %c30_635, %c0_636, %c0_637] : memref<1x32x16x16xf32, #tpu.memory_space<vmem>>, vector<1x1x16x16xf32>
    %830 = vector.shape_cast %829 : vector<1x1x16x16xf32> to vector<16x16xf32>
    %c30_638 = arith.constant 30 : index
    %c0_639 = arith.constant 0 : index
    %831 = vector.load %arg7[%c30_638, %c0_639] : memref<32x1xf32, #tpu.memory_space<vmem>>, vector<1x1xf32>
    %832 = vector.broadcast %831 : vector<1x1xf32> to vector<16x16xf32>
    %833 = arith.mulf %830, %832 : vector<16x16xf32>
    %c0_640 = arith.constant 0 : index
    %c30_641 = arith.constant 30 : index
    %c0_642 = arith.constant 0 : index
    %c0_643 = arith.constant 0 : index
    %834 = vector.load %arg5[%c0_640, %c30_641, %c0_642, %c0_643] : memref<1x32x16x16xf32, #tpu.memory_space<vmem>>, vector<1x1x16x16xf32>
    %835 = vector.shape_cast %834 : vector<1x1x16x16xf32> to vector<16x16xf32>
    %836 = vector.shape_cast %833 : vector<16x16xf32> to vector<1x1x16x16xf32>
    tpu.vector_store %arg5[%c0_640, %c30_641, %c0_642, %c0_643], %836 {strides = array<i32>} : memref<1x32x16x16xf32, #tpu.memory_space<vmem>>, vector<1x1x16x16xf32>,
    %837 = arith.maximumf %827, %833 : vector<16x16xf32>
    %838 = arith.addf %828, %833 : vector<16x16xf32>
    %c0_644 = arith.constant 0 : index
    %c31_645 = arith.constant 31 : index
    %c0_646 = arith.constant 0 : index
    %c0_647 = arith.constant 0 : index
    %839 = vector.load %arg2[%c0_644, %c31_645, %c0_646, %c0_647] : memref<1x32x16x16xf32, #tpu.memory_space<vmem>>, vector<1x1x16x16xf32>
    %840 = vector.shape_cast %839 : vector<1x1x16x16xf32> to vector<16x16xf32>
    %c31_648 = arith.constant 31 : index
    %c0_649 = arith.constant 0 : index
    %841 = vector.load %arg7[%c31_648, %c0_649] : memref<32x1xf32, #tpu.memory_space<vmem>>, vector<1x1xf32>
    %842 = vector.broadcast %841 : vector<1x1xf32> to vector<16x16xf32>
    %843 = arith.mulf %840, %842 : vector<16x16xf32>
    %c0_650 = arith.constant 0 : index
    %c31_651 = arith.constant 31 : index
    %c0_652 = arith.constant 0 : index
    %c0_653 = arith.constant 0 : index
    %844 = vector.load %arg5[%c0_650, %c31_651, %c0_652, %c0_653] : memref<1x32x16x16xf32, #tpu.memory_space<vmem>>, vector<1x1x16x16xf32>
    %845 = vector.shape_cast %844 : vector<1x1x16x16xf32> to vector<16x16xf32>
    %846 = vector.shape_cast %843 : vector<16x16xf32> to vector<1x1x16x16xf32>
    tpu.vector_store %arg5[%c0_650, %c31_651, %c0_652, %c0_653], %846 {strides = array<i32>} : memref<1x32x16x16xf32, #tpu.memory_space<vmem>>, vector<1x1x16x16xf32>,
    %847 = arith.maximumf %837, %843 : vector<16x16xf32>
    %848 = arith.addf %838, %843 : vector<16x16xf32>
    %cst_654 = arith.constant 3.125000e-02 : f32
    %849 = vector.broadcast %cst_654 : f32 to vector<16x16xf32>
    %850 = arith.mulf %848, %849 : vector<16x16xf32>
    %cst_655 = arith.constant 0.000000e+00 : f32
    %851 = vector.broadcast %cst_655 : f32 to vector<3x22xf32>
    %c0_656 = arith.constant 0 : index
    %c0_657 = arith.constant 0 : index
    %c0_658 = arith.constant 0 : index
    %852 = vector.load %arg8[%c0_656, %c0_657, %c0_658] : memref<2x22x22xf32, #tpu.memory_space<vmem>>, vector<1x3x22xf32>
    %853 = vector.shape_cast %852 : vector<1x3x22xf32> to vector<3x22xf32>
    %854 = vector.shape_cast %851 : vector<3x22xf32> to vector<1x3x22xf32>
    tpu.vector_store %arg8[%c0_656, %c0_657, %c0_658], %854 {strides = array<i32>} : memref<2x22x22xf32, #tpu.memory_space<vmem>>, vector<1x3x22xf32>,
    %cst_659 = arith.constant 0.000000e+00 : f32
    %855 = vector.broadcast %cst_659 : f32 to vector<3x22xf32>
    %c0_660 = arith.constant 0 : index
    %c19_661 = arith.constant 19 : index
    %c0_662 = arith.constant 0 : index
    %856 = vector.load %arg8[%c0_660, %c19_661, %c0_662] : memref<2x22x22xf32, #tpu.memory_space<vmem>>, vector<1x3x22xf32>
    %857 = vector.shape_cast %856 : vector<1x3x22xf32> to vector<3x22xf32>
    %858 = vector.shape_cast %855 : vector<3x22xf32> to vector<1x3x22xf32>
    tpu.vector_store %arg8[%c0_660, %c19_661, %c0_662], %858 {strides = array<i32>} : memref<2x22x22xf32, #tpu.memory_space<vmem>>, vector<1x3x22xf32>,
    %cst_663 = arith.constant 0.000000e+00 : f32
    %859 = vector.broadcast %cst_663 : f32 to vector<22x3xf32>
    %c0_664 = arith.constant 0 : index
    %c0_665 = arith.constant 0 : index
    %c0_666 = arith.constant 0 : index
    %860 = vector.load %arg8[%c0_664, %c0_665, %c0_666] : memref<2x22x22xf32, #tpu.memory_space<vmem>>, vector<1x22x3xf32>
    %861 = vector.shape_cast %860 : vector<1x22x3xf32> to vector<22x3xf32>
    %862 = vector.shape_cast %859 : vector<22x3xf32> to vector<1x22x3xf32>
    tpu.vector_store %arg8[%c0_664, %c0_665, %c0_666], %862 {strides = array<i32>} : memref<2x22x22xf32, #tpu.memory_space<vmem>>, vector<1x22x3xf32>,
    %cst_667 = arith.constant 0.000000e+00 : f32
    %863 = vector.broadcast %cst_667 : f32 to vector<22x3xf32>
    %c0_668 = arith.constant 0 : index
    %c0_669 = arith.constant 0 : index
    %c19_670 = arith.constant 19 : index
    %864 = vector.load %arg8[%c0_668, %c0_669, %c19_670] : memref<2x22x22xf32, #tpu.memory_space<vmem>>, vector<1x22x3xf32>
    %865 = vector.shape_cast %864 : vector<1x22x3xf32> to vector<22x3xf32>
    %866 = vector.shape_cast %863 : vector<22x3xf32> to vector<1x22x3xf32>
    tpu.vector_store %arg8[%c0_668, %c0_669, %c19_670], %866 {strides = array<i32>} : memref<2x22x22xf32, #tpu.memory_space<vmem>>, vector<1x22x3xf32>,
    %cst_671 = arith.constant 0.000000e+00 : f32
    %867 = vector.broadcast %cst_671 : f32 to vector<3x22xf32>
    %c1_672 = arith.constant 1 : index
    %c0_673 = arith.constant 0 : index
    %c0_674 = arith.constant 0 : index
    %868 = vector.load %arg8[%c1_672, %c0_673, %c0_674] : memref<2x22x22xf32, #tpu.memory_space<vmem>>, vector<1x3x22xf32>
    %869 = vector.shape_cast %868 : vector<1x3x22xf32> to vector<3x22xf32>
    %870 = vector.shape_cast %867 : vector<3x22xf32> to vector<1x3x22xf32>
    tpu.vector_store %arg8[%c1_672, %c0_673, %c0_674], %870 {strides = array<i32>} : memref<2x22x22xf32, #tpu.memory_space<vmem>>, vector<1x3x22xf32>,
    %cst_675 = arith.constant 0.000000e+00 : f32
    %871 = vector.broadcast %cst_675 : f32 to vector<3x22xf32>
    %c1_676 = arith.constant 1 : index
    %c19_677 = arith.constant 19 : index
    %c0_678 = arith.constant 0 : index
    %872 = vector.load %arg8[%c1_676, %c19_677, %c0_678] : memref<2x22x22xf32, #tpu.memory_space<vmem>>, vector<1x3x22xf32>
    %873 = vector.shape_cast %872 : vector<1x3x22xf32> to vector<3x22xf32>
    %874 = vector.shape_cast %871 : vector<3x22xf32> to vector<1x3x22xf32>
    tpu.vector_store %arg8[%c1_676, %c19_677, %c0_678], %874 {strides = array<i32>} : memref<2x22x22xf32, #tpu.memory_space<vmem>>, vector<1x3x22xf32>,
    %cst_679 = arith.constant 0.000000e+00 : f32
    %875 = vector.broadcast %cst_679 : f32 to vector<22x3xf32>
    %c1_680 = arith.constant 1 : index
    %c0_681 = arith.constant 0 : index
    %c0_682 = arith.constant 0 : index
    %876 = vector.load %arg8[%c1_680, %c0_681, %c0_682] : memref<2x22x22xf32, #tpu.memory_space<vmem>>, vector<1x22x3xf32>
    %877 = vector.shape_cast %876 : vector<1x22x3xf32> to vector<22x3xf32>
    %878 = vector.shape_cast %875 : vector<22x3xf32> to vector<1x22x3xf32>
    tpu.vector_store %arg8[%c1_680, %c0_681, %c0_682], %878 {strides = array<i32>} : memref<2x22x22xf32, #tpu.memory_space<vmem>>, vector<1x22x3xf32>,
    %cst_683 = arith.constant 0.000000e+00 : f32
    %879 = vector.broadcast %cst_683 : f32 to vector<22x3xf32>
    %c1_684 = arith.constant 1 : index
    %c0_685 = arith.constant 0 : index
    %c19_686 = arith.constant 19 : index
    %880 = vector.load %arg8[%c1_684, %c0_685, %c19_686] : memref<2x22x22xf32, #tpu.memory_space<vmem>>, vector<1x22x3xf32>
    %881 = vector.shape_cast %880 : vector<1x22x3xf32> to vector<22x3xf32>
    %882 = vector.shape_cast %879 : vector<22x3xf32> to vector<1x22x3xf32>
    tpu.vector_store %arg8[%c1_684, %c0_685, %c19_686], %882 {strides = array<i32>} : memref<2x22x22xf32, #tpu.memory_space<vmem>>, vector<1x22x3xf32>,
    %c0_687 = arith.constant 0 : index
    %c3_688 = arith.constant 3 : index
    %c3_689 = arith.constant 3 : index
    %883 = vector.load %arg8[%c0_687, %c3_688, %c3_689] : memref<2x22x22xf32, #tpu.memory_space<vmem>>, vector<1x16x16xf32>
    %884 = vector.shape_cast %883 : vector<1x16x16xf32> to vector<16x16xf32>
    %885 = vector.shape_cast %847 : vector<16x16xf32> to vector<1x16x16xf32>
    tpu.vector_store %arg8[%c0_687, %c3_688, %c3_689], %885 {strides = array<i32>} : memref<2x22x22xf32, #tpu.memory_space<vmem>>, vector<1x16x16xf32>,
    %c1_690 = arith.constant 1 : index
    %c3_691 = arith.constant 3 : index
    %c3_692 = arith.constant 3 : index
    %886 = vector.load %arg8[%c1_690, %c3_691, %c3_692] : memref<2x22x22xf32, #tpu.memory_space<vmem>>, vector<1x16x16xf32>
    %887 = vector.shape_cast %886 : vector<1x16x16xf32> to vector<16x16xf32>
    %888 = vector.shape_cast %850 : vector<16x16xf32> to vector<1x16x16xf32>
    tpu.vector_store %arg8[%c1_690, %c3_691, %c3_692], %888 {strides = array<i32>} : memref<2x22x22xf32, #tpu.memory_space<vmem>>, vector<1x16x16xf32>,
    %c0_693 = arith.constant 0 : index
    %c0_694 = arith.constant 0 : index
    %c0_695 = arith.constant 0 : index
    %889 = vector.load %arg8[%c0_693, %c0_694, %c0_695] : memref<2x22x22xf32, #tpu.memory_space<vmem>>, vector<1x22x22xf32>
    %890 = vector.shape_cast %889 : vector<1x22x22xf32> to vector<22x22xf32>
    %c0_696 = arith.constant 0 : index
    %c0_697 = arith.constant 0 : index
    %c0_698 = arith.constant 0 : index
    %891 = vector.load %arg9[%c0_696, %c0_697, %c0_698] : memref<14x22x22xf32, #tpu.memory_space<vmem>>, vector<1x22x22xf32>
    %892 = vector.shape_cast %891 : vector<1x22x22xf32> to vector<22x22xf32>
    %893 = vector.shape_cast %890 : vector<22x22xf32> to vector<1x22x22xf32>
    tpu.vector_store %arg9[%c0_696, %c0_697, %c0_698], %893 {strides = array<i32>} : memref<14x22x22xf32, #tpu.memory_space<vmem>>, vector<1x22x22xf32>,
    %c0_699 = arith.constant 0 : index
    %c0_700 = arith.constant 0 : index
    %c1_701 = arith.constant 1 : index
    %894 = vector.load %arg8[%c0_699, %c0_700, %c1_701] : memref<2x22x22xf32, #tpu.memory_space<vmem>>, vector<1x22x21xf32>
    %895 = vector.shape_cast %894 : vector<1x22x21xf32> to vector<22x21xf32>
    %c1_702 = arith.constant 1 : index
    %c0_703 = arith.constant 0 : index
    %c0_704 = arith.constant 0 : index
    %896 = vector.load %arg9[%c1_702, %c0_703, %c0_704] : memref<14x22x22xf32, #tpu.memory_space<vmem>>, vector<1x22x21xf32>
    %897 = vector.shape_cast %896 : vector<1x22x21xf32> to vector<22x21xf32>
    %898 = vector.shape_cast %895 : vector<22x21xf32> to vector<1x22x21xf32>
    tpu.vector_store %arg9[%c1_702, %c0_703, %c0_704], %898 {strides = array<i32>} : memref<14x22x22xf32, #tpu.memory_space<vmem>>, vector<1x22x21xf32>,
    %c0_705 = arith.constant 0 : index
    %c0_706 = arith.constant 0 : index
    %c2_707 = arith.constant 2 : index
    %899 = vector.load %arg8[%c0_705, %c0_706, %c2_707] : memref<2x22x22xf32, #tpu.memory_space<vmem>>, vector<1x22x20xf32>
    %900 = vector.shape_cast %899 : vector<1x22x20xf32> to vector<22x20xf32>
    %c2_708 = arith.constant 2 : index
    %c0_709 = arith.constant 0 : index
    %c0_710 = arith.constant 0 : index
    %901 = vector.load %arg9[%c2_708, %c0_709, %c0_710] : memref<14x22x22xf32, #tpu.memory_space<vmem>>, vector<1x22x20xf32>
    %902 = vector.shape_cast %901 : vector<1x22x20xf32> to vector<22x20xf32>
    %903 = vector.shape_cast %900 : vector<22x20xf32> to vector<1x22x20xf32>
    tpu.vector_store %arg9[%c2_708, %c0_709, %c0_710], %903 {strides = array<i32>} : memref<14x22x22xf32, #tpu.memory_space<vmem>>, vector<1x22x20xf32>,
    %c0_711 = arith.constant 0 : index
    %c0_712 = arith.constant 0 : index
    %c3_713 = arith.constant 3 : index
    %904 = vector.load %arg8[%c0_711, %c0_712, %c3_713] : memref<2x22x22xf32, #tpu.memory_space<vmem>>, vector<1x22x19xf32>
    %905 = vector.shape_cast %904 : vector<1x22x19xf32> to vector<22x19xf32>
    %c3_714 = arith.constant 3 : index
    %c0_715 = arith.constant 0 : index
    %c0_716 = arith.constant 0 : index
    %906 = vector.load %arg9[%c3_714, %c0_715, %c0_716] : memref<14x22x22xf32, #tpu.memory_space<vmem>>, vector<1x22x19xf32>
    %907 = vector.shape_cast %906 : vector<1x22x19xf32> to vector<22x19xf32>
    %908 = vector.shape_cast %905 : vector<22x19xf32> to vector<1x22x19xf32>
    tpu.vector_store %arg9[%c3_714, %c0_715, %c0_716], %908 {strides = array<i32>} : memref<14x22x22xf32, #tpu.memory_space<vmem>>, vector<1x22x19xf32>,
    %c0_717 = arith.constant 0 : index
    %c0_718 = arith.constant 0 : index
    %c4_719 = arith.constant 4 : index
    %909 = vector.load %arg8[%c0_717, %c0_718, %c4_719] : memref<2x22x22xf32, #tpu.memory_space<vmem>>, vector<1x22x18xf32>
    %910 = vector.shape_cast %909 : vector<1x22x18xf32> to vector<22x18xf32>
    %c4_720 = arith.constant 4 : index
    %c0_721 = arith.constant 0 : index
    %c0_722 = arith.constant 0 : index
    %911 = vector.load %arg9[%c4_720, %c0_721, %c0_722] : memref<14x22x22xf32, #tpu.memory_space<vmem>>, vector<1x22x18xf32>
    %912 = vector.shape_cast %911 : vector<1x22x18xf32> to vector<22x18xf32>
    %913 = vector.shape_cast %910 : vector<22x18xf32> to vector<1x22x18xf32>
    tpu.vector_store %arg9[%c4_720, %c0_721, %c0_722], %913 {strides = array<i32>} : memref<14x22x22xf32, #tpu.memory_space<vmem>>, vector<1x22x18xf32>,
    %c0_723 = arith.constant 0 : index
    %c0_724 = arith.constant 0 : index
    %c5_725 = arith.constant 5 : index
    %914 = vector.load %arg8[%c0_723, %c0_724, %c5_725] : memref<2x22x22xf32, #tpu.memory_space<vmem>>, vector<1x22x17xf32>
    %915 = vector.shape_cast %914 : vector<1x22x17xf32> to vector<22x17xf32>
    %c5_726 = arith.constant 5 : index
    %c0_727 = arith.constant 0 : index
    %c0_728 = arith.constant 0 : index
    %916 = vector.load %arg9[%c5_726, %c0_727, %c0_728] : memref<14x22x22xf32, #tpu.memory_space<vmem>>, vector<1x22x17xf32>
    %917 = vector.shape_cast %916 : vector<1x22x17xf32> to vector<22x17xf32>
    %918 = vector.shape_cast %915 : vector<22x17xf32> to vector<1x22x17xf32>
    tpu.vector_store %arg9[%c5_726, %c0_727, %c0_728], %918 {strides = array<i32>} : memref<14x22x22xf32, #tpu.memory_space<vmem>>, vector<1x22x17xf32>,
    %c0_729 = arith.constant 0 : index
    %c0_730 = arith.constant 0 : index
    %c6_731 = arith.constant 6 : index
    %919 = vector.load %arg8[%c0_729, %c0_730, %c6_731] : memref<2x22x22xf32, #tpu.memory_space<vmem>>, vector<1x22x16xf32>
    %920 = vector.shape_cast %919 : vector<1x22x16xf32> to vector<22x16xf32>
    %c6_732 = arith.constant 6 : index
    %c0_733 = arith.constant 0 : index
    %c0_734 = arith.constant 0 : index
    %921 = vector.load %arg9[%c6_732, %c0_733, %c0_734] : memref<14x22x22xf32, #tpu.memory_space<vmem>>, vector<1x22x16xf32>
    %922 = vector.shape_cast %921 : vector<1x22x16xf32> to vector<22x16xf32>
    %923 = vector.shape_cast %920 : vector<22x16xf32> to vector<1x22x16xf32>
    tpu.vector_store %arg9[%c6_732, %c0_733, %c0_734], %923 {strides = array<i32>} : memref<14x22x22xf32, #tpu.memory_space<vmem>>, vector<1x22x16xf32>,
    %c1_735 = arith.constant 1 : index
    %c0_736 = arith.constant 0 : index
    %c0_737 = arith.constant 0 : index
    %924 = vector.load %arg8[%c1_735, %c0_736, %c0_737] : memref<2x22x22xf32, #tpu.memory_space<vmem>>, vector<1x22x22xf32>
    %925 = vector.shape_cast %924 : vector<1x22x22xf32> to vector<22x22xf32>
    %c7_738 = arith.constant 7 : index
    %c0_739 = arith.constant 0 : index
    %c0_740 = arith.constant 0 : index
    %926 = vector.load %arg9[%c7_738, %c0_739, %c0_740] : memref<14x22x22xf32, #tpu.memory_space<vmem>>, vector<1x22x22xf32>
    %927 = vector.shape_cast %926 : vector<1x22x22xf32> to vector<22x22xf32>
    %928 = vector.shape_cast %925 : vector<22x22xf32> to vector<1x22x22xf32>
    tpu.vector_store %arg9[%c7_738, %c0_739, %c0_740], %928 {strides = array<i32>} : memref<14x22x22xf32, #tpu.memory_space<vmem>>, vector<1x22x22xf32>,
    %c1_741 = arith.constant 1 : index
    %c0_742 = arith.constant 0 : index
    %c1_743 = arith.constant 1 : index
    %929 = vector.load %arg8[%c1_741, %c0_742, %c1_743] : memref<2x22x22xf32, #tpu.memory_space<vmem>>, vector<1x22x21xf32>
    %930 = vector.shape_cast %929 : vector<1x22x21xf32> to vector<22x21xf32>
    %c8_744 = arith.constant 8 : index
    %c0_745 = arith.constant 0 : index
    %c0_746 = arith.constant 0 : index
    %931 = vector.load %arg9[%c8_744, %c0_745, %c0_746] : memref<14x22x22xf32, #tpu.memory_space<vmem>>, vector<1x22x21xf32>
    %932 = vector.shape_cast %931 : vector<1x22x21xf32> to vector<22x21xf32>
    %933 = vector.shape_cast %930 : vector<22x21xf32> to vector<1x22x21xf32>
    tpu.vector_store %arg9[%c8_744, %c0_745, %c0_746], %933 {strides = array<i32>} : memref<14x22x22xf32, #tpu.memory_space<vmem>>, vector<1x22x21xf32>,
    %c1_747 = arith.constant 1 : index
    %c0_748 = arith.constant 0 : index
    %c2_749 = arith.constant 2 : index
    %934 = vector.load %arg8[%c1_747, %c0_748, %c2_749] : memref<2x22x22xf32, #tpu.memory_space<vmem>>, vector<1x22x20xf32>
    %935 = vector.shape_cast %934 : vector<1x22x20xf32> to vector<22x20xf32>
    %c9_750 = arith.constant 9 : index
    %c0_751 = arith.constant 0 : index
    %c0_752 = arith.constant 0 : index
    %936 = vector.load %arg9[%c9_750, %c0_751, %c0_752] : memref<14x22x22xf32, #tpu.memory_space<vmem>>, vector<1x22x20xf32>
    %937 = vector.shape_cast %936 : vector<1x22x20xf32> to vector<22x20xf32>
    %938 = vector.shape_cast %935 : vector<22x20xf32> to vector<1x22x20xf32>
    tpu.vector_store %arg9[%c9_750, %c0_751, %c0_752], %938 {strides = array<i32>} : memref<14x22x22xf32, #tpu.memory_space<vmem>>, vector<1x22x20xf32>,
    %c1_753 = arith.constant 1 : index
    %c0_754 = arith.constant 0 : index
    %c3_755 = arith.constant 3 : index
    %939 = vector.load %arg8[%c1_753, %c0_754, %c3_755] : memref<2x22x22xf32, #tpu.memory_space<vmem>>, vector<1x22x19xf32>
    %940 = vector.shape_cast %939 : vector<1x22x19xf32> to vector<22x19xf32>
    %c10_756 = arith.constant 10 : index
    %c0_757 = arith.constant 0 : index
    %c0_758 = arith.constant 0 : index
    %941 = vector.load %arg9[%c10_756, %c0_757, %c0_758] : memref<14x22x22xf32, #tpu.memory_space<vmem>>, vector<1x22x19xf32>
    %942 = vector.shape_cast %941 : vector<1x22x19xf32> to vector<22x19xf32>
    %943 = vector.shape_cast %940 : vector<22x19xf32> to vector<1x22x19xf32>
    tpu.vector_store %arg9[%c10_756, %c0_757, %c0_758], %943 {strides = array<i32>} : memref<14x22x22xf32, #tpu.memory_space<vmem>>, vector<1x22x19xf32>,
    %c1_759 = arith.constant 1 : index
    %c0_760 = arith.constant 0 : index
    %c4_761 = arith.constant 4 : index
    %944 = vector.load %arg8[%c1_759, %c0_760, %c4_761] : memref<2x22x22xf32, #tpu.memory_space<vmem>>, vector<1x22x18xf32>
    %945 = vector.shape_cast %944 : vector<1x22x18xf32> to vector<22x18xf32>
    %c11_762 = arith.constant 11 : index
    %c0_763 = arith.constant 0 : index
    %c0_764 = arith.constant 0 : index
    %946 = vector.load %arg9[%c11_762, %c0_763, %c0_764] : memref<14x22x22xf32, #tpu.memory_space<vmem>>, vector<1x22x18xf32>
    %947 = vector.shape_cast %946 : vector<1x22x18xf32> to vector<22x18xf32>
    %948 = vector.shape_cast %945 : vector<22x18xf32> to vector<1x22x18xf32>
    tpu.vector_store %arg9[%c11_762, %c0_763, %c0_764], %948 {strides = array<i32>} : memref<14x22x22xf32, #tpu.memory_space<vmem>>, vector<1x22x18xf32>,
    %c1_765 = arith.constant 1 : index
    %c0_766 = arith.constant 0 : index
    %c5_767 = arith.constant 5 : index
    %949 = vector.load %arg8[%c1_765, %c0_766, %c5_767] : memref<2x22x22xf32, #tpu.memory_space<vmem>>, vector<1x22x17xf32>
    %950 = vector.shape_cast %949 : vector<1x22x17xf32> to vector<22x17xf32>
    %c12_768 = arith.constant 12 : index
    %c0_769 = arith.constant 0 : index
    %c0_770 = arith.constant 0 : index
    %951 = vector.load %arg9[%c12_768, %c0_769, %c0_770] : memref<14x22x22xf32, #tpu.memory_space<vmem>>, vector<1x22x17xf32>
    %952 = vector.shape_cast %951 : vector<1x22x17xf32> to vector<22x17xf32>
    %953 = vector.shape_cast %950 : vector<22x17xf32> to vector<1x22x17xf32>
    tpu.vector_store %arg9[%c12_768, %c0_769, %c0_770], %953 {strides = array<i32>} : memref<14x22x22xf32, #tpu.memory_space<vmem>>, vector<1x22x17xf32>,
    %c1_771 = arith.constant 1 : index
    %c0_772 = arith.constant 0 : index
    %c6_773 = arith.constant 6 : index
    %954 = vector.load %arg8[%c1_771, %c0_772, %c6_773] : memref<2x22x22xf32, #tpu.memory_space<vmem>>, vector<1x22x16xf32>
    %955 = vector.shape_cast %954 : vector<1x22x16xf32> to vector<22x16xf32>
    %c13_774 = arith.constant 13 : index
    %c0_775 = arith.constant 0 : index
    %c0_776 = arith.constant 0 : index
    %956 = vector.load %arg9[%c13_774, %c0_775, %c0_776] : memref<14x22x22xf32, #tpu.memory_space<vmem>>, vector<1x22x16xf32>
    %957 = vector.shape_cast %956 : vector<1x22x16xf32> to vector<22x16xf32>
    %958 = vector.shape_cast %955 : vector<22x16xf32> to vector<1x22x16xf32>
    tpu.vector_store %arg9[%c13_774, %c0_775, %c0_776], %958 {strides = array<i32>} : memref<14x22x22xf32, #tpu.memory_space<vmem>>, vector<1x22x16xf32>,
    %cst_777 = arith.constant 0.000000e+00 : f32
    %959 = vector.broadcast %cst_777 : f32 to vector<16x16xf32>
    %c0_778 = arith.constant 0 : index
    %960 = memref.load %arg1[%c0_778] : memref<98xf32, #tpu.memory_space<smem>>
    %c0_779 = arith.constant 0 : index
    %c0_780 = arith.constant 0 : index
    %c0_781 = arith.constant 0 : index
    %961 = vector.load %arg9[%c0_779, %c0_780, %c0_781] : memref<14x22x22xf32, #tpu.memory_space<vmem>>, vector<1x16x16xf32>
    %962 = vector.shape_cast %961 : vector<1x16x16xf32> to vector<16x16xf32>
    %963 = vector.broadcast %960 : f32 to vector<16x16xf32>
    %964 = arith.mulf %963, %962 : vector<16x16xf32>
    %965 = arith.addf %959, %964 : vector<16x16xf32>
    %c1_782 = arith.constant 1 : index
    %966 = memref.load %arg1[%c1_782] : memref<98xf32, #tpu.memory_space<smem>>
    %c1_783 = arith.constant 1 : index
    %c0_784 = arith.constant 0 : index
    %c0_785 = arith.constant 0 : index
    %967 = vector.load %arg9[%c1_783, %c0_784, %c0_785] : memref<14x22x22xf32, #tpu.memory_space<vmem>>, vector<1x16x16xf32>
    %968 = vector.shape_cast %967 : vector<1x16x16xf32> to vector<16x16xf32>
    %969 = vector.broadcast %966 : f32 to vector<16x16xf32>
    %970 = arith.mulf %969, %968 : vector<16x16xf32>
    %971 = arith.addf %965, %970 : vector<16x16xf32>
    %c2_786 = arith.constant 2 : index
    %972 = memref.load %arg1[%c2_786] : memref<98xf32, #tpu.memory_space<smem>>
    %c2_787 = arith.constant 2 : index
    %c0_788 = arith.constant 0 : index
    %c0_789 = arith.constant 0 : index
    %973 = vector.load %arg9[%c2_787, %c0_788, %c0_789] : memref<14x22x22xf32, #tpu.memory_space<vmem>>, vector<1x16x16xf32>
    %974 = vector.shape_cast %973 : vector<1x16x16xf32> to vector<16x16xf32>
    %975 = vector.broadcast %972 : f32 to vector<16x16xf32>
    %976 = arith.mulf %975, %974 : vector<16x16xf32>
    %977 = arith.addf %971, %976 : vector<16x16xf32>
    %c3_790 = arith.constant 3 : index
    %978 = memref.load %arg1[%c3_790] : memref<98xf32, #tpu.memory_space<smem>>
    %c3_791 = arith.constant 3 : index
    %c0_792 = arith.constant 0 : index
    %c0_793 = arith.constant 0 : index
    %979 = vector.load %arg9[%c3_791, %c0_792, %c0_793] : memref<14x22x22xf32, #tpu.memory_space<vmem>>, vector<1x16x16xf32>
    %980 = vector.shape_cast %979 : vector<1x16x16xf32> to vector<16x16xf32>
    %981 = vector.broadcast %978 : f32 to vector<16x16xf32>
    %982 = arith.mulf %981, %980 : vector<16x16xf32>
    %983 = arith.addf %977, %982 : vector<16x16xf32>
    %c4_794 = arith.constant 4 : index
    %984 = memref.load %arg1[%c4_794] : memref<98xf32, #tpu.memory_space<smem>>
    %c4_795 = arith.constant 4 : index
    %c0_796 = arith.constant 0 : index
    %c0_797 = arith.constant 0 : index
    %985 = vector.load %arg9[%c4_795, %c0_796, %c0_797] : memref<14x22x22xf32, #tpu.memory_space<vmem>>, vector<1x16x16xf32>
    %986 = vector.shape_cast %985 : vector<1x16x16xf32> to vector<16x16xf32>
    %987 = vector.broadcast %984 : f32 to vector<16x16xf32>
    %988 = arith.mulf %987, %986 : vector<16x16xf32>
    %989 = arith.addf %983, %988 : vector<16x16xf32>
    %c5_798 = arith.constant 5 : index
    %990 = memref.load %arg1[%c5_798] : memref<98xf32, #tpu.memory_space<smem>>
    %c5_799 = arith.constant 5 : index
    %c0_800 = arith.constant 0 : index
    %c0_801 = arith.constant 0 : index
    %991 = vector.load %arg9[%c5_799, %c0_800, %c0_801] : memref<14x22x22xf32, #tpu.memory_space<vmem>>, vector<1x16x16xf32>
    %992 = vector.shape_cast %991 : vector<1x16x16xf32> to vector<16x16xf32>
    %993 = vector.broadcast %990 : f32 to vector<16x16xf32>
    %994 = arith.mulf %993, %992 : vector<16x16xf32>
    %995 = arith.addf %989, %994 : vector<16x16xf32>
    %c6_802 = arith.constant 6 : index
    %996 = memref.load %arg1[%c6_802] : memref<98xf32, #tpu.memory_space<smem>>
    %c6_803 = arith.constant 6 : index
    %c0_804 = arith.constant 0 : index
    %c0_805 = arith.constant 0 : index
    %997 = vector.load %arg9[%c6_803, %c0_804, %c0_805] : memref<14x22x22xf32, #tpu.memory_space<vmem>>, vector<1x16x16xf32>
    %998 = vector.shape_cast %997 : vector<1x16x16xf32> to vector<16x16xf32>
    %999 = vector.broadcast %996 : f32 to vector<16x16xf32>
    %1000 = arith.mulf %999, %998 : vector<16x16xf32>
    %1001 = arith.addf %995, %1000 : vector<16x16xf32>
    %c7_806 = arith.constant 7 : index
    %1002 = memref.load %arg1[%c7_806] : memref<98xf32, #tpu.memory_space<smem>>
    %c0_807 = arith.constant 0 : index
    %c1_808 = arith.constant 1 : index
    %c0_809 = arith.constant 0 : index
    %1003 = vector.load %arg9[%c0_807, %c1_808, %c0_809] : memref<14x22x22xf32, #tpu.memory_space<vmem>>, vector<1x16x16xf32>
    %1004 = vector.shape_cast %1003 : vector<1x16x16xf32> to vector<16x16xf32>
    %1005 = vector.broadcast %1002 : f32 to vector<16x16xf32>
    %1006 = arith.mulf %1005, %1004 : vector<16x16xf32>
    %1007 = arith.addf %1001, %1006 : vector<16x16xf32>
    %c8_810 = arith.constant 8 : index
    %1008 = memref.load %arg1[%c8_810] : memref<98xf32, #tpu.memory_space<smem>>
    %c1_811 = arith.constant 1 : index
    %c1_812 = arith.constant 1 : index
    %c0_813 = arith.constant 0 : index
    %1009 = vector.load %arg9[%c1_811, %c1_812, %c0_813] : memref<14x22x22xf32, #tpu.memory_space<vmem>>, vector<1x16x16xf32>
    %1010 = vector.shape_cast %1009 : vector<1x16x16xf32> to vector<16x16xf32>
    %1011 = vector.broadcast %1008 : f32 to vector<16x16xf32>
    %1012 = arith.mulf %1011, %1010 : vector<16x16xf32>
    %1013 = arith.addf %1007, %1012 : vector<16x16xf32>
    %c9_814 = arith.constant 9 : index
    %1014 = memref.load %arg1[%c9_814] : memref<98xf32, #tpu.memory_space<smem>>
    %c2_815 = arith.constant 2 : index
    %c1_816 = arith.constant 1 : index
    %c0_817 = arith.constant 0 : index
    %1015 = vector.load %arg9[%c2_815, %c1_816, %c0_817] : memref<14x22x22xf32, #tpu.memory_space<vmem>>, vector<1x16x16xf32>
    %1016 = vector.shape_cast %1015 : vector<1x16x16xf32> to vector<16x16xf32>
    %1017 = vector.broadcast %1014 : f32 to vector<16x16xf32>
    %1018 = arith.mulf %1017, %1016 : vector<16x16xf32>
    %1019 = arith.addf %1013, %1018 : vector<16x16xf32>
    %c10_818 = arith.constant 10 : index
    %1020 = memref.load %arg1[%c10_818] : memref<98xf32, #tpu.memory_space<smem>>
    %c3_819 = arith.constant 3 : index
    %c1_820 = arith.constant 1 : index
    %c0_821 = arith.constant 0 : index
    %1021 = vector.load %arg9[%c3_819, %c1_820, %c0_821] : memref<14x22x22xf32, #tpu.memory_space<vmem>>, vector<1x16x16xf32>
    %1022 = vector.shape_cast %1021 : vector<1x16x16xf32> to vector<16x16xf32>
    %1023 = vector.broadcast %1020 : f32 to vector<16x16xf32>
    %1024 = arith.mulf %1023, %1022 : vector<16x16xf32>
    %1025 = arith.addf %1019, %1024 : vector<16x16xf32>
    %c11_822 = arith.constant 11 : index
    %1026 = memref.load %arg1[%c11_822] : memref<98xf32, #tpu.memory_space<smem>>
    %c4_823 = arith.constant 4 : index
    %c1_824 = arith.constant 1 : index
    %c0_825 = arith.constant 0 : index
    %1027 = vector.load %arg9[%c4_823, %c1_824, %c0_825] : memref<14x22x22xf32, #tpu.memory_space<vmem>>, vector<1x16x16xf32>
    %1028 = vector.shape_cast %1027 : vector<1x16x16xf32> to vector<16x16xf32>
    %1029 = vector.broadcast %1026 : f32 to vector<16x16xf32>
    %1030 = arith.mulf %1029, %1028 : vector<16x16xf32>
    %1031 = arith.addf %1025, %1030 : vector<16x16xf32>
    %c12_826 = arith.constant 12 : index
    %1032 = memref.load %arg1[%c12_826] : memref<98xf32, #tpu.memory_space<smem>>
    %c5_827 = arith.constant 5 : index
    %c1_828 = arith.constant 1 : index
    %c0_829 = arith.constant 0 : index
    %1033 = vector.load %arg9[%c5_827, %c1_828, %c0_829] : memref<14x22x22xf32, #tpu.memory_space<vmem>>, vector<1x16x16xf32>
    %1034 = vector.shape_cast %1033 : vector<1x16x16xf32> to vector<16x16xf32>
    %1035 = vector.broadcast %1032 : f32 to vector<16x16xf32>
    %1036 = arith.mulf %1035, %1034 : vector<16x16xf32>
    %1037 = arith.addf %1031, %1036 : vector<16x16xf32>
    %c13_830 = arith.constant 13 : index
    %1038 = memref.load %arg1[%c13_830] : memref<98xf32, #tpu.memory_space<smem>>
    %c6_831 = arith.constant 6 : index
    %c1_832 = arith.constant 1 : index
    %c0_833 = arith.constant 0 : index
    %1039 = vector.load %arg9[%c6_831, %c1_832, %c0_833] : memref<14x22x22xf32, #tpu.memory_space<vmem>>, vector<1x16x16xf32>
    %1040 = vector.shape_cast %1039 : vector<1x16x16xf32> to vector<16x16xf32>
    %1041 = vector.broadcast %1038 : f32 to vector<16x16xf32>
    %1042 = arith.mulf %1041, %1040 : vector<16x16xf32>
    %1043 = arith.addf %1037, %1042 : vector<16x16xf32>
    %c14_834 = arith.constant 14 : index
    %1044 = memref.load %arg1[%c14_834] : memref<98xf32, #tpu.memory_space<smem>>
    %c0_835 = arith.constant 0 : index
    %c2_836 = arith.constant 2 : index
    %c0_837 = arith.constant 0 : index
    %1045 = vector.load %arg9[%c0_835, %c2_836, %c0_837] : memref<14x22x22xf32, #tpu.memory_space<vmem>>, vector<1x16x16xf32>
    %1046 = vector.shape_cast %1045 : vector<1x16x16xf32> to vector<16x16xf32>
    %1047 = vector.broadcast %1044 : f32 to vector<16x16xf32>
    %1048 = arith.mulf %1047, %1046 : vector<16x16xf32>
    %1049 = arith.addf %1043, %1048 : vector<16x16xf32>
    %c15_838 = arith.constant 15 : index
    %1050 = memref.load %arg1[%c15_838] : memref<98xf32, #tpu.memory_space<smem>>
    %c1_839 = arith.constant 1 : index
    %c2_840 = arith.constant 2 : index
    %c0_841 = arith.constant 0 : index
    %1051 = vector.load %arg9[%c1_839, %c2_840, %c0_841] : memref<14x22x22xf32, #tpu.memory_space<vmem>>, vector<1x16x16xf32>
    %1052 = vector.shape_cast %1051 : vector<1x16x16xf32> to vector<16x16xf32>
    %1053 = vector.broadcast %1050 : f32 to vector<16x16xf32>
    %1054 = arith.mulf %1053, %1052 : vector<16x16xf32>
    %1055 = arith.addf %1049, %1054 : vector<16x16xf32>
    %c16_842 = arith.constant 16 : index
    %1056 = memref.load %arg1[%c16_842] : memref<98xf32, #tpu.memory_space<smem>>
    %c2_843 = arith.constant 2 : index
    %c2_844 = arith.constant 2 : index
    %c0_845 = arith.constant 0 : index
    %1057 = vector.load %arg9[%c2_843, %c2_844, %c0_845] : memref<14x22x22xf32, #tpu.memory_space<vmem>>, vector<1x16x16xf32>
    %1058 = vector.shape_cast %1057 : vector<1x16x16xf32> to vector<16x16xf32>
    %1059 = vector.broadcast %1056 : f32 to vector<16x16xf32>
    %1060 = arith.mulf %1059, %1058 : vector<16x16xf32>
    %1061 = arith.addf %1055, %1060 : vector<16x16xf32>
    %c17_846 = arith.constant 17 : index
    %1062 = memref.load %arg1[%c17_846] : memref<98xf32, #tpu.memory_space<smem>>
    %c3_847 = arith.constant 3 : index
    %c2_848 = arith.constant 2 : index
    %c0_849 = arith.constant 0 : index
    %1063 = vector.load %arg9[%c3_847, %c2_848, %c0_849] : memref<14x22x22xf32, #tpu.memory_space<vmem>>, vector<1x16x16xf32>
    %1064 = vector.shape_cast %1063 : vector<1x16x16xf32> to vector<16x16xf32>
    %1065 = vector.broadcast %1062 : f32 to vector<16x16xf32>
    %1066 = arith.mulf %1065, %1064 : vector<16x16xf32>
    %1067 = arith.addf %1061, %1066 : vector<16x16xf32>
    %c18_850 = arith.constant 18 : index
    %1068 = memref.load %arg1[%c18_850] : memref<98xf32, #tpu.memory_space<smem>>
    %c4_851 = arith.constant 4 : index
    %c2_852 = arith.constant 2 : index
    %c0_853 = arith.constant 0 : index
    %1069 = vector.load %arg9[%c4_851, %c2_852, %c0_853] : memref<14x22x22xf32, #tpu.memory_space<vmem>>, vector<1x16x16xf32>
    %1070 = vector.shape_cast %1069 : vector<1x16x16xf32> to vector<16x16xf32>
    %1071 = vector.broadcast %1068 : f32 to vector<16x16xf32>
    %1072 = arith.mulf %1071, %1070 : vector<16x16xf32>
    %1073 = arith.addf %1067, %1072 : vector<16x16xf32>
    %c19_854 = arith.constant 19 : index
    %1074 = memref.load %arg1[%c19_854] : memref<98xf32, #tpu.memory_space<smem>>
    %c5_855 = arith.constant 5 : index
    %c2_856 = arith.constant 2 : index
    %c0_857 = arith.constant 0 : index
    %1075 = vector.load %arg9[%c5_855, %c2_856, %c0_857] : memref<14x22x22xf32, #tpu.memory_space<vmem>>, vector<1x16x16xf32>
    %1076 = vector.shape_cast %1075 : vector<1x16x16xf32> to vector<16x16xf32>
    %1077 = vector.broadcast %1074 : f32 to vector<16x16xf32>
    %1078 = arith.mulf %1077, %1076 : vector<16x16xf32>
    %1079 = arith.addf %1073, %1078 : vector<16x16xf32>
    %c20_858 = arith.constant 20 : index
    %1080 = memref.load %arg1[%c20_858] : memref<98xf32, #tpu.memory_space<smem>>
    %c6_859 = arith.constant 6 : index
    %c2_860 = arith.constant 2 : index
    %c0_861 = arith.constant 0 : index
    %1081 = vector.load %arg9[%c6_859, %c2_860, %c0_861] : memref<14x22x22xf32, #tpu.memory_space<vmem>>, vector<1x16x16xf32>
    %1082 = vector.shape_cast %1081 : vector<1x16x16xf32> to vector<16x16xf32>
    %1083 = vector.broadcast %1080 : f32 to vector<16x16xf32>
    %1084 = arith.mulf %1083, %1082 : vector<16x16xf32>
    %1085 = arith.addf %1079, %1084 : vector<16x16xf32>
    %c21_862 = arith.constant 21 : index
    %1086 = memref.load %arg1[%c21_862] : memref<98xf32, #tpu.memory_space<smem>>
    %c0_863 = arith.constant 0 : index
    %c3_864 = arith.constant 3 : index
    %c0_865 = arith.constant 0 : index
    %1087 = vector.load %arg9[%c0_863, %c3_864, %c0_865] : memref<14x22x22xf32, #tpu.memory_space<vmem>>, vector<1x16x16xf32>
    %1088 = vector.shape_cast %1087 : vector<1x16x16xf32> to vector<16x16xf32>
    %1089 = vector.broadcast %1086 : f32 to vector<16x16xf32>
    %1090 = arith.mulf %1089, %1088 : vector<16x16xf32>
    %1091 = arith.addf %1085, %1090 : vector<16x16xf32>
    %c22_866 = arith.constant 22 : index
    %1092 = memref.load %arg1[%c22_866] : memref<98xf32, #tpu.memory_space<smem>>
    %c1_867 = arith.constant 1 : index
    %c3_868 = arith.constant 3 : index
    %c0_869 = arith.constant 0 : index
    %1093 = vector.load %arg9[%c1_867, %c3_868, %c0_869] : memref<14x22x22xf32, #tpu.memory_space<vmem>>, vector<1x16x16xf32>
    %1094 = vector.shape_cast %1093 : vector<1x16x16xf32> to vector<16x16xf32>
    %1095 = vector.broadcast %1092 : f32 to vector<16x16xf32>
    %1096 = arith.mulf %1095, %1094 : vector<16x16xf32>
    %1097 = arith.addf %1091, %1096 : vector<16x16xf32>
    %c23_870 = arith.constant 23 : index
    %1098 = memref.load %arg1[%c23_870] : memref<98xf32, #tpu.memory_space<smem>>
    %c2_871 = arith.constant 2 : index
    %c3_872 = arith.constant 3 : index
    %c0_873 = arith.constant 0 : index
    %1099 = vector.load %arg9[%c2_871, %c3_872, %c0_873] : memref<14x22x22xf32, #tpu.memory_space<vmem>>, vector<1x16x16xf32>
    %1100 = vector.shape_cast %1099 : vector<1x16x16xf32> to vector<16x16xf32>
    %1101 = vector.broadcast %1098 : f32 to vector<16x16xf32>
    %1102 = arith.mulf %1101, %1100 : vector<16x16xf32>
    %1103 = arith.addf %1097, %1102 : vector<16x16xf32>
    %c24_874 = arith.constant 24 : index
    %1104 = memref.load %arg1[%c24_874] : memref<98xf32, #tpu.memory_space<smem>>
    %c3_875 = arith.constant 3 : index
    %c3_876 = arith.constant 3 : index
    %c0_877 = arith.constant 0 : index
    %1105 = vector.load %arg9[%c3_875, %c3_876, %c0_877] : memref<14x22x22xf32, #tpu.memory_space<vmem>>, vector<1x16x16xf32>
    %1106 = vector.shape_cast %1105 : vector<1x16x16xf32> to vector<16x16xf32>
    %1107 = vector.broadcast %1104 : f32 to vector<16x16xf32>
    %1108 = arith.mulf %1107, %1106 : vector<16x16xf32>
    %1109 = arith.addf %1103, %1108 : vector<16x16xf32>
    %c25_878 = arith.constant 25 : index
    %1110 = memref.load %arg1[%c25_878] : memref<98xf32, #tpu.memory_space<smem>>
    %c4_879 = arith.constant 4 : index
    %c3_880 = arith.constant 3 : index
    %c0_881 = arith.constant 0 : index
    %1111 = vector.load %arg9[%c4_879, %c3_880, %c0_881] : memref<14x22x22xf32, #tpu.memory_space<vmem>>, vector<1x16x16xf32>
    %1112 = vector.shape_cast %1111 : vector<1x16x16xf32> to vector<16x16xf32>
    %1113 = vector.broadcast %1110 : f32 to vector<16x16xf32>
    %1114 = arith.mulf %1113, %1112 : vector<16x16xf32>
    %1115 = arith.addf %1109, %1114 : vector<16x16xf32>
    %c26_882 = arith.constant 26 : index
    %1116 = memref.load %arg1[%c26_882] : memref<98xf32, #tpu.memory_space<smem>>
    %c5_883 = arith.constant 5 : index
    %c3_884 = arith.constant 3 : index
    %c0_885 = arith.constant 0 : index
    %1117 = vector.load %arg9[%c5_883, %c3_884, %c0_885] : memref<14x22x22xf32, #tpu.memory_space<vmem>>, vector<1x16x16xf32>
    %1118 = vector.shape_cast %1117 : vector<1x16x16xf32> to vector<16x16xf32>
    %1119 = vector.broadcast %1116 : f32 to vector<16x16xf32>
    %1120 = arith.mulf %1119, %1118 : vector<16x16xf32>
    %1121 = arith.addf %1115, %1120 : vector<16x16xf32>
    %c27_886 = arith.constant 27 : index
    %1122 = memref.load %arg1[%c27_886] : memref<98xf32, #tpu.memory_space<smem>>
    %c6_887 = arith.constant 6 : index
    %c3_888 = arith.constant 3 : index
    %c0_889 = arith.constant 0 : index
    %1123 = vector.load %arg9[%c6_887, %c3_888, %c0_889] : memref<14x22x22xf32, #tpu.memory_space<vmem>>, vector<1x16x16xf32>
    %1124 = vector.shape_cast %1123 : vector<1x16x16xf32> to vector<16x16xf32>
    %1125 = vector.broadcast %1122 : f32 to vector<16x16xf32>
    %1126 = arith.mulf %1125, %1124 : vector<16x16xf32>
    %1127 = arith.addf %1121, %1126 : vector<16x16xf32>
    %c28_890 = arith.constant 28 : index
    %1128 = memref.load %arg1[%c28_890] : memref<98xf32, #tpu.memory_space<smem>>
    %c0_891 = arith.constant 0 : index
    %c4_892 = arith.constant 4 : index
    %c0_893 = arith.constant 0 : index
    %1129 = vector.load %arg9[%c0_891, %c4_892, %c0_893] : memref<14x22x22xf32, #tpu.memory_space<vmem>>, vector<1x16x16xf32>
    %1130 = vector.shape_cast %1129 : vector<1x16x16xf32> to vector<16x16xf32>
    %1131 = vector.broadcast %1128 : f32 to vector<16x16xf32>
    %1132 = arith.mulf %1131, %1130 : vector<16x16xf32>
    %1133 = arith.addf %1127, %1132 : vector<16x16xf32>
    %c29_894 = arith.constant 29 : index
    %1134 = memref.load %arg1[%c29_894] : memref<98xf32, #tpu.memory_space<smem>>
    %c1_895 = arith.constant 1 : index
    %c4_896 = arith.constant 4 : index
    %c0_897 = arith.constant 0 : index
    %1135 = vector.load %arg9[%c1_895, %c4_896, %c0_897] : memref<14x22x22xf32, #tpu.memory_space<vmem>>, vector<1x16x16xf32>
    %1136 = vector.shape_cast %1135 : vector<1x16x16xf32> to vector<16x16xf32>
    %1137 = vector.broadcast %1134 : f32 to vector<16x16xf32>
    %1138 = arith.mulf %1137, %1136 : vector<16x16xf32>
    %1139 = arith.addf %1133, %1138 : vector<16x16xf32>
    %c30_898 = arith.constant 30 : index
    %1140 = memref.load %arg1[%c30_898] : memref<98xf32, #tpu.memory_space<smem>>
    %c2_899 = arith.constant 2 : index
    %c4_900 = arith.constant 4 : index
    %c0_901 = arith.constant 0 : index
    %1141 = vector.load %arg9[%c2_899, %c4_900, %c0_901] : memref<14x22x22xf32, #tpu.memory_space<vmem>>, vector<1x16x16xf32>
    %1142 = vector.shape_cast %1141 : vector<1x16x16xf32> to vector<16x16xf32>
    %1143 = vector.broadcast %1140 : f32 to vector<16x16xf32>
    %1144 = arith.mulf %1143, %1142 : vector<16x16xf32>
    %1145 = arith.addf %1139, %1144 : vector<16x16xf32>
    %c31_902 = arith.constant 31 : index
    %1146 = memref.load %arg1[%c31_902] : memref<98xf32, #tpu.memory_space<smem>>
    %c3_903 = arith.constant 3 : index
    %c4_904 = arith.constant 4 : index
    %c0_905 = arith.constant 0 : index
    %1147 = vector.load %arg9[%c3_903, %c4_904, %c0_905] : memref<14x22x22xf32, #tpu.memory_space<vmem>>, vector<1x16x16xf32>
    %1148 = vector.shape_cast %1147 : vector<1x16x16xf32> to vector<16x16xf32>
    %1149 = vector.broadcast %1146 : f32 to vector<16x16xf32>
    %1150 = arith.mulf %1149, %1148 : vector<16x16xf32>
    %1151 = arith.addf %1145, %1150 : vector<16x16xf32>
    %c32 = arith.constant 32 : index
    %1152 = memref.load %arg1[%c32] : memref<98xf32, #tpu.memory_space<smem>>
    %c4_906 = arith.constant 4 : index
    %c4_907 = arith.constant 4 : index
    %c0_908 = arith.constant 0 : index
    %1153 = vector.load %arg9[%c4_906, %c4_907, %c0_908] : memref<14x22x22xf32, #tpu.memory_space<vmem>>, vector<1x16x16xf32>
    %1154 = vector.shape_cast %1153 : vector<1x16x16xf32> to vector<16x16xf32>
    %1155 = vector.broadcast %1152 : f32 to vector<16x16xf32>
    %1156 = arith.mulf %1155, %1154 : vector<16x16xf32>
    %1157 = arith.addf %1151, %1156 : vector<16x16xf32>
    %c33 = arith.constant 33 : index
    %1158 = memref.load %arg1[%c33] : memref<98xf32, #tpu.memory_space<smem>>
    %c5_909 = arith.constant 5 : index
    %c4_910 = arith.constant 4 : index
    %c0_911 = arith.constant 0 : index
    %1159 = vector.load %arg9[%c5_909, %c4_910, %c0_911] : memref<14x22x22xf32, #tpu.memory_space<vmem>>, vector<1x16x16xf32>
    %1160 = vector.shape_cast %1159 : vector<1x16x16xf32> to vector<16x16xf32>
    %1161 = vector.broadcast %1158 : f32 to vector<16x16xf32>
    %1162 = arith.mulf %1161, %1160 : vector<16x16xf32>
    %1163 = arith.addf %1157, %1162 : vector<16x16xf32>
    %c34 = arith.constant 34 : index
    %1164 = memref.load %arg1[%c34] : memref<98xf32, #tpu.memory_space<smem>>
    %c6_912 = arith.constant 6 : index
    %c4_913 = arith.constant 4 : index
    %c0_914 = arith.constant 0 : index
    %1165 = vector.load %arg9[%c6_912, %c4_913, %c0_914] : memref<14x22x22xf32, #tpu.memory_space<vmem>>, vector<1x16x16xf32>
    %1166 = vector.shape_cast %1165 : vector<1x16x16xf32> to vector<16x16xf32>
    %1167 = vector.broadcast %1164 : f32 to vector<16x16xf32>
    %1168 = arith.mulf %1167, %1166 : vector<16x16xf32>
    %1169 = arith.addf %1163, %1168 : vector<16x16xf32>
    %c35 = arith.constant 35 : index
    %1170 = memref.load %arg1[%c35] : memref<98xf32, #tpu.memory_space<smem>>
    %c0_915 = arith.constant 0 : index
    %c5_916 = arith.constant 5 : index
    %c0_917 = arith.constant 0 : index
    %1171 = vector.load %arg9[%c0_915, %c5_916, %c0_917] : memref<14x22x22xf32, #tpu.memory_space<vmem>>, vector<1x16x16xf32>
    %1172 = vector.shape_cast %1171 : vector<1x16x16xf32> to vector<16x16xf32>
    %1173 = vector.broadcast %1170 : f32 to vector<16x16xf32>
    %1174 = arith.mulf %1173, %1172 : vector<16x16xf32>
    %1175 = arith.addf %1169, %1174 : vector<16x16xf32>
    %c36 = arith.constant 36 : index
    %1176 = memref.load %arg1[%c36] : memref<98xf32, #tpu.memory_space<smem>>
    %c1_918 = arith.constant 1 : index
    %c5_919 = arith.constant 5 : index
    %c0_920 = arith.constant 0 : index
    %1177 = vector.load %arg9[%c1_918, %c5_919, %c0_920] : memref<14x22x22xf32, #tpu.memory_space<vmem>>, vector<1x16x16xf32>
    %1178 = vector.shape_cast %1177 : vector<1x16x16xf32> to vector<16x16xf32>
    %1179 = vector.broadcast %1176 : f32 to vector<16x16xf32>
    %1180 = arith.mulf %1179, %1178 : vector<16x16xf32>
    %1181 = arith.addf %1175, %1180 : vector<16x16xf32>
    %c37 = arith.constant 37 : index
    %1182 = memref.load %arg1[%c37] : memref<98xf32, #tpu.memory_space<smem>>
    %c2_921 = arith.constant 2 : index
    %c5_922 = arith.constant 5 : index
    %c0_923 = arith.constant 0 : index
    %1183 = vector.load %arg9[%c2_921, %c5_922, %c0_923] : memref<14x22x22xf32, #tpu.memory_space<vmem>>, vector<1x16x16xf32>
    %1184 = vector.shape_cast %1183 : vector<1x16x16xf32> to vector<16x16xf32>
    %1185 = vector.broadcast %1182 : f32 to vector<16x16xf32>
    %1186 = arith.mulf %1185, %1184 : vector<16x16xf32>
    %1187 = arith.addf %1181, %1186 : vector<16x16xf32>
    %c38 = arith.constant 38 : index
    %1188 = memref.load %arg1[%c38] : memref<98xf32, #tpu.memory_space<smem>>
    %c3_924 = arith.constant 3 : index
    %c5_925 = arith.constant 5 : index
    %c0_926 = arith.constant 0 : index
    %1189 = vector.load %arg9[%c3_924, %c5_925, %c0_926] : memref<14x22x22xf32, #tpu.memory_space<vmem>>, vector<1x16x16xf32>
    %1190 = vector.shape_cast %1189 : vector<1x16x16xf32> to vector<16x16xf32>
    %1191 = vector.broadcast %1188 : f32 to vector<16x16xf32>
    %1192 = arith.mulf %1191, %1190 : vector<16x16xf32>
    %1193 = arith.addf %1187, %1192 : vector<16x16xf32>
    %c39 = arith.constant 39 : index
    %1194 = memref.load %arg1[%c39] : memref<98xf32, #tpu.memory_space<smem>>
    %c4_927 = arith.constant 4 : index
    %c5_928 = arith.constant 5 : index
    %c0_929 = arith.constant 0 : index
    %1195 = vector.load %arg9[%c4_927, %c5_928, %c0_929] : memref<14x22x22xf32, #tpu.memory_space<vmem>>, vector<1x16x16xf32>
    %1196 = vector.shape_cast %1195 : vector<1x16x16xf32> to vector<16x16xf32>
    %1197 = vector.broadcast %1194 : f32 to vector<16x16xf32>
    %1198 = arith.mulf %1197, %1196 : vector<16x16xf32>
    %1199 = arith.addf %1193, %1198 : vector<16x16xf32>
    %c40 = arith.constant 40 : index
    %1200 = memref.load %arg1[%c40] : memref<98xf32, #tpu.memory_space<smem>>
    %c5_930 = arith.constant 5 : index
    %c5_931 = arith.constant 5 : index
    %c0_932 = arith.constant 0 : index
    %1201 = vector.load %arg9[%c5_930, %c5_931, %c0_932] : memref<14x22x22xf32, #tpu.memory_space<vmem>>, vector<1x16x16xf32>
    %1202 = vector.shape_cast %1201 : vector<1x16x16xf32> to vector<16x16xf32>
    %1203 = vector.broadcast %1200 : f32 to vector<16x16xf32>
    %1204 = arith.mulf %1203, %1202 : vector<16x16xf32>
    %1205 = arith.addf %1199, %1204 : vector<16x16xf32>
    %c41 = arith.constant 41 : index
    %1206 = memref.load %arg1[%c41] : memref<98xf32, #tpu.memory_space<smem>>
    %c6_933 = arith.constant 6 : index
    %c5_934 = arith.constant 5 : index
    %c0_935 = arith.constant 0 : index
    %1207 = vector.load %arg9[%c6_933, %c5_934, %c0_935] : memref<14x22x22xf32, #tpu.memory_space<vmem>>, vector<1x16x16xf32>
    %1208 = vector.shape_cast %1207 : vector<1x16x16xf32> to vector<16x16xf32>
    %1209 = vector.broadcast %1206 : f32 to vector<16x16xf32>
    %1210 = arith.mulf %1209, %1208 : vector<16x16xf32>
    %1211 = arith.addf %1205, %1210 : vector<16x16xf32>
    %c42 = arith.constant 42 : index
    %1212 = memref.load %arg1[%c42] : memref<98xf32, #tpu.memory_space<smem>>
    %c0_936 = arith.constant 0 : index
    %c6_937 = arith.constant 6 : index
    %c0_938 = arith.constant 0 : index
    %1213 = vector.load %arg9[%c0_936, %c6_937, %c0_938] : memref<14x22x22xf32, #tpu.memory_space<vmem>>, vector<1x16x16xf32>
    %1214 = vector.shape_cast %1213 : vector<1x16x16xf32> to vector<16x16xf32>
    %1215 = vector.broadcast %1212 : f32 to vector<16x16xf32>
    %1216 = arith.mulf %1215, %1214 : vector<16x16xf32>
    %1217 = arith.addf %1211, %1216 : vector<16x16xf32>
    %c43 = arith.constant 43 : index
    %1218 = memref.load %arg1[%c43] : memref<98xf32, #tpu.memory_space<smem>>
    %c1_939 = arith.constant 1 : index
    %c6_940 = arith.constant 6 : index
    %c0_941 = arith.constant 0 : index
    %1219 = vector.load %arg9[%c1_939, %c6_940, %c0_941] : memref<14x22x22xf32, #tpu.memory_space<vmem>>, vector<1x16x16xf32>
    %1220 = vector.shape_cast %1219 : vector<1x16x16xf32> to vector<16x16xf32>
    %1221 = vector.broadcast %1218 : f32 to vector<16x16xf32>
    %1222 = arith.mulf %1221, %1220 : vector<16x16xf32>
    %1223 = arith.addf %1217, %1222 : vector<16x16xf32>
    %c44 = arith.constant 44 : index
    %1224 = memref.load %arg1[%c44] : memref<98xf32, #tpu.memory_space<smem>>
    %c2_942 = arith.constant 2 : index
    %c6_943 = arith.constant 6 : index
    %c0_944 = arith.constant 0 : index
    %1225 = vector.load %arg9[%c2_942, %c6_943, %c0_944] : memref<14x22x22xf32, #tpu.memory_space<vmem>>, vector<1x16x16xf32>
    %1226 = vector.shape_cast %1225 : vector<1x16x16xf32> to vector<16x16xf32>
    %1227 = vector.broadcast %1224 : f32 to vector<16x16xf32>
    %1228 = arith.mulf %1227, %1226 : vector<16x16xf32>
    %1229 = arith.addf %1223, %1228 : vector<16x16xf32>
    %c45 = arith.constant 45 : index
    %1230 = memref.load %arg1[%c45] : memref<98xf32, #tpu.memory_space<smem>>
    %c3_945 = arith.constant 3 : index
    %c6_946 = arith.constant 6 : index
    %c0_947 = arith.constant 0 : index
    %1231 = vector.load %arg9[%c3_945, %c6_946, %c0_947] : memref<14x22x22xf32, #tpu.memory_space<vmem>>, vector<1x16x16xf32>
    %1232 = vector.shape_cast %1231 : vector<1x16x16xf32> to vector<16x16xf32>
    %1233 = vector.broadcast %1230 : f32 to vector<16x16xf32>
    %1234 = arith.mulf %1233, %1232 : vector<16x16xf32>
    %1235 = arith.addf %1229, %1234 : vector<16x16xf32>
    %c46 = arith.constant 46 : index
    %1236 = memref.load %arg1[%c46] : memref<98xf32, #tpu.memory_space<smem>>
    %c4_948 = arith.constant 4 : index
    %c6_949 = arith.constant 6 : index
    %c0_950 = arith.constant 0 : index
    %1237 = vector.load %arg9[%c4_948, %c6_949, %c0_950] : memref<14x22x22xf32, #tpu.memory_space<vmem>>, vector<1x16x16xf32>
    %1238 = vector.shape_cast %1237 : vector<1x16x16xf32> to vector<16x16xf32>
    %1239 = vector.broadcast %1236 : f32 to vector<16x16xf32>
    %1240 = arith.mulf %1239, %1238 : vector<16x16xf32>
    %1241 = arith.addf %1235, %1240 : vector<16x16xf32>
    %c47 = arith.constant 47 : index
    %1242 = memref.load %arg1[%c47] : memref<98xf32, #tpu.memory_space<smem>>
    %c5_951 = arith.constant 5 : index
    %c6_952 = arith.constant 6 : index
    %c0_953 = arith.constant 0 : index
    %1243 = vector.load %arg9[%c5_951, %c6_952, %c0_953] : memref<14x22x22xf32, #tpu.memory_space<vmem>>, vector<1x16x16xf32>
    %1244 = vector.shape_cast %1243 : vector<1x16x16xf32> to vector<16x16xf32>
    %1245 = vector.broadcast %1242 : f32 to vector<16x16xf32>
    %1246 = arith.mulf %1245, %1244 : vector<16x16xf32>
    %1247 = arith.addf %1241, %1246 : vector<16x16xf32>
    %c48 = arith.constant 48 : index
    %1248 = memref.load %arg1[%c48] : memref<98xf32, #tpu.memory_space<smem>>
    %c6_954 = arith.constant 6 : index
    %c6_955 = arith.constant 6 : index
    %c0_956 = arith.constant 0 : index
    %1249 = vector.load %arg9[%c6_954, %c6_955, %c0_956] : memref<14x22x22xf32, #tpu.memory_space<vmem>>, vector<1x16x16xf32>
    %1250 = vector.shape_cast %1249 : vector<1x16x16xf32> to vector<16x16xf32>
    %1251 = vector.broadcast %1248 : f32 to vector<16x16xf32>
    %1252 = arith.mulf %1251, %1250 : vector<16x16xf32>
    %1253 = arith.addf %1247, %1252 : vector<16x16xf32>
    %c49 = arith.constant 49 : index
    %1254 = memref.load %arg1[%c49] : memref<98xf32, #tpu.memory_space<smem>>
    %c7_957 = arith.constant 7 : index
    %c0_958 = arith.constant 0 : index
    %c0_959 = arith.constant 0 : index
    %1255 = vector.load %arg9[%c7_957, %c0_958, %c0_959] : memref<14x22x22xf32, #tpu.memory_space<vmem>>, vector<1x16x16xf32>
    %1256 = vector.shape_cast %1255 : vector<1x16x16xf32> to vector<16x16xf32>
    %1257 = vector.broadcast %1254 : f32 to vector<16x16xf32>
    %1258 = arith.mulf %1257, %1256 : vector<16x16xf32>
    %1259 = arith.addf %1253, %1258 : vector<16x16xf32>
    %c50 = arith.constant 50 : index
    %1260 = memref.load %arg1[%c50] : memref<98xf32, #tpu.memory_space<smem>>
    %c8_960 = arith.constant 8 : index
    %c0_961 = arith.constant 0 : index
    %c0_962 = arith.constant 0 : index
    %1261 = vector.load %arg9[%c8_960, %c0_961, %c0_962] : memref<14x22x22xf32, #tpu.memory_space<vmem>>, vector<1x16x16xf32>
    %1262 = vector.shape_cast %1261 : vector<1x16x16xf32> to vector<16x16xf32>
    %1263 = vector.broadcast %1260 : f32 to vector<16x16xf32>
    %1264 = arith.mulf %1263, %1262 : vector<16x16xf32>
    %1265 = arith.addf %1259, %1264 : vector<16x16xf32>
    %c51 = arith.constant 51 : index
    %1266 = memref.load %arg1[%c51] : memref<98xf32, #tpu.memory_space<smem>>
    %c9_963 = arith.constant 9 : index
    %c0_964 = arith.constant 0 : index
    %c0_965 = arith.constant 0 : index
    %1267 = vector.load %arg9[%c9_963, %c0_964, %c0_965] : memref<14x22x22xf32, #tpu.memory_space<vmem>>, vector<1x16x16xf32>
    %1268 = vector.shape_cast %1267 : vector<1x16x16xf32> to vector<16x16xf32>
    %1269 = vector.broadcast %1266 : f32 to vector<16x16xf32>
    %1270 = arith.mulf %1269, %1268 : vector<16x16xf32>
    %1271 = arith.addf %1265, %1270 : vector<16x16xf32>
    %c52 = arith.constant 52 : index
    %1272 = memref.load %arg1[%c52] : memref<98xf32, #tpu.memory_space<smem>>
    %c10_966 = arith.constant 10 : index
    %c0_967 = arith.constant 0 : index
    %c0_968 = arith.constant 0 : index
    %1273 = vector.load %arg9[%c10_966, %c0_967, %c0_968] : memref<14x22x22xf32, #tpu.memory_space<vmem>>, vector<1x16x16xf32>
    %1274 = vector.shape_cast %1273 : vector<1x16x16xf32> to vector<16x16xf32>
    %1275 = vector.broadcast %1272 : f32 to vector<16x16xf32>
    %1276 = arith.mulf %1275, %1274 : vector<16x16xf32>
    %1277 = arith.addf %1271, %1276 : vector<16x16xf32>
    %c53 = arith.constant 53 : index
    %1278 = memref.load %arg1[%c53] : memref<98xf32, #tpu.memory_space<smem>>
    %c11_969 = arith.constant 11 : index
    %c0_970 = arith.constant 0 : index
    %c0_971 = arith.constant 0 : index
    %1279 = vector.load %arg9[%c11_969, %c0_970, %c0_971] : memref<14x22x22xf32, #tpu.memory_space<vmem>>, vector<1x16x16xf32>
    %1280 = vector.shape_cast %1279 : vector<1x16x16xf32> to vector<16x16xf32>
    %1281 = vector.broadcast %1278 : f32 to vector<16x16xf32>
    %1282 = arith.mulf %1281, %1280 : vector<16x16xf32>
    %1283 = arith.addf %1277, %1282 : vector<16x16xf32>
    %c54 = arith.constant 54 : index
    %1284 = memref.load %arg1[%c54] : memref<98xf32, #tpu.memory_space<smem>>
    %c12_972 = arith.constant 12 : index
    %c0_973 = arith.constant 0 : index
    %c0_974 = arith.constant 0 : index
    %1285 = vector.load %arg9[%c12_972, %c0_973, %c0_974] : memref<14x22x22xf32, #tpu.memory_space<vmem>>, vector<1x16x16xf32>
    %1286 = vector.shape_cast %1285 : vector<1x16x16xf32> to vector<16x16xf32>
    %1287 = vector.broadcast %1284 : f32 to vector<16x16xf32>
    %1288 = arith.mulf %1287, %1286 : vector<16x16xf32>
    %1289 = arith.addf %1283, %1288 : vector<16x16xf32>
    %c55 = arith.constant 55 : index
    %1290 = memref.load %arg1[%c55] : memref<98xf32, #tpu.memory_space<smem>>
    %c13_975 = arith.constant 13 : index
    %c0_976 = arith.constant 0 : index
    %c0_977 = arith.constant 0 : index
    %1291 = vector.load %arg9[%c13_975, %c0_976, %c0_977] : memref<14x22x22xf32, #tpu.memory_space<vmem>>, vector<1x16x16xf32>
    %1292 = vector.shape_cast %1291 : vector<1x16x16xf32> to vector<16x16xf32>
    %1293 = vector.broadcast %1290 : f32 to vector<16x16xf32>
    %1294 = arith.mulf %1293, %1292 : vector<16x16xf32>
    %1295 = arith.addf %1289, %1294 : vector<16x16xf32>
    %c56 = arith.constant 56 : index
    %1296 = memref.load %arg1[%c56] : memref<98xf32, #tpu.memory_space<smem>>
    %c7_978 = arith.constant 7 : index
    %c1_979 = arith.constant 1 : index
    %c0_980 = arith.constant 0 : index
    %1297 = vector.load %arg9[%c7_978, %c1_979, %c0_980] : memref<14x22x22xf32, #tpu.memory_space<vmem>>, vector<1x16x16xf32>
    %1298 = vector.shape_cast %1297 : vector<1x16x16xf32> to vector<16x16xf32>
    %1299 = vector.broadcast %1296 : f32 to vector<16x16xf32>
    %1300 = arith.mulf %1299, %1298 : vector<16x16xf32>
    %1301 = arith.addf %1295, %1300 : vector<16x16xf32>
    %c57 = arith.constant 57 : index
    %1302 = memref.load %arg1[%c57] : memref<98xf32, #tpu.memory_space<smem>>
    %c8_981 = arith.constant 8 : index
    %c1_982 = arith.constant 1 : index
    %c0_983 = arith.constant 0 : index
    %1303 = vector.load %arg9[%c8_981, %c1_982, %c0_983] : memref<14x22x22xf32, #tpu.memory_space<vmem>>, vector<1x16x16xf32>
    %1304 = vector.shape_cast %1303 : vector<1x16x16xf32> to vector<16x16xf32>
    %1305 = vector.broadcast %1302 : f32 to vector<16x16xf32>
    %1306 = arith.mulf %1305, %1304 : vector<16x16xf32>
    %1307 = arith.addf %1301, %1306 : vector<16x16xf32>
    %c58 = arith.constant 58 : index
    %1308 = memref.load %arg1[%c58] : memref<98xf32, #tpu.memory_space<smem>>
    %c9_984 = arith.constant 9 : index
    %c1_985 = arith.constant 1 : index
    %c0_986 = arith.constant 0 : index
    %1309 = vector.load %arg9[%c9_984, %c1_985, %c0_986] : memref<14x22x22xf32, #tpu.memory_space<vmem>>, vector<1x16x16xf32>
    %1310 = vector.shape_cast %1309 : vector<1x16x16xf32> to vector<16x16xf32>
    %1311 = vector.broadcast %1308 : f32 to vector<16x16xf32>
    %1312 = arith.mulf %1311, %1310 : vector<16x16xf32>
    %1313 = arith.addf %1307, %1312 : vector<16x16xf32>
    %c59 = arith.constant 59 : index
    %1314 = memref.load %arg1[%c59] : memref<98xf32, #tpu.memory_space<smem>>
    %c10_987 = arith.constant 10 : index
    %c1_988 = arith.constant 1 : index
    %c0_989 = arith.constant 0 : index
    %1315 = vector.load %arg9[%c10_987, %c1_988, %c0_989] : memref<14x22x22xf32, #tpu.memory_space<vmem>>, vector<1x16x16xf32>
    %1316 = vector.shape_cast %1315 : vector<1x16x16xf32> to vector<16x16xf32>
    %1317 = vector.broadcast %1314 : f32 to vector<16x16xf32>
    %1318 = arith.mulf %1317, %1316 : vector<16x16xf32>
    %1319 = arith.addf %1313, %1318 : vector<16x16xf32>
    %c60 = arith.constant 60 : index
    %1320 = memref.load %arg1[%c60] : memref<98xf32, #tpu.memory_space<smem>>
    %c11_990 = arith.constant 11 : index
    %c1_991 = arith.constant 1 : index
    %c0_992 = arith.constant 0 : index
    %1321 = vector.load %arg9[%c11_990, %c1_991, %c0_992] : memref<14x22x22xf32, #tpu.memory_space<vmem>>, vector<1x16x16xf32>
    %1322 = vector.shape_cast %1321 : vector<1x16x16xf32> to vector<16x16xf32>
    %1323 = vector.broadcast %1320 : f32 to vector<16x16xf32>
    %1324 = arith.mulf %1323, %1322 : vector<16x16xf32>
    %1325 = arith.addf %1319, %1324 : vector<16x16xf32>
    %c61 = arith.constant 61 : index
    %1326 = memref.load %arg1[%c61] : memref<98xf32, #tpu.memory_space<smem>>
    %c12_993 = arith.constant 12 : index
    %c1_994 = arith.constant 1 : index
    %c0_995 = arith.constant 0 : index
    %1327 = vector.load %arg9[%c12_993, %c1_994, %c0_995] : memref<14x22x22xf32, #tpu.memory_space<vmem>>, vector<1x16x16xf32>
    %1328 = vector.shape_cast %1327 : vector<1x16x16xf32> to vector<16x16xf32>
    %1329 = vector.broadcast %1326 : f32 to vector<16x16xf32>
    %1330 = arith.mulf %1329, %1328 : vector<16x16xf32>
    %1331 = arith.addf %1325, %1330 : vector<16x16xf32>
    %c62 = arith.constant 62 : index
    %1332 = memref.load %arg1[%c62] : memref<98xf32, #tpu.memory_space<smem>>
    %c13_996 = arith.constant 13 : index
    %c1_997 = arith.constant 1 : index
    %c0_998 = arith.constant 0 : index
    %1333 = vector.load %arg9[%c13_996, %c1_997, %c0_998] : memref<14x22x22xf32, #tpu.memory_space<vmem>>, vector<1x16x16xf32>
    %1334 = vector.shape_cast %1333 : vector<1x16x16xf32> to vector<16x16xf32>
    %1335 = vector.broadcast %1332 : f32 to vector<16x16xf32>
    %1336 = arith.mulf %1335, %1334 : vector<16x16xf32>
    %1337 = arith.addf %1331, %1336 : vector<16x16xf32>
    %c63 = arith.constant 63 : index
    %1338 = memref.load %arg1[%c63] : memref<98xf32, #tpu.memory_space<smem>>
    %c7_999 = arith.constant 7 : index
    %c2_1000 = arith.constant 2 : index
    %c0_1001 = arith.constant 0 : index
    %1339 = vector.load %arg9[%c7_999, %c2_1000, %c0_1001] : memref<14x22x22xf32, #tpu.memory_space<vmem>>, vector<1x16x16xf32>
    %1340 = vector.shape_cast %1339 : vector<1x16x16xf32> to vector<16x16xf32>
    %1341 = vector.broadcast %1338 : f32 to vector<16x16xf32>
    %1342 = arith.mulf %1341, %1340 : vector<16x16xf32>
    %1343 = arith.addf %1337, %1342 : vector<16x16xf32>
    %c64 = arith.constant 64 : index
    %1344 = memref.load %arg1[%c64] : memref<98xf32, #tpu.memory_space<smem>>
    %c8_1002 = arith.constant 8 : index
    %c2_1003 = arith.constant 2 : index
    %c0_1004 = arith.constant 0 : index
    %1345 = vector.load %arg9[%c8_1002, %c2_1003, %c0_1004] : memref<14x22x22xf32, #tpu.memory_space<vmem>>, vector<1x16x16xf32>
    %1346 = vector.shape_cast %1345 : vector<1x16x16xf32> to vector<16x16xf32>
    %1347 = vector.broadcast %1344 : f32 to vector<16x16xf32>
    %1348 = arith.mulf %1347, %1346 : vector<16x16xf32>
    %1349 = arith.addf %1343, %1348 : vector<16x16xf32>
    %c65 = arith.constant 65 : index
    %1350 = memref.load %arg1[%c65] : memref<98xf32, #tpu.memory_space<smem>>
    %c9_1005 = arith.constant 9 : index
    %c2_1006 = arith.constant 2 : index
    %c0_1007 = arith.constant 0 : index
    %1351 = vector.load %arg9[%c9_1005, %c2_1006, %c0_1007] : memref<14x22x22xf32, #tpu.memory_space<vmem>>, vector<1x16x16xf32>
    %1352 = vector.shape_cast %1351 : vector<1x16x16xf32> to vector<16x16xf32>
    %1353 = vector.broadcast %1350 : f32 to vector<16x16xf32>
    %1354 = arith.mulf %1353, %1352 : vector<16x16xf32>
    %1355 = arith.addf %1349, %1354 : vector<16x16xf32>
    %c66 = arith.constant 66 : index
    %1356 = memref.load %arg1[%c66] : memref<98xf32, #tpu.memory_space<smem>>
    %c10_1008 = arith.constant 10 : index
    %c2_1009 = arith.constant 2 : index
    %c0_1010 = arith.constant 0 : index
    %1357 = vector.load %arg9[%c10_1008, %c2_1009, %c0_1010] : memref<14x22x22xf32, #tpu.memory_space<vmem>>, vector<1x16x16xf32>
    %1358 = vector.shape_cast %1357 : vector<1x16x16xf32> to vector<16x16xf32>
    %1359 = vector.broadcast %1356 : f32 to vector<16x16xf32>
    %1360 = arith.mulf %1359, %1358 : vector<16x16xf32>
    %1361 = arith.addf %1355, %1360 : vector<16x16xf32>
    %c67 = arith.constant 67 : index
    %1362 = memref.load %arg1[%c67] : memref<98xf32, #tpu.memory_space<smem>>
    %c11_1011 = arith.constant 11 : index
    %c2_1012 = arith.constant 2 : index
    %c0_1013 = arith.constant 0 : index
    %1363 = vector.load %arg9[%c11_1011, %c2_1012, %c0_1013] : memref<14x22x22xf32, #tpu.memory_space<vmem>>, vector<1x16x16xf32>
    %1364 = vector.shape_cast %1363 : vector<1x16x16xf32> to vector<16x16xf32>
    %1365 = vector.broadcast %1362 : f32 to vector<16x16xf32>
    %1366 = arith.mulf %1365, %1364 : vector<16x16xf32>
    %1367 = arith.addf %1361, %1366 : vector<16x16xf32>
    %c68 = arith.constant 68 : index
    %1368 = memref.load %arg1[%c68] : memref<98xf32, #tpu.memory_space<smem>>
    %c12_1014 = arith.constant 12 : index
    %c2_1015 = arith.constant 2 : index
    %c0_1016 = arith.constant 0 : index
    %1369 = vector.load %arg9[%c12_1014, %c2_1015, %c0_1016] : memref<14x22x22xf32, #tpu.memory_space<vmem>>, vector<1x16x16xf32>
    %1370 = vector.shape_cast %1369 : vector<1x16x16xf32> to vector<16x16xf32>
    %1371 = vector.broadcast %1368 : f32 to vector<16x16xf32>
    %1372 = arith.mulf %1371, %1370 : vector<16x16xf32>
    %1373 = arith.addf %1367, %1372 : vector<16x16xf32>
    %c69 = arith.constant 69 : index
    %1374 = memref.load %arg1[%c69] : memref<98xf32, #tpu.memory_space<smem>>
    %c13_1017 = arith.constant 13 : index
    %c2_1018 = arith.constant 2 : index
    %c0_1019 = arith.constant 0 : index
    %1375 = vector.load %arg9[%c13_1017, %c2_1018, %c0_1019] : memref<14x22x22xf32, #tpu.memory_space<vmem>>, vector<1x16x16xf32>
    %1376 = vector.shape_cast %1375 : vector<1x16x16xf32> to vector<16x16xf32>
    %1377 = vector.broadcast %1374 : f32 to vector<16x16xf32>
    %1378 = arith.mulf %1377, %1376 : vector<16x16xf32>
    %1379 = arith.addf %1373, %1378 : vector<16x16xf32>
    %c70 = arith.constant 70 : index
    %1380 = memref.load %arg1[%c70] : memref<98xf32, #tpu.memory_space<smem>>
    %c7_1020 = arith.constant 7 : index
    %c3_1021 = arith.constant 3 : index
    %c0_1022 = arith.constant 0 : index
    %1381 = vector.load %arg9[%c7_1020, %c3_1021, %c0_1022] : memref<14x22x22xf32, #tpu.memory_space<vmem>>, vector<1x16x16xf32>
    %1382 = vector.shape_cast %1381 : vector<1x16x16xf32> to vector<16x16xf32>
    %1383 = vector.broadcast %1380 : f32 to vector<16x16xf32>
    %1384 = arith.mulf %1383, %1382 : vector<16x16xf32>
    %1385 = arith.addf %1379, %1384 : vector<16x16xf32>
    %c71 = arith.constant 71 : index
    %1386 = memref.load %arg1[%c71] : memref<98xf32, #tpu.memory_space<smem>>
    %c8_1023 = arith.constant 8 : index
    %c3_1024 = arith.constant 3 : index
    %c0_1025 = arith.constant 0 : index
    %1387 = vector.load %arg9[%c8_1023, %c3_1024, %c0_1025] : memref<14x22x22xf32, #tpu.memory_space<vmem>>, vector<1x16x16xf32>
    %1388 = vector.shape_cast %1387 : vector<1x16x16xf32> to vector<16x16xf32>
    %1389 = vector.broadcast %1386 : f32 to vector<16x16xf32>
    %1390 = arith.mulf %1389, %1388 : vector<16x16xf32>
    %1391 = arith.addf %1385, %1390 : vector<16x16xf32>
    %c72 = arith.constant 72 : index
    %1392 = memref.load %arg1[%c72] : memref<98xf32, #tpu.memory_space<smem>>
    %c9_1026 = arith.constant 9 : index
    %c3_1027 = arith.constant 3 : index
    %c0_1028 = arith.constant 0 : index
    %1393 = vector.load %arg9[%c9_1026, %c3_1027, %c0_1028] : memref<14x22x22xf32, #tpu.memory_space<vmem>>, vector<1x16x16xf32>
    %1394 = vector.shape_cast %1393 : vector<1x16x16xf32> to vector<16x16xf32>
    %1395 = vector.broadcast %1392 : f32 to vector<16x16xf32>
    %1396 = arith.mulf %1395, %1394 : vector<16x16xf32>
    %1397 = arith.addf %1391, %1396 : vector<16x16xf32>
    %c73 = arith.constant 73 : index
    %1398 = memref.load %arg1[%c73] : memref<98xf32, #tpu.memory_space<smem>>
    %c10_1029 = arith.constant 10 : index
    %c3_1030 = arith.constant 3 : index
    %c0_1031 = arith.constant 0 : index
    %1399 = vector.load %arg9[%c10_1029, %c3_1030, %c0_1031] : memref<14x22x22xf32, #tpu.memory_space<vmem>>, vector<1x16x16xf32>
    %1400 = vector.shape_cast %1399 : vector<1x16x16xf32> to vector<16x16xf32>
    %1401 = vector.broadcast %1398 : f32 to vector<16x16xf32>
    %1402 = arith.mulf %1401, %1400 : vector<16x16xf32>
    %1403 = arith.addf %1397, %1402 : vector<16x16xf32>
    %c74 = arith.constant 74 : index
    %1404 = memref.load %arg1[%c74] : memref<98xf32, #tpu.memory_space<smem>>
    %c11_1032 = arith.constant 11 : index
    %c3_1033 = arith.constant 3 : index
    %c0_1034 = arith.constant 0 : index
    %1405 = vector.load %arg9[%c11_1032, %c3_1033, %c0_1034] : memref<14x22x22xf32, #tpu.memory_space<vmem>>, vector<1x16x16xf32>
    %1406 = vector.shape_cast %1405 : vector<1x16x16xf32> to vector<16x16xf32>
    %1407 = vector.broadcast %1404 : f32 to vector<16x16xf32>
    %1408 = arith.mulf %1407, %1406 : vector<16x16xf32>
    %1409 = arith.addf %1403, %1408 : vector<16x16xf32>
    %c75 = arith.constant 75 : index
    %1410 = memref.load %arg1[%c75] : memref<98xf32, #tpu.memory_space<smem>>
    %c12_1035 = arith.constant 12 : index
    %c3_1036 = arith.constant 3 : index
    %c0_1037 = arith.constant 0 : index
    %1411 = vector.load %arg9[%c12_1035, %c3_1036, %c0_1037] : memref<14x22x22xf32, #tpu.memory_space<vmem>>, vector<1x16x16xf32>
    %1412 = vector.shape_cast %1411 : vector<1x16x16xf32> to vector<16x16xf32>
    %1413 = vector.broadcast %1410 : f32 to vector<16x16xf32>
    %1414 = arith.mulf %1413, %1412 : vector<16x16xf32>
    %1415 = arith.addf %1409, %1414 : vector<16x16xf32>
    %c76 = arith.constant 76 : index
    %1416 = memref.load %arg1[%c76] : memref<98xf32, #tpu.memory_space<smem>>
    %c13_1038 = arith.constant 13 : index
    %c3_1039 = arith.constant 3 : index
    %c0_1040 = arith.constant 0 : index
    %1417 = vector.load %arg9[%c13_1038, %c3_1039, %c0_1040] : memref<14x22x22xf32, #tpu.memory_space<vmem>>, vector<1x16x16xf32>
    %1418 = vector.shape_cast %1417 : vector<1x16x16xf32> to vector<16x16xf32>
    %1419 = vector.broadcast %1416 : f32 to vector<16x16xf32>
    %1420 = arith.mulf %1419, %1418 : vector<16x16xf32>
    %1421 = arith.addf %1415, %1420 : vector<16x16xf32>
    %c77 = arith.constant 77 : index
    %1422 = memref.load %arg1[%c77] : memref<98xf32, #tpu.memory_space<smem>>
    %c7_1041 = arith.constant 7 : index
    %c4_1042 = arith.constant 4 : index
    %c0_1043 = arith.constant 0 : index
    %1423 = vector.load %arg9[%c7_1041, %c4_1042, %c0_1043] : memref<14x22x22xf32, #tpu.memory_space<vmem>>, vector<1x16x16xf32>
    %1424 = vector.shape_cast %1423 : vector<1x16x16xf32> to vector<16x16xf32>
    %1425 = vector.broadcast %1422 : f32 to vector<16x16xf32>
    %1426 = arith.mulf %1425, %1424 : vector<16x16xf32>
    %1427 = arith.addf %1421, %1426 : vector<16x16xf32>
    %c78 = arith.constant 78 : index
    %1428 = memref.load %arg1[%c78] : memref<98xf32, #tpu.memory_space<smem>>
    %c8_1044 = arith.constant 8 : index
    %c4_1045 = arith.constant 4 : index
    %c0_1046 = arith.constant 0 : index
    %1429 = vector.load %arg9[%c8_1044, %c4_1045, %c0_1046] : memref<14x22x22xf32, #tpu.memory_space<vmem>>, vector<1x16x16xf32>
    %1430 = vector.shape_cast %1429 : vector<1x16x16xf32> to vector<16x16xf32>
    %1431 = vector.broadcast %1428 : f32 to vector<16x16xf32>
    %1432 = arith.mulf %1431, %1430 : vector<16x16xf32>
    %1433 = arith.addf %1427, %1432 : vector<16x16xf32>
    %c79 = arith.constant 79 : index
    %1434 = memref.load %arg1[%c79] : memref<98xf32, #tpu.memory_space<smem>>
    %c9_1047 = arith.constant 9 : index
    %c4_1048 = arith.constant 4 : index
    %c0_1049 = arith.constant 0 : index
    %1435 = vector.load %arg9[%c9_1047, %c4_1048, %c0_1049] : memref<14x22x22xf32, #tpu.memory_space<vmem>>, vector<1x16x16xf32>
    %1436 = vector.shape_cast %1435 : vector<1x16x16xf32> to vector<16x16xf32>
    %1437 = vector.broadcast %1434 : f32 to vector<16x16xf32>
    %1438 = arith.mulf %1437, %1436 : vector<16x16xf32>
    %1439 = arith.addf %1433, %1438 : vector<16x16xf32>
    %c80 = arith.constant 80 : index
    %1440 = memref.load %arg1[%c80] : memref<98xf32, #tpu.memory_space<smem>>
    %c10_1050 = arith.constant 10 : index
    %c4_1051 = arith.constant 4 : index
    %c0_1052 = arith.constant 0 : index
    %1441 = vector.load %arg9[%c10_1050, %c4_1051, %c0_1052] : memref<14x22x22xf32, #tpu.memory_space<vmem>>, vector<1x16x16xf32>
    %1442 = vector.shape_cast %1441 : vector<1x16x16xf32> to vector<16x16xf32>
    %1443 = vector.broadcast %1440 : f32 to vector<16x16xf32>
    %1444 = arith.mulf %1443, %1442 : vector<16x16xf32>
    %1445 = arith.addf %1439, %1444 : vector<16x16xf32>
    %c81 = arith.constant 81 : index
    %1446 = memref.load %arg1[%c81] : memref<98xf32, #tpu.memory_space<smem>>
    %c11_1053 = arith.constant 11 : index
    %c4_1054 = arith.constant 4 : index
    %c0_1055 = arith.constant 0 : index
    %1447 = vector.load %arg9[%c11_1053, %c4_1054, %c0_1055] : memref<14x22x22xf32, #tpu.memory_space<vmem>>, vector<1x16x16xf32>
    %1448 = vector.shape_cast %1447 : vector<1x16x16xf32> to vector<16x16xf32>
    %1449 = vector.broadcast %1446 : f32 to vector<16x16xf32>
    %1450 = arith.mulf %1449, %1448 : vector<16x16xf32>
    %1451 = arith.addf %1445, %1450 : vector<16x16xf32>
    %c82 = arith.constant 82 : index
    %1452 = memref.load %arg1[%c82] : memref<98xf32, #tpu.memory_space<smem>>
    %c12_1056 = arith.constant 12 : index
    %c4_1057 = arith.constant 4 : index
    %c0_1058 = arith.constant 0 : index
    %1453 = vector.load %arg9[%c12_1056, %c4_1057, %c0_1058] : memref<14x22x22xf32, #tpu.memory_space<vmem>>, vector<1x16x16xf32>
    %1454 = vector.shape_cast %1453 : vector<1x16x16xf32> to vector<16x16xf32>
    %1455 = vector.broadcast %1452 : f32 to vector<16x16xf32>
    %1456 = arith.mulf %1455, %1454 : vector<16x16xf32>
    %1457 = arith.addf %1451, %1456 : vector<16x16xf32>
    %c83 = arith.constant 83 : index
    %1458 = memref.load %arg1[%c83] : memref<98xf32, #tpu.memory_space<smem>>
    %c13_1059 = arith.constant 13 : index
    %c4_1060 = arith.constant 4 : index
    %c0_1061 = arith.constant 0 : index
    %1459 = vector.load %arg9[%c13_1059, %c4_1060, %c0_1061] : memref<14x22x22xf32, #tpu.memory_space<vmem>>, vector<1x16x16xf32>
    %1460 = vector.shape_cast %1459 : vector<1x16x16xf32> to vector<16x16xf32>
    %1461 = vector.broadcast %1458 : f32 to vector<16x16xf32>
    %1462 = arith.mulf %1461, %1460 : vector<16x16xf32>
    %1463 = arith.addf %1457, %1462 : vector<16x16xf32>
    %c84 = arith.constant 84 : index
    %1464 = memref.load %arg1[%c84] : memref<98xf32, #tpu.memory_space<smem>>
    %c7_1062 = arith.constant 7 : index
    %c5_1063 = arith.constant 5 : index
    %c0_1064 = arith.constant 0 : index
    %1465 = vector.load %arg9[%c7_1062, %c5_1063, %c0_1064] : memref<14x22x22xf32, #tpu.memory_space<vmem>>, vector<1x16x16xf32>
    %1466 = vector.shape_cast %1465 : vector<1x16x16xf32> to vector<16x16xf32>
    %1467 = vector.broadcast %1464 : f32 to vector<16x16xf32>
    %1468 = arith.mulf %1467, %1466 : vector<16x16xf32>
    %1469 = arith.addf %1463, %1468 : vector<16x16xf32>
    %c85 = arith.constant 85 : index
    %1470 = memref.load %arg1[%c85] : memref<98xf32, #tpu.memory_space<smem>>
    %c8_1065 = arith.constant 8 : index
    %c5_1066 = arith.constant 5 : index
    %c0_1067 = arith.constant 0 : index
    %1471 = vector.load %arg9[%c8_1065, %c5_1066, %c0_1067] : memref<14x22x22xf32, #tpu.memory_space<vmem>>, vector<1x16x16xf32>
    %1472 = vector.shape_cast %1471 : vector<1x16x16xf32> to vector<16x16xf32>
    %1473 = vector.broadcast %1470 : f32 to vector<16x16xf32>
    %1474 = arith.mulf %1473, %1472 : vector<16x16xf32>
    %1475 = arith.addf %1469, %1474 : vector<16x16xf32>
    %c86 = arith.constant 86 : index
    %1476 = memref.load %arg1[%c86] : memref<98xf32, #tpu.memory_space<smem>>
    %c9_1068 = arith.constant 9 : index
    %c5_1069 = arith.constant 5 : index
    %c0_1070 = arith.constant 0 : index
    %1477 = vector.load %arg9[%c9_1068, %c5_1069, %c0_1070] : memref<14x22x22xf32, #tpu.memory_space<vmem>>, vector<1x16x16xf32>
    %1478 = vector.shape_cast %1477 : vector<1x16x16xf32> to vector<16x16xf32>
    %1479 = vector.broadcast %1476 : f32 to vector<16x16xf32>
    %1480 = arith.mulf %1479, %1478 : vector<16x16xf32>
    %1481 = arith.addf %1475, %1480 : vector<16x16xf32>
    %c87 = arith.constant 87 : index
    %1482 = memref.load %arg1[%c87] : memref<98xf32, #tpu.memory_space<smem>>
    %c10_1071 = arith.constant 10 : index
    %c5_1072 = arith.constant 5 : index
    %c0_1073 = arith.constant 0 : index
    %1483 = vector.load %arg9[%c10_1071, %c5_1072, %c0_1073] : memref<14x22x22xf32, #tpu.memory_space<vmem>>, vector<1x16x16xf32>
    %1484 = vector.shape_cast %1483 : vector<1x16x16xf32> to vector<16x16xf32>
    %1485 = vector.broadcast %1482 : f32 to vector<16x16xf32>
    %1486 = arith.mulf %1485, %1484 : vector<16x16xf32>
    %1487 = arith.addf %1481, %1486 : vector<16x16xf32>
    %c88 = arith.constant 88 : index
    %1488 = memref.load %arg1[%c88] : memref<98xf32, #tpu.memory_space<smem>>
    %c11_1074 = arith.constant 11 : index
    %c5_1075 = arith.constant 5 : index
    %c0_1076 = arith.constant 0 : index
    %1489 = vector.load %arg9[%c11_1074, %c5_1075, %c0_1076] : memref<14x22x22xf32, #tpu.memory_space<vmem>>, vector<1x16x16xf32>
    %1490 = vector.shape_cast %1489 : vector<1x16x16xf32> to vector<16x16xf32>
    %1491 = vector.broadcast %1488 : f32 to vector<16x16xf32>
    %1492 = arith.mulf %1491, %1490 : vector<16x16xf32>
    %1493 = arith.addf %1487, %1492 : vector<16x16xf32>
    %c89 = arith.constant 89 : index
    %1494 = memref.load %arg1[%c89] : memref<98xf32, #tpu.memory_space<smem>>
    %c12_1077 = arith.constant 12 : index
    %c5_1078 = arith.constant 5 : index
    %c0_1079 = arith.constant 0 : index
    %1495 = vector.load %arg9[%c12_1077, %c5_1078, %c0_1079] : memref<14x22x22xf32, #tpu.memory_space<vmem>>, vector<1x16x16xf32>
    %1496 = vector.shape_cast %1495 : vector<1x16x16xf32> to vector<16x16xf32>
    %1497 = vector.broadcast %1494 : f32 to vector<16x16xf32>
    %1498 = arith.mulf %1497, %1496 : vector<16x16xf32>
    %1499 = arith.addf %1493, %1498 : vector<16x16xf32>
    %c90 = arith.constant 90 : index
    %1500 = memref.load %arg1[%c90] : memref<98xf32, #tpu.memory_space<smem>>
    %c13_1080 = arith.constant 13 : index
    %c5_1081 = arith.constant 5 : index
    %c0_1082 = arith.constant 0 : index
    %1501 = vector.load %arg9[%c13_1080, %c5_1081, %c0_1082] : memref<14x22x22xf32, #tpu.memory_space<vmem>>, vector<1x16x16xf32>
    %1502 = vector.shape_cast %1501 : vector<1x16x16xf32> to vector<16x16xf32>
    %1503 = vector.broadcast %1500 : f32 to vector<16x16xf32>
    %1504 = arith.mulf %1503, %1502 : vector<16x16xf32>
    %1505 = arith.addf %1499, %1504 : vector<16x16xf32>
    %c91 = arith.constant 91 : index
    %1506 = memref.load %arg1[%c91] : memref<98xf32, #tpu.memory_space<smem>>
    %c7_1083 = arith.constant 7 : index
    %c6_1084 = arith.constant 6 : index
    %c0_1085 = arith.constant 0 : index
    %1507 = vector.load %arg9[%c7_1083, %c6_1084, %c0_1085] : memref<14x22x22xf32, #tpu.memory_space<vmem>>, vector<1x16x16xf32>
    %1508 = vector.shape_cast %1507 : vector<1x16x16xf32> to vector<16x16xf32>
    %1509 = vector.broadcast %1506 : f32 to vector<16x16xf32>
    %1510 = arith.mulf %1509, %1508 : vector<16x16xf32>
    %1511 = arith.addf %1505, %1510 : vector<16x16xf32>
    %c92 = arith.constant 92 : index
    %1512 = memref.load %arg1[%c92] : memref<98xf32, #tpu.memory_space<smem>>
    %c8_1086 = arith.constant 8 : index
    %c6_1087 = arith.constant 6 : index
    %c0_1088 = arith.constant 0 : index
    %1513 = vector.load %arg9[%c8_1086, %c6_1087, %c0_1088] : memref<14x22x22xf32, #tpu.memory_space<vmem>>, vector<1x16x16xf32>
    %1514 = vector.shape_cast %1513 : vector<1x16x16xf32> to vector<16x16xf32>
    %1515 = vector.broadcast %1512 : f32 to vector<16x16xf32>
    %1516 = arith.mulf %1515, %1514 : vector<16x16xf32>
    %1517 = arith.addf %1511, %1516 : vector<16x16xf32>
    %c93 = arith.constant 93 : index
    %1518 = memref.load %arg1[%c93] : memref<98xf32, #tpu.memory_space<smem>>
    %c9_1089 = arith.constant 9 : index
    %c6_1090 = arith.constant 6 : index
    %c0_1091 = arith.constant 0 : index
    %1519 = vector.load %arg9[%c9_1089, %c6_1090, %c0_1091] : memref<14x22x22xf32, #tpu.memory_space<vmem>>, vector<1x16x16xf32>
    %1520 = vector.shape_cast %1519 : vector<1x16x16xf32> to vector<16x16xf32>
    %1521 = vector.broadcast %1518 : f32 to vector<16x16xf32>
    %1522 = arith.mulf %1521, %1520 : vector<16x16xf32>
    %1523 = arith.addf %1517, %1522 : vector<16x16xf32>
    %c94 = arith.constant 94 : index
    %1524 = memref.load %arg1[%c94] : memref<98xf32, #tpu.memory_space<smem>>
    %c10_1092 = arith.constant 10 : index
    %c6_1093 = arith.constant 6 : index
    %c0_1094 = arith.constant 0 : index
    %1525 = vector.load %arg9[%c10_1092, %c6_1093, %c0_1094] : memref<14x22x22xf32, #tpu.memory_space<vmem>>, vector<1x16x16xf32>
    %1526 = vector.shape_cast %1525 : vector<1x16x16xf32> to vector<16x16xf32>
    %1527 = vector.broadcast %1524 : f32 to vector<16x16xf32>
    %1528 = arith.mulf %1527, %1526 : vector<16x16xf32>
    %1529 = arith.addf %1523, %1528 : vector<16x16xf32>
    %c95 = arith.constant 95 : index
    %1530 = memref.load %arg1[%c95] : memref<98xf32, #tpu.memory_space<smem>>
    %c11_1095 = arith.constant 11 : index
    %c6_1096 = arith.constant 6 : index
    %c0_1097 = arith.constant 0 : index
    %1531 = vector.load %arg9[%c11_1095, %c6_1096, %c0_1097] : memref<14x22x22xf32, #tpu.memory_space<vmem>>, vector<1x16x16xf32>
    %1532 = vector.shape_cast %1531 : vector<1x16x16xf32> to vector<16x16xf32>
    %1533 = vector.broadcast %1530 : f32 to vector<16x16xf32>
    %1534 = arith.mulf %1533, %1532 : vector<16x16xf32>
    %1535 = arith.addf %1529, %1534 : vector<16x16xf32>
    %c96 = arith.constant 96 : index
    %1536 = memref.load %arg1[%c96] : memref<98xf32, #tpu.memory_space<smem>>
    %c12_1098 = arith.constant 12 : index
    %c6_1099 = arith.constant 6 : index
    %c0_1100 = arith.constant 0 : index
    %1537 = vector.load %arg9[%c12_1098, %c6_1099, %c0_1100] : memref<14x22x22xf32, #tpu.memory_space<vmem>>, vector<1x16x16xf32>
    %1538 = vector.shape_cast %1537 : vector<1x16x16xf32> to vector<16x16xf32>
    %1539 = vector.broadcast %1536 : f32 to vector<16x16xf32>
    %1540 = arith.mulf %1539, %1538 : vector<16x16xf32>
    %1541 = arith.addf %1535, %1540 : vector<16x16xf32>
    %c97 = arith.constant 97 : index
    %1542 = memref.load %arg1[%c97] : memref<98xf32, #tpu.memory_space<smem>>
    %c13_1101 = arith.constant 13 : index
    %c6_1102 = arith.constant 6 : index
    %c0_1103 = arith.constant 0 : index
    %1543 = vector.load %arg9[%c13_1101, %c6_1102, %c0_1103] : memref<14x22x22xf32, #tpu.memory_space<vmem>>, vector<1x16x16xf32>
    %1544 = vector.shape_cast %1543 : vector<1x16x16xf32> to vector<16x16xf32>
    %1545 = vector.broadcast %1542 : f32 to vector<16x16xf32>
    %1546 = arith.mulf %1545, %1544 : vector<16x16xf32>
    %1547 = arith.addf %1541, %1546 : vector<16x16xf32>
    %1548 = arith.negf %1547 : vector<16x16xf32>
    %1549 = math.exp %1548 : vector<16x16xf32>
    %cst_1104 = arith.constant 1.000000e+00 : f32
    %1550 = vector.broadcast %cst_1104 : f32 to vector<16x16xf32>
    %1551 = arith.addf %1550, %1549 : vector<16x16xf32>
    %1552 = arith.divf %1550, %1551 : vector<16x16xf32>
    %c0_1105 = arith.constant 0 : index
    %c0_1106 = arith.constant 0 : index
    %c0_1107 = arith.constant 0 : index
    %c0_1108 = arith.constant 0 : index
    %1553 = vector.load %arg5[%c0_1105, %c0_1106, %c0_1107, %c0_1108] : memref<1x32x16x16xf32, #tpu.memory_space<vmem>>, vector<1x1x16x16xf32>
    %1554 = vector.shape_cast %1553 : vector<1x1x16x16xf32> to vector<16x16xf32>
    %1555 = arith.mulf %1554, %1552 : vector<16x16xf32>
    %c0_1109 = arith.constant 0 : index
    %c0_1110 = arith.constant 0 : index
    %c0_1111 = arith.constant 0 : index
    %c0_1112 = arith.constant 0 : index
    %1556 = vector.load %arg5[%c0_1109, %c0_1110, %c0_1111, %c0_1112] : memref<1x32x16x16xf32, #tpu.memory_space<vmem>>, vector<1x1x16x16xf32>
    %1557 = vector.shape_cast %1556 : vector<1x1x16x16xf32> to vector<16x16xf32>
    %1558 = vector.shape_cast %1555 : vector<16x16xf32> to vector<1x1x16x16xf32>
    tpu.vector_store %arg5[%c0_1109, %c0_1110, %c0_1111, %c0_1112], %1558 {strides = array<i32>} : memref<1x32x16x16xf32, #tpu.memory_space<vmem>>, vector<1x1x16x16xf32>,
    %c0_1113 = arith.constant 0 : index
    %c1_1114 = arith.constant 1 : index
    %c0_1115 = arith.constant 0 : index
    %c0_1116 = arith.constant 0 : index
    %1559 = vector.load %arg5[%c0_1113, %c1_1114, %c0_1115, %c0_1116] : memref<1x32x16x16xf32, #tpu.memory_space<vmem>>, vector<1x1x16x16xf32>
    %1560 = vector.shape_cast %1559 : vector<1x1x16x16xf32> to vector<16x16xf32>
    %1561 = arith.mulf %1560, %1552 : vector<16x16xf32>
    %c0_1117 = arith.constant 0 : index
    %c1_1118 = arith.constant 1 : index
    %c0_1119 = arith.constant 0 : index
    %c0_1120 = arith.constant 0 : index
    %1562 = vector.load %arg5[%c0_1117, %c1_1118, %c0_1119, %c0_1120] : memref<1x32x16x16xf32, #tpu.memory_space<vmem>>, vector<1x1x16x16xf32>
    %1563 = vector.shape_cast %1562 : vector<1x1x16x16xf32> to vector<16x16xf32>
    %1564 = vector.shape_cast %1561 : vector<16x16xf32> to vector<1x1x16x16xf32>
    tpu.vector_store %arg5[%c0_1117, %c1_1118, %c0_1119, %c0_1120], %1564 {strides = array<i32>} : memref<1x32x16x16xf32, #tpu.memory_space<vmem>>, vector<1x1x16x16xf32>,
    %c0_1121 = arith.constant 0 : index
    %c2_1122 = arith.constant 2 : index
    %c0_1123 = arith.constant 0 : index
    %c0_1124 = arith.constant 0 : index
    %1565 = vector.load %arg5[%c0_1121, %c2_1122, %c0_1123, %c0_1124] : memref<1x32x16x16xf32, #tpu.memory_space<vmem>>, vector<1x1x16x16xf32>
    %1566 = vector.shape_cast %1565 : vector<1x1x16x16xf32> to vector<16x16xf32>
    %1567 = arith.mulf %1566, %1552 : vector<16x16xf32>
    %c0_1125 = arith.constant 0 : index
    %c2_1126 = arith.constant 2 : index
    %c0_1127 = arith.constant 0 : index
    %c0_1128 = arith.constant 0 : index
    %1568 = vector.load %arg5[%c0_1125, %c2_1126, %c0_1127, %c0_1128] : memref<1x32x16x16xf32, #tpu.memory_space<vmem>>, vector<1x1x16x16xf32>
    %1569 = vector.shape_cast %1568 : vector<1x1x16x16xf32> to vector<16x16xf32>
    %1570 = vector.shape_cast %1567 : vector<16x16xf32> to vector<1x1x16x16xf32>
    tpu.vector_store %arg5[%c0_1125, %c2_1126, %c0_1127, %c0_1128], %1570 {strides = array<i32>} : memref<1x32x16x16xf32, #tpu.memory_space<vmem>>, vector<1x1x16x16xf32>,
    %c0_1129 = arith.constant 0 : index
    %c3_1130 = arith.constant 3 : index
    %c0_1131 = arith.constant 0 : index
    %c0_1132 = arith.constant 0 : index
    %1571 = vector.load %arg5[%c0_1129, %c3_1130, %c0_1131, %c0_1132] : memref<1x32x16x16xf32, #tpu.memory_space<vmem>>, vector<1x1x16x16xf32>
    %1572 = vector.shape_cast %1571 : vector<1x1x16x16xf32> to vector<16x16xf32>
    %1573 = arith.mulf %1572, %1552 : vector<16x16xf32>
    %c0_1133 = arith.constant 0 : index
    %c3_1134 = arith.constant 3 : index
    %c0_1135 = arith.constant 0 : index
    %c0_1136 = arith.constant 0 : index
    %1574 = vector.load %arg5[%c0_1133, %c3_1134, %c0_1135, %c0_1136] : memref<1x32x16x16xf32, #tpu.memory_space<vmem>>, vector<1x1x16x16xf32>
    %1575 = vector.shape_cast %1574 : vector<1x1x16x16xf32> to vector<16x16xf32>
    %1576 = vector.shape_cast %1573 : vector<16x16xf32> to vector<1x1x16x16xf32>
    tpu.vector_store %arg5[%c0_1133, %c3_1134, %c0_1135, %c0_1136], %1576 {strides = array<i32>} : memref<1x32x16x16xf32, #tpu.memory_space<vmem>>, vector<1x1x16x16xf32>,
    %c0_1137 = arith.constant 0 : index
    %c4_1138 = arith.constant 4 : index
    %c0_1139 = arith.constant 0 : index
    %c0_1140 = arith.constant 0 : index
    %1577 = vector.load %arg5[%c0_1137, %c4_1138, %c0_1139, %c0_1140] : memref<1x32x16x16xf32, #tpu.memory_space<vmem>>, vector<1x1x16x16xf32>
    %1578 = vector.shape_cast %1577 : vector<1x1x16x16xf32> to vector<16x16xf32>
    %1579 = arith.mulf %1578, %1552 : vector<16x16xf32>
    %c0_1141 = arith.constant 0 : index
    %c4_1142 = arith.constant 4 : index
    %c0_1143 = arith.constant 0 : index
    %c0_1144 = arith.constant 0 : index
    %1580 = vector.load %arg5[%c0_1141, %c4_1142, %c0_1143, %c0_1144] : memref<1x32x16x16xf32, #tpu.memory_space<vmem>>, vector<1x1x16x16xf32>
    %1581 = vector.shape_cast %1580 : vector<1x1x16x16xf32> to vector<16x16xf32>
    %1582 = vector.shape_cast %1579 : vector<16x16xf32> to vector<1x1x16x16xf32>
    tpu.vector_store %arg5[%c0_1141, %c4_1142, %c0_1143, %c0_1144], %1582 {strides = array<i32>} : memref<1x32x16x16xf32, #tpu.memory_space<vmem>>, vector<1x1x16x16xf32>,
    %c0_1145 = arith.constant 0 : index
    %c5_1146 = arith.constant 5 : index
    %c0_1147 = arith.constant 0 : index
    %c0_1148 = arith.constant 0 : index
    %1583 = vector.load %arg5[%c0_1145, %c5_1146, %c0_1147, %c0_1148] : memref<1x32x16x16xf32, #tpu.memory_space<vmem>>, vector<1x1x16x16xf32>
    %1584 = vector.shape_cast %1583 : vector<1x1x16x16xf32> to vector<16x16xf32>
    %1585 = arith.mulf %1584, %1552 : vector<16x16xf32>
    %c0_1149 = arith.constant 0 : index
    %c5_1150 = arith.constant 5 : index
    %c0_1151 = arith.constant 0 : index
    %c0_1152 = arith.constant 0 : index
    %1586 = vector.load %arg5[%c0_1149, %c5_1150, %c0_1151, %c0_1152] : memref<1x32x16x16xf32, #tpu.memory_space<vmem>>, vector<1x1x16x16xf32>
    %1587 = vector.shape_cast %1586 : vector<1x1x16x16xf32> to vector<16x16xf32>
    %1588 = vector.shape_cast %1585 : vector<16x16xf32> to vector<1x1x16x16xf32>
    tpu.vector_store %arg5[%c0_1149, %c5_1150, %c0_1151, %c0_1152], %1588 {strides = array<i32>} : memref<1x32x16x16xf32, #tpu.memory_space<vmem>>, vector<1x1x16x16xf32>,
    %c0_1153 = arith.constant 0 : index
    %c6_1154 = arith.constant 6 : index
    %c0_1155 = arith.constant 0 : index
    %c0_1156 = arith.constant 0 : index
    %1589 = vector.load %arg5[%c0_1153, %c6_1154, %c0_1155, %c0_1156] : memref<1x32x16x16xf32, #tpu.memory_space<vmem>>, vector<1x1x16x16xf32>
    %1590 = vector.shape_cast %1589 : vector<1x1x16x16xf32> to vector<16x16xf32>
    %1591 = arith.mulf %1590, %1552 : vector<16x16xf32>
    %c0_1157 = arith.constant 0 : index
    %c6_1158 = arith.constant 6 : index
    %c0_1159 = arith.constant 0 : index
    %c0_1160 = arith.constant 0 : index
    %1592 = vector.load %arg5[%c0_1157, %c6_1158, %c0_1159, %c0_1160] : memref<1x32x16x16xf32, #tpu.memory_space<vmem>>, vector<1x1x16x16xf32>
    %1593 = vector.shape_cast %1592 : vector<1x1x16x16xf32> to vector<16x16xf32>
    %1594 = vector.shape_cast %1591 : vector<16x16xf32> to vector<1x1x16x16xf32>
    tpu.vector_store %arg5[%c0_1157, %c6_1158, %c0_1159, %c0_1160], %1594 {strides = array<i32>} : memref<1x32x16x16xf32, #tpu.memory_space<vmem>>, vector<1x1x16x16xf32>,
    %c0_1161 = arith.constant 0 : index
    %c7_1162 = arith.constant 7 : index
    %c0_1163 = arith.constant 0 : index
    %c0_1164 = arith.constant 0 : index
    %1595 = vector.load %arg5[%c0_1161, %c7_1162, %c0_1163, %c0_1164] : memref<1x32x16x16xf32, #tpu.memory_space<vmem>>, vector<1x1x16x16xf32>
    %1596 = vector.shape_cast %1595 : vector<1x1x16x16xf32> to vector<16x16xf32>
    %1597 = arith.mulf %1596, %1552 : vector<16x16xf32>
    %c0_1165 = arith.constant 0 : index
    %c7_1166 = arith.constant 7 : index
    %c0_1167 = arith.constant 0 : index
    %c0_1168 = arith.constant 0 : index
    %1598 = vector.load %arg5[%c0_1165, %c7_1166, %c0_1167, %c0_1168] : memref<1x32x16x16xf32, #tpu.memory_space<vmem>>, vector<1x1x16x16xf32>
    %1599 = vector.shape_cast %1598 : vector<1x1x16x16xf32> to vector<16x16xf32>
    %1600 = vector.shape_cast %1597 : vector<16x16xf32> to vector<1x1x16x16xf32>
    tpu.vector_store %arg5[%c0_1165, %c7_1166, %c0_1167, %c0_1168], %1600 {strides = array<i32>} : memref<1x32x16x16xf32, #tpu.memory_space<vmem>>, vector<1x1x16x16xf32>,
    %c0_1169 = arith.constant 0 : index
    %c8_1170 = arith.constant 8 : index
    %c0_1171 = arith.constant 0 : index
    %c0_1172 = arith.constant 0 : index
    %1601 = vector.load %arg5[%c0_1169, %c8_1170, %c0_1171, %c0_1172] : memref<1x32x16x16xf32, #tpu.memory_space<vmem>>, vector<1x1x16x16xf32>
    %1602 = vector.shape_cast %1601 : vector<1x1x16x16xf32> to vector<16x16xf32>
    %1603 = arith.mulf %1602, %1552 : vector<16x16xf32>
    %c0_1173 = arith.constant 0 : index
    %c8_1174 = arith.constant 8 : index
    %c0_1175 = arith.constant 0 : index
    %c0_1176 = arith.constant 0 : index
    %1604 = vector.load %arg5[%c0_1173, %c8_1174, %c0_1175, %c0_1176] : memref<1x32x16x16xf32, #tpu.memory_space<vmem>>, vector<1x1x16x16xf32>
    %1605 = vector.shape_cast %1604 : vector<1x1x16x16xf32> to vector<16x16xf32>
    %1606 = vector.shape_cast %1603 : vector<16x16xf32> to vector<1x1x16x16xf32>
    tpu.vector_store %arg5[%c0_1173, %c8_1174, %c0_1175, %c0_1176], %1606 {strides = array<i32>} : memref<1x32x16x16xf32, #tpu.memory_space<vmem>>, vector<1x1x16x16xf32>,
    %c0_1177 = arith.constant 0 : index
    %c9_1178 = arith.constant 9 : index
    %c0_1179 = arith.constant 0 : index
    %c0_1180 = arith.constant 0 : index
    %1607 = vector.load %arg5[%c0_1177, %c9_1178, %c0_1179, %c0_1180] : memref<1x32x16x16xf32, #tpu.memory_space<vmem>>, vector<1x1x16x16xf32>
    %1608 = vector.shape_cast %1607 : vector<1x1x16x16xf32> to vector<16x16xf32>
    %1609 = arith.mulf %1608, %1552 : vector<16x16xf32>
    %c0_1181 = arith.constant 0 : index
    %c9_1182 = arith.constant 9 : index
    %c0_1183 = arith.constant 0 : index
    %c0_1184 = arith.constant 0 : index
    %1610 = vector.load %arg5[%c0_1181, %c9_1182, %c0_1183, %c0_1184] : memref<1x32x16x16xf32, #tpu.memory_space<vmem>>, vector<1x1x16x16xf32>
    %1611 = vector.shape_cast %1610 : vector<1x1x16x16xf32> to vector<16x16xf32>
    %1612 = vector.shape_cast %1609 : vector<16x16xf32> to vector<1x1x16x16xf32>
    tpu.vector_store %arg5[%c0_1181, %c9_1182, %c0_1183, %c0_1184], %1612 {strides = array<i32>} : memref<1x32x16x16xf32, #tpu.memory_space<vmem>>, vector<1x1x16x16xf32>,
    %c0_1185 = arith.constant 0 : index
    %c10_1186 = arith.constant 10 : index
    %c0_1187 = arith.constant 0 : index
    %c0_1188 = arith.constant 0 : index
    %1613 = vector.load %arg5[%c0_1185, %c10_1186, %c0_1187, %c0_1188] : memref<1x32x16x16xf32, #tpu.memory_space<vmem>>, vector<1x1x16x16xf32>
    %1614 = vector.shape_cast %1613 : vector<1x1x16x16xf32> to vector<16x16xf32>
    %1615 = arith.mulf %1614, %1552 : vector<16x16xf32>
    %c0_1189 = arith.constant 0 : index
    %c10_1190 = arith.constant 10 : index
    %c0_1191 = arith.constant 0 : index
    %c0_1192 = arith.constant 0 : index
    %1616 = vector.load %arg5[%c0_1189, %c10_1190, %c0_1191, %c0_1192] : memref<1x32x16x16xf32, #tpu.memory_space<vmem>>, vector<1x1x16x16xf32>
    %1617 = vector.shape_cast %1616 : vector<1x1x16x16xf32> to vector<16x16xf32>
    %1618 = vector.shape_cast %1615 : vector<16x16xf32> to vector<1x1x16x16xf32>
    tpu.vector_store %arg5[%c0_1189, %c10_1190, %c0_1191, %c0_1192], %1618 {strides = array<i32>} : memref<1x32x16x16xf32, #tpu.memory_space<vmem>>, vector<1x1x16x16xf32>,
    %c0_1193 = arith.constant 0 : index
    %c11_1194 = arith.constant 11 : index
    %c0_1195 = arith.constant 0 : index
    %c0_1196 = arith.constant 0 : index
    %1619 = vector.load %arg5[%c0_1193, %c11_1194, %c0_1195, %c0_1196] : memref<1x32x16x16xf32, #tpu.memory_space<vmem>>, vector<1x1x16x16xf32>
    %1620 = vector.shape_cast %1619 : vector<1x1x16x16xf32> to vector<16x16xf32>
    %1621 = arith.mulf %1620, %1552 : vector<16x16xf32>
    %c0_1197 = arith.constant 0 : index
    %c11_1198 = arith.constant 11 : index
    %c0_1199 = arith.constant 0 : index
    %c0_1200 = arith.constant 0 : index
    %1622 = vector.load %arg5[%c0_1197, %c11_1198, %c0_1199, %c0_1200] : memref<1x32x16x16xf32, #tpu.memory_space<vmem>>, vector<1x1x16x16xf32>
    %1623 = vector.shape_cast %1622 : vector<1x1x16x16xf32> to vector<16x16xf32>
    %1624 = vector.shape_cast %1621 : vector<16x16xf32> to vector<1x1x16x16xf32>
    tpu.vector_store %arg5[%c0_1197, %c11_1198, %c0_1199, %c0_1200], %1624 {strides = array<i32>} : memref<1x32x16x16xf32, #tpu.memory_space<vmem>>, vector<1x1x16x16xf32>,
    %c0_1201 = arith.constant 0 : index
    %c12_1202 = arith.constant 12 : index
    %c0_1203 = arith.constant 0 : index
    %c0_1204 = arith.constant 0 : index
    %1625 = vector.load %arg5[%c0_1201, %c12_1202, %c0_1203, %c0_1204] : memref<1x32x16x16xf32, #tpu.memory_space<vmem>>, vector<1x1x16x16xf32>
    %1626 = vector.shape_cast %1625 : vector<1x1x16x16xf32> to vector<16x16xf32>
    %1627 = arith.mulf %1626, %1552 : vector<16x16xf32>
    %c0_1205 = arith.constant 0 : index
    %c12_1206 = arith.constant 12 : index
    %c0_1207 = arith.constant 0 : index
    %c0_1208 = arith.constant 0 : index
    %1628 = vector.load %arg5[%c0_1205, %c12_1206, %c0_1207, %c0_1208] : memref<1x32x16x16xf32, #tpu.memory_space<vmem>>, vector<1x1x16x16xf32>
    %1629 = vector.shape_cast %1628 : vector<1x1x16x16xf32> to vector<16x16xf32>
    %1630 = vector.shape_cast %1627 : vector<16x16xf32> to vector<1x1x16x16xf32>
    tpu.vector_store %arg5[%c0_1205, %c12_1206, %c0_1207, %c0_1208], %1630 {strides = array<i32>} : memref<1x32x16x16xf32, #tpu.memory_space<vmem>>, vector<1x1x16x16xf32>,
    %c0_1209 = arith.constant 0 : index
    %c13_1210 = arith.constant 13 : index
    %c0_1211 = arith.constant 0 : index
    %c0_1212 = arith.constant 0 : index
    %1631 = vector.load %arg5[%c0_1209, %c13_1210, %c0_1211, %c0_1212] : memref<1x32x16x16xf32, #tpu.memory_space<vmem>>, vector<1x1x16x16xf32>
    %1632 = vector.shape_cast %1631 : vector<1x1x16x16xf32> to vector<16x16xf32>
    %1633 = arith.mulf %1632, %1552 : vector<16x16xf32>
    %c0_1213 = arith.constant 0 : index
    %c13_1214 = arith.constant 13 : index
    %c0_1215 = arith.constant 0 : index
    %c0_1216 = arith.constant 0 : index
    %1634 = vector.load %arg5[%c0_1213, %c13_1214, %c0_1215, %c0_1216] : memref<1x32x16x16xf32, #tpu.memory_space<vmem>>, vector<1x1x16x16xf32>
    %1635 = vector.shape_cast %1634 : vector<1x1x16x16xf32> to vector<16x16xf32>
    %1636 = vector.shape_cast %1633 : vector<16x16xf32> to vector<1x1x16x16xf32>
    tpu.vector_store %arg5[%c0_1213, %c13_1214, %c0_1215, %c0_1216], %1636 {strides = array<i32>} : memref<1x32x16x16xf32, #tpu.memory_space<vmem>>, vector<1x1x16x16xf32>,
    %c0_1217 = arith.constant 0 : index
    %c14_1218 = arith.constant 14 : index
    %c0_1219 = arith.constant 0 : index
    %c0_1220 = arith.constant 0 : index
    %1637 = vector.load %arg5[%c0_1217, %c14_1218, %c0_1219, %c0_1220] : memref<1x32x16x16xf32, #tpu.memory_space<vmem>>, vector<1x1x16x16xf32>
    %1638 = vector.shape_cast %1637 : vector<1x1x16x16xf32> to vector<16x16xf32>
    %1639 = arith.mulf %1638, %1552 : vector<16x16xf32>
    %c0_1221 = arith.constant 0 : index
    %c14_1222 = arith.constant 14 : index
    %c0_1223 = arith.constant 0 : index
    %c0_1224 = arith.constant 0 : index
    %1640 = vector.load %arg5[%c0_1221, %c14_1222, %c0_1223, %c0_1224] : memref<1x32x16x16xf32, #tpu.memory_space<vmem>>, vector<1x1x16x16xf32>
    %1641 = vector.shape_cast %1640 : vector<1x1x16x16xf32> to vector<16x16xf32>
    %1642 = vector.shape_cast %1639 : vector<16x16xf32> to vector<1x1x16x16xf32>
    tpu.vector_store %arg5[%c0_1221, %c14_1222, %c0_1223, %c0_1224], %1642 {strides = array<i32>} : memref<1x32x16x16xf32, #tpu.memory_space<vmem>>, vector<1x1x16x16xf32>,
    %c0_1225 = arith.constant 0 : index
    %c15_1226 = arith.constant 15 : index
    %c0_1227 = arith.constant 0 : index
    %c0_1228 = arith.constant 0 : index
    %1643 = vector.load %arg5[%c0_1225, %c15_1226, %c0_1227, %c0_1228] : memref<1x32x16x16xf32, #tpu.memory_space<vmem>>, vector<1x1x16x16xf32>
    %1644 = vector.shape_cast %1643 : vector<1x1x16x16xf32> to vector<16x16xf32>
    %1645 = arith.mulf %1644, %1552 : vector<16x16xf32>
    %c0_1229 = arith.constant 0 : index
    %c15_1230 = arith.constant 15 : index
    %c0_1231 = arith.constant 0 : index
    %c0_1232 = arith.constant 0 : index
    %1646 = vector.load %arg5[%c0_1229, %c15_1230, %c0_1231, %c0_1232] : memref<1x32x16x16xf32, #tpu.memory_space<vmem>>, vector<1x1x16x16xf32>
    %1647 = vector.shape_cast %1646 : vector<1x1x16x16xf32> to vector<16x16xf32>
    %1648 = vector.shape_cast %1645 : vector<16x16xf32> to vector<1x1x16x16xf32>
    tpu.vector_store %arg5[%c0_1229, %c15_1230, %c0_1231, %c0_1232], %1648 {strides = array<i32>} : memref<1x32x16x16xf32, #tpu.memory_space<vmem>>, vector<1x1x16x16xf32>,
    %c0_1233 = arith.constant 0 : index
    %c16_1234 = arith.constant 16 : index
    %c0_1235 = arith.constant 0 : index
    %c0_1236 = arith.constant 0 : index
    %1649 = vector.load %arg5[%c0_1233, %c16_1234, %c0_1235, %c0_1236] : memref<1x32x16x16xf32, #tpu.memory_space<vmem>>, vector<1x1x16x16xf32>
    %1650 = vector.shape_cast %1649 : vector<1x1x16x16xf32> to vector<16x16xf32>
    %1651 = arith.mulf %1650, %1552 : vector<16x16xf32>
    %c0_1237 = arith.constant 0 : index
    %c16_1238 = arith.constant 16 : index
    %c0_1239 = arith.constant 0 : index
    %c0_1240 = arith.constant 0 : index
    %1652 = vector.load %arg5[%c0_1237, %c16_1238, %c0_1239, %c0_1240] : memref<1x32x16x16xf32, #tpu.memory_space<vmem>>, vector<1x1x16x16xf32>
    %1653 = vector.shape_cast %1652 : vector<1x1x16x16xf32> to vector<16x16xf32>
    %1654 = vector.shape_cast %1651 : vector<16x16xf32> to vector<1x1x16x16xf32>
    tpu.vector_store %arg5[%c0_1237, %c16_1238, %c0_1239, %c0_1240], %1654 {strides = array<i32>} : memref<1x32x16x16xf32, #tpu.memory_space<vmem>>, vector<1x1x16x16xf32>,
    %c0_1241 = arith.constant 0 : index
    %c17_1242 = arith.constant 17 : index
    %c0_1243 = arith.constant 0 : index
    %c0_1244 = arith.constant 0 : index
    %1655 = vector.load %arg5[%c0_1241, %c17_1242, %c0_1243, %c0_1244] : memref<1x32x16x16xf32, #tpu.memory_space<vmem>>, vector<1x1x16x16xf32>
    %1656 = vector.shape_cast %1655 : vector<1x1x16x16xf32> to vector<16x16xf32>
    %1657 = arith.mulf %1656, %1552 : vector<16x16xf32>
    %c0_1245 = arith.constant 0 : index
    %c17_1246 = arith.constant 17 : index
    %c0_1247 = arith.constant 0 : index
    %c0_1248 = arith.constant 0 : index
    %1658 = vector.load %arg5[%c0_1245, %c17_1246, %c0_1247, %c0_1248] : memref<1x32x16x16xf32, #tpu.memory_space<vmem>>, vector<1x1x16x16xf32>
    %1659 = vector.shape_cast %1658 : vector<1x1x16x16xf32> to vector<16x16xf32>
    %1660 = vector.shape_cast %1657 : vector<16x16xf32> to vector<1x1x16x16xf32>
    tpu.vector_store %arg5[%c0_1245, %c17_1246, %c0_1247, %c0_1248], %1660 {strides = array<i32>} : memref<1x32x16x16xf32, #tpu.memory_space<vmem>>, vector<1x1x16x16xf32>,
    %c0_1249 = arith.constant 0 : index
    %c18_1250 = arith.constant 18 : index
    %c0_1251 = arith.constant 0 : index
    %c0_1252 = arith.constant 0 : index
    %1661 = vector.load %arg5[%c0_1249, %c18_1250, %c0_1251, %c0_1252] : memref<1x32x16x16xf32, #tpu.memory_space<vmem>>, vector<1x1x16x16xf32>
    %1662 = vector.shape_cast %1661 : vector<1x1x16x16xf32> to vector<16x16xf32>
    %1663 = arith.mulf %1662, %1552 : vector<16x16xf32>
    %c0_1253 = arith.constant 0 : index
    %c18_1254 = arith.constant 18 : index
    %c0_1255 = arith.constant 0 : index
    %c0_1256 = arith.constant 0 : index
    %1664 = vector.load %arg5[%c0_1253, %c18_1254, %c0_1255, %c0_1256] : memref<1x32x16x16xf32, #tpu.memory_space<vmem>>, vector<1x1x16x16xf32>
    %1665 = vector.shape_cast %1664 : vector<1x1x16x16xf32> to vector<16x16xf32>
    %1666 = vector.shape_cast %1663 : vector<16x16xf32> to vector<1x1x16x16xf32>
    tpu.vector_store %arg5[%c0_1253, %c18_1254, %c0_1255, %c0_1256], %1666 {strides = array<i32>} : memref<1x32x16x16xf32, #tpu.memory_space<vmem>>, vector<1x1x16x16xf32>,
    %c0_1257 = arith.constant 0 : index
    %c19_1258 = arith.constant 19 : index
    %c0_1259 = arith.constant 0 : index
    %c0_1260 = arith.constant 0 : index
    %1667 = vector.load %arg5[%c0_1257, %c19_1258, %c0_1259, %c0_1260] : memref<1x32x16x16xf32, #tpu.memory_space<vmem>>, vector<1x1x16x16xf32>
    %1668 = vector.shape_cast %1667 : vector<1x1x16x16xf32> to vector<16x16xf32>
    %1669 = arith.mulf %1668, %1552 : vector<16x16xf32>
    %c0_1261 = arith.constant 0 : index
    %c19_1262 = arith.constant 19 : index
    %c0_1263 = arith.constant 0 : index
    %c0_1264 = arith.constant 0 : index
    %1670 = vector.load %arg5[%c0_1261, %c19_1262, %c0_1263, %c0_1264] : memref<1x32x16x16xf32, #tpu.memory_space<vmem>>, vector<1x1x16x16xf32>
    %1671 = vector.shape_cast %1670 : vector<1x1x16x16xf32> to vector<16x16xf32>
    %1672 = vector.shape_cast %1669 : vector<16x16xf32> to vector<1x1x16x16xf32>
    tpu.vector_store %arg5[%c0_1261, %c19_1262, %c0_1263, %c0_1264], %1672 {strides = array<i32>} : memref<1x32x16x16xf32, #tpu.memory_space<vmem>>, vector<1x1x16x16xf32>,
    %c0_1265 = arith.constant 0 : index
    %c20_1266 = arith.constant 20 : index
    %c0_1267 = arith.constant 0 : index
    %c0_1268 = arith.constant 0 : index
    %1673 = vector.load %arg5[%c0_1265, %c20_1266, %c0_1267, %c0_1268] : memref<1x32x16x16xf32, #tpu.memory_space<vmem>>, vector<1x1x16x16xf32>
    %1674 = vector.shape_cast %1673 : vector<1x1x16x16xf32> to vector<16x16xf32>
    %1675 = arith.mulf %1674, %1552 : vector<16x16xf32>
    %c0_1269 = arith.constant 0 : index
    %c20_1270 = arith.constant 20 : index
    %c0_1271 = arith.constant 0 : index
    %c0_1272 = arith.constant 0 : index
    %1676 = vector.load %arg5[%c0_1269, %c20_1270, %c0_1271, %c0_1272] : memref<1x32x16x16xf32, #tpu.memory_space<vmem>>, vector<1x1x16x16xf32>
    %1677 = vector.shape_cast %1676 : vector<1x1x16x16xf32> to vector<16x16xf32>
    %1678 = vector.shape_cast %1675 : vector<16x16xf32> to vector<1x1x16x16xf32>
    tpu.vector_store %arg5[%c0_1269, %c20_1270, %c0_1271, %c0_1272], %1678 {strides = array<i32>} : memref<1x32x16x16xf32, #tpu.memory_space<vmem>>, vector<1x1x16x16xf32>,
    %c0_1273 = arith.constant 0 : index
    %c21_1274 = arith.constant 21 : index
    %c0_1275 = arith.constant 0 : index
    %c0_1276 = arith.constant 0 : index
    %1679 = vector.load %arg5[%c0_1273, %c21_1274, %c0_1275, %c0_1276] : memref<1x32x16x16xf32, #tpu.memory_space<vmem>>, vector<1x1x16x16xf32>
    %1680 = vector.shape_cast %1679 : vector<1x1x16x16xf32> to vector<16x16xf32>
    %1681 = arith.mulf %1680, %1552 : vector<16x16xf32>
    %c0_1277 = arith.constant 0 : index
    %c21_1278 = arith.constant 21 : index
    %c0_1279 = arith.constant 0 : index
    %c0_1280 = arith.constant 0 : index
    %1682 = vector.load %arg5[%c0_1277, %c21_1278, %c0_1279, %c0_1280] : memref<1x32x16x16xf32, #tpu.memory_space<vmem>>, vector<1x1x16x16xf32>
    %1683 = vector.shape_cast %1682 : vector<1x1x16x16xf32> to vector<16x16xf32>
    %1684 = vector.shape_cast %1681 : vector<16x16xf32> to vector<1x1x16x16xf32>
    tpu.vector_store %arg5[%c0_1277, %c21_1278, %c0_1279, %c0_1280], %1684 {strides = array<i32>} : memref<1x32x16x16xf32, #tpu.memory_space<vmem>>, vector<1x1x16x16xf32>,
    %c0_1281 = arith.constant 0 : index
    %c22_1282 = arith.constant 22 : index
    %c0_1283 = arith.constant 0 : index
    %c0_1284 = arith.constant 0 : index
    %1685 = vector.load %arg5[%c0_1281, %c22_1282, %c0_1283, %c0_1284] : memref<1x32x16x16xf32, #tpu.memory_space<vmem>>, vector<1x1x16x16xf32>
    %1686 = vector.shape_cast %1685 : vector<1x1x16x16xf32> to vector<16x16xf32>
    %1687 = arith.mulf %1686, %1552 : vector<16x16xf32>
    %c0_1285 = arith.constant 0 : index
    %c22_1286 = arith.constant 22 : index
    %c0_1287 = arith.constant 0 : index
    %c0_1288 = arith.constant 0 : index
    %1688 = vector.load %arg5[%c0_1285, %c22_1286, %c0_1287, %c0_1288] : memref<1x32x16x16xf32, #tpu.memory_space<vmem>>, vector<1x1x16x16xf32>
    %1689 = vector.shape_cast %1688 : vector<1x1x16x16xf32> to vector<16x16xf32>
    %1690 = vector.shape_cast %1687 : vector<16x16xf32> to vector<1x1x16x16xf32>
    tpu.vector_store %arg5[%c0_1285, %c22_1286, %c0_1287, %c0_1288], %1690 {strides = array<i32>} : memref<1x32x16x16xf32, #tpu.memory_space<vmem>>, vector<1x1x16x16xf32>,
    %c0_1289 = arith.constant 0 : index
    %c23_1290 = arith.constant 23 : index
    %c0_1291 = arith.constant 0 : index
    %c0_1292 = arith.constant 0 : index
    %1691 = vector.load %arg5[%c0_1289, %c23_1290, %c0_1291, %c0_1292] : memref<1x32x16x16xf32, #tpu.memory_space<vmem>>, vector<1x1x16x16xf32>
    %1692 = vector.shape_cast %1691 : vector<1x1x16x16xf32> to vector<16x16xf32>
    %1693 = arith.mulf %1692, %1552 : vector<16x16xf32>
    %c0_1293 = arith.constant 0 : index
    %c23_1294 = arith.constant 23 : index
    %c0_1295 = arith.constant 0 : index
    %c0_1296 = arith.constant 0 : index
    %1694 = vector.load %arg5[%c0_1293, %c23_1294, %c0_1295, %c0_1296] : memref<1x32x16x16xf32, #tpu.memory_space<vmem>>, vector<1x1x16x16xf32>
    %1695 = vector.shape_cast %1694 : vector<1x1x16x16xf32> to vector<16x16xf32>
    %1696 = vector.shape_cast %1693 : vector<16x16xf32> to vector<1x1x16x16xf32>
    tpu.vector_store %arg5[%c0_1293, %c23_1294, %c0_1295, %c0_1296], %1696 {strides = array<i32>} : memref<1x32x16x16xf32, #tpu.memory_space<vmem>>, vector<1x1x16x16xf32>,
    %c0_1297 = arith.constant 0 : index
    %c24_1298 = arith.constant 24 : index
    %c0_1299 = arith.constant 0 : index
    %c0_1300 = arith.constant 0 : index
    %1697 = vector.load %arg5[%c0_1297, %c24_1298, %c0_1299, %c0_1300] : memref<1x32x16x16xf32, #tpu.memory_space<vmem>>, vector<1x1x16x16xf32>
    %1698 = vector.shape_cast %1697 : vector<1x1x16x16xf32> to vector<16x16xf32>
    %1699 = arith.mulf %1698, %1552 : vector<16x16xf32>
    %c0_1301 = arith.constant 0 : index
    %c24_1302 = arith.constant 24 : index
    %c0_1303 = arith.constant 0 : index
    %c0_1304 = arith.constant 0 : index
    %1700 = vector.load %arg5[%c0_1301, %c24_1302, %c0_1303, %c0_1304] : memref<1x32x16x16xf32, #tpu.memory_space<vmem>>, vector<1x1x16x16xf32>
    %1701 = vector.shape_cast %1700 : vector<1x1x16x16xf32> to vector<16x16xf32>
    %1702 = vector.shape_cast %1699 : vector<16x16xf32> to vector<1x1x16x16xf32>
    tpu.vector_store %arg5[%c0_1301, %c24_1302, %c0_1303, %c0_1304], %1702 {strides = array<i32>} : memref<1x32x16x16xf32, #tpu.memory_space<vmem>>, vector<1x1x16x16xf32>,
    %c0_1305 = arith.constant 0 : index
    %c25_1306 = arith.constant 25 : index
    %c0_1307 = arith.constant 0 : index
    %c0_1308 = arith.constant 0 : index
    %1703 = vector.load %arg5[%c0_1305, %c25_1306, %c0_1307, %c0_1308] : memref<1x32x16x16xf32, #tpu.memory_space<vmem>>, vector<1x1x16x16xf32>
    %1704 = vector.shape_cast %1703 : vector<1x1x16x16xf32> to vector<16x16xf32>
    %1705 = arith.mulf %1704, %1552 : vector<16x16xf32>
    %c0_1309 = arith.constant 0 : index
    %c25_1310 = arith.constant 25 : index
    %c0_1311 = arith.constant 0 : index
    %c0_1312 = arith.constant 0 : index
    %1706 = vector.load %arg5[%c0_1309, %c25_1310, %c0_1311, %c0_1312] : memref<1x32x16x16xf32, #tpu.memory_space<vmem>>, vector<1x1x16x16xf32>
    %1707 = vector.shape_cast %1706 : vector<1x1x16x16xf32> to vector<16x16xf32>
    %1708 = vector.shape_cast %1705 : vector<16x16xf32> to vector<1x1x16x16xf32>
    tpu.vector_store %arg5[%c0_1309, %c25_1310, %c0_1311, %c0_1312], %1708 {strides = array<i32>} : memref<1x32x16x16xf32, #tpu.memory_space<vmem>>, vector<1x1x16x16xf32>,
    %c0_1313 = arith.constant 0 : index
    %c26_1314 = arith.constant 26 : index
    %c0_1315 = arith.constant 0 : index
    %c0_1316 = arith.constant 0 : index
    %1709 = vector.load %arg5[%c0_1313, %c26_1314, %c0_1315, %c0_1316] : memref<1x32x16x16xf32, #tpu.memory_space<vmem>>, vector<1x1x16x16xf32>
    %1710 = vector.shape_cast %1709 : vector<1x1x16x16xf32> to vector<16x16xf32>
    %1711 = arith.mulf %1710, %1552 : vector<16x16xf32>
    %c0_1317 = arith.constant 0 : index
    %c26_1318 = arith.constant 26 : index
    %c0_1319 = arith.constant 0 : index
    %c0_1320 = arith.constant 0 : index
    %1712 = vector.load %arg5[%c0_1317, %c26_1318, %c0_1319, %c0_1320] : memref<1x32x16x16xf32, #tpu.memory_space<vmem>>, vector<1x1x16x16xf32>
    %1713 = vector.shape_cast %1712 : vector<1x1x16x16xf32> to vector<16x16xf32>
    %1714 = vector.shape_cast %1711 : vector<16x16xf32> to vector<1x1x16x16xf32>
    tpu.vector_store %arg5[%c0_1317, %c26_1318, %c0_1319, %c0_1320], %1714 {strides = array<i32>} : memref<1x32x16x16xf32, #tpu.memory_space<vmem>>, vector<1x1x16x16xf32>,
    %c0_1321 = arith.constant 0 : index
    %c27_1322 = arith.constant 27 : index
    %c0_1323 = arith.constant 0 : index
    %c0_1324 = arith.constant 0 : index
    %1715 = vector.load %arg5[%c0_1321, %c27_1322, %c0_1323, %c0_1324] : memref<1x32x16x16xf32, #tpu.memory_space<vmem>>, vector<1x1x16x16xf32>
    %1716 = vector.shape_cast %1715 : vector<1x1x16x16xf32> to vector<16x16xf32>
    %1717 = arith.mulf %1716, %1552 : vector<16x16xf32>
    %c0_1325 = arith.constant 0 : index
    %c27_1326 = arith.constant 27 : index
    %c0_1327 = arith.constant 0 : index
    %c0_1328 = arith.constant 0 : index
    %1718 = vector.load %arg5[%c0_1325, %c27_1326, %c0_1327, %c0_1328] : memref<1x32x16x16xf32, #tpu.memory_space<vmem>>, vector<1x1x16x16xf32>
    %1719 = vector.shape_cast %1718 : vector<1x1x16x16xf32> to vector<16x16xf32>
    %1720 = vector.shape_cast %1717 : vector<16x16xf32> to vector<1x1x16x16xf32>
    tpu.vector_store %arg5[%c0_1325, %c27_1326, %c0_1327, %c0_1328], %1720 {strides = array<i32>} : memref<1x32x16x16xf32, #tpu.memory_space<vmem>>, vector<1x1x16x16xf32>,
    %c0_1329 = arith.constant 0 : index
    %c28_1330 = arith.constant 28 : index
    %c0_1331 = arith.constant 0 : index
    %c0_1332 = arith.constant 0 : index
    %1721 = vector.load %arg5[%c0_1329, %c28_1330, %c0_1331, %c0_1332] : memref<1x32x16x16xf32, #tpu.memory_space<vmem>>, vector<1x1x16x16xf32>
    %1722 = vector.shape_cast %1721 : vector<1x1x16x16xf32> to vector<16x16xf32>
    %1723 = arith.mulf %1722, %1552 : vector<16x16xf32>
    %c0_1333 = arith.constant 0 : index
    %c28_1334 = arith.constant 28 : index
    %c0_1335 = arith.constant 0 : index
    %c0_1336 = arith.constant 0 : index
    %1724 = vector.load %arg5[%c0_1333, %c28_1334, %c0_1335, %c0_1336] : memref<1x32x16x16xf32, #tpu.memory_space<vmem>>, vector<1x1x16x16xf32>
    %1725 = vector.shape_cast %1724 : vector<1x1x16x16xf32> to vector<16x16xf32>
    %1726 = vector.shape_cast %1723 : vector<16x16xf32> to vector<1x1x16x16xf32>
    tpu.vector_store %arg5[%c0_1333, %c28_1334, %c0_1335, %c0_1336], %1726 {strides = array<i32>} : memref<1x32x16x16xf32, #tpu.memory_space<vmem>>, vector<1x1x16x16xf32>,
    %c0_1337 = arith.constant 0 : index
    %c29_1338 = arith.constant 29 : index
    %c0_1339 = arith.constant 0 : index
    %c0_1340 = arith.constant 0 : index
    %1727 = vector.load %arg5[%c0_1337, %c29_1338, %c0_1339, %c0_1340] : memref<1x32x16x16xf32, #tpu.memory_space<vmem>>, vector<1x1x16x16xf32>
    %1728 = vector.shape_cast %1727 : vector<1x1x16x16xf32> to vector<16x16xf32>
    %1729 = arith.mulf %1728, %1552 : vector<16x16xf32>
    %c0_1341 = arith.constant 0 : index
    %c29_1342 = arith.constant 29 : index
    %c0_1343 = arith.constant 0 : index
    %c0_1344 = arith.constant 0 : index
    %1730 = vector.load %arg5[%c0_1341, %c29_1342, %c0_1343, %c0_1344] : memref<1x32x16x16xf32, #tpu.memory_space<vmem>>, vector<1x1x16x16xf32>
    %1731 = vector.shape_cast %1730 : vector<1x1x16x16xf32> to vector<16x16xf32>
    %1732 = vector.shape_cast %1729 : vector<16x16xf32> to vector<1x1x16x16xf32>
    tpu.vector_store %arg5[%c0_1341, %c29_1342, %c0_1343, %c0_1344], %1732 {strides = array<i32>} : memref<1x32x16x16xf32, #tpu.memory_space<vmem>>, vector<1x1x16x16xf32>,
    %c0_1345 = arith.constant 0 : index
    %c30_1346 = arith.constant 30 : index
    %c0_1347 = arith.constant 0 : index
    %c0_1348 = arith.constant 0 : index
    %1733 = vector.load %arg5[%c0_1345, %c30_1346, %c0_1347, %c0_1348] : memref<1x32x16x16xf32, #tpu.memory_space<vmem>>, vector<1x1x16x16xf32>
    %1734 = vector.shape_cast %1733 : vector<1x1x16x16xf32> to vector<16x16xf32>
    %1735 = arith.mulf %1734, %1552 : vector<16x16xf32>
    %c0_1349 = arith.constant 0 : index
    %c30_1350 = arith.constant 30 : index
    %c0_1351 = arith.constant 0 : index
    %c0_1352 = arith.constant 0 : index
    %1736 = vector.load %arg5[%c0_1349, %c30_1350, %c0_1351, %c0_1352] : memref<1x32x16x16xf32, #tpu.memory_space<vmem>>, vector<1x1x16x16xf32>
    %1737 = vector.shape_cast %1736 : vector<1x1x16x16xf32> to vector<16x16xf32>
    %1738 = vector.shape_cast %1735 : vector<16x16xf32> to vector<1x1x16x16xf32>
    tpu.vector_store %arg5[%c0_1349, %c30_1350, %c0_1351, %c0_1352], %1738 {strides = array<i32>} : memref<1x32x16x16xf32, #tpu.memory_space<vmem>>, vector<1x1x16x16xf32>,
    %c0_1353 = arith.constant 0 : index
    %c31_1354 = arith.constant 31 : index
    %c0_1355 = arith.constant 0 : index
    %c0_1356 = arith.constant 0 : index
    %1739 = vector.load %arg5[%c0_1353, %c31_1354, %c0_1355, %c0_1356] : memref<1x32x16x16xf32, #tpu.memory_space<vmem>>, vector<1x1x16x16xf32>
    %1740 = vector.shape_cast %1739 : vector<1x1x16x16xf32> to vector<16x16xf32>
    %1741 = arith.mulf %1740, %1552 : vector<16x16xf32>
    %c0_1357 = arith.constant 0 : index
    %c31_1358 = arith.constant 31 : index
    %c0_1359 = arith.constant 0 : index
    %c0_1360 = arith.constant 0 : index
    %1742 = vector.load %arg5[%c0_1357, %c31_1358, %c0_1359, %c0_1360] : memref<1x32x16x16xf32, #tpu.memory_space<vmem>>, vector<1x1x16x16xf32>
    %1743 = vector.shape_cast %1742 : vector<1x1x16x16xf32> to vector<16x16xf32>
    %1744 = vector.shape_cast %1741 : vector<16x16xf32> to vector<1x1x16x16xf32>
    tpu.vector_store %arg5[%c0_1357, %c31_1358, %c0_1359, %c0_1360], %1744 {strides = array<i32>} : memref<1x32x16x16xf32, #tpu.memory_space<vmem>>, vector<1x1x16x16xf32>,
    return
  }
  func.func @transform_0(%arg0: i32) -> i32 {
    %c0_i32 = arith.constant 0 : i32
    %c0_i32_0 = arith.constant 0 : i32
    return %c0_i32 : i32
  }
  func.func @transform_1(%arg0: i32) -> (i32, i32, i32, i32) {
    %c0_i32 = arith.constant 0 : i32
    %c0_i32_0 = arith.constant 0 : i32
    %c0_i32_1 = arith.constant 0 : i32
    %c0_i32_2 = arith.constant 0 : i32
    return %arg0, %c0_i32, %c0_i32_0, %c0_i32_1 : i32, i32, i32, i32
  }
  func.func @transform_2(%arg0: i32) -> (i32, i32) {
    %c0_i32 = arith.constant 0 : i32
    %c0_i32_0 = arith.constant 0 : i32
    %c0_i32_1 = arith.constant 0 : i32
    return %c0_i32, %c0_i32_0 : i32, i32
  }
  func.func @transform_3(%arg0: i32) -> (i32, i32) {
    %c0_i32 = arith.constant 0 : i32
    %c0_i32_0 = arith.constant 0 : i32
    %c0_i32_1 = arith.constant 0 : i32
    return %c0_i32, %c0_i32_0 : i32, i32
  }
  func.func @transform_4(%arg0: i32) -> (i32, i32, i32, i32) {
    %c0_i32 = arith.constant 0 : i32
    %c0_i32_0 = arith.constant 0 : i32
    %c0_i32_1 = arith.constant 0 : i32
    %c0_i32_2 = arith.constant 0 : i32
    return %arg0, %c0_i32, %c0_i32_0, %c0_i32_1 : i32, i32, i32, i32
  }
}

</mosaic_0001>

<llo_original>
// kernel: tpu_custom_call.1
$region0: #{tpu_custom_call.1}
  #allocation0 [shape = 'u32[]', space=smem, size = 0x4, offset = 0x4, fixed_abs, tag = 'smem constant byte address 0x4 - core index']
  #allocation1 [shape = 'u32[144,128]{1,0:T(1,128)}', space=vmem, size = 0x12000, scoped, tag = 'internal scratch']
  #allocation2 [shape = 'f32[32,2]{1,0:T(8,128)}', space=vmem, size = 0x4000, scoped, tag = 'scratch operand']
  #allocation3 [shape = 'f32[32,1]{1,0:T(8,128)}', space=vmem, size = 0x4000, scoped, tag = 'scratch operand']
  #allocation4 [shape = 'f32[2,22,22]{2,1,0:T(8,128)}', space=vmem, size = 0x6000, scoped, tag = 'scratch operand']
  #allocation5 [shape = 'f32[14,22,22]{2,1,0:T(8,128)}', space=vmem, size = 0x2a000, scoped, tag = 'scratch operand']
  %s0 = inlined_call_operand.vmem [shape: f32[98], index: 0, kind: input, shape index: {}]
  %s1 = inlined_call_operand.vmem [shape: f32[2,32,16,16], index: 1, kind: input, shape index: {}]
  %s2 = inlined_call_operand.vmem [shape: f32[2,32], index: 2, kind: input, shape index: {}]
  %s3 = inlined_call_operand.vmem [shape: f32[32,2], index: 3, kind: input, shape index: {}]
  %s4 = inlined_call_operand.vmem [shape: f32[2,32,16,16], index: 4, kind: output, shape index: {}]
  %s5 = sld [smem:[#allocation0]]
  $region53: #{tpu_custom_call.1} parent=0
    _
  %s7 = ssub.s32 1, %s5
  %s8 = scalar_select 0, %s7, %s5
  $region1: #{tpu_custom_call.1} parent=0
    #allocation6 [shape = 'u8[512]{0}', space=smem, size = 0x200, scoped, tag = 'input window, operand 0, single buffered']
    #allocation7 [shape = 's32[2]{0}', space=sflag, size = 0x8, scoped, tag = 'scoped memory for tpu_custom_call.1']
    %9 = vsyncpa [#allocation7], 0
    loop: start=0, step=1, limit=4
    $region2: #{tpu_custom_call.1} parent=1 // loop_pre_header
      _
    $region3: #{tpu_custom_call.1} parent=1 // loop_header
      %s11 = sphi 0, %s15
      %p12 = scmp.ge.s32.totalorder %s11, 4
      %s19 = sphi 0, %s19
      %s21 = sphi 0, %s19
      %s22 = sphi 0, %s21
      %s36 = sphi 0, %s22
      %s42 = sphi 0, %s44
      %s45 = sphi 0, %s42
      %s46 = sphi 0, %s45
      %s62 = sphi 0, %s46
      %s66 = sphi 0, %s66
      %s68 = sphi 0, %s66
      %s69 = sphi 0, %s68
      %s83 = sphi 0, %s69
      %s87 = sphi 0, %s87
      %s89 = sphi 0, %s87
      %s90 = sphi 0, %s89
      %s104 = sphi 0, %s90
      %s110 = sphi 0, %s112
      %s113 = sphi 0, %s110
      %s114 = sphi 0, %s113
      %s130 = sphi 0, %s114
    $region4: #{tpu_custom_call.1} parent=1 // loop_header_branch
      %14 = sbr.rel (%p12) target = $region8
    $region5: #{tpu_custom_call.1} parent=1 // loop_body
      %s16 = ssub.s32 %s11, 1
      %s17 = ssub.s32 %s11, 2
      %s18 = sadd.s32 %s11, 1
      %s20 = sadd.s32 %s19, 1
      %p23 = scmp.eq.s32.totalorder %s11, 1
      %p24 = scmp.ne.s32.totalorder %s19, %s21
      %p25 = scmp.eq.s32.totalorder %s11, 0
      %p26 = por %p24, %p25
      %p27 = scmp.ne.s32.totalorder %s19, %s21
      %p28 = scmp.eq.s32.totalorder %s16, 1
      %p29 = por %p27, %p28
      %p30 = scmp.ne.s32.totalorder %s21, %s22
      %p31 = scmp.eq.s32.totalorder %s16, 0
      %p32 = por %p30, %p31
      %p33 = scmp.ne.s32.totalorder %s21, %s22
      %p34 = scmp.eq.s32.totalorder %s17, 1
      %p35 = por %p33, %p34
      %p37 = scmp.ne.s32.totalorder %s22, %s36
      %p38 = scmp.eq.s32.totalorder %s17, 0
      %p39 = por %p37, %p38
      %s40 = ssub.s32 %s11, %s18
      %p41 = scmp.eq.s32.totalorder %s40, 0
      %s43 = sadd.s32 %s42, 1
      %s44 = scalar_select %p41, %s42, %s43
      %p47 = pneg %p41
      %p48 = scmp.eq.s32.totalorder %s11, 1
      %p49 = por %p47, %p48
      %p50 = scmp.ne.s32.totalorder %s42, %s45
      %p51 = scmp.eq.s32.totalorder %s11, 0
      %p52 = por %p50, %p51
      %p53 = scmp.ne.s32.totalorder %s42, %s45
      %p54 = scmp.eq.s32.totalorder %s16, 1
      %p55 = por %p53, %p54
      %p56 = scmp.ne.s32.totalorder %s45, %s46
      %p57 = scmp.eq.s32.totalorder %s16, 0
      %p58 = por %p56, %p57
      %p59 = scmp.ne.s32.totalorder %s45, %s46
      %p60 = scmp.eq.s32.totalorder %s17, 1
      %p61 = por %p59, %p60
      %p63 = scmp.ne.s32.totalorder %s46, %s62
      %p64 = scmp.eq.s32.totalorder %s17, 0
      %p65 = por %p63, %p64
      %s67 = sadd.s32 %s66, 1
      %p70 = scmp.eq.s32.totalorder %s11, 1
      %p71 = scmp.ne.s32.totalorder %s66, %s68
      %p72 = scmp.eq.s32.totalorder %s11, 0
      %p73 = por %p71, %p72
      %p74 = scmp.ne.s32.totalorder %s66, %s68
      %p75 = scmp.eq.s32.totalorder %s16, 1
      %p76 = por %p74, %p75
      %p77 = scmp.ne.s32.totalorder %s68, %s69
      %p78 = scmp.eq.s32.totalorder %s16, 0
      %p79 = por %p77, %p78
      %p80 = scmp.ne.s32.totalorder %s68, %s69
      %p81 = scmp.eq.s32.totalorder %s17, 1
      %p82 = por %p80, %p81
      %p84 = scmp.ne.s32.totalorder %s69, %s83
      %p85 = scmp.eq.s32.totalorder %s17, 0
      %p86 = por %p84, %p85
      %s88 = sadd.s32 %s87, 1
      %p91 = scmp.eq.s32.totalorder %s11, 1
      %p92 = scmp.ne.s32.totalorder %s87, %s89
      %p93 = scmp.eq.s32.totalorder %s11, 0
      %p94 = por %p92, %p93
      %p95 = scmp.ne.s32.totalorder %s87, %s89
      %p96 = scmp.eq.s32.totalorder %s16, 1
      %p97 = por %p95, %p96
      %p98 = scmp.ne.s32.totalorder %s89, %s90
      %p99 = scmp.eq.s32.totalorder %s16, 0
      %p100 = por %p98, %p99
      %p101 = scmp.ne.s32.totalorder %s89, %s90
      %p102 = scmp.eq.s32.totalorder %s17, 1
      %p103 = por %p101, %p102
      %p105 = scmp.ne.s32.totalorder %s90, %s104
      %p106 = scmp.eq.s32.totalorder %s17, 0
      %p107 = por %p105, %p106
      %s108 = ssub.s32 %s11, %s18
      %p109 = scmp.eq.s32.totalorder %s108, 0
      %s111 = sadd.s32 %s110, 1
      %s112 = scalar_select %p109, %s110, %s111
      %p115 = pneg %p109
      %p116 = scmp.eq.s32.totalorder %s11, 1
      %p117 = por %p115, %p116
      %p118 = scmp.ne.s32.totalorder %s110, %s113
      %p119 = scmp.eq.s32.totalorder %s11, 0
      %p120 = por %p118, %p119
      %p121 = scmp.ne.s32.totalorder %s110, %s113
      %p122 = scmp.eq.s32.totalorder %s16, 1
      %p123 = por %p121, %p122
      %p124 = scmp.ne.s32.totalorder %s113, %s114
      %p125 = scmp.eq.s32.totalorder %s16, 0
      %p126 = por %p124, %p125
      %p127 = scmp.ne.s32.totalorder %s113, %s114
      %p128 = scmp.eq.s32.totalorder %s17, 1
      %p129 = por %p127, %p128
      %p131 = scmp.ne.s32.totalorder %s114, %s130
      %p132 = scmp.eq.s32.totalorder %s17, 0
      %p133 = por %p131, %p132
      %p134 = scmp.le.s32.totalorder 1, %s11
      %p135 = scmp.lt.s32.totalorder %s11, 3
      %p136 = pnand %p134, %p135
      %p137 = pneg %p136
      // Predicated region
      $region9: #{tpu_custom_call.1} parent=5 // pred_check
        _
      $region10: #{tpu_custom_call.1} parent=5 // pred_check_branch
        %139 = sbr.rel (%p136) target = $region12
      $region11: #{tpu_custom_call.1} parent=5 // pred_region
        %s140 = ssub.s32 %s11, 1
        // Predicated region
        $region13: #{tpu_custom_call.1} parent=11 // pred_check
          %p141 = pneg %p32
        $region14: #{tpu_custom_call.1} parent=11 // pred_check_branch
          %143 = sbr.rel (%p141) target = $region16
        $region15: #{tpu_custom_call.1} parent=11 // pred_region
          %s145 = ssub.s32 16, 16
          %146 = vsyncadd [#allocation7], %s145
          %s148 = sshll.u32 %s0, 4
          %s149 = int_to_ptr.vmem [resolvable:$true] %s148
          %151 = dma.vmem_to_smem %s149, 16, [#allocation6], [#allocation7]
        $region16: #{tpu_custom_call.1} parent=11 // pred_fallthru
          _
        // Predicated region
        $region17: #{tpu_custom_call.1} parent=11 // pred_check
          %p152 = pneg %p79
        $region18: #{tpu_custom_call.1} parent=11 // pred_check_branch
          %154 = sbr.rel (%p152) target = $region20
        $region19: #{tpu_custom_call.1} parent=11 // pred_region
          _
        $region20: #{tpu_custom_call.1} parent=11 // pred_fallthru
          _
        // Predicated region
        $region21: #{tpu_custom_call.1} parent=11 // pred_check
          %p155 = pneg %p100
        $region22: #{tpu_custom_call.1} parent=11 // pred_check_branch
          %157 = sbr.rel (%p155) target = $region24
        $region23: #{tpu_custom_call.1} parent=11 // pred_region
          _
        $region24: #{tpu_custom_call.1} parent=11 // pred_fallthru
          _
      $region12: #{tpu_custom_call.1} parent=5 // pred_fallthru
        _
      %p158 = scmp.lt.s32.totalorder %s11, 2
      // Predicated region
      $region25: #{tpu_custom_call.1} parent=5 // pred_check
        %p159 = pneg %p158
      $region26: #{tpu_custom_call.1} parent=5 // pred_check_branch
        %161 = sbr.rel (%p159) target = $region28
      $region27: #{tpu_custom_call.1} parent=5 // pred_region
        // Predicated region
        $region29: #{tpu_custom_call.1} parent=27 // pred_check
          %p162 = pneg %p52
        $region30: #{tpu_custom_call.1} parent=27 // pred_check_branch
          %164 = sbr.rel (%p162) target = $region32
        $region31: #{tpu_custom_call.1} parent=27 // pred_region
          %p165 = scmp.lt.s32.totalorder %s11, 1
          %s166 = scalar_select %p165, %s11, 1
          %s167 = smul.addr %s166, 64
          %s168 = smul.addr %s167, 8
          %s169 = scalar_lea.vmem %s1, %s168
        $region32: #{tpu_custom_call.1} parent=27 // pred_fallthru
          _
      $region28: #{tpu_custom_call.1} parent=5 // pred_fallthru
        _
      %p170 = scmp.le.s32.totalorder 1, %s11
      %p171 = scmp.lt.s32.totalorder %s11, 3
      %p172 = pnand %p170, %p171
      %p173 = pneg %p172
      // Predicated region
      $region33: #{tpu_custom_call.1} parent=5 // pred_check
        _
      $region34: #{tpu_custom_call.1} parent=5 // pred_check_branch
        %175 = sbr.rel (%p172) target = $region36
      $region35: #{tpu_custom_call.1} parent=5 // pred_region
        %s176 = ssub.s32 %s11, 1
        // Predicated region
        $region37: #{tpu_custom_call.1} parent=35 // pred_check
          %p177 = pneg %p32
        $region38: #{tpu_custom_call.1} parent=35 // pred_check_branch
          %179 = sbr.rel (%p177) target = $region40
        $region39: #{tpu_custom_call.1} parent=35 // pred_region
          %180 = dma.done [#allocation7], 16
        $region40: #{tpu_custom_call.1} parent=35 // pred_fallthru
          _
        %181 = sfence
        %p182 = pneg %p32
        %p183 = pneg %p29
        %p184 = scmp.lt.s32.totalorder %s16, 1
        %s185 = scalar_select %p184, %s16, 1
        %s186 = smul.addr %s185, 64
        %s187 = smul.addr %s186, 8
        %s188 = scalar_lea.vmem %s1, %s187
        %p189 = pneg %p58
        %p190 = pneg %p55
        %p191 = pneg %p79
        %p192 = pneg %p76
        %p193 = pneg %p100
        %p194 = pneg %p97
        %p195 = pneg %p126
        %p196 = pneg %p123
        %p197 = scmp.lt.s32.totalorder %s16, 1
        %s198 = scalar_select %p197, %s16, 1
        %s199 = smul.addr %s198, 64
        %s200 = smul.addr %s199, 8
        %s201 = scalar_lea.vmem %s4, %s200
        %p202 = scmp.lt.s32.totalorder %s16, 1
        %s203 = scalar_select %p202, %s16, 1
        %s204 = smul.addr %s203, 64
        %s205 = smul.addr %s204, 8
        %s206 = scalar_lea.vmem %s1, %s205
        %p207 = scmp.lt.s32.totalorder %s16, 1
        %s208 = scalar_select %p207, %s16, 1
        %s209 = smul.addr %s208, 64
        %s210 = smul.addr %s209, 8
        %s211 = scalar_lea.vmem %s4, %s210
        %v212 = vld [vmem:[%s206] sm:$0xff]
        %v213 = vld [vmem:[%s206 + $0x8] sm:$0xff]
        %vm214 = vcmask 130048
        %v215 = vsel %vm214, %v212, -inf
        %v216 = vsel %vm214, %v213, -inf
        %v217 = vmax.f32 %v215, %v216
        %218 = vmax.xlane.f32.xlu0 %v217
        %v219 = vpop.xlane.xlu0 %218
        %v220 = vrot.slane %v219, 4
        %v221 = vmax.f32 %v219, %v220
        %v222 = vrot.slane %v221, 2
        %v223 = vmax.f32 %v221, %v222
        %v224 = vrot.slane %v223, 1
        %v225 = vmax.f32 %v223, %v224
        %s226 = vtos %v225
        %v227 = vstv %s226
        %vm228 = vcmask 0
        %229 = vst.msk [vmem:[#allocation2] sm:$0x1] %vm228, %v227
        %v230 = vsel %vm214, %v212, 0.0
        %v231 = vsel %vm214, %v213, 0.0
        %v232 = vadd.f32 %v230, %v231
        %233 = vadd.xlane.f32.xlu0 %v232
        %v234 = vpop.xlane.xlu0 %233
        %v235 = vrot.slane %v234, 4
        %v236 = vadd.f32 %v234, %v235
        %v237 = vrot.slane %v236, 2
        %v238 = vadd.f32 %v236, %v237
        %v239 = vrot.slane %v238, 1
        %v240 = vadd.f32 %v238, %v239
        %s241 = vtos %v240
        %v242 = vstv %s241
        %v243 = vrcp.pop 256.0
        %v244 = vmul.f32 %v242, %v243
        %vm245 = vcmask 8200
        %246 = vst.msk [vmem:[#allocation2] sm:$0x1] %vm245, %v244
        %s247 = scalar_lea.vmem %s206, 16
        %v248 = vld [vmem:[%s247] sm:$0xff]
        %v249 = vld [vmem:[%s247 + $0x8] sm:$0xff]
        %v250 = vsel %vm214, %v248, -inf
        %v251 = vsel %vm214, %v249, -inf
        %v252 = vmax.f32 %v250, %v251
        %253 = vmax.xlane.f32.xlu0 %v252
        %v254 = vpop.xlane.xlu0 %253
        %v255 = vrot.slane %v254, 4
        %v256 = vmax.f32 %v254, %v255
        %v257 = vrot.slane %v256, 2
        %v258 = vmax.f32 %v256, %v257
        %v259 = vrot.slane %v258, 1
        %v260 = vmax.f32 %v258, %v259
        %s261 = vtos %v260
        %v262 = vstv %s261
        %263 = vst.msk [vmem:[#allocation2 + $0x1] sm:$0x1] %vm228, %v262
        %v264 = vsel %vm214, %v248, 0.0
        %v265 = vsel %vm214, %v249, 0.0
        %v266 = vadd.f32 %v264, %v265
        %267 = vadd.xlane.f32.xlu0 %v266
        %v268 = vpop.xlane.xlu0 %267
        %v269 = vrot.slane %v268, 4
        %v270 = vadd.f32 %v268, %v269
        %v271 = vrot.slane %v270, 2
        %v272 = vadd.f32 %v270, %v271
        %v273 = vrot.slane %v272, 1
        %v274 = vadd.f32 %v272, %v273
        %s275 = vtos %v274
        %v276 = vstv %s275
        %v277 = vmul.f32 %v276, %v243
        %278 = vst.msk [vmem:[#allocation2 + $0x1] sm:$0x1] %vm245, %v277
        %s279 = scalar_lea.vmem %s206, 32
        %v280 = vld [vmem:[%s279] sm:$0xff]
        %v281 = vld [vmem:[%s279 + $0x8] sm:$0xff]
        %v282 = vsel %vm214, %v280, -inf
        %v283 = vsel %vm214, %v281, -inf
        %v284 = vmax.f32 %v282, %v283
        %285 = vmax.xlane.f32.xlu0 %v284
        %v286 = vpop.xlane.xlu0 %285
        %v287 = vrot.slane %v286, 4
        %v288 = vmax.f32 %v286, %v287
        %v289 = vrot.slane %v288, 2
        %v290 = vmax.f32 %v288, %v289
        %v291 = vrot.slane %v290, 1
        %v292 = vmax.f32 %v290, %v291
        %s293 = vtos %v292
        %v294 = vstv %s293
        %295 = vst.msk [vmem:[#allocation2 + $0x2] sm:$0x1] %vm228, %v294
        %v296 = vsel %vm214, %v280, 0.0
        %v297 = vsel %vm214, %v281, 0.0
        %v298 = vadd.f32 %v296, %v297
        %299 = vadd.xlane.f32.xlu0 %v298
        %v300 = vpop.xlane.xlu0 %299
        %v301 = vrot.slane %v300, 4
        %v302 = vadd.f32 %v300, %v301
        %v303 = vrot.slane %v302, 2
        %v304 = vadd.f32 %v302, %v303
        %v305 = vrot.slane %v304, 1
        %v306 = vadd.f32 %v304, %v305
        %s307 = vtos %v306
        %v308 = vstv %s307
        %v309 = vmul.f32 %v308, %v243
        %310 = vst.msk [vmem:[#allocation2 + $0x2] sm:$0x1] %vm245, %v309
        %s311 = scalar_lea.vmem %s206, 48
        %v312 = vld [vmem:[%s311] sm:$0xff]
        %v313 = vld [vmem:[%s311 + $0x8] sm:$0xff]
        %v314 = vsel %vm214, %v312, -inf
        %v315 = vsel %vm214, %v313, -inf
        %v316 = vmax.f32 %v314, %v315
        %317 = vmax.xlane.f32.xlu0 %v316
        %v318 = vpop.xlane.xlu0 %317
        %v319 = vrot.slane %v318, 4
        %v320 = vmax.f32 %v318, %v319
        %v321 = vrot.slane %v320, 2
        %v322 = vmax.f32 %v320, %v321
        %v323 = vrot.slane %v322, 1
        %v324 = vmax.f32 %v322, %v323
        %s325 = vtos %v324
        %v326 = vstv %s325
        %327 = vst.msk [vmem:[#allocation2 + $0x3] sm:$0x1] %vm228, %v326
        %v328 = vsel %vm214, %v312, 0.0
        %v329 = vsel %vm214, %v313, 0.0
        %v330 = vadd.f32 %v328, %v329
        %331 = vadd.xlane.f32.xlu0 %v330
        %v332 = vpop.xlane.xlu0 %331
        %v333 = vrot.slane %v332, 4
        %v334 = vadd.f32 %v332, %v333
        %v335 = vrot.slane %v334, 2
        %v336 = vadd.f32 %v334, %v335
        %v337 = vrot.slane %v336, 1
        %v338 = vadd.f32 %v336, %v337
        %s339 = vtos %v338
        %v340 = vstv %s339
        %v341 = vmul.f32 %v340, %v243
        %342 = vst.msk [vmem:[#allocation2 + $0x3] sm:$0x1] %vm245, %v341
        %s343 = scalar_lea.vmem %s206, 64
        %v344 = vld [vmem:[%s343] sm:$0xff]
        %v345 = vld [vmem:[%s343 + $0x8] sm:$0xff]
        %v346 = vsel %vm214, %v344, -inf
        %v347 = vsel %vm214, %v345, -inf
        %v348 = vmax.f32 %v346, %v347
        %349 = vmax.xlane.f32.xlu0 %v348
        %v350 = vpop.xlane.xlu0 %349
        %v351 = vrot.slane %v350, 4
        %v352 = vmax.f32 %v350, %v351
        %v353 = vrot.slane %v352, 2
        %v354 = vmax.f32 %v352, %v353
        %v355 = vrot.slane %v354, 1
        %v356 = vmax.f32 %v354, %v355
        %s357 = vtos %v356
        %v358 = vstv %s357
        %359 = vst.msk [vmem:[#allocation2 + $0x4] sm:$0x1] %vm228, %v358
        %v360 = vsel %vm214, %v344, 0.0
        %v361 = vsel %vm214, %v345, 0.0
        %v362 = vadd.f32 %v360, %v361
        %363 = vadd.xlane.f32.xlu0 %v362
        %v364 = vpop.xlane.xlu0 %363
        %v365 = vrot.slane %v364, 4
        %v366 = vadd.f32 %v364, %v365
        %v367 = vrot.slane %v366, 2
        %v368 = vadd.f32 %v366, %v367
        %v369 = vrot.slane %v368, 1
        %v370 = vadd.f32 %v368, %v369
        %s371 = vtos %v370
        %v372 = vstv %s371
        %v373 = vmul.f32 %v372, %v243
        %374 = vst.msk [vmem:[#allocation2 + $0x4] sm:$0x1] %vm245, %v373
        %s375 = scalar_lea.vmem %s206, 80
        %v376 = vld [vmem:[%s375] sm:$0xff]
        %v377 = vld [vmem:[%s375 + $0x8] sm:$0xff]
        %v378 = vsel %vm214, %v376, -inf
        %v379 = vsel %vm214, %v377, -inf
        %v380 = vmax.f32 %v378, %v379
        %381 = vmax.xlane.f32.xlu0 %v380
        %v382 = vpop.xlane.xlu0 %381
        %v383 = vrot.slane %v382, 4
        %v384 = vmax.f32 %v382, %v383
        %v385 = vrot.slane %v384, 2
        %v386 = vmax.f32 %v384, %v385
        %v387 = vrot.slane %v386, 1
        %v388 = vmax.f32 %v386, %v387
        %s389 = vtos %v388
        %v390 = vstv %s389
        %391 = vst.msk [vmem:[#allocation2 + $0x5] sm:$0x1] %vm228, %v390
        %v392 = vsel %vm214, %v376, 0.0
        %v393 = vsel %vm214, %v377, 0.0
        %v394 = vadd.f32 %v392, %v393
        %395 = vadd.xlane.f32.xlu0 %v394
        %v396 = vpop.xlane.xlu0 %395
        %v397 = vrot.slane %v396, 4
        %v398 = vadd.f32 %v396, %v397
        %v399 = vrot.slane %v398, 2
        %v400 = vadd.f32 %v398, %v399
        %v401 = vrot.slane %v400, 1
        %v402 = vadd.f32 %v400, %v401
        %s403 = vtos %v402
        %v404 = vstv %s403
        %v405 = vmul.f32 %v404, %v243
        %406 = vst.msk [vmem:[#allocation2 + $0x5] sm:$0x1] %vm245, %v405
        %s407 = scalar_lea.vmem %s206, 96
        %v408 = vld [vmem:[%s407] sm:$0xff]
        %v409 = vld [vmem:[%s407 + $0x8] sm:$0xff]
        %v410 = vsel %vm214, %v408, -inf
        %v411 = vsel %vm214, %v409, -inf
        %v412 = vmax.f32 %v410, %v411
        %413 = vmax.xlane.f32.xlu0 %v412
        %v414 = vpop.xlane.xlu0 %413
        %v415 = vrot.slane %v414, 4
        %v416 = vmax.f32 %v414, %v415
        %v417 = vrot.slane %v416, 2
        %v418 = vmax.f32 %v416, %v417
        %v419 = vrot.slane %v418, 1
        %v420 = vmax.f32 %v418, %v419
        %s421 = vtos %v420
        %v422 = vstv %s421
        %423 = vst.msk [vmem:[#allocation2 + $0x6] sm:$0x1] %vm228, %v422
        %v424 = vsel %vm214, %v408, 0.0
        %v425 = vsel %vm214, %v409, 0.0
        %v426 = vadd.f32 %v424, %v425
        %427 = vadd.xlane.f32.xlu0 %v426
        %v428 = vpop.xlane.xlu0 %427
        %v429 = vrot.slane %v428, 4
        %v430 = vadd.f32 %v428, %v429
        %v431 = vrot.slane %v430, 2
        %v432 = vadd.f32 %v430, %v431
        %v433 = vrot.slane %v432, 1
        %v434 = vadd.f32 %v432, %v433
        %s435 = vtos %v434
        %v436 = vstv %s435
        %v437 = vmul.f32 %v436, %v243
        %438 = vst.msk [vmem:[#allocation2 + $0x6] sm:$0x1] %vm245, %v437
        %s439 = scalar_lea.vmem %s206, 112
        %v440 = vld [vmem:[%s439] sm:$0xff]
        %v441 = vld [vmem:[%s439 + $0x8] sm:$0xff]
        %v442 = vsel %vm214, %v440, -inf
        %v443 = vsel %vm214, %v441, -inf
        %v444 = vmax.f32 %v442, %v443
        %445 = vmax.xlane.f32.xlu0 %v444
        %v446 = vpop.xlane.xlu0 %445
        %v447 = vrot.slane %v446, 4
        %v448 = vmax.f32 %v446, %v447
        %v449 = vrot.slane %v448, 2
        %v450 = vmax.f32 %v448, %v449
        %v451 = vrot.slane %v450, 1
        %v452 = vmax.f32 %v450, %v451
        %s453 = vtos %v452
        %v454 = vstv %s453
        %455 = vst.msk [vmem:[#allocation2 + $0x7] sm:$0x1] %vm228, %v454
        %v456 = vsel %vm214, %v440, 0.0
        %v457 = vsel %vm214, %v441, 0.0
        %v458 = vadd.f32 %v456, %v457
        %459 = vadd.xlane.f32.xlu0 %v458
        %v460 = vpop.xlane.xlu0 %459
        %v461 = vrot.slane %v460, 4
        %v462 = vadd.f32 %v460, %v461
        %v463 = vrot.slane %v462, 2
        %v464 = vadd.f32 %v462, %v463
        %v465 = vrot.slane %v464, 1
        %v466 = vadd.f32 %v464, %v465
        %s467 = vtos %v466
        %v468 = vstv %s467
        %v469 = vmul.f32 %v468, %v243
        %470 = vst.msk [vmem:[#allocation2 + $0x7] sm:$0x1] %vm245, %v469
        %s471 = scalar_lea.vmem %s206, 128
        %v472 = vld [vmem:[%s471] sm:$0xff]
        %v473 = vld [vmem:[%s471 + $0x8] sm:$0xff]
        %v474 = vsel %vm214, %v472, -inf
        %v475 = vsel %vm214, %v473, -inf
        %v476 = vmax.f32 %v474, %v475
        %477 = vmax.xlane.f32.xlu0 %v476
        %v478 = vpop.xlane.xlu0 %477
        %v479 = vrot.slane %v478, 4
        %v480 = vmax.f32 %v478, %v479
        %v481 = vrot.slane %v480, 2
        %v482 = vmax.f32 %v480, %v481
        %v483 = vrot.slane %v482, 1
        %v484 = vmax.f32 %v482, %v483
        %s485 = vtos %v484
        %v486 = vstv %s485
        %487 = vst.msk [vmem:[#allocation2 + $0x8] sm:$0x1] %vm228, %v486
        %v488 = vsel %vm214, %v472, 0.0
        %v489 = vsel %vm214, %v473, 0.0
        %v490 = vadd.f32 %v488, %v489
        %491 = vadd.xlane.f32.xlu0 %v490
        %v492 = vpop.xlane.xlu0 %491
        %v493 = vrot.slane %v492, 4
        %v494 = vadd.f32 %v492, %v493
        %v495 = vrot.slane %v494, 2
        %v496 = vadd.f32 %v494, %v495
        %v497 = vrot.slane %v496, 1
        %v498 = vadd.f32 %v496, %v497
        %s499 = vtos %v498
        %v500 = vstv %s499
        %v501 = vmul.f32 %v500, %v243
        %502 = vst.msk [vmem:[#allocation2 + $0x8] sm:$0x1] %vm245, %v501
        %s503 = scalar_lea.vmem %s206, 144
        %v504 = vld [vmem:[%s503] sm:$0xff]
        %v505 = vld [vmem:[%s503 + $0x8] sm:$0xff]
        %v506 = vsel %vm214, %v504, -inf
        %v507 = vsel %vm214, %v505, -inf
        %v508 = vmax.f32 %v506, %v507
        %509 = vmax.xlane.f32.xlu0 %v508
        %v510 = vpop.xlane.xlu0 %509
        %v511 = vrot.slane %v510, 4
        %v512 = vmax.f32 %v510, %v511
        %v513 = vrot.slane %v512, 2
        %v514 = vmax.f32 %v512, %v513
        %v515 = vrot.slane %v514, 1
        %v516 = vmax.f32 %v514, %v515
        %s517 = vtos %v516
        %v518 = vstv %s517
        %519 = vst.msk [vmem:[#allocation2 + $0x9] sm:$0x1] %vm228, %v518
        %v520 = vsel %vm214, %v504, 0.0
        %v521 = vsel %vm214, %v505, 0.0
        %v522 = vadd.f32 %v520, %v521
        %523 = vadd.xlane.f32.xlu0 %v522
        %v524 = vpop.xlane.xlu0 %523
        %v525 = vrot.slane %v524, 4
        %v526 = vadd.f32 %v524, %v525
        %v527 = vrot.slane %v526, 2
        %v528 = vadd.f32 %v526, %v527
        %v529 = vrot.slane %v528, 1
        %v530 = vadd.f32 %v528, %v529
        %s531 = vtos %v530
        %v532 = vstv %s531
        %v533 = vmul.f32 %v532, %v243
        %534 = vst.msk [vmem:[#allocation2 + $0x9] sm:$0x1] %vm245, %v533
        %s535 = scalar_lea.vmem %s206, 160
        %v536 = vld [vmem:[%s535] sm:$0xff]
        %v537 = vld [vmem:[%s535 + $0x8] sm:$0xff]
        %v538 = vsel %vm214, %v536, -inf
        %v539 = vsel %vm214, %v537, -inf
        %v540 = vmax.f32 %v538, %v539
        %541 = vmax.xlane.f32.xlu0 %v540
        %v542 = vpop.xlane.xlu0 %541
        %v543 = vrot.slane %v542, 4
        %v544 = vmax.f32 %v542, %v543
        %v545 = vrot.slane %v544, 2
        %v546 = vmax.f32 %v544, %v545
        %v547 = vrot.slane %v546, 1
        %v548 = vmax.f32 %v546, %v547
        %s549 = vtos %v548
        %v550 = vstv %s549
        %551 = vst.msk [vmem:[#allocation2 + $0xa] sm:$0x1] %vm228, %v550
        %v552 = vsel %vm214, %v536, 0.0
        %v553 = vsel %vm214, %v537, 0.0
        %v554 = vadd.f32 %v552, %v553
        %555 = vadd.xlane.f32.xlu0 %v554
        %v556 = vpop.xlane.xlu0 %555
        %v557 = vrot.slane %v556, 4
        %v558 = vadd.f32 %v556, %v557
        %v559 = vrot.slane %v558, 2
        %v560 = vadd.f32 %v558, %v559
        %v561 = vrot.slane %v560, 1
        %v562 = vadd.f32 %v560, %v561
        %s563 = vtos %v562
        %v564 = vstv %s563
        %v565 = vmul.f32 %v564, %v243
        %566 = vst.msk [vmem:[#allocation2 + $0xa] sm:$0x1] %vm245, %v565
        %s567 = scalar_lea.vmem %s206, 176
        %v568 = vld [vmem:[%s567] sm:$0xff]
        %v569 = vld [vmem:[%s567 + $0x8] sm:$0xff]
        %v570 = vsel %vm214, %v568, -inf
        %v571 = vsel %vm214, %v569, -inf
        %v572 = vmax.f32 %v570, %v571
        %573 = vmax.xlane.f32.xlu0 %v572
        %v574 = vpop.xlane.xlu0 %573
        %v575 = vrot.slane %v574, 4
        %v576 = vmax.f32 %v574, %v575
        %v577 = vrot.slane %v576, 2
        %v578 = vmax.f32 %v576, %v577
        %v579 = vrot.slane %v578, 1
        %v580 = vmax.f32 %v578, %v579
        %s581 = vtos %v580
        %v582 = vstv %s581
        %583 = vst.msk [vmem:[#allocation2 + $0xb] sm:$0x1] %vm228, %v582
        %v584 = vsel %vm214, %v568, 0.0
        %v585 = vsel %vm214, %v569, 0.0
        %v586 = vadd.f32 %v584, %v585
        %587 = vadd.xlane.f32.xlu0 %v586
        %v588 = vpop.xlane.xlu0 %587
        %v589 = vrot.slane %v588, 4
        %v590 = vadd.f32 %v588, %v589
        %v591 = vrot.slane %v590, 2
        %v592 = vadd.f32 %v590, %v591
        %v593 = vrot.slane %v592, 1
        %v594 = vadd.f32 %v592, %v593
        %s595 = vtos %v594
        %v596 = vstv %s595
        %v597 = vmul.f32 %v596, %v243
        %598 = vst.msk [vmem:[#allocation2 + $0xb] sm:$0x1] %vm245, %v597
        %s599 = scalar_lea.vmem %s206, 192
        %v600 = vld [vmem:[%s599] sm:$0xff]
        %v601 = vld [vmem:[%s599 + $0x8] sm:$0xff]
        %v602 = vsel %vm214, %v600, -inf
        %v603 = vsel %vm214, %v601, -inf
        %v604 = vmax.f32 %v602, %v603
        %605 = vmax.xlane.f32.xlu0 %v604
        %v606 = vpop.xlane.xlu0 %605
        %v607 = vrot.slane %v606, 4
        %v608 = vmax.f32 %v606, %v607
        %v609 = vrot.slane %v608, 2
        %v610 = vmax.f32 %v608, %v609
        %v611 = vrot.slane %v610, 1
        %v612 = vmax.f32 %v610, %v611
        %s613 = vtos %v612
        %v614 = vstv %s613
        %615 = vst.msk [vmem:[#allocation2 + $0xc] sm:$0x1] %vm228, %v614
        %v616 = vsel %vm214, %v600, 0.0
        %v617 = vsel %vm214, %v601, 0.0
        %v618 = vadd.f32 %v616, %v617
        %619 = vadd.xlane.f32.xlu0 %v618
        %v620 = vpop.xlane.xlu0 %619
        %v621 = vrot.slane %v620, 4
        %v622 = vadd.f32 %v620, %v621
        %v623 = vrot.slane %v622, 2
        %v624 = vadd.f32 %v622, %v623
        %v625 = vrot.slane %v624, 1
        %v626 = vadd.f32 %v624, %v625
        %s627 = vtos %v626
        %v628 = vstv %s627
        %v629 = vmul.f32 %v628, %v243
        %630 = vst.msk [vmem:[#allocation2 + $0xc] sm:$0x1] %vm245, %v629
        %s631 = scalar_lea.vmem %s206, 208
        %v632 = vld [vmem:[%s631] sm:$0xff]
        %v633 = vld [vmem:[%s631 + $0x8] sm:$0xff]
        %v634 = vsel %vm214, %v632, -inf
        %v635 = vsel %vm214, %v633, -inf
        %v636 = vmax.f32 %v634, %v635
        %637 = vmax.xlane.f32.xlu0 %v636
        %v638 = vpop.xlane.xlu0 %637
        %v639 = vrot.slane %v638, 4
        %v640 = vmax.f32 %v638, %v639
        %v641 = vrot.slane %v640, 2
        %v642 = vmax.f32 %v640, %v641
        %v643 = vrot.slane %v642, 1
        %v644 = vmax.f32 %v642, %v643
        %s645 = vtos %v644
        %v646 = vstv %s645
        %647 = vst.msk [vmem:[#allocation2 + $0xd] sm:$0x1] %vm228, %v646
        %v648 = vsel %vm214, %v632, 0.0
        %v649 = vsel %vm214, %v633, 0.0
        %v650 = vadd.f32 %v648, %v649
        %651 = vadd.xlane.f32.xlu0 %v650
        %v652 = vpop.xlane.xlu0 %651
        %v653 = vrot.slane %v652, 4
        %v654 = vadd.f32 %v652, %v653
        %v655 = vrot.slane %v654, 2
        %v656 = vadd.f32 %v654, %v655
        %v657 = vrot.slane %v656, 1
        %v658 = vadd.f32 %v656, %v657
        %s659 = vtos %v658
        %v660 = vstv %s659
        %v661 = vmul.f32 %v660, %v243
        %662 = vst.msk [vmem:[#allocation2 + $0xd] sm:$0x1] %vm245, %v661
        %s663 = scalar_lea.vmem %s206, 224
        %v664 = vld [vmem:[%s663] sm:$0xff]
        %v665 = vld [vmem:[%s663 + $0x8] sm:$0xff]
        %v666 = vsel %vm214, %v664, -inf
        %v667 = vsel %vm214, %v665, -inf
        %v668 = vmax.f32 %v666, %v667
        %669 = vmax.xlane.f32.xlu0 %v668
        %v670 = vpop.xlane.xlu0 %669
        %v671 = vrot.slane %v670, 4
        %v672 = vmax.f32 %v670, %v671
        %v673 = vrot.slane %v672, 2
        %v674 = vmax.f32 %v672, %v673
        %v675 = vrot.slane %v674, 1
        %v676 = vmax.f32 %v674, %v675
        %s677 = vtos %v676
        %v678 = vstv %s677
        %679 = vst.msk [vmem:[#allocation2 + $0xe] sm:$0x1] %vm228, %v678
        %v680 = vsel %vm214, %v664, 0.0
        %v681 = vsel %vm214, %v665, 0.0
        %v682 = vadd.f32 %v680, %v681
        %683 = vadd.xlane.f32.xlu0 %v682
        %v684 = vpop.xlane.xlu0 %683
        %v685 = vrot.slane %v684, 4
        %v686 = vadd.f32 %v684, %v685
        %v687 = vrot.slane %v686, 2
        %v688 = vadd.f32 %v686, %v687
        %v689 = vrot.slane %v688, 1
        %v690 = vadd.f32 %v688, %v689
        %s691 = vtos %v690
        %v692 = vstv %s691
        %v693 = vmul.f32 %v692, %v243
        %694 = vst.msk [vmem:[#allocation2 + $0xe] sm:$0x1] %vm245, %v693
        %s695 = scalar_lea.vmem %s206, 240
        %v696 = vld [vmem:[%s695] sm:$0xff]
        %v697 = vld [vmem:[%s695 + $0x8] sm:$0xff]
        %v698 = vsel %vm214, %v696, -inf
        %v699 = vsel %vm214, %v697, -inf
        %v700 = vmax.f32 %v698, %v699
        %701 = vmax.xlane.f32.xlu0 %v700
        %v702 = vpop.xlane.xlu0 %701
        %v703 = vrot.slane %v702, 4
        %v704 = vmax.f32 %v702, %v703
        %v705 = vrot.slane %v704, 2
        %v706 = vmax.f32 %v704, %v705
        %v707 = vrot.slane %v706, 1
        %v708 = vmax.f32 %v706, %v707
        %s709 = vtos %v708
        %v710 = vstv %s709
        %711 = vst.msk [vmem:[#allocation2 + $0xf] sm:$0x1] %vm228, %v710
        %v712 = vsel %vm214, %v696, 0.0
        %v713 = vsel %vm214, %v697, 0.0
        %v714 = vadd.f32 %v712, %v713
        %715 = vadd.xlane.f32.xlu0 %v714
        %v716 = vpop.xlane.xlu0 %715
        %v717 = vrot.slane %v716, 4
        %v718 = vadd.f32 %v716, %v717
        %v719 = vrot.slane %v718, 2
        %v720 = vadd.f32 %v718, %v719
        %v721 = vrot.slane %v720, 1
        %v722 = vadd.f32 %v720, %v721
        %s723 = vtos %v722
        %v724 = vstv %s723
        %v725 = vmul.f32 %v724, %v243
        %726 = vst.msk [vmem:[#allocation2 + $0xf] sm:$0x1] %vm245, %v725
        %s727 = scalar_lea.vmem %s206, 256
        %v728 = vld [vmem:[%s727] sm:$0xff]
        %v729 = vld [vmem:[%s727 + $0x8] sm:$0xff]
        %v730 = vsel %vm214, %v728, -inf
        %v731 = vsel %vm214, %v729, -inf
        %v732 = vmax.f32 %v730, %v731
        %733 = vmax.xlane.f32.xlu0 %v732
        %v734 = vpop.xlane.xlu0 %733
        %v735 = vrot.slane %v734, 4
        %v736 = vmax.f32 %v734, %v735
        %v737 = vrot.slane %v736, 2
        %v738 = vmax.f32 %v736, %v737
        %v739 = vrot.slane %v738, 1
        %v740 = vmax.f32 %v738, %v739
        %s741 = vtos %v740
        %v742 = vstv %s741
        %743 = vst.msk [vmem:[#allocation2 + $0x10] sm:$0x1] %vm228, %v742
        %v744 = vsel %vm214, %v728, 0.0
        %v745 = vsel %vm214, %v729, 0.0
        %v746 = vadd.f32 %v744, %v745
        %747 = vadd.xlane.f32.xlu0 %v746
        %v748 = vpop.xlane.xlu0 %747
        %v749 = vrot.slane %v748, 4
        %v750 = vadd.f32 %v748, %v749
        %v751 = vrot.slane %v750, 2
        %v752 = vadd.f32 %v750, %v751
        %v753 = vrot.slane %v752, 1
        %v754 = vadd.f32 %v752, %v753
        %s755 = vtos %v754
        %v756 = vstv %s755
        %v757 = vmul.f32 %v756, %v243
        %758 = vst.msk [vmem:[#allocation2 + $0x10] sm:$0x1] %vm245, %v757
        %s759 = scalar_lea.vmem %s206, 272
        %v760 = vld [vmem:[%s759] sm:$0xff]
        %v761 = vld [vmem:[%s759 + $0x8] sm:$0xff]
        %v762 = vsel %vm214, %v760, -inf
        %v763 = vsel %vm214, %v761, -inf
        %v764 = vmax.f32 %v762, %v763
        %765 = vmax.xlane.f32.xlu0 %v764
        %v766 = vpop.xlane.xlu0 %765
        %v767 = vrot.slane %v766, 4
        %v768 = vmax.f32 %v766, %v767
        %v769 = vrot.slane %v768, 2
        %v770 = vmax.f32 %v768, %v769
        %v771 = vrot.slane %v770, 1
        %v772 = vmax.f32 %v770, %v771
        %s773 = vtos %v772
        %v774 = vstv %s773
        %775 = vst.msk [vmem:[#allocation2 + $0x11] sm:$0x1] %vm228, %v774
        %v776 = vsel %vm214, %v760, 0.0
        %v777 = vsel %vm214, %v761, 0.0
        %v778 = vadd.f32 %v776, %v777
        %779 = vadd.xlane.f32.xlu0 %v778
        %v780 = vpop.xlane.xlu0 %779
        %v781 = vrot.slane %v780, 4
        %v782 = vadd.f32 %v780, %v781
        %v783 = vrot.slane %v782, 2
        %v784 = vadd.f32 %v782, %v783
        %v785 = vrot.slane %v784, 1
        %v786 = vadd.f32 %v784, %v785
        %s787 = vtos %v786
        %v788 = vstv %s787
        %v789 = vmul.f32 %v788, %v243
        %790 = vst.msk [vmem:[#allocation2 + $0x11] sm:$0x1] %vm245, %v789
        %s791 = scalar_lea.vmem %s206, 288
        %v792 = vld [vmem:[%s791] sm:$0xff]
        %v793 = vld [vmem:[%s791 + $0x8] sm:$0xff]
        %v794 = vsel %vm214, %v792, -inf
        %v795 = vsel %vm214, %v793, -inf
        %v796 = vmax.f32 %v794, %v795
        %797 = vmax.xlane.f32.xlu0 %v796
        %v798 = vpop.xlane.xlu0 %797
        %v799 = vrot.slane %v798, 4
        %v800 = vmax.f32 %v798, %v799
        %v801 = vrot.slane %v800, 2
        %v802 = vmax.f32 %v800, %v801
        %v803 = vrot.slane %v802, 1
        %v804 = vmax.f32 %v802, %v803
        %s805 = vtos %v804
        %v806 = vstv %s805
        %807 = vst.msk [vmem:[#allocation2 + $0x12] sm:$0x1] %vm228, %v806
        %v808 = vsel %vm214, %v792, 0.0
        %v809 = vsel %vm214, %v793, 0.0
        %v810 = vadd.f32 %v808, %v809
        %811 = vadd.xlane.f32.xlu0 %v810
        %v812 = vpop.xlane.xlu0 %811
        %v813 = vrot.slane %v812, 4
        %v814 = vadd.f32 %v812, %v813
        %v815 = vrot.slane %v814, 2
        %v816 = vadd.f32 %v814, %v815
        %v817 = vrot.slane %v816, 1
        %v818 = vadd.f32 %v816, %v817
        %s819 = vtos %v818
        %v820 = vstv %s819
        %v821 = vmul.f32 %v820, %v243
        %822 = vst.msk [vmem:[#allocation2 + $0x12] sm:$0x1] %vm245, %v821
        %s823 = scalar_lea.vmem %s206, 304
        %v824 = vld [vmem:[%s823] sm:$0xff]
        %v825 = vld [vmem:[%s823 + $0x8] sm:$0xff]
        %v826 = vsel %vm214, %v824, -inf
        %v827 = vsel %vm214, %v825, -inf
        %v828 = vmax.f32 %v826, %v827
        %829 = vmax.xlane.f32.xlu0 %v828
        %v830 = vpop.xlane.xlu0 %829
        %v831 = vrot.slane %v830, 4
        %v832 = vmax.f32 %v830, %v831
        %v833 = vrot.slane %v832, 2
        %v834 = vmax.f32 %v832, %v833
        %v835 = vrot.slane %v834, 1
        %v836 = vmax.f32 %v834, %v835
        %s837 = vtos %v836
        %v838 = vstv %s837
        %839 = vst.msk [vmem:[#allocation2 + $0x13] sm:$0x1] %vm228, %v838
        %v840 = vsel %vm214, %v824, 0.0
        %v841 = vsel %vm214, %v825, 0.0
        %v842 = vadd.f32 %v840, %v841
        %843 = vadd.xlane.f32.xlu0 %v842
        %v844 = vpop.xlane.xlu0 %843
        %v845 = vrot.slane %v844, 4
        %v846 = vadd.f32 %v844, %v845
        %v847 = vrot.slane %v846, 2
        %v848 = vadd.f32 %v846, %v847
        %v849 = vrot.slane %v848, 1
        %v850 = vadd.f32 %v848, %v849
        %s851 = vtos %v850
        %v852 = vstv %s851
        %v853 = vmul.f32 %v852, %v243
        %854 = vst.msk [vmem:[#allocation2 + $0x13] sm:$0x1] %vm245, %v853
        %s855 = scalar_lea.vmem %s206, 320
        %v856 = vld [vmem:[%s855] sm:$0xff]
        %v857 = vld [vmem:[%s855 + $0x8] sm:$0xff]
        %v858 = vsel %vm214, %v856, -inf
        %v859 = vsel %vm214, %v857, -inf
        %v860 = vmax.f32 %v858, %v859
        %861 = vmax.xlane.f32.xlu0 %v860
        %v862 = vpop.xlane.xlu0 %861
        %v863 = vrot.slane %v862, 4
        %v864 = vmax.f32 %v862, %v863
        %v865 = vrot.slane %v864, 2
        %v866 = vmax.f32 %v864, %v865
        %v867 = vrot.slane %v866, 1
        %v868 = vmax.f32 %v866, %v867
        %s869 = vtos %v868
        %v870 = vstv %s869
        %871 = vst.msk [vmem:[#allocation2 + $0x14] sm:$0x1] %vm228, %v870
        %v872 = vsel %vm214, %v856, 0.0
        %v873 = vsel %vm214, %v857, 0.0
        %v874 = vadd.f32 %v872, %v873
        %875 = vadd.xlane.f32.xlu0 %v874
        %v876 = vpop.xlane.xlu0 %875
        %v877 = vrot.slane %v876, 4
        %v878 = vadd.f32 %v876, %v877
        %v879 = vrot.slane %v878, 2
        %v880 = vadd.f32 %v878, %v879
        %v881 = vrot.slane %v880, 1
        %v882 = vadd.f32 %v880, %v881
        %s883 = vtos %v882
        %v884 = vstv %s883
        %v885 = vmul.f32 %v884, %v243
        %886 = vst.msk [vmem:[#allocation2 + $0x14] sm:$0x1] %vm245, %v885
        %s887 = scalar_lea.vmem %s206, 336
        %v888 = vld [vmem:[%s887] sm:$0xff]
        %v889 = vld [vmem:[%s887 + $0x8] sm:$0xff]
        %v890 = vsel %vm214, %v888, -inf
        %v891 = vsel %vm214, %v889, -inf
        %v892 = vmax.f32 %v890, %v891
        %893 = vmax.xlane.f32.xlu0 %v892
        %v894 = vpop.xlane.xlu0 %893
        %v895 = vrot.slane %v894, 4
        %v896 = vmax.f32 %v894, %v895
        %v897 = vrot.slane %v896, 2
        %v898 = vmax.f32 %v896, %v897
        %v899 = vrot.slane %v898, 1
        %v900 = vmax.f32 %v898, %v899
        %s901 = vtos %v900
        %v902 = vstv %s901
        %903 = vst.msk [vmem:[#allocation2 + $0x15] sm:$0x1] %vm228, %v902
        %v904 = vsel %vm214, %v888, 0.0
        %v905 = vsel %vm214, %v889, 0.0
        %v906 = vadd.f32 %v904, %v905
        %907 = vadd.xlane.f32.xlu0 %v906
        %v908 = vpop.xlane.xlu0 %907
        %v909 = vrot.slane %v908, 4
        %v910 = vadd.f32 %v908, %v909
        %v911 = vrot.slane %v910, 2
        %v912 = vadd.f32 %v910, %v911
        %v913 = vrot.slane %v912, 1
        %v914 = vadd.f32 %v912, %v913
        %s915 = vtos %v914
        %v916 = vstv %s915
        %v917 = vmul.f32 %v916, %v243
        %918 = vst.msk [vmem:[#allocation2 + $0x15] sm:$0x1] %vm245, %v917
        %s919 = scalar_lea.vmem %s206, 352
        %v920 = vld [vmem:[%s919] sm:$0xff]
        %v921 = vld [vmem:[%s919 + $0x8] sm:$0xff]
        %v922 = vsel %vm214, %v920, -inf
        %v923 = vsel %vm214, %v921, -inf
        %v924 = vmax.f32 %v922, %v923
        %925 = vmax.xlane.f32.xlu0 %v924
        %v926 = vpop.xlane.xlu0 %925
        %v927 = vrot.slane %v926, 4
        %v928 = vmax.f32 %v926, %v927
        %v929 = vrot.slane %v928, 2
        %v930 = vmax.f32 %v928, %v929
        %v931 = vrot.slane %v930, 1
        %v932 = vmax.f32 %v930, %v931
        %s933 = vtos %v932
        %v934 = vstv %s933
        %935 = vst.msk [vmem:[#allocation2 + $0x16] sm:$0x1] %vm228, %v934
        %v936 = vsel %vm214, %v920, 0.0
        %v937 = vsel %vm214, %v921, 0.0
        %v938 = vadd.f32 %v936, %v937
        %939 = vadd.xlane.f32.xlu0 %v938
        %v940 = vpop.xlane.xlu0 %939
        %v941 = vrot.slane %v940, 4
        %v942 = vadd.f32 %v940, %v941
        %v943 = vrot.slane %v942, 2
        %v944 = vadd.f32 %v942, %v943
        %v945 = vrot.slane %v944, 1
        %v946 = vadd.f32 %v944, %v945
        %s947 = vtos %v946
        %v948 = vstv %s947
        %v949 = vmul.f32 %v948, %v243
        %950 = vst.msk [vmem:[#allocation2 + $0x16] sm:$0x1] %vm245, %v949
        %s951 = scalar_lea.vmem %s206, 368
        %v952 = vld [vmem:[%s951] sm:$0xff]
        %v953 = vld [vmem:[%s951 + $0x8] sm:$0xff]
        %v954 = vsel %vm214, %v952, -inf
        %v955 = vsel %vm214, %v953, -inf
        %v956 = vmax.f32 %v954, %v955
        %957 = vmax.xlane.f32.xlu0 %v956
        %v958 = vpop.xlane.xlu0 %957
        %v959 = vrot.slane %v958, 4
        %v960 = vmax.f32 %v958, %v959
        %v961 = vrot.slane %v960, 2
        %v962 = vmax.f32 %v960, %v961
        %v963 = vrot.slane %v962, 1
        %v964 = vmax.f32 %v962, %v963
        %s965 = vtos %v964
        %v966 = vstv %s965
        %967 = vst.msk [vmem:[#allocation2 + $0x17] sm:$0x1] %vm228, %v966
        %v968 = vsel %vm214, %v952, 0.0
        %v969 = vsel %vm214, %v953, 0.0
        %v970 = vadd.f32 %v968, %v969
        %971 = vadd.xlane.f32.xlu0 %v970
        %v972 = vpop.xlane.xlu0 %971
        %v973 = vrot.slane %v972, 4
        %v974 = vadd.f32 %v972, %v973
        %v975 = vrot.slane %v974, 2
        %v976 = vadd.f32 %v974, %v975
        %v977 = vrot.slane %v976, 1
        %v978 = vadd.f32 %v976, %v977
        %s979 = vtos %v978
        %v980 = vstv %s979
        %v981 = vmul.f32 %v980, %v243
        %982 = vst.msk [vmem:[#allocation2 + $0x17] sm:$0x1] %vm245, %v981
        %s983 = scalar_lea.vmem %s206, 384
        %v984 = vld [vmem:[%s983] sm:$0xff]
        %v985 = vld [vmem:[%s983 + $0x8] sm:$0xff]
        %v986 = vsel %vm214, %v984, -inf
        %v987 = vsel %vm214, %v985, -inf
        %v988 = vmax.f32 %v986, %v987
        %989 = vmax.xlane.f32.xlu0 %v988
        %v990 = vpop.xlane.xlu0 %989
        %v991 = vrot.slane %v990, 4
        %v992 = vmax.f32 %v990, %v991
        %v993 = vrot.slane %v992, 2
        %v994 = vmax.f32 %v992, %v993
        %v995 = vrot.slane %v994, 1
        %v996 = vmax.f32 %v994, %v995
        %s997 = vtos %v996
        %v998 = vstv %s997
        %999 = vst.msk [vmem:[#allocation2 + $0x18] sm:$0x1] %vm228, %v998
        %v1000 = vsel %vm214, %v984, 0.0
        %v1001 = vsel %vm214, %v985, 0.0
        %v1002 = vadd.f32 %v1000, %v1001
        %1003 = vadd.xlane.f32.xlu0 %v1002
        %v1004 = vpop.xlane.xlu0 %1003
        %v1005 = vrot.slane %v1004, 4
        %v1006 = vadd.f32 %v1004, %v1005
        %v1007 = vrot.slane %v1006, 2
        %v1008 = vadd.f32 %v1006, %v1007
        %v1009 = vrot.slane %v1008, 1
        %v1010 = vadd.f32 %v1008, %v1009
        %s1011 = vtos %v1010
        %v1012 = vstv %s1011
        %v1013 = vmul.f32 %v1012, %v243
        %1014 = vst.msk [vmem:[#allocation2 + $0x18] sm:$0x1] %vm245, %v1013
        %s1015 = scalar_lea.vmem %s206, 400
        %v1016 = vld [vmem:[%s1015] sm:$0xff]
        %v1017 = vld [vmem:[%s1015 + $0x8] sm:$0xff]
        %v1018 = vsel %vm214, %v1016, -inf
        %v1019 = vsel %vm214, %v1017, -inf
        %v1020 = vmax.f32 %v1018, %v1019
        %1021 = vmax.xlane.f32.xlu0 %v1020
        %v1022 = vpop.xlane.xlu0 %1021
        %v1023 = vrot.slane %v1022, 4
        %v1024 = vmax.f32 %v1022, %v1023
        %v1025 = vrot.slane %v1024, 2
        %v1026 = vmax.f32 %v1024, %v1025
        %v1027 = vrot.slane %v1026, 1
        %v1028 = vmax.f32 %v1026, %v1027
        %s1029 = vtos %v1028
        %v1030 = vstv %s1029
        %1031 = vst.msk [vmem:[#allocation2 + $0x19] sm:$0x1] %vm228, %v1030
        %v1032 = vsel %vm214, %v1016, 0.0
        %v1033 = vsel %vm214, %v1017, 0.0
        %v1034 = vadd.f32 %v1032, %v1033
        %1035 = vadd.xlane.f32.xlu0 %v1034
        %v1036 = vpop.xlane.xlu0 %1035
        %v1037 = vrot.slane %v1036, 4
        %v1038 = vadd.f32 %v1036, %v1037
        %v1039 = vrot.slane %v1038, 2
        %v1040 = vadd.f32 %v1038, %v1039
        %v1041 = vrot.slane %v1040, 1
        %v1042 = vadd.f32 %v1040, %v1041
        %s1043 = vtos %v1042
        %v1044 = vstv %s1043
        %v1045 = vmul.f32 %v1044, %v243
        %1046 = vst.msk [vmem:[#allocation2 + $0x19] sm:$0x1] %vm245, %v1045
        %s1047 = scalar_lea.vmem %s206, 416
        %v1048 = vld [vmem:[%s1047] sm:$0xff]
        %v1049 = vld [vmem:[%s1047 + $0x8] sm:$0xff]
        %v1050 = vsel %vm214, %v1048, -inf
        %v1051 = vsel %vm214, %v1049, -inf
        %v1052 = vmax.f32 %v1050, %v1051
        %1053 = vmax.xlane.f32.xlu0 %v1052
        %v1054 = vpop.xlane.xlu0 %1053
        %v1055 = vrot.slane %v1054, 4
        %v1056 = vmax.f32 %v1054, %v1055
        %v1057 = vrot.slane %v1056, 2
        %v1058 = vmax.f32 %v1056, %v1057
        %v1059 = vrot.slane %v1058, 1
        %v1060 = vmax.f32 %v1058, %v1059
        %s1061 = vtos %v1060
        %v1062 = vstv %s1061
        %1063 = vst.msk [vmem:[#allocation2 + $0x1a] sm:$0x1] %vm228, %v1062
        %v1064 = vsel %vm214, %v1048, 0.0
        %v1065 = vsel %vm214, %v1049, 0.0
        %v1066 = vadd.f32 %v1064, %v1065
        %1067 = vadd.xlane.f32.xlu0 %v1066
        %v1068 = vpop.xlane.xlu0 %1067
        %v1069 = vrot.slane %v1068, 4
        %v1070 = vadd.f32 %v1068, %v1069
        %v1071 = vrot.slane %v1070, 2
        %v1072 = vadd.f32 %v1070, %v1071
        %v1073 = vrot.slane %v1072, 1
        %v1074 = vadd.f32 %v1072, %v1073
        %s1075 = vtos %v1074
        %v1076 = vstv %s1075
        %v1077 = vmul.f32 %v1076, %v243
        %1078 = vst.msk [vmem:[#allocation2 + $0x1a] sm:$0x1] %vm245, %v1077
        %s1079 = scalar_lea.vmem %s206, 432
        %v1080 = vld [vmem:[%s1079] sm:$0xff]
        %v1081 = vld [vmem:[%s1079 + $0x8] sm:$0xff]
        %v1082 = vsel %vm214, %v1080, -inf
        %v1083 = vsel %vm214, %v1081, -inf
        %v1084 = vmax.f32 %v1082, %v1083
        %1085 = vmax.xlane.f32.xlu0 %v1084
        %v1086 = vpop.xlane.xlu0 %1085
        %v1087 = vrot.slane %v1086, 4
        %v1088 = vmax.f32 %v1086, %v1087
        %v1089 = vrot.slane %v1088, 2
        %v1090 = vmax.f32 %v1088, %v1089
        %v1091 = vrot.slane %v1090, 1
        %v1092 = vmax.f32 %v1090, %v1091
        %s1093 = vtos %v1092
        %v1094 = vstv %s1093
        %1095 = vst.msk [vmem:[#allocation2 + $0x1b] sm:$0x1] %vm228, %v1094
        %v1096 = vsel %vm214, %v1080, 0.0
        %v1097 = vsel %vm214, %v1081, 0.0
        %v1098 = vadd.f32 %v1096, %v1097
        %1099 = vadd.xlane.f32.xlu0 %v1098
        %v1100 = vpop.xlane.xlu0 %1099
        %v1101 = vrot.slane %v1100, 4
        %v1102 = vadd.f32 %v1100, %v1101
        %v1103 = vrot.slane %v1102, 2
        %v1104 = vadd.f32 %v1102, %v1103
        %v1105 = vrot.slane %v1104, 1
        %v1106 = vadd.f32 %v1104, %v1105
        %s1107 = vtos %v1106
        %v1108 = vstv %s1107
        %v1109 = vmul.f32 %v1108, %v243
        %1110 = vst.msk [vmem:[#allocation2 + $0x1b] sm:$0x1] %vm245, %v1109
        %s1111 = scalar_lea.vmem %s206, 448
        %v1112 = vld [vmem:[%s1111] sm:$0xff]
        %v1113 = vld [vmem:[%s1111 + $0x8] sm:$0xff]
        %v1114 = vsel %vm214, %v1112, -inf
        %v1115 = vsel %vm214, %v1113, -inf
        %v1116 = vmax.f32 %v1114, %v1115
        %1117 = vmax.xlane.f32.xlu0 %v1116
        %v1118 = vpop.xlane.xlu0 %1117
        %v1119 = vrot.slane %v1118, 4
        %v1120 = vmax.f32 %v1118, %v1119
        %v1121 = vrot.slane %v1120, 2
        %v1122 = vmax.f32 %v1120, %v1121
        %v1123 = vrot.slane %v1122, 1
        %v1124 = vmax.f32 %v1122, %v1123
        %s1125 = vtos %v1124
        %v1126 = vstv %s1125
        %1127 = vst.msk [vmem:[#allocation2 + $0x1c] sm:$0x1] %vm228, %v1126
        %v1128 = vsel %vm214, %v1112, 0.0
        %v1129 = vsel %vm214, %v1113, 0.0
        %v1130 = vadd.f32 %v1128, %v1129
        %1131 = vadd.xlane.f32.xlu0 %v1130
        %v1132 = vpop.xlane.xlu0 %1131
        %v1133 = vrot.slane %v1132, 4
        %v1134 = vadd.f32 %v1132, %v1133
        %v1135 = vrot.slane %v1134, 2
        %v1136 = vadd.f32 %v1134, %v1135
        %v1137 = vrot.slane %v1136, 1
        %v1138 = vadd.f32 %v1136, %v1137
        %s1139 = vtos %v1138
        %v1140 = vstv %s1139
        %v1141 = vmul.f32 %v1140, %v243
        %1142 = vst.msk [vmem:[#allocation2 + $0x1c] sm:$0x1] %vm245, %v1141
        %s1143 = scalar_lea.vmem %s206, 464
        %v1144 = vld [vmem:[%s1143] sm:$0xff]
        %v1145 = vld [vmem:[%s1143 + $0x8] sm:$0xff]
        %v1146 = vsel %vm214, %v1144, -inf
        %v1147 = vsel %vm214, %v1145, -inf
        %v1148 = vmax.f32 %v1146, %v1147
        %1149 = vmax.xlane.f32.xlu0 %v1148
        %v1150 = vpop.xlane.xlu0 %1149
        %v1151 = vrot.slane %v1150, 4
        %v1152 = vmax.f32 %v1150, %v1151
        %v1153 = vrot.slane %v1152, 2
        %v1154 = vmax.f32 %v1152, %v1153
        %v1155 = vrot.slane %v1154, 1
        %v1156 = vmax.f32 %v1154, %v1155
        %s1157 = vtos %v1156
        %v1158 = vstv %s1157
        %1159 = vst.msk [vmem:[#allocation2 + $0x1d] sm:$0x1] %vm228, %v1158
        %v1160 = vsel %vm214, %v1144, 0.0
        %v1161 = vsel %vm214, %v1145, 0.0
        %v1162 = vadd.f32 %v1160, %v1161
        %1163 = vadd.xlane.f32.xlu0 %v1162
        %v1164 = vpop.xlane.xlu0 %1163
        %v1165 = vrot.slane %v1164, 4
        %v1166 = vadd.f32 %v1164, %v1165
        %v1167 = vrot.slane %v1166, 2
        %v1168 = vadd.f32 %v1166, %v1167
        %v1169 = vrot.slane %v1168, 1
        %v1170 = vadd.f32 %v1168, %v1169
        %s1171 = vtos %v1170
        %v1172 = vstv %s1171
        %v1173 = vmul.f32 %v1172, %v243
        %1174 = vst.msk [vmem:[#allocation2 + $0x1d] sm:$0x1] %vm245, %v1173
        %s1175 = scalar_lea.vmem %s206, 480
        %v1176 = vld [vmem:[%s1175] sm:$0xff]
        %v1177 = vld [vmem:[%s1175 + $0x8] sm:$0xff]
        %v1178 = vsel %vm214, %v1176, -inf
        %v1179 = vsel %vm214, %v1177, -inf
        %v1180 = vmax.f32 %v1178, %v1179
        %1181 = vmax.xlane.f32.xlu0 %v1180
        %v1182 = vpop.xlane.xlu0 %1181
        %v1183 = vrot.slane %v1182, 4
        %v1184 = vmax.f32 %v1182, %v1183
        %v1185 = vrot.slane %v1184, 2
        %v1186 = vmax.f32 %v1184, %v1185
        %v1187 = vrot.slane %v1186, 1
        %v1188 = vmax.f32 %v1186, %v1187
        %s1189 = vtos %v1188
        %v1190 = vstv %s1189
        %1191 = vst.msk [vmem:[#allocation2 + $0x1e] sm:$0x1] %vm228, %v1190
        %v1192 = vsel %vm214, %v1176, 0.0
        %v1193 = vsel %vm214, %v1177, 0.0
        %v1194 = vadd.f32 %v1192, %v1193
        %1195 = vadd.xlane.f32.xlu0 %v1194
        %v1196 = vpop.xlane.xlu0 %1195
        %v1197 = vrot.slane %v1196, 4
        %v1198 = vadd.f32 %v1196, %v1197
        %v1199 = vrot.slane %v1198, 2
        %v1200 = vadd.f32 %v1198, %v1199
        %v1201 = vrot.slane %v1200, 1
        %v1202 = vadd.f32 %v1200, %v1201
        %s1203 = vtos %v1202
        %v1204 = vstv %s1203
        %v1205 = vmul.f32 %v1204, %v243
        %1206 = vst.msk [vmem:[#allocation2 + $0x1e] sm:$0x1] %vm245, %v1205
        %s1207 = scalar_lea.vmem %s206, 496
        %v1208 = vld [vmem:[%s1207] sm:$0xff]
        %v1209 = vld [vmem:[%s1207 + $0x8] sm:$0xff]
        %v1210 = vsel %vm214, %v1208, -inf
        %v1211 = vsel %vm214, %v1209, -inf
        %v1212 = vmax.f32 %v1210, %v1211
        %1213 = vmax.xlane.f32.xlu0 %v1212
        %v1214 = vpop.xlane.xlu0 %1213
        %v1215 = vrot.slane %v1214, 4
        %v1216 = vmax.f32 %v1214, %v1215
        %v1217 = vrot.slane %v1216, 2
        %v1218 = vmax.f32 %v1216, %v1217
        %v1219 = vrot.slane %v1218, 1
        %v1220 = vmax.f32 %v1218, %v1219
        %s1221 = vtos %v1220
        %v1222 = vstv %s1221
        %1223 = vst.msk [vmem:[#allocation2 + $0x1f] sm:$0x1] %vm228, %v1222
        %v1224 = vsel %vm214, %v1208, 0.0
        %v1225 = vsel %vm214, %v1209, 0.0
        %v1226 = vadd.f32 %v1224, %v1225
        %1227 = vadd.xlane.f32.xlu0 %v1226
        %v1228 = vpop.xlane.xlu0 %1227
        %v1229 = vrot.slane %v1228, 4
        %v1230 = vadd.f32 %v1228, %v1229
        %v1231 = vrot.slane %v1230, 2
        %v1232 = vadd.f32 %v1230, %v1231
        %v1233 = vrot.slane %v1232, 1
        %v1234 = vadd.f32 %v1232, %v1233
        %s1235 = vtos %v1234
        %v1236 = vstv %s1235
        %v1237 = vmul.f32 %v1236, %v243
        %1238 = vst.msk [vmem:[#allocation2 + $0x1f] sm:$0x1] %vm245, %v1237
        %v1239 = vld [vmem:[#allocation2] sm:$0xff]
        %v1240 = vld [vmem:[#allocation2 + $0x8] sm:$0xff]
        %v1241 = vld [vmem:[#allocation2 + $0x10] sm:$0xff]
        %v1242 = vld [vmem:[#allocation2 + $0x18] sm:$0xff]
        %v1243 = vld [vmem:[%s2] sm:$0x3]
        %vm1244 = vcmask 261120
        %v1246 = vsel %vm1244, %v1243, 0
        %1248 = vmatprep.subr.mxu0 0.0
        %1249 = vmatpush1.msra.mxu0 0.0
        %1250 = vmatprep.subr.mxu0 0.0
        %1251 = vmatpush1.msra.mxu0 0.0
        %1252 = vmatprep.subr.mxu0 0.0
        %1253 = vmatpush1.msra.mxu0 0.0
        %1254 = vmatprep.subr.mxu0 0.0
        %1255 = vmatpush1.msra.mxu0 0.0
        %1256 = vmatprep.subr.mxu0 0.0
        %1257 = vmatpush1.msra.mxu0 0.0
        %1258 = vmatprep.subr.mxu0 0.0
        %1259 = vmatpush1.msra.mxu0 0.0
        %1260 = vmatprep.subr.mxu0 0.0
        %1261 = vmatpush1.msra.mxu0 0.0
        %1262 = vmatprep.subr.mxu0 0.0
        %1263 = vmatpush1.msra.mxu0 0.0
        %1264 = vmatprep.subr.mxu0 0.0
        %1265 = vmatpush1.msra.mxu0 0.0
        %1266 = vmatprep.subr.mxu0 0.0
        %1267 = vmatpush1.msra.mxu0 0.0
        %1268 = vmatprep.subr.mxu0 0.0
        %1269 = vmatpush1.msra.mxu0 0.0
        %1270 = vmatprep.subr.mxu0 0.0
        %1271 = vmatpush1.msra.mxu0 0.0
        %1272 = vmatprep.subr.mxu0 0.0
        %1273 = vmatpush1.msra.mxu0 %v1242
        %1274 = vmatprep.subr.mxu0 0.0
        %1275 = vmatpush1.msra.mxu0 %v1241
        %1276 = vmatprep.subr.mxu0 0.0
        %1277 = vmatpush1.msra.mxu0 %v1240
        %1278 = vmatprep.subr.mxu0 0.0
        %1279 = vmatpush1.msra.mxu0 %v1239
        %1280 = vmatprep.subr.mxu0 0.0
        %1281 = vmatpush2.msra.mxu0 0.0
        %1282 = vmatprep.subr.mxu0 0.0
        %1283 = vmatpush2.msra.mxu0 0.0
        %1284 = vmatprep.subr.mxu0 0.0
        %1285 = vmatpush2.msra.mxu0 0.0
        %1286 = vmatprep.subr.mxu0 0.0
        %1287 = vmatpush2.msra.mxu0 0.0
        %1288 = vmatprep.subr.mxu0 0.0
        %1289 = vmatpush2.msra.mxu0 0.0
        %1290 = vmatprep.subr.mxu0 0.0
        %1291 = vmatpush2.msra.mxu0 0.0
        %1292 = vmatprep.subr.mxu0 0.0
        %1293 = vmatpush2.msra.mxu0 0.0
        %1294 = vmatprep.subr.mxu0 0.0
        %1295 = vmatpush2.msra.mxu0 0.0
        %1296 = vmatprep.subr.mxu0 0.0
        %1297 = vmatpush2.msra.mxu0 0.0
        %1298 = vmatprep.subr.mxu0 0.0
        %1299 = vmatpush2.msra.mxu0 0.0
        %1300 = vmatprep.subr.mxu0 0.0
        %1301 = vmatpush2.msra.mxu0 0.0
        %1302 = vmatprep.subr.mxu0 0.0
        %1303 = vmatpush2.msra.mxu0 0.0
        %1304 = vmatprep.subr.mxu0 0.0
        %1305 = vmatpush2.msra.mxu0 0.0
        %1306 = vmatprep.subr.mxu0 0.0
        %1307 = vmatpush2.msra.mxu0 0.0
        %1308 = vmatprep.subr.mxu0 0.0
        %1309 = vmatpush2.msra.mxu0 0.0
        %1310 = vmatprep.subr.mxu0 0.0
        %1311 = vmatpush2.msra.mxu0 0.0
        %1312 = vmatprep.mubr.f32.mxu0 0.0
        %1313 = vmatmul.mubr.f32.gmra.mxu0 %v1246
        %v1314 = vpop.f32.mrf.mxu0
        %v1315 = vadd.f32 0.0, %v1314
        %v1316 = vpop.f32.mrf.mxu0
        %1317 = vdwg.mxu0
        %v1318 = vmax.f32 %v1315, 0.0
        %v1319 = vld [vmem:[%s3] sm:$0xff]
        %v1320 = vld [vmem:[%s3 + $0x8] sm:$0xff]
        %v1321 = vld [vmem:[%s3 + $0x10] sm:$0xff]
        %v1322 = vld [vmem:[%s3 + $0x18] sm:$0xff]
        %vm1323 = vcmask 15360
        %v1325 = vsel %vm1323, %v1319, 0
        %v1328 = vsel %vm1323, %v1320, 0
        %v1331 = vsel %vm1323, %v1321, 0
        %v1334 = vsel %vm1323, %v1322, 0
        %vm1336 = vcmask 1041408
        %v1338 = vsel %vm1336, %v1318, 0
        %1340 = vmatprep.subr.mxu0 0.0
        %1341 = vmatpush1.msra.mxu0 0.0
        %1342 = vmatprep.subr.mxu0 0.0
        %1343 = vmatpush1.msra.mxu0 0.0
        %1344 = vmatprep.subr.mxu0 0.0
        %1345 = vmatpush1.msra.mxu0 0.0
        %1346 = vmatprep.subr.mxu0 0.0
        %1347 = vmatpush1.msra.mxu0 0.0
        %1348 = vmatprep.subr.mxu0 0.0
        %1349 = vmatpush1.msra.mxu0 0.0
        %1350 = vmatprep.subr.mxu0 0.0
        %1351 = vmatpush1.msra.mxu0 0.0
        %1352 = vmatprep.subr.mxu0 0.0
        %1353 = vmatpush1.msra.mxu0 0.0
        %1354 = vmatprep.subr.mxu0 0.0
        %1355 = vmatpush1.msra.mxu0 0.0
        %1356 = vmatprep.subr.mxu0 0.0
        %1357 = vmatpush1.msra.mxu0 0.0
        %1358 = vmatprep.subr.mxu0 0.0
        %1359 = vmatpush1.msra.mxu0 0.0
        %1360 = vmatprep.subr.mxu0 0.0
        %1361 = vmatpush1.msra.mxu0 0.0
        %1362 = vmatprep.subr.mxu0 0.0
        %1363 = vmatpush1.msra.mxu0 0.0
        %1364 = vmatprep.subr.mxu0 0.0
        %1365 = vmatpush1.msra.mxu0 0.0
        %1366 = vmatprep.subr.mxu0 0.0
        %1367 = vmatpush1.msra.mxu0 0.0
        %1368 = vmatprep.subr.mxu0 0.0
        %1369 = vmatpush1.msra.mxu0 0.0
        %1370 = vmatprep.subr.mxu0 0.0
        %1371 = vmatpush1.msra.mxu0 %v1338
        %1372 = vmatprep.subr.mxu0 0.0
        %1373 = vmatpush2.msra.mxu0 0.0
        %1374 = vmatprep.subr.mxu0 0.0
        %1375 = vmatpush2.msra.mxu0 0.0
        %1376 = vmatprep.subr.mxu0 0.0
        %1377 = vmatpush2.msra.mxu0 0.0
        %1378 = vmatprep.subr.mxu0 0.0
        %1379 = vmatpush2.msra.mxu0 0.0
        %1380 = vmatprep.subr.mxu0 0.0
        %1381 = vmatpush2.msra.mxu0 0.0
        %1382 = vmatprep.subr.mxu0 0.0
        %1383 = vmatpush2.msra.mxu0 0.0
        %1384 = vmatprep.subr.mxu0 0.0
        %1385 = vmatpush2.msra.mxu0 0.0
        %1386 = vmatprep.subr.mxu0 0.0
        %1387 = vmatpush2.msra.mxu0 0.0
        %1388 = vmatprep.subr.mxu0 0.0
        %1389 = vmatpush2.msra.mxu0 0.0
        %1390 = vmatprep.subr.mxu0 0.0
        %1391 = vmatpush2.msra.mxu0 0.0
        %1392 = vmatprep.subr.mxu0 0.0
        %1393 = vmatpush2.msra.mxu0 0.0
        %1394 = vmatprep.subr.mxu0 0.0
        %1395 = vmatpush2.msra.mxu0 0.0
        %1396 = vmatprep.subr.mxu0 0.0
        %1397 = vmatpush2.msra.mxu0 0.0
        %1398 = vmatprep.subr.mxu0 0.0
        %1399 = vmatpush2.msra.mxu0 0.0
        %1400 = vmatprep.subr.mxu0 0.0
        %1401 = vmatpush2.msra.mxu0 0.0
        %1402 = vmatprep.subr.mxu0 0.0
        %1403 = vmatpush2.msra.mxu0 0.0
        %1404 = vmatprep.mubr.f32.mxu0 0.0
        %1405 = vmatmul.mubr.f32.gmra.mxu0 %v1325
        %v1406 = vpop.f32.mrf.mxu0
        %v1407 = vadd.f32 0.0, %v1406
        %v1408 = vpop.f32.mrf.mxu0
        %1409 = vmatprep.mubr.f32.mxu0 0.0
        %1410 = vmatmul.mubr.f32.gmra.mxu0 %v1328
        %v1411 = vpop.f32.mrf.mxu0
        %v1412 = vadd.f32 0.0, %v1411
        %v1413 = vpop.f32.mrf.mxu0
        %1414 = vmatprep.mubr.f32.mxu0 0.0
        %1415 = vmatmul.mubr.f32.gmra.mxu0 %v1331
        %v1416 = vpop.f32.mrf.mxu0
        %v1417 = vadd.f32 0.0, %v1416
        %v1418 = vpop.f32.mrf.mxu0
        %1419 = vmatprep.mubr.f32.mxu0 0.0
        %1420 = vmatmul.mubr.f32.gmra.mxu0 %v1334
        %v1421 = vpop.f32.mrf.mxu0
        %v1422 = vadd.f32 0.0, %v1421
        %v1423 = vpop.f32.mrf.mxu0
        %1424 = vdwg.mxu0
        %v1425 = vsel %vm1323, %v1407, 0.0
        %1426 = vadd.xlane.f32.xlu0 %v1425
        %v1427 = vpop.xlane.xlu0 %1426
        %v1428 = vsel %vm1323, %v1412, 0.0
        %1429 = vadd.xlane.f32.xlu0 %v1428
        %v1430 = vpop.xlane.xlu0 %1429
        %v1431 = vsel %vm1323, %v1417, 0.0
        %1432 = vadd.xlane.f32.xlu0 %v1431
        %v1433 = vpop.xlane.xlu0 %1432
        %v1434 = vsel %vm1323, %v1422, 0.0
        %1435 = vadd.xlane.f32.xlu0 %v1434
        %v1436 = vpop.xlane.xlu0 %1435
        %v1437 = vxor.u32 %v1427, 2147483648
        %v1438 = vxor.u32 %v1430, 2147483648
        %v1439 = vxor.u32 %v1433, 2147483648
        %v1440 = vxor.u32 %v1436, 2147483648
        %v1441 = vmul.f32 %v1437, 1.442695
        %v1442 = vpow.pop %v1441
        %v1443 = vmul.f32 %v1438, 1.442695
        %v1444 = vpow.pop %v1443
        %v1445 = vmul.f32 %v1439, 1.442695
        %v1446 = vpow.pop %v1445
        %v1447 = vmul.f32 %v1440, 1.442695
        %v1448 = vpow.pop %v1447
        %v1449 = vadd.f32 %v1442, 1.0
        %v1450 = vadd.f32 %v1444, 1.0
        %v1451 = vadd.f32 %v1446, 1.0
        %v1452 = vadd.f32 %v1448, 1.0
        %v1453 = vrcp.pop %v1449
        %v1454 = vmul.f32 1.0, %v1453
        %v1455 = vrcp.pop %v1450
        %v1456 = vmul.f32 1.0, %v1455
        %v1457 = vrcp.pop %v1451
        %v1458 = vmul.f32 1.0, %v1457
        %v1459 = vrcp.pop %v1452
        %v1460 = vmul.f32 1.0, %v1459
        %vm1461 = vcmask 7168
        %1462 = vst.msk [vmem:[#allocation3] sm:$0xff] %vm1461, %v1454
        %1463 = vst.msk [vmem:[#allocation3 + $0x8] sm:$0xff] %vm1461, %v1456
        %1464 = vst.msk [vmem:[#allocation3 + $0x10] sm:$0xff] %vm1461, %v1458
        %1465 = vst.msk [vmem:[#allocation3 + $0x18] sm:$0xff] %vm1461, %v1460
        %v1466 = vld [vmem:[%s206] sm:$0xff]
        %v1467 = vld [vmem:[%s206 + $0x8] sm:$0xff]
        %v1468 = vld [vmem:[#allocation3] sm:$0x1]
        %s1470 = vtos %v1468
        %v1471 = vstv %s1470
        %v1473 = vmul.f32 %v1466, %v1471
        %v1474 = vmul.f32 %v1467, %v1471
        %1475 = vst.msk [vmem:[%s211] sm:$0xff] %vm214, %v1473
        %1476 = vst.msk [vmem:[%s211 + $0x8] sm:$0xff] %vm214, %v1474
        %v1477 = vadd.f32 %v1473, 0.0
        %v1478 = vadd.f32 %v1474, 0.0
        %v1479 = vld [vmem:[%s247] sm:$0xff]
        %v1480 = vld [vmem:[%s247 + $0x8] sm:$0xff]
        %v1481 = vld [vmem:[#allocation3 + $0x1] sm:$0x1]
        %s1483 = vtos %v1481
        %v1484 = vstv %s1483
        %v1486 = vmul.f32 %v1479, %v1484
        %v1487 = vmul.f32 %v1480, %v1484
        %s1488 = scalar_lea.vmem %s211, 16
        %1489 = vst.msk [vmem:[%s1488] sm:$0xff] %vm214, %v1486
        %1490 = vst.msk [vmem:[%s1488 + $0x8] sm:$0xff] %vm214, %v1487
        %v1491 = vmax.f32 %v1473, %v1486
        %v1492 = vmax.f32 %v1474, %v1487
        %v1493 = vadd.f32 %v1477, %v1486
        %v1494 = vadd.f32 %v1478, %v1487
        %v1495 = vld [vmem:[%s279] sm:$0xff]
        %v1496 = vld [vmem:[%s279 + $0x8] sm:$0xff]
        %v1497 = vld [vmem:[#allocation3 + $0x2] sm:$0x1]
        %s1499 = vtos %v1497
        %v1500 = vstv %s1499
        %v1502 = vmul.f32 %v1495, %v1500
        %v1503 = vmul.f32 %v1496, %v1500
        %s1504 = scalar_lea.vmem %s211, 32
        %1505 = vst.msk [vmem:[%s1504] sm:$0xff] %vm214, %v1502
        %1506 = vst.msk [vmem:[%s1504 + $0x8] sm:$0xff] %vm214, %v1503
        %v1507 = vmax.f32 %v1491, %v1502
        %v1508 = vmax.f32 %v1492, %v1503
        %v1509 = vadd.f32 %v1493, %v1502
        %v1510 = vadd.f32 %v1494, %v1503
        %v1511 = vld [vmem:[%s311] sm:$0xff]
        %v1512 = vld [vmem:[%s311 + $0x8] sm:$0xff]
        %v1513 = vld [vmem:[#allocation3 + $0x3] sm:$0x1]
        %s1515 = vtos %v1513
        %v1516 = vstv %s1515
        %v1518 = vmul.f32 %v1511, %v1516
        %v1519 = vmul.f32 %v1512, %v1516
        %s1520 = scalar_lea.vmem %s211, 48
        %1521 = vst.msk [vmem:[%s1520] sm:$0xff] %vm214, %v1518
        %1522 = vst.msk [vmem:[%s1520 + $0x8] sm:$0xff] %vm214, %v1519
        %v1523 = vmax.f32 %v1507, %v1518
        %v1524 = vmax.f32 %v1508, %v1519
        %v1525 = vadd.f32 %v1509, %v1518
        %v1526 = vadd.f32 %v1510, %v1519
        %v1527 = vld [vmem:[%s343] sm:$0xff]
        %v1528 = vld [vmem:[%s343 + $0x8] sm:$0xff]
        %v1529 = vld [vmem:[#allocation3 + $0x4] sm:$0x1]
        %s1531 = vtos %v1529
        %v1532 = vstv %s1531
        %v1534 = vmul.f32 %v1527, %v1532
        %v1535 = vmul.f32 %v1528, %v1532
        %s1536 = scalar_lea.vmem %s211, 64
        %1537 = vst.msk [vmem:[%s1536] sm:$0xff] %vm214, %v1534
        %1538 = vst.msk [vmem:[%s1536 + $0x8] sm:$0xff] %vm214, %v1535
        %v1539 = vmax.f32 %v1523, %v1534
        %v1540 = vmax.f32 %v1524, %v1535
        %v1541 = vadd.f32 %v1525, %v1534
        %v1542 = vadd.f32 %v1526, %v1535
        %v1543 = vld [vmem:[%s375] sm:$0xff]
        %v1544 = vld [vmem:[%s375 + $0x8] sm:$0xff]
        %v1545 = vld [vmem:[#allocation3 + $0x5] sm:$0x1]
        %s1547 = vtos %v1545
        %v1548 = vstv %s1547
        %v1550 = vmul.f32 %v1543, %v1548
        %v1551 = vmul.f32 %v1544, %v1548
        %s1552 = scalar_lea.vmem %s211, 80
        %1553 = vst.msk [vmem:[%s1552] sm:$0xff] %vm214, %v1550
        %1554 = vst.msk [vmem:[%s1552 + $0x8] sm:$0xff] %vm214, %v1551
        %v1555 = vmax.f32 %v1539, %v1550
        %v1556 = vmax.f32 %v1540, %v1551
        %v1557 = vadd.f32 %v1541, %v1550
        %v1558 = vadd.f32 %v1542, %v1551
        %v1559 = vld [vmem:[%s407] sm:$0xff]
        %v1560 = vld [vmem:[%s407 + $0x8] sm:$0xff]
        %v1561 = vld [vmem:[#allocation3 + $0x6] sm:$0x1]
        %s1563 = vtos %v1561
        %v1564 = vstv %s1563
        %v1566 = vmul.f32 %v1559, %v1564
        %v1567 = vmul.f32 %v1560, %v1564
        %s1568 = scalar_lea.vmem %s211, 96
        %1569 = vst.msk [vmem:[%s1568] sm:$0xff] %vm214, %v1566
        %1570 = vst.msk [vmem:[%s1568 + $0x8] sm:$0xff] %vm214, %v1567
        %v1571 = vmax.f32 %v1555, %v1566
        %v1572 = vmax.f32 %v1556, %v1567
        %v1573 = vadd.f32 %v1557, %v1566
        %v1574 = vadd.f32 %v1558, %v1567
        %v1575 = vld [vmem:[%s439] sm:$0xff]
        %v1576 = vld [vmem:[%s439 + $0x8] sm:$0xff]
        %v1577 = vld [vmem:[#allocation3 + $0x7] sm:$0x1]
        %s1579 = vtos %v1577
        %v1580 = vstv %s1579
        %v1582 = vmul.f32 %v1575, %v1580
        %v1583 = vmul.f32 %v1576, %v1580
        %s1584 = scalar_lea.vmem %s211, 112
        %1585 = vst.msk [vmem:[%s1584] sm:$0xff] %vm214, %v1582
        %1586 = vst.msk [vmem:[%s1584 + $0x8] sm:$0xff] %vm214, %v1583
        %v1587 = vmax.f32 %v1571, %v1582
        %v1588 = vmax.f32 %v1572, %v1583
        %v1589 = vadd.f32 %v1573, %v1582
        %v1590 = vadd.f32 %v1574, %v1583
        %v1591 = vld [vmem:[%s471] sm:$0xff]
        %v1592 = vld [vmem:[%s471 + $0x8] sm:$0xff]
        %v1593 = vld [vmem:[#allocation3 + $0x8] sm:$0x1]
        %s1595 = vtos %v1593
        %v1596 = vstv %s1595
        %v1598 = vmul.f32 %v1591, %v1596
        %v1599 = vmul.f32 %v1592, %v1596
        %s1600 = scalar_lea.vmem %s211, 128
        %1601 = vst.msk [vmem:[%s1600] sm:$0xff] %vm214, %v1598
        %1602 = vst.msk [vmem:[%s1600 + $0x8] sm:$0xff] %vm214, %v1599
        %v1603 = vmax.f32 %v1587, %v1598
        %v1604 = vmax.f32 %v1588, %v1599
        %v1605 = vadd.f32 %v1589, %v1598
        %v1606 = vadd.f32 %v1590, %v1599
        %v1607 = vld [vmem:[%s503] sm:$0xff]
        %v1608 = vld [vmem:[%s503 + $0x8] sm:$0xff]
        %v1609 = vld [vmem:[#allocation3 + $0x9] sm:$0x1]
        %s1611 = vtos %v1609
        %v1612 = vstv %s1611
        %v1614 = vmul.f32 %v1607, %v1612
        %v1615 = vmul.f32 %v1608, %v1612
        %s1616 = scalar_lea.vmem %s211, 144
        %1617 = vst.msk [vmem:[%s1616] sm:$0xff] %vm214, %v1614
        %1618 = vst.msk [vmem:[%s1616 + $0x8] sm:$0xff] %vm214, %v1615
        %v1619 = vmax.f32 %v1603, %v1614
        %v1620 = vmax.f32 %v1604, %v1615
        %v1621 = vadd.f32 %v1605, %v1614
        %v1622 = vadd.f32 %v1606, %v1615
        %v1623 = vld [vmem:[%s535] sm:$0xff]
        %v1624 = vld [vmem:[%s535 + $0x8] sm:$0xff]
        %v1625 = vld [vmem:[#allocation3 + $0xa] sm:$0x1]
        %s1627 = vtos %v1625
        %v1628 = vstv %s1627
        %v1630 = vmul.f32 %v1623, %v1628
        %v1631 = vmul.f32 %v1624, %v1628
        %s1632 = scalar_lea.vmem %s211, 160
        %1633 = vst.msk [vmem:[%s1632] sm:$0xff] %vm214, %v1630
        %1634 = vst.msk [vmem:[%s1632 + $0x8] sm:$0xff] %vm214, %v1631
        %v1635 = vmax.f32 %v1619, %v1630
        %v1636 = vmax.f32 %v1620, %v1631
        %v1637 = vadd.f32 %v1621, %v1630
        %v1638 = vadd.f32 %v1622, %v1631
        %v1639 = vld [vmem:[%s567] sm:$0xff]
        %v1640 = vld [vmem:[%s567 + $0x8] sm:$0xff]
        %v1641 = vld [vmem:[#allocation3 + $0xb] sm:$0x1]
        %s1643 = vtos %v1641
        %v1644 = vstv %s1643
        %v1646 = vmul.f32 %v1639, %v1644
        %v1647 = vmul.f32 %v1640, %v1644
        %s1648 = scalar_lea.vmem %s211, 176
        %1649 = vst.msk [vmem:[%s1648] sm:$0xff] %vm214, %v1646
        %1650 = vst.msk [vmem:[%s1648 + $0x8] sm:$0xff] %vm214, %v1647
        %v1651 = vmax.f32 %v1635, %v1646
        %v1652 = vmax.f32 %v1636, %v1647
        %v1653 = vadd.f32 %v1637, %v1646
        %v1654 = vadd.f32 %v1638, %v1647
        %v1655 = vld [vmem:[%s599] sm:$0xff]
        %v1656 = vld [vmem:[%s599 + $0x8] sm:$0xff]
        %v1657 = vld [vmem:[#allocation3 + $0xc] sm:$0x1]
        %s1659 = vtos %v1657
        %v1660 = vstv %s1659
        %v1662 = vmul.f32 %v1655, %v1660
        %v1663 = vmul.f32 %v1656, %v1660
        %s1664 = scalar_lea.vmem %s211, 192
        %1665 = vst.msk [vmem:[%s1664] sm:$0xff] %vm214, %v1662
        %1666 = vst.msk [vmem:[%s1664 + $0x8] sm:$0xff] %vm214, %v1663
        %v1667 = vmax.f32 %v1651, %v1662
        %v1668 = vmax.f32 %v1652, %v1663
        %v1669 = vadd.f32 %v1653, %v1662
        %v1670 = vadd.f32 %v1654, %v1663
        %v1671 = vld [vmem:[%s631] sm:$0xff]
        %v1672 = vld [vmem:[%s631 + $0x8] sm:$0xff]
        %v1673 = vld [vmem:[#allocation3 + $0xd] sm:$0x1]
        %s1675 = vtos %v1673
        %v1676 = vstv %s1675
        %v1678 = vmul.f32 %v1671, %v1676
        %v1679 = vmul.f32 %v1672, %v1676
        %s1680 = scalar_lea.vmem %s211, 208
        %1681 = vst.msk [vmem:[%s1680] sm:$0xff] %vm214, %v1678
        %1682 = vst.msk [vmem:[%s1680 + $0x8] sm:$0xff] %vm214, %v1679
        %v1683 = vmax.f32 %v1667, %v1678
        %v1684 = vmax.f32 %v1668, %v1679
        %v1685 = vadd.f32 %v1669, %v1678
        %v1686 = vadd.f32 %v1670, %v1679
        %v1687 = vld [vmem:[%s663] sm:$0xff]
        %v1688 = vld [vmem:[%s663 + $0x8] sm:$0xff]
        %v1689 = vld [vmem:[#allocation3 + $0xe] sm:$0x1]
        %s1691 = vtos %v1689
        %v1692 = vstv %s1691
        %v1694 = vmul.f32 %v1687, %v1692
        %v1695 = vmul.f32 %v1688, %v1692
        %s1696 = scalar_lea.vmem %s211, 224
        %1697 = vst.msk [vmem:[%s1696] sm:$0xff] %vm214, %v1694
        %1698 = vst.msk [vmem:[%s1696 + $0x8] sm:$0xff] %vm214, %v1695
        %v1699 = vmax.f32 %v1683, %v1694
        %v1700 = vmax.f32 %v1684, %v1695
        %v1701 = vadd.f32 %v1685, %v1694
        %v1702 = vadd.f32 %v1686, %v1695
        %v1703 = vld [vmem:[%s695] sm:$0xff]
        %v1704 = vld [vmem:[%s695 + $0x8] sm:$0xff]
        %v1705 = vld [vmem:[#allocation3 + $0xf] sm:$0x1]
        %s1707 = vtos %v1705
        %v1708 = vstv %s1707
        %v1710 = vmul.f32 %v1703, %v1708
        %v1711 = vmul.f32 %v1704, %v1708
        %s1712 = scalar_lea.vmem %s211, 240
        %1713 = vst.msk [vmem:[%s1712] sm:$0xff] %vm214, %v1710
        %1714 = vst.msk [vmem:[%s1712 + $0x8] sm:$0xff] %vm214, %v1711
        %v1715 = vmax.f32 %v1699, %v1710
        %v1716 = vmax.f32 %v1700, %v1711
        %v1717 = vadd.f32 %v1701, %v1710
        %v1718 = vadd.f32 %v1702, %v1711
        %v1719 = vld [vmem:[%s727] sm:$0xff]
        %v1720 = vld [vmem:[%s727 + $0x8] sm:$0xff]
        %v1721 = vld [vmem:[#allocation3 + $0x10] sm:$0x1]
        %s1723 = vtos %v1721
        %v1724 = vstv %s1723
        %v1726 = vmul.f32 %v1719, %v1724
        %v1727 = vmul.f32 %v1720, %v1724
        %s1728 = scalar_lea.vmem %s211, 256
        %1729 = vst.msk [vmem:[%s1728] sm:$0xff] %vm214, %v1726
        %1730 = vst.msk [vmem:[%s1728 + $0x8] sm:$0xff] %vm214, %v1727
        %v1731 = vmax.f32 %v1715, %v1726
        %v1732 = vmax.f32 %v1716, %v1727
        %v1733 = vadd.f32 %v1717, %v1726
        %v1734 = vadd.f32 %v1718, %v1727
        %v1735 = vld [vmem:[%s759] sm:$0xff]
        %v1736 = vld [vmem:[%s759 + $0x8] sm:$0xff]
        %v1737 = vld [vmem:[#allocation3 + $0x11] sm:$0x1]
        %s1739 = vtos %v1737
        %v1740 = vstv %s1739
        %v1742 = vmul.f32 %v1735, %v1740
        %v1743 = vmul.f32 %v1736, %v1740
        %s1744 = scalar_lea.vmem %s211, 272
        %1745 = vst.msk [vmem:[%s1744] sm:$0xff] %vm214, %v1742
        %1746 = vst.msk [vmem:[%s1744 + $0x8] sm:$0xff] %vm214, %v1743
        %v1747 = vmax.f32 %v1731, %v1742
        %v1748 = vmax.f32 %v1732, %v1743
        %v1749 = vadd.f32 %v1733, %v1742
        %v1750 = vadd.f32 %v1734, %v1743
        %v1751 = vld [vmem:[%s791] sm:$0xff]
        %v1752 = vld [vmem:[%s791 + $0x8] sm:$0xff]
        %v1753 = vld [vmem:[#allocation3 + $0x12] sm:$0x1]
        %s1755 = vtos %v1753
        %v1756 = vstv %s1755
        %v1758 = vmul.f32 %v1751, %v1756
        %v1759 = vmul.f32 %v1752, %v1756
        %s1760 = scalar_lea.vmem %s211, 288
        %1761 = vst.msk [vmem:[%s1760] sm:$0xff] %vm214, %v1758
        %1762 = vst.msk [vmem:[%s1760 + $0x8] sm:$0xff] %vm214, %v1759
        %v1763 = vmax.f32 %v1747, %v1758
        %v1764 = vmax.f32 %v1748, %v1759
        %v1765 = vadd.f32 %v1749, %v1758
        %v1766 = vadd.f32 %v1750, %v1759
        %v1767 = vld [vmem:[%s823] sm:$0xff]
        %v1768 = vld [vmem:[%s823 + $0x8] sm:$0xff]
        %v1769 = vld [vmem:[#allocation3 + $0x13] sm:$0x1]
        %s1771 = vtos %v1769
        %v1772 = vstv %s1771
        %v1774 = vmul.f32 %v1767, %v1772
        %v1775 = vmul.f32 %v1768, %v1772
        %s1776 = scalar_lea.vmem %s211, 304
        %1777 = vst.msk [vmem:[%s1776] sm:$0xff] %vm214, %v1774
        %1778 = vst.msk [vmem:[%s1776 + $0x8] sm:$0xff] %vm214, %v1775
        %v1779 = vmax.f32 %v1763, %v1774
        %v1780 = vmax.f32 %v1764, %v1775
        %v1781 = vadd.f32 %v1765, %v1774
        %v1782 = vadd.f32 %v1766, %v1775
        %v1783 = vld [vmem:[%s855] sm:$0xff]
        %v1784 = vld [vmem:[%s855 + $0x8] sm:$0xff]
        %v1785 = vld [vmem:[#allocation3 + $0x14] sm:$0x1]
        %s1787 = vtos %v1785
        %v1788 = vstv %s1787
        %v1790 = vmul.f32 %v1783, %v1788
        %v1791 = vmul.f32 %v1784, %v1788
        %s1792 = scalar_lea.vmem %s211, 320
        %1793 = vst.msk [vmem:[%s1792] sm:$0xff] %vm214, %v1790
        %1794 = vst.msk [vmem:[%s1792 + $0x8] sm:$0xff] %vm214, %v1791
        %v1795 = vmax.f32 %v1779, %v1790
        %v1796 = vmax.f32 %v1780, %v1791
        %v1797 = vadd.f32 %v1781, %v1790
        %v1798 = vadd.f32 %v1782, %v1791
        %v1799 = vld [vmem:[%s887] sm:$0xff]
        %v1800 = vld [vmem:[%s887 + $0x8] sm:$0xff]
        %v1801 = vld [vmem:[#allocation3 + $0x15] sm:$0x1]
        %s1803 = vtos %v1801
        %v1804 = vstv %s1803
        %v1806 = vmul.f32 %v1799, %v1804
        %v1807 = vmul.f32 %v1800, %v1804
        %s1808 = scalar_lea.vmem %s211, 336
        %1809 = vst.msk [vmem:[%s1808] sm:$0xff] %vm214, %v1806
        %1810 = vst.msk [vmem:[%s1808 + $0x8] sm:$0xff] %vm214, %v1807
        %v1811 = vmax.f32 %v1795, %v1806
        %v1812 = vmax.f32 %v1796, %v1807
        %v1813 = vadd.f32 %v1797, %v1806
        %v1814 = vadd.f32 %v1798, %v1807
        %v1815 = vld [vmem:[%s919] sm:$0xff]
        %v1816 = vld [vmem:[%s919 + $0x8] sm:$0xff]
        %v1817 = vld [vmem:[#allocation3 + $0x16] sm:$0x1]
        %s1819 = vtos %v1817
        %v1820 = vstv %s1819
        %v1822 = vmul.f32 %v1815, %v1820
        %v1823 = vmul.f32 %v1816, %v1820
        %s1824 = scalar_lea.vmem %s211, 352
        %1825 = vst.msk [vmem:[%s1824] sm:$0xff] %vm214, %v1822
        %1826 = vst.msk [vmem:[%s1824 + $0x8] sm:$0xff] %vm214, %v1823
        %v1827 = vmax.f32 %v1811, %v1822
        %v1828 = vmax.f32 %v1812, %v1823
        %v1829 = vadd.f32 %v1813, %v1822
        %v1830 = vadd.f32 %v1814, %v1823
        %v1831 = vld [vmem:[%s951] sm:$0xff]
        %v1832 = vld [vmem:[%s951 + $0x8] sm:$0xff]
        %v1833 = vld [vmem:[#allocation3 + $0x17] sm:$0x1]
        %s1835 = vtos %v1833
        %v1836 = vstv %s1835
        %v1838 = vmul.f32 %v1831, %v1836
        %v1839 = vmul.f32 %v1832, %v1836
        %s1840 = scalar_lea.vmem %s211, 368
        %1841 = vst.msk [vmem:[%s1840] sm:$0xff] %vm214, %v1838
        %1842 = vst.msk [vmem:[%s1840 + $0x8] sm:$0xff] %vm214, %v1839
        %v1843 = vmax.f32 %v1827, %v1838
        %v1844 = vmax.f32 %v1828, %v1839
        %v1845 = vadd.f32 %v1829, %v1838
        %v1846 = vadd.f32 %v1830, %v1839
        %v1847 = vld [vmem:[%s983] sm:$0xff]
        %v1848 = vld [vmem:[%s983 + $0x8] sm:$0xff]
        %v1849 = vld [vmem:[#allocation3 + $0x18] sm:$0x1]
        %s1851 = vtos %v1849
        %v1852 = vstv %s1851
        %v1854 = vmul.f32 %v1847, %v1852
        %v1855 = vmul.f32 %v1848, %v1852
        %s1856 = scalar_lea.vmem %s211, 384
        %1857 = vst.msk [vmem:[%s1856] sm:$0xff] %vm214, %v1854
        %1858 = vst.msk [vmem:[%s1856 + $0x8] sm:$0xff] %vm214, %v1855
        %v1859 = vmax.f32 %v1843, %v1854
        %v1860 = vmax.f32 %v1844, %v1855
        %v1861 = vadd.f32 %v1845, %v1854
        %v1862 = vadd.f32 %v1846, %v1855
        %v1863 = vld [vmem:[%s1015] sm:$0xff]
        %v1864 = vld [vmem:[%s1015 + $0x8] sm:$0xff]
        %v1865 = vld [vmem:[#allocation3 + $0x19] sm:$0x1]
        %s1867 = vtos %v1865
        %v1868 = vstv %s1867
        %v1870 = vmul.f32 %v1863, %v1868
        %v1871 = vmul.f32 %v1864, %v1868
        %s1872 = scalar_lea.vmem %s211, 400
        %1873 = vst.msk [vmem:[%s1872] sm:$0xff] %vm214, %v1870
        %1874 = vst.msk [vmem:[%s1872 + $0x8] sm:$0xff] %vm214, %v1871
        %v1875 = vmax.f32 %v1859, %v1870
        %v1876 = vmax.f32 %v1860, %v1871
        %v1877 = vadd.f32 %v1861, %v1870
        %v1878 = vadd.f32 %v1862, %v1871
        %v1879 = vld [vmem:[%s1047] sm:$0xff]
        %v1880 = vld [vmem:[%s1047 + $0x8] sm:$0xff]
        %v1881 = vld [vmem:[#allocation3 + $0x1a] sm:$0x1]
        %s1883 = vtos %v1881
        %v1884 = vstv %s1883
        %v1886 = vmul.f32 %v1879, %v1884
        %v1887 = vmul.f32 %v1880, %v1884
        %s1888 = scalar_lea.vmem %s211, 416
        %1889 = vst.msk [vmem:[%s1888] sm:$0xff] %vm214, %v1886
        %1890 = vst.msk [vmem:[%s1888 + $0x8] sm:$0xff] %vm214, %v1887
        %v1891 = vmax.f32 %v1875, %v1886
        %v1892 = vmax.f32 %v1876, %v1887
        %v1893 = vadd.f32 %v1877, %v1886
        %v1894 = vadd.f32 %v1878, %v1887
        %v1895 = vld [vmem:[%s1079] sm:$0xff]
        %v1896 = vld [vmem:[%s1079 + $0x8] sm:$0xff]
        %v1897 = vld [vmem:[#allocation3 + $0x1b] sm:$0x1]
        %s1899 = vtos %v1897
        %v1900 = vstv %s1899
        %v1902 = vmul.f32 %v1895, %v1900
        %v1903 = vmul.f32 %v1896, %v1900
        %s1904 = scalar_lea.vmem %s211, 432
        %1905 = vst.msk [vmem:[%s1904] sm:$0xff] %vm214, %v1902
        %1906 = vst.msk [vmem:[%s1904 + $0x8] sm:$0xff] %vm214, %v1903
        %v1907 = vmax.f32 %v1891, %v1902
        %v1908 = vmax.f32 %v1892, %v1903
        %v1909 = vadd.f32 %v1893, %v1902
        %v1910 = vadd.f32 %v1894, %v1903
        %v1911 = vld [vmem:[%s1111] sm:$0xff]
        %v1912 = vld [vmem:[%s1111 + $0x8] sm:$0xff]
        %v1913 = vld [vmem:[#allocation3 + $0x1c] sm:$0x1]
        %s1915 = vtos %v1913
        %v1916 = vstv %s1915
        %v1918 = vmul.f32 %v1911, %v1916
        %v1919 = vmul.f32 %v1912, %v1916
        %s1920 = scalar_lea.vmem %s211, 448
        %1921 = vst.msk [vmem:[%s1920] sm:$0xff] %vm214, %v1918
        %1922 = vst.msk [vmem:[%s1920 + $0x8] sm:$0xff] %vm214, %v1919
        %v1923 = vmax.f32 %v1907, %v1918
        %v1924 = vmax.f32 %v1908, %v1919
        %v1925 = vadd.f32 %v1909, %v1918
        %v1926 = vadd.f32 %v1910, %v1919
        %v1927 = vld [vmem:[%s1143] sm:$0xff]
        %v1928 = vld [vmem:[%s1143 + $0x8] sm:$0xff]
        %v1929 = vld [vmem:[#allocation3 + $0x1d] sm:$0x1]
        %s1931 = vtos %v1929
        %v1932 = vstv %s1931
        %v1934 = vmul.f32 %v1927, %v1932
        %v1935 = vmul.f32 %v1928, %v1932
        %s1936 = scalar_lea.vmem %s211, 464
        %1937 = vst.msk [vmem:[%s1936] sm:$0xff] %vm214, %v1934
        %1938 = vst.msk [vmem:[%s1936 + $0x8] sm:$0xff] %vm214, %v1935
        %v1939 = vmax.f32 %v1923, %v1934
        %v1940 = vmax.f32 %v1924, %v1935
        %v1941 = vadd.f32 %v1925, %v1934
        %v1942 = vadd.f32 %v1926, %v1935
        %v1943 = vld [vmem:[%s1175] sm:$0xff]
        %v1944 = vld [vmem:[%s1175 + $0x8] sm:$0xff]
        %v1945 = vld [vmem:[#allocation3 + $0x1e] sm:$0x1]
        %s1947 = vtos %v1945
        %v1948 = vstv %s1947
        %v1950 = vmul.f32 %v1943, %v1948
        %v1951 = vmul.f32 %v1944, %v1948
        %s1952 = scalar_lea.vmem %s211, 480
        %1953 = vst.msk [vmem:[%s1952] sm:$0xff] %vm214, %v1950
        %1954 = vst.msk [vmem:[%s1952 + $0x8] sm:$0xff] %vm214, %v1951
        %v1955 = vmax.f32 %v1939, %v1950
        %v1956 = vmax.f32 %v1940, %v1951
        %v1957 = vadd.f32 %v1941, %v1950
        %v1958 = vadd.f32 %v1942, %v1951
        %v1959 = vld [vmem:[%s1207] sm:$0xff]
        %v1960 = vld [vmem:[%s1207 + $0x8] sm:$0xff]
        %v1961 = vld [vmem:[#allocation3 + $0x1f] sm:$0x1]
        %s1963 = vtos %v1961
        %v1964 = vstv %s1963
        %v1966 = vmul.f32 %v1959, %v1964
        %v1967 = vmul.f32 %v1960, %v1964
        %s1968 = scalar_lea.vmem %s211, 496
        %1969 = vst.msk [vmem:[%s1968] sm:$0xff] %vm214, %v1966
        %1970 = vst.msk [vmem:[%s1968 + $0x8] sm:$0xff] %vm214, %v1967
        %v1971 = vmax.f32 %v1955, %v1966
        %v1972 = vmax.f32 %v1956, %v1967
        %v1973 = vadd.f32 %v1957, %v1966
        %v1974 = vadd.f32 %v1958, %v1967
        %v1975 = vmul.f32 %v1973, 0.03125
        %v1976 = vmul.f32 %v1974, 0.03125
        %vm1977 = vcmask 174080
        %1978 = vst.msk [vmem:[#allocation4] sm:$0x7] %vm1977, 0.0
        %1979 = vst.msk [vmem:[#allocation4 + $0x13] sm:$0x7] %vm1977, 0.0
        %vm1980 = vcmask 23552
        %1981 = vst.msk [vmem:[#allocation4] sm:$0xff] %vm1980, 0.0
        %1982 = vst.msk [vmem:[#allocation4 + $0x8] sm:$0xff] %vm1980, 0.0
        %vm1983 = vcmask 21504
        %1984 = vst.msk [vmem:[#allocation4 + $0x10] sm:$0x3f] %vm1983, 0.0
        %vm1985 = vcmask 179352
        %1986 = vst.msk [vmem:[#allocation4] sm:$0xff] %vm1985, 0.0
        %1987 = vst.msk [vmem:[#allocation4 + $0x8] sm:$0xff] %vm1985, 0.0
        %vm1988 = vcmask 177304
        %1989 = vst.msk [vmem:[#allocation4 + $0x10] sm:$0x3f] %vm1988, 0.0
        %s1990 = scalar_lea.vmem [#allocation4], 24
        %1991 = vst.msk [vmem:[%s1990] sm:$0x7] %vm1977, 0.0
        %1992 = vst.msk [vmem:[%s1990 + $0x13] sm:$0x7] %vm1977, 0.0
        %1993 = vst.msk [vmem:[%s1990] sm:$0xff] %vm1980, 0.0
        %1994 = vst.msk [vmem:[%s1990 + $0x8] sm:$0xff] %vm1980, 0.0
        %1995 = vst.msk [vmem:[%s1990 + $0x10] sm:$0x3f] %vm1983, 0.0
        %1996 = vst.msk [vmem:[%s1990] sm:$0xff] %vm1985, 0.0
        %1997 = vst.msk [vmem:[%s1990 + $0x8] sm:$0xff] %vm1985, 0.0
        %1998 = vst.msk [vmem:[%s1990 + $0x10] sm:$0x3f] %vm1988, 0.0
        %2001 = vrot.lane.b32.xlu0 %v1971, 3
        %v2002 = vpop.permute.xlu0 %2001
        %2003 = vrot.lane.b32.xlu0 %v1972, 3
        %v2004 = vpop.permute.xlu0 %2003
        %vm2007 = vcmask 154648
        %2008 = vst.msk [vmem:[#allocation4 + $0x3] sm:$0xff] %vm2007, %v2002
        %2009 = vst.msk [vmem:[#allocation4 + $0xb] sm:$0xff] %vm2007, %v2004
        %2012 = vrot.lane.b32.xlu0 %v1975, 3
        %v2013 = vpop.permute.xlu0 %2012
        %2014 = vrot.lane.b32.xlu0 %v1976, 3
        %v2015 = vpop.permute.xlu0 %2014
        %2018 = vst.msk [vmem:[%s1990 + $0x3] sm:$0xff] %vm2007, %v2013
        %2019 = vst.msk [vmem:[%s1990 + $0xb] sm:$0xff] %vm2007, %v2015
        %v2020 = vld [vmem:[#allocation4] sm:$0xff]
        %v2021 = vld [vmem:[#allocation4 + $0x8] sm:$0xff]
        %v2022 = vld [vmem:[#allocation4 + $0x10] sm:$0x3f]
        %vm2023 = vcmask 179200
        %2024 = vst.msk [vmem:[#allocation5] sm:$0xff] %vm2023, %v2020
        %2025 = vst.msk [vmem:[#allocation5 + $0x8] sm:$0xff] %vm2023, %v2021
        %vm2026 = vcmask 177152
        %2027 = vst.msk [vmem:[#allocation5 + $0x10] sm:$0x3f] %vm2026, %v2022
        %v2028 = vld [vmem:[#allocation4] sm:$0xff]
        %v2029 = vld [vmem:[#allocation4 + $0x8] sm:$0xff]
        %v2030 = vld [vmem:[#allocation4 + $0x10] sm:$0x3f]
        %2034 = vrot.lane.b32.xlu0 %v2028, 127
        %v2035 = vpop.permute.xlu0 %2034
        %2036 = vrot.lane.b32.xlu0 %v2029, 127
        %v2037 = vpop.permute.xlu0 %2036
        %2038 = vrot.lane.b32.xlu0 %v2030, 127
        %v2039 = vpop.permute.xlu0 %2038
        %s2043 = scalar_lea.vmem [#allocation5], 24
        %vm2044 = vcmask 171008
        %2045 = vst.msk [vmem:[%s2043] sm:$0xff] %vm2044, %v2035
        %2046 = vst.msk [vmem:[%s2043 + $0x8] sm:$0xff] %vm2044, %v2037
        %vm2047 = vcmask 168960
        %2048 = vst.msk [vmem:[%s2043 + $0x10] sm:$0x3f] %vm2047, %v2039
        %v2049 = vld [vmem:[#allocation4] sm:$0xff]
        %v2050 = vld [vmem:[#allocation4 + $0x8] sm:$0xff]
        %v2051 = vld [vmem:[#allocation4 + $0x10] sm:$0x3f]
        %2055 = vrot.lane.b32.xlu0 %v2049, 126
        %v2056 = vpop.permute.xlu0 %2055
        %2057 = vrot.lane.b32.xlu0 %v2050, 126
        %v2058 = vpop.permute.xlu0 %2057
        %2059 = vrot.lane.b32.xlu0 %v2051, 126
        %v2060 = vpop.permute.xlu0 %2059
        %s2064 = scalar_lea.vmem [#allocation5], 48
        %vm2065 = vcmask 162816
        %2066 = vst.msk [vmem:[%s2064] sm:$0xff] %vm2065, %v2056
        %2067 = vst.msk [vmem:[%s2064 + $0x8] sm:$0xff] %vm2065, %v2058
        %vm2068 = vcmask 160768
        %2069 = vst.msk [vmem:[%s2064 + $0x10] sm:$0x3f] %vm2068, %v2060
        %v2070 = vld [vmem:[#allocation4] sm:$0xff]
        %v2071 = vld [vmem:[#allocation4 + $0x8] sm:$0xff]
        %v2072 = vld [vmem:[#allocation4 + $0x10] sm:$0x3f]
        %2076 = vrot.lane.b32.xlu0 %v2070, 125
        %v2077 = vpop.permute.xlu0 %2076
        %2078 = vrot.lane.b32.xlu0 %v2071, 125
        %v2079 = vpop.permute.xlu0 %2078
        %2080 = vrot.lane.b32.xlu0 %v2072, 125
        %v2081 = vpop.permute.xlu0 %2080
        %s2085 = scalar_lea.vmem [#allocation5], 72
        %vm2086 = vcmask 154624
        %2087 = vst.msk [vmem:[%s2085] sm:$0xff] %vm2086, %v2077
        %2088 = vst.msk [vmem:[%s2085 + $0x8] sm:$0xff] %vm2086, %v2079
        %vm2089 = vcmask 152576
        %2090 = vst.msk [vmem:[%s2085 + $0x10] sm:$0x3f] %vm2089, %v2081
        %v2091 = vld [vmem:[#allocation4] sm:$0xff]
        %v2092 = vld [vmem:[#allocation4 + $0x8] sm:$0xff]
        %v2093 = vld [vmem:[#allocation4 + $0x10] sm:$0x3f]
        %2097 = vrot.lane.b32.xlu0 %v2091, 124
        %v2098 = vpop.permute.xlu0 %2097
        %2099 = vrot.lane.b32.xlu0 %v2092, 124
        %v2100 = vpop.permute.xlu0 %2099
        %2101 = vrot.lane.b32.xlu0 %v2093, 124
        %v2102 = vpop.permute.xlu0 %2101
        %s2106 = scalar_lea.vmem [#allocation5], 96
        %vm2107 = vcmask 146432
        %2108 = vst.msk [vmem:[%s2106] sm:$0xff] %vm2107, %v2098
        %2109 = vst.msk [vmem:[%s2106 + $0x8] sm:$0xff] %vm2107, %v2100
        %vm2110 = vcmask 144384
        %2111 = vst.msk [vmem:[%s2106 + $0x10] sm:$0x3f] %vm2110, %v2102
        %v2112 = vld [vmem:[#allocation4] sm:$0xff]
        %v2113 = vld [vmem:[#allocation4 + $0x8] sm:$0xff]
        %v2114 = vld [vmem:[#allocation4 + $0x10] sm:$0x3f]
        %2118 = vrot.lane.b32.xlu0 %v2112, 123
        %v2119 = vpop.permute.xlu0 %2118
        %2120 = vrot.lane.b32.xlu0 %v2113, 123
        %v2121 = vpop.permute.xlu0 %2120
        %2122 = vrot.lane.b32.xlu0 %v2114, 123
        %v2123 = vpop.permute.xlu0 %2122
        %s2127 = scalar_lea.vmem [#allocation5], 120
        %vm2128 = vcmask 138240
        %2129 = vst.msk [vmem:[%s2127] sm:$0xff] %vm2128, %v2119
        %2130 = vst.msk [vmem:[%s2127 + $0x8] sm:$0xff] %vm2128, %v2121
        %vm2131 = vcmask 136192
        %2132 = vst.msk [vmem:[%s2127 + $0x10] sm:$0x3f] %vm2131, %v2123
        %v2133 = vld [vmem:[#allocation4] sm:$0xff]
        %v2134 = vld [vmem:[#allocation4 + $0x8] sm:$0xff]
        %v2135 = vld [vmem:[#allocation4 + $0x10] sm:$0x3f]
        %2139 = vrot.lane.b32.xlu0 %v2133, 122
        %v2140 = vpop.permute.xlu0 %2139
        %2141 = vrot.lane.b32.xlu0 %v2134, 122
        %v2142 = vpop.permute.xlu0 %2141
        %2143 = vrot.lane.b32.xlu0 %v2135, 122
        %v2144 = vpop.permute.xlu0 %2143
        %s2148 = scalar_lea.vmem [#allocation5], 144
        %2149 = vst.msk [vmem:[%s2148] sm:$0xff] %vm214, %v2140
        %2150 = vst.msk [vmem:[%s2148 + $0x8] sm:$0xff] %vm214, %v2142
        %vm2151 = vcmask 128000
        %2152 = vst.msk [vmem:[%s2148 + $0x10] sm:$0x3f] %vm2151, %v2144
        %v2153 = vld [vmem:[%s1990] sm:$0xff]
        %v2154 = vld [vmem:[%s1990 + $0x8] sm:$0xff]
        %v2155 = vld [vmem:[%s1990 + $0x10] sm:$0x3f]
        %s2156 = scalar_lea.vmem [#allocation5], 168
        %2157 = vst.msk [vmem:[%s2156] sm:$0xff] %vm2023, %v2153
        %2158 = vst.msk [vmem:[%s2156 + $0x8] sm:$0xff] %vm2023, %v2154
        %2159 = vst.msk [vmem:[%s2156 + $0x10] sm:$0x3f] %vm2026, %v2155
        %v2160 = vld [vmem:[%s1990] sm:$0xff]
        %v2161 = vld [vmem:[%s1990 + $0x8] sm:$0xff]
        %v2162 = vld [vmem:[%s1990 + $0x10] sm:$0x3f]
        %2166 = vrot.lane.b32.xlu0 %v2160, 127
        %v2167 = vpop.permute.xlu0 %2166
        %2168 = vrot.lane.b32.xlu0 %v2161, 127
        %v2169 = vpop.permute.xlu0 %2168
        %2170 = vrot.lane.b32.xlu0 %v2162, 127
        %v2171 = vpop.permute.xlu0 %2170
        %s2175 = scalar_lea.vmem [#allocation5], 192
        %2176 = vst.msk [vmem:[%s2175] sm:$0xff] %vm2044, %v2167
        %2177 = vst.msk [vmem:[%s2175 + $0x8] sm:$0xff] %vm2044, %v2169
        %2178 = vst.msk [vmem:[%s2175 + $0x10] sm:$0x3f] %vm2047, %v2171
        %v2179 = vld [vmem:[%s1990] sm:$0xff]
        %v2180 = vld [vmem:[%s1990 + $0x8] sm:$0xff]
        %v2181 = vld [vmem:[%s1990 + $0x10] sm:$0x3f]
        %2185 = vrot.lane.b32.xlu0 %v2179, 126
        %v2186 = vpop.permute.xlu0 %2185
        %2187 = vrot.lane.b32.xlu0 %v2180, 126
        %v2188 = vpop.permute.xlu0 %2187
        %2189 = vrot.lane.b32.xlu0 %v2181, 126
        %v2190 = vpop.permute.xlu0 %2189
        %s2194 = scalar_lea.vmem [#allocation5], 216
        %2195 = vst.msk [vmem:[%s2194] sm:$0xff] %vm2065, %v2186
        %2196 = vst.msk [vmem:[%s2194 + $0x8] sm:$0xff] %vm2065, %v2188
        %2197 = vst.msk [vmem:[%s2194 + $0x10] sm:$0x3f] %vm2068, %v2190
        %v2198 = vld [vmem:[%s1990] sm:$0xff]
        %v2199 = vld [vmem:[%s1990 + $0x8] sm:$0xff]
        %v2200 = vld [vmem:[%s1990 + $0x10] sm:$0x3f]
        %2204 = vrot.lane.b32.xlu0 %v2198, 125
        %v2205 = vpop.permute.xlu0 %2204
        %2206 = vrot.lane.b32.xlu0 %v2199, 125
        %v2207 = vpop.permute.xlu0 %2206
        %2208 = vrot.lane.b32.xlu0 %v2200, 125
        %v2209 = vpop.permute.xlu0 %2208
        %s2213 = scalar_lea.vmem [#allocation5], 240
        %2214 = vst.msk [vmem:[%s2213] sm:$0xff] %vm2086, %v2205
        %2215 = vst.msk [vmem:[%s2213 + $0x8] sm:$0xff] %vm2086, %v2207
        %2216 = vst.msk [vmem:[%s2213 + $0x10] sm:$0x3f] %vm2089, %v2209
        %v2217 = vld [vmem:[%s1990] sm:$0xff]
        %v2218 = vld [vmem:[%s1990 + $0x8] sm:$0xff]
        %v2219 = vld [vmem:[%s1990 + $0x10] sm:$0x3f]
        %2223 = vrot.lane.b32.xlu0 %v2217, 124
        %v2224 = vpop.permute.xlu0 %2223
        %2225 = vrot.lane.b32.xlu0 %v2218, 124
        %v2226 = vpop.permute.xlu0 %2225
        %2227 = vrot.lane.b32.xlu0 %v2219, 124
        %v2228 = vpop.permute.xlu0 %2227
        %s2232 = scalar_lea.vmem [#allocation5], 264
        %2233 = vst.msk [vmem:[%s2232] sm:$0xff] %vm2107, %v2224
        %2234 = vst.msk [vmem:[%s2232 + $0x8] sm:$0xff] %vm2107, %v2226
        %2235 = vst.msk [vmem:[%s2232 + $0x10] sm:$0x3f] %vm2110, %v2228
        %v2236 = vld [vmem:[%s1990] sm:$0xff]
        %v2237 = vld [vmem:[%s1990 + $0x8] sm:$0xff]
        %v2238 = vld [vmem:[%s1990 + $0x10] sm:$0x3f]
        %2242 = vrot.lane.b32.xlu0 %v2236, 123
        %v2243 = vpop.permute.xlu0 %2242
        %2244 = vrot.lane.b32.xlu0 %v2237, 123
        %v2245 = vpop.permute.xlu0 %2244
        %2246 = vrot.lane.b32.xlu0 %v2238, 123
        %v2247 = vpop.permute.xlu0 %2246
        %s2251 = scalar_lea.vmem [#allocation5], 288
        %2252 = vst.msk [vmem:[%s2251] sm:$0xff] %vm2128, %v2243
        %2253 = vst.msk [vmem:[%s2251 + $0x8] sm:$0xff] %vm2128, %v2245
        %2254 = vst.msk [vmem:[%s2251 + $0x10] sm:$0x3f] %vm2131, %v2247
        %v2255 = vld [vmem:[%s1990] sm:$0xff]
        %v2256 = vld [vmem:[%s1990 + $0x8] sm:$0xff]
        %v2257 = vld [vmem:[%s1990 + $0x10] sm:$0x3f]
        %2261 = vrot.lane.b32.xlu0 %v2255, 122
        %v2262 = vpop.permute.xlu0 %2261
        %2263 = vrot.lane.b32.xlu0 %v2256, 122
        %v2264 = vpop.permute.xlu0 %2263
        %2265 = vrot.lane.b32.xlu0 %v2257, 122
        %v2266 = vpop.permute.xlu0 %2265
        %s2270 = scalar_lea.vmem [#allocation5], 312
        %2271 = vst.msk [vmem:[%s2270] sm:$0xff] %vm214, %v2262
        %2272 = vst.msk [vmem:[%s2270 + $0x8] sm:$0xff] %vm214, %v2264
        %2273 = vst.msk [vmem:[%s2270 + $0x10] sm:$0x3f] %vm2151, %v2266
        %s2274 = sld [smem:[#allocation6]]
        %v2275 = vld [vmem:[#allocation5] sm:$0xff]
        %v2276 = vld [vmem:[#allocation5 + $0x8] sm:$0xff]
        %v2277 = vstv %s2274
        %v2278 = vmul.f32 %v2277, %v2275
        %v2279 = vmul.f32 %v2277, %v2276
        %v2280 = vadd.f32 %v2278, 0.0
        %v2281 = vadd.f32 %v2279, 0.0
        %s2282 = sld [smem:[#allocation6 + $0x1]]
        %v2283 = vld [vmem:[%s2043] sm:$0xff]
        %v2284 = vld [vmem:[%s2043 + $0x8] sm:$0xff]
        %v2285 = vstv %s2282
        %v2286 = vmul.f32 %v2285, %v2283
        %v2287 = vmul.f32 %v2285, %v2284
        %v2288 = vadd.f32 %v2280, %v2286
        %v2289 = vadd.f32 %v2281, %v2287
        %s2290 = sld [smem:[#allocation6 + $0x2]]
        %v2291 = vld [vmem:[%s2064] sm:$0xff]
        %v2292 = vld [vmem:[%s2064 + $0x8] sm:$0xff]
        %v2293 = vstv %s2290
        %v2294 = vmul.f32 %v2293, %v2291
        %v2295 = vmul.f32 %v2293, %v2292
        %v2296 = vadd.f32 %v2288, %v2294
        %v2297 = vadd.f32 %v2289, %v2295
        %s2298 = sld [smem:[#allocation6 + $0x3]]
        %v2299 = vld [vmem:[%s2085] sm:$0xff]
        %v2300 = vld [vmem:[%s2085 + $0x8] sm:$0xff]
        %v2301 = vstv %s2298
        %v2302 = vmul.f32 %v2301, %v2299
        %v2303 = vmul.f32 %v2301, %v2300
        %v2304 = vadd.f32 %v2296, %v2302
        %v2305 = vadd.f32 %v2297, %v2303
        %s2306 = sld [smem:[#allocation6 + $0x4]]
        %v2307 = vld [vmem:[%s2106] sm:$0xff]
        %v2308 = vld [vmem:[%s2106 + $0x8] sm:$0xff]
        %v2309 = vstv %s2306
        %v2310 = vmul.f32 %v2309, %v2307
        %v2311 = vmul.f32 %v2309, %v2308
        %v2312 = vadd.f32 %v2304, %v2310
        %v2313 = vadd.f32 %v2305, %v2311
        %s2314 = sld [smem:[#allocation6 + $0x5]]
        %v2315 = vld [vmem:[%s2127] sm:$0xff]
        %v2316 = vld [vmem:[%s2127 + $0x8] sm:$0xff]
        %v2317 = vstv %s2314
        %v2318 = vmul.f32 %v2317, %v2315
        %v2319 = vmul.f32 %v2317, %v2316
        %v2320 = vadd.f32 %v2312, %v2318
        %v2321 = vadd.f32 %v2313, %v2319
        %s2322 = sld [smem:[#allocation6 + $0x6]]
        %v2323 = vld [vmem:[%s2148] sm:$0xff]
        %v2324 = vld [vmem:[%s2148 + $0x8] sm:$0xff]
        %v2325 = vstv %s2322
        %v2326 = vmul.f32 %v2325, %v2323
        %v2327 = vmul.f32 %v2325, %v2324
        %v2328 = vadd.f32 %v2320, %v2326
        %v2329 = vadd.f32 %v2321, %v2327
        %s2330 = sld [smem:[#allocation6 + $0x7]]
        %v2331 = vld [vmem:[#allocation5 + $0x1] sm:$0xff]
        %v2332 = vld [vmem:[#allocation5 + $0x9] sm:$0xff]
        %v2333 = vstv %s2330
        %v2334 = vmul.f32 %v2333, %v2331
        %v2335 = vmul.f32 %v2333, %v2332
        %v2336 = vadd.f32 %v2328, %v2334
        %v2337 = vadd.f32 %v2329, %v2335
        %s2338 = sld [smem:[#allocation6 + $0x8]]
        %v2339 = vld [vmem:[%s2043 + $0x1] sm:$0xff]
        %v2340 = vld [vmem:[%s2043 + $0x9] sm:$0xff]
        %v2341 = vstv %s2338
        %v2342 = vmul.f32 %v2341, %v2339
        %v2343 = vmul.f32 %v2341, %v2340
        %v2344 = vadd.f32 %v2336, %v2342
        %v2345 = vadd.f32 %v2337, %v2343
        %s2346 = sld [smem:[#allocation6 + $0x9]]
        %v2347 = vld [vmem:[%s2064 + $0x1] sm:$0xff]
        %v2348 = vld [vmem:[%s2064 + $0x9] sm:$0xff]
        %v2349 = vstv %s2346
        %v2350 = vmul.f32 %v2349, %v2347
        %v2351 = vmul.f32 %v2349, %v2348
        %v2352 = vadd.f32 %v2344, %v2350
        %v2353 = vadd.f32 %v2345, %v2351
        %s2354 = sld [smem:[#allocation6 + $0xa]]
        %v2355 = vld [vmem:[%s2085 + $0x1] sm:$0xff]
        %v2356 = vld [vmem:[%s2085 + $0x9] sm:$0xff]
        %v2357 = vstv %s2354
        %v2358 = vmul.f32 %v2357, %v2355
        %v2359 = vmul.f32 %v2357, %v2356
        %v2360 = vadd.f32 %v2352, %v2358
        %v2361 = vadd.f32 %v2353, %v2359
        %s2362 = sld [smem:[#allocation6 + $0xb]]
        %v2363 = vld [vmem:[%s2106 + $0x1] sm:$0xff]
        %v2364 = vld [vmem:[%s2106 + $0x9] sm:$0xff]
        %v2365 = vstv %s2362
        %v2366 = vmul.f32 %v2365, %v2363
        %v2367 = vmul.f32 %v2365, %v2364
        %v2368 = vadd.f32 %v2360, %v2366
        %v2369 = vadd.f32 %v2361, %v2367
        %s2370 = sld [smem:[#allocation6 + $0xc]]
        %v2371 = vld [vmem:[%s2127 + $0x1] sm:$0xff]
        %v2372 = vld [vmem:[%s2127 + $0x9] sm:$0xff]
        %v2373 = vstv %s2370
        %v2374 = vmul.f32 %v2373, %v2371
        %v2375 = vmul.f32 %v2373, %v2372
        %v2376 = vadd.f32 %v2368, %v2374
        %v2377 = vadd.f32 %v2369, %v2375
        %s2378 = sld [smem:[#allocation6 + $0xd]]
        %v2379 = vld [vmem:[%s2148 + $0x1] sm:$0xff]
        %v2380 = vld [vmem:[%s2148 + $0x9] sm:$0xff]
        %v2381 = vstv %s2378
        %v2382 = vmul.f32 %v2381, %v2379
        %v2383 = vmul.f32 %v2381, %v2380
        %v2384 = vadd.f32 %v2376, %v2382
        %v2385 = vadd.f32 %v2377, %v2383
        %s2386 = sld [smem:[#allocation6 + $0xe]]
        %v2387 = vld [vmem:[#allocation5 + $0x2] sm:$0xff]
        %v2388 = vld [vmem:[#allocation5 + $0xa] sm:$0xff]
        %v2389 = vstv %s2386
        %v2390 = vmul.f32 %v2389, %v2387
        %v2391 = vmul.f32 %v2389, %v2388
        %v2392 = vadd.f32 %v2384, %v2390
        %v2393 = vadd.f32 %v2385, %v2391
        %s2394 = sld [smem:[#allocation6 + $0xf]]
        %v2395 = vld [vmem:[%s2043 + $0x2] sm:$0xff]
        %v2396 = vld [vmem:[%s2043 + $0xa] sm:$0xff]
        %v2397 = vstv %s2394
        %v2398 = vmul.f32 %v2397, %v2395
        %v2399 = vmul.f32 %v2397, %v2396
        %v2400 = vadd.f32 %v2392, %v2398
        %v2401 = vadd.f32 %v2393, %v2399
        %s2402 = sld [smem:[#allocation6 + $0x10]]
        %v2403 = vld [vmem:[%s2064 + $0x2] sm:$0xff]
        %v2404 = vld [vmem:[%s2064 + $0xa] sm:$0xff]
        %v2405 = vstv %s2402
        %v2406 = vmul.f32 %v2405, %v2403
        %v2407 = vmul.f32 %v2405, %v2404
        %v2408 = vadd.f32 %v2400, %v2406
        %v2409 = vadd.f32 %v2401, %v2407
        %s2410 = sld [smem:[#allocation6 + $0x11]]
        %v2411 = vld [vmem:[%s2085 + $0x2] sm:$0xff]
        %v2412 = vld [vmem:[%s2085 + $0xa] sm:$0xff]
        %v2413 = vstv %s2410
        %v2414 = vmul.f32 %v2413, %v2411
        %v2415 = vmul.f32 %v2413, %v2412
        %v2416 = vadd.f32 %v2408, %v2414
        %v2417 = vadd.f32 %v2409, %v2415
        %s2418 = sld [smem:[#allocation6 + $0x12]]
        %v2419 = vld [vmem:[%s2106 + $0x2] sm:$0xff]
        %v2420 = vld [vmem:[%s2106 + $0xa] sm:$0xff]
        %v2421 = vstv %s2418
        %v2422 = vmul.f32 %v2421, %v2419
        %v2423 = vmul.f32 %v2421, %v2420
        %v2424 = vadd.f32 %v2416, %v2422
        %v2425 = vadd.f32 %v2417, %v2423
        %s2426 = sld [smem:[#allocation6 + $0x13]]
        %v2427 = vld [vmem:[%s2127 + $0x2] sm:$0xff]
        %v2428 = vld [vmem:[%s2127 + $0xa] sm:$0xff]
        %v2429 = vstv %s2426
        %v2430 = vmul.f32 %v2429, %v2427
        %v2431 = vmul.f32 %v2429, %v2428
        %v2432 = vadd.f32 %v2424, %v2430
        %v2433 = vadd.f32 %v2425, %v2431
        %s2434 = sld [smem:[#allocation6 + $0x14]]
        %v2435 = vld [vmem:[%s2148 + $0x2] sm:$0xff]
        %v2436 = vld [vmem:[%s2148 + $0xa] sm:$0xff]
        %v2437 = vstv %s2434
        %v2438 = vmul.f32 %v2437, %v2435
        %v2439 = vmul.f32 %v2437, %v2436
        %v2440 = vadd.f32 %v2432, %v2438
        %v2441 = vadd.f32 %v2433, %v2439
        %s2442 = sld [smem:[#allocation6 + $0x15]]
        %v2443 = vld [vmem:[#allocation5 + $0x3] sm:$0xff]
        %v2444 = vld [vmem:[#allocation5 + $0xb] sm:$0xff]
        %v2445 = vstv %s2442
        %v2446 = vmul.f32 %v2445, %v2443
        %v2447 = vmul.f32 %v2445, %v2444
        %v2448 = vadd.f32 %v2440, %v2446
        %v2449 = vadd.f32 %v2441, %v2447
        %s2450 = sld [smem:[#allocation6 + $0x16]]
        %v2451 = vld [vmem:[%s2043 + $0x3] sm:$0xff]
        %v2452 = vld [vmem:[%s2043 + $0xb] sm:$0xff]
        %v2453 = vstv %s2450
        %v2454 = vmul.f32 %v2453, %v2451
        %v2455 = vmul.f32 %v2453, %v2452
        %v2456 = vadd.f32 %v2448, %v2454
        %v2457 = vadd.f32 %v2449, %v2455
        %s2458 = sld [smem:[#allocation6 + $0x17]]
        %v2459 = vld [vmem:[%s2064 + $0x3] sm:$0xff]
        %v2460 = vld [vmem:[%s2064 + $0xb] sm:$0xff]
        %v2461 = vstv %s2458
        %v2462 = vmul.f32 %v2461, %v2459
        %v2463 = vmul.f32 %v2461, %v2460
        %v2464 = vadd.f32 %v2456, %v2462
        %v2465 = vadd.f32 %v2457, %v2463
        %s2466 = sld [smem:[#allocation6 + $0x18]]
        %v2467 = vld [vmem:[%s2085 + $0x3] sm:$0xff]
        %v2468 = vld [vmem:[%s2085 + $0xb] sm:$0xff]
        %v2469 = vstv %s2466
        %v2470 = vmul.f32 %v2469, %v2467
        %v2471 = vmul.f32 %v2469, %v2468
        %v2472 = vadd.f32 %v2464, %v2470
        %v2473 = vadd.f32 %v2465, %v2471
        %s2474 = sld [smem:[#allocation6 + $0x19]]
        %v2475 = vld [vmem:[%s2106 + $0x3] sm:$0xff]
        %v2476 = vld [vmem:[%s2106 + $0xb] sm:$0xff]
        %v2477 = vstv %s2474
        %v2478 = vmul.f32 %v2477, %v2475
        %v2479 = vmul.f32 %v2477, %v2476
        %v2480 = vadd.f32 %v2472, %v2478
        %v2481 = vadd.f32 %v2473, %v2479
        %s2482 = sld [smem:[#allocation6 + $0x1a]]
        %v2483 = vld [vmem:[%s2127 + $0x3] sm:$0xff]
        %v2484 = vld [vmem:[%s2127 + $0xb] sm:$0xff]
        %v2485 = vstv %s2482
        %v2486 = vmul.f32 %v2485, %v2483
        %v2487 = vmul.f32 %v2485, %v2484
        %v2488 = vadd.f32 %v2480, %v2486
        %v2489 = vadd.f32 %v2481, %v2487
        %s2490 = sld [smem:[#allocation6 + $0x1b]]
        %v2491 = vld [vmem:[%s2148 + $0x3] sm:$0xff]
        %v2492 = vld [vmem:[%s2148 + $0xb] sm:$0xff]
        %v2493 = vstv %s2490
        %v2494 = vmul.f32 %v2493, %v2491
        %v2495 = vmul.f32 %v2493, %v2492
        %v2496 = vadd.f32 %v2488, %v2494
        %v2497 = vadd.f32 %v2489, %v2495
        %s2498 = sld [smem:[#allocation6 + $0x1c]]
        %v2499 = vld [vmem:[#allocation5 + $0x4] sm:$0xff]
        %v2500 = vld [vmem:[#allocation5 + $0xc] sm:$0xff]
        %v2501 = vstv %s2498
        %v2502 = vmul.f32 %v2501, %v2499
        %v2503 = vmul.f32 %v2501, %v2500
        %v2504 = vadd.f32 %v2496, %v2502
        %v2505 = vadd.f32 %v2497, %v2503
        %s2506 = sld [smem:[#allocation6 + $0x1d]]
        %v2507 = vld [vmem:[%s2043 + $0x4] sm:$0xff]
        %v2508 = vld [vmem:[%s2043 + $0xc] sm:$0xff]
        %v2509 = vstv %s2506
        %v2510 = vmul.f32 %v2509, %v2507
        %v2511 = vmul.f32 %v2509, %v2508
        %v2512 = vadd.f32 %v2504, %v2510
        %v2513 = vadd.f32 %v2505, %v2511
        %s2514 = sld [smem:[#allocation6 + $0x1e]]
        %v2515 = vld [vmem:[%s2064 + $0x4] sm:$0xff]
        %v2516 = vld [vmem:[%s2064 + $0xc] sm:$0xff]
        %v2517 = vstv %s2514
        %v2518 = vmul.f32 %v2517, %v2515
        %v2519 = vmul.f32 %v2517, %v2516
        %v2520 = vadd.f32 %v2512, %v2518
        %v2521 = vadd.f32 %v2513, %v2519
        %s2522 = sld [smem:[#allocation6 + $0x1f]]
        %v2523 = vld [vmem:[%s2085 + $0x4] sm:$0xff]
        %v2524 = vld [vmem:[%s2085 + $0xc] sm:$0xff]
        %v2525 = vstv %s2522
        %v2526 = vmul.f32 %v2525, %v2523
        %v2527 = vmul.f32 %v2525, %v2524
        %v2528 = vadd.f32 %v2520, %v2526
        %v2529 = vadd.f32 %v2521, %v2527
        %s2530 = sld [smem:[#allocation6 + $0x20]]
        %v2531 = vld [vmem:[%s2106 + $0x4] sm:$0xff]
        %v2532 = vld [vmem:[%s2106 + $0xc] sm:$0xff]
        %v2533 = vstv %s2530
        %v2534 = vmul.f32 %v2533, %v2531
        %v2535 = vmul.f32 %v2533, %v2532
        %v2536 = vadd.f32 %v2528, %v2534
        %v2537 = vadd.f32 %v2529, %v2535
        %s2538 = sld [smem:[#allocation6 + $0x21]]
        %v2539 = vld [vmem:[%s2127 + $0x4] sm:$0xff]
        %v2540 = vld [vmem:[%s2127 + $0xc] sm:$0xff]
        %v2541 = vstv %s2538
        %v2542 = vmul.f32 %v2541, %v2539
        %v2543 = vmul.f32 %v2541, %v2540
        %v2544 = vadd.f32 %v2536, %v2542
        %v2545 = vadd.f32 %v2537, %v2543
        %s2546 = sld [smem:[#allocation6 + $0x22]]
        %v2547 = vld [vmem:[%s2148 + $0x4] sm:$0xff]
        %v2548 = vld [vmem:[%s2148 + $0xc] sm:$0xff]
        %v2549 = vstv %s2546
        %v2550 = vmul.f32 %v2549, %v2547
        %v2551 = vmul.f32 %v2549, %v2548
        %v2552 = vadd.f32 %v2544, %v2550
        %v2553 = vadd.f32 %v2545, %v2551
        %s2554 = sld [smem:[#allocation6 + $0x23]]
        %v2555 = vld [vmem:[#allocation5 + $0x5] sm:$0xff]
        %v2556 = vld [vmem:[#allocation5 + $0xd] sm:$0xff]
        %v2557 = vstv %s2554
        %v2558 = vmul.f32 %v2557, %v2555
        %v2559 = vmul.f32 %v2557, %v2556
        %v2560 = vadd.f32 %v2552, %v2558
        %v2561 = vadd.f32 %v2553, %v2559
        %s2562 = sld [smem:[#allocation6 + $0x24]]
        %v2563 = vld [vmem:[%s2043 + $0x5] sm:$0xff]
        %v2564 = vld [vmem:[%s2043 + $0xd] sm:$0xff]
        %v2565 = vstv %s2562
        %v2566 = vmul.f32 %v2565, %v2563
        %v2567 = vmul.f32 %v2565, %v2564
        %v2568 = vadd.f32 %v2560, %v2566
        %v2569 = vadd.f32 %v2561, %v2567
        %s2570 = sld [smem:[#allocation6 + $0x25]]
        %v2571 = vld [vmem:[%s2064 + $0x5] sm:$0xff]
        %v2572 = vld [vmem:[%s2064 + $0xd] sm:$0xff]
        %v2573 = vstv %s2570
        %v2574 = vmul.f32 %v2573, %v2571
        %v2575 = vmul.f32 %v2573, %v2572
        %v2576 = vadd.f32 %v2568, %v2574
        %v2577 = vadd.f32 %v2569, %v2575
        %s2578 = sld [smem:[#allocation6 + $0x26]]
        %v2579 = vld [vmem:[%s2085 + $0x5] sm:$0xff]
        %v2580 = vld [vmem:[%s2085 + $0xd] sm:$0xff]
        %v2581 = vstv %s2578
        %v2582 = vmul.f32 %v2581, %v2579
        %v2583 = vmul.f32 %v2581, %v2580
        %v2584 = vadd.f32 %v2576, %v2582
        %v2585 = vadd.f32 %v2577, %v2583
        %s2586 = sld [smem:[#allocation6 + $0x27]]
        %v2587 = vld [vmem:[%s2106 + $0x5] sm:$0xff]
        %v2588 = vld [vmem:[%s2106 + $0xd] sm:$0xff]
        %v2589 = vstv %s2586
        %v2590 = vmul.f32 %v2589, %v2587
        %v2591 = vmul.f32 %v2589, %v2588
        %v2592 = vadd.f32 %v2584, %v2590
        %v2593 = vadd.f32 %v2585, %v2591
        %s2594 = sld [smem:[#allocation6 + $0x28]]
        %v2595 = vld [vmem:[%s2127 + $0x5] sm:$0xff]
        %v2596 = vld [vmem:[%s2127 + $0xd] sm:$0xff]
        %v2597 = vstv %s2594
        %v2598 = vmul.f32 %v2597, %v2595
        %v2599 = vmul.f32 %v2597, %v2596
        %v2600 = vadd.f32 %v2592, %v2598
        %v2601 = vadd.f32 %v2593, %v2599
        %s2602 = sld [smem:[#allocation6 + $0x29]]
        %v2603 = vld [vmem:[%s2148 + $0x5] sm:$0xff]
        %v2604 = vld [vmem:[%s2148 + $0xd] sm:$0xff]
        %v2605 = vstv %s2602
        %v2606 = vmul.f32 %v2605, %v2603
        %v2607 = vmul.f32 %v2605, %v2604
        %v2608 = vadd.f32 %v2600, %v2606
        %v2609 = vadd.f32 %v2601, %v2607
        %s2610 = sld [smem:[#allocation6 + $0x2a]]
        %v2611 = vld [vmem:[#allocation5 + $0x6] sm:$0xff]
        %v2612 = vld [vmem:[#allocation5 + $0xe] sm:$0xff]
        %v2613 = vstv %s2610
        %v2614 = vmul.f32 %v2613, %v2611
        %v2615 = vmul.f32 %v2613, %v2612
        %v2616 = vadd.f32 %v2608, %v2614
        %v2617 = vadd.f32 %v2609, %v2615
        %s2618 = sld [smem:[#allocation6 + $0x2b]]
        %v2619 = vld [vmem:[%s2043 + $0x6] sm:$0xff]
        %v2620 = vld [vmem:[%s2043 + $0xe] sm:$0xff]
        %v2621 = vstv %s2618
        %v2622 = vmul.f32 %v2621, %v2619
        %v2623 = vmul.f32 %v2621, %v2620
        %v2624 = vadd.f32 %v2616, %v2622
        %v2625 = vadd.f32 %v2617, %v2623
        %s2626 = sld [smem:[#allocation6 + $0x2c]]
        %v2627 = vld [vmem:[%s2064 + $0x6] sm:$0xff]
        %v2628 = vld [vmem:[%s2064 + $0xe] sm:$0xff]
        %v2629 = vstv %s2626
        %v2630 = vmul.f32 %v2629, %v2627
        %v2631 = vmul.f32 %v2629, %v2628
        %v2632 = vadd.f32 %v2624, %v2630
        %v2633 = vadd.f32 %v2625, %v2631
        %s2634 = sld [smem:[#allocation6 + $0x2d]]
        %v2635 = vld [vmem:[%s2085 + $0x6] sm:$0xff]
        %v2636 = vld [vmem:[%s2085 + $0xe] sm:$0xff]
        %v2637 = vstv %s2634
        %v2638 = vmul.f32 %v2637, %v2635
        %v2639 = vmul.f32 %v2637, %v2636
        %v2640 = vadd.f32 %v2632, %v2638
        %v2641 = vadd.f32 %v2633, %v2639
        %s2642 = sld [smem:[#allocation6 + $0x2e]]
        %v2643 = vld [vmem:[%s2106 + $0x6] sm:$0xff]
        %v2644 = vld [vmem:[%s2106 + $0xe] sm:$0xff]
        %v2645 = vstv %s2642
        %v2646 = vmul.f32 %v2645, %v2643
        %v2647 = vmul.f32 %v2645, %v2644
        %v2648 = vadd.f32 %v2640, %v2646
        %v2649 = vadd.f32 %v2641, %v2647
        %s2650 = sld [smem:[#allocation6 + $0x2f]]
        %v2651 = vld [vmem:[%s2127 + $0x6] sm:$0xff]
        %v2652 = vld [vmem:[%s2127 + $0xe] sm:$0xff]
        %v2653 = vstv %s2650
        %v2654 = vmul.f32 %v2653, %v2651
        %v2655 = vmul.f32 %v2653, %v2652
        %v2656 = vadd.f32 %v2648, %v2654
        %v2657 = vadd.f32 %v2649, %v2655
        %s2658 = sld [smem:[#allocation6 + $0x30]]
        %v2659 = vld [vmem:[%s2148 + $0x6] sm:$0xff]
        %v2660 = vld [vmem:[%s2148 + $0xe] sm:$0xff]
        %v2661 = vstv %s2658
        %v2662 = vmul.f32 %v2661, %v2659
        %v2663 = vmul.f32 %v2661, %v2660
        %v2664 = vadd.f32 %v2656, %v2662
        %v2665 = vadd.f32 %v2657, %v2663
        %s2666 = sld [smem:[#allocation6 + $0x31]]
        %v2667 = vld [vmem:[%s2156] sm:$0xff]
        %v2668 = vld [vmem:[%s2156 + $0x8] sm:$0xff]
        %v2669 = vstv %s2666
        %v2670 = vmul.f32 %v2669, %v2667
        %v2671 = vmul.f32 %v2669, %v2668
        %v2672 = vadd.f32 %v2664, %v2670
        %v2673 = vadd.f32 %v2665, %v2671
        %s2674 = sld [smem:[#allocation6 + $0x32]]
        %v2675 = vld [vmem:[%s2175] sm:$0xff]
        %v2676 = vld [vmem:[%s2175 + $0x8] sm:$0xff]
        %v2677 = vstv %s2674
        %v2678 = vmul.f32 %v2677, %v2675
        %v2679 = vmul.f32 %v2677, %v2676
        %v2680 = vadd.f32 %v2672, %v2678
        %v2681 = vadd.f32 %v2673, %v2679
        %s2682 = sld [smem:[#allocation6 + $0x33]]
        %v2683 = vld [vmem:[%s2194] sm:$0xff]
        %v2684 = vld [vmem:[%s2194 + $0x8] sm:$0xff]
        %v2685 = vstv %s2682
        %v2686 = vmul.f32 %v2685, %v2683
        %v2687 = vmul.f32 %v2685, %v2684
        %v2688 = vadd.f32 %v2680, %v2686
        %v2689 = vadd.f32 %v2681, %v2687
        %s2690 = sld [smem:[#allocation6 + $0x34]]
        %v2691 = vld [vmem:[%s2213] sm:$0xff]
        %v2692 = vld [vmem:[%s2213 + $0x8] sm:$0xff]
        %v2693 = vstv %s2690
        %v2694 = vmul.f32 %v2693, %v2691
        %v2695 = vmul.f32 %v2693, %v2692
        %v2696 = vadd.f32 %v2688, %v2694
        %v2697 = vadd.f32 %v2689, %v2695
        %s2698 = sld [smem:[#allocation6 + $0x35]]
        %v2699 = vld [vmem:[%s2232] sm:$0xff]
        %v2700 = vld [vmem:[%s2232 + $0x8] sm:$0xff]
        %v2701 = vstv %s2698
        %v2702 = vmul.f32 %v2701, %v2699
        %v2703 = vmul.f32 %v2701, %v2700
        %v2704 = vadd.f32 %v2696, %v2702
        %v2705 = vadd.f32 %v2697, %v2703
        %s2706 = sld [smem:[#allocation6 + $0x36]]
        %v2707 = vld [vmem:[%s2251] sm:$0xff]
        %v2708 = vld [vmem:[%s2251 + $0x8] sm:$0xff]
        %v2709 = vstv %s2706
        %v2710 = vmul.f32 %v2709, %v2707
        %v2711 = vmul.f32 %v2709, %v2708
        %v2712 = vadd.f32 %v2704, %v2710
        %v2713 = vadd.f32 %v2705, %v2711
        %s2714 = sld [smem:[#allocation6 + $0x37]]
        %v2715 = vld [vmem:[%s2270] sm:$0xff]
        %v2716 = vld [vmem:[%s2270 + $0x8] sm:$0xff]
        %v2717 = vstv %s2714
        %v2718 = vmul.f32 %v2717, %v2715
        %v2719 = vmul.f32 %v2717, %v2716
        %v2720 = vadd.f32 %v2712, %v2718
        %v2721 = vadd.f32 %v2713, %v2719
        %s2722 = sld [smem:[#allocation6 + $0x38]]
        %v2723 = vld [vmem:[%s2156 + $0x1] sm:$0xff]
        %v2724 = vld [vmem:[%s2156 + $0x9] sm:$0xff]
        %v2725 = vstv %s2722
        %v2726 = vmul.f32 %v2725, %v2723
        %v2727 = vmul.f32 %v2725, %v2724
        %v2728 = vadd.f32 %v2720, %v2726
        %v2729 = vadd.f32 %v2721, %v2727
        %s2730 = sld [smem:[#allocation6 + $0x39]]
        %v2731 = vld [vmem:[%s2175 + $0x1] sm:$0xff]
        %v2732 = vld [vmem:[%s2175 + $0x9] sm:$0xff]
        %v2733 = vstv %s2730
        %v2734 = vmul.f32 %v2733, %v2731
        %v2735 = vmul.f32 %v2733, %v2732
        %v2736 = vadd.f32 %v2728, %v2734
        %v2737 = vadd.f32 %v2729, %v2735
        %s2738 = sld [smem:[#allocation6 + $0x3a]]
        %v2739 = vld [vmem:[%s2194 + $0x1] sm:$0xff]
        %v2740 = vld [vmem:[%s2194 + $0x9] sm:$0xff]
        %v2741 = vstv %s2738
        %v2742 = vmul.f32 %v2741, %v2739
        %v2743 = vmul.f32 %v2741, %v2740
        %v2744 = vadd.f32 %v2736, %v2742
        %v2745 = vadd.f32 %v2737, %v2743
        %s2746 = sld [smem:[#allocation6 + $0x3b]]
        %v2747 = vld [vmem:[%s2213 + $0x1] sm:$0xff]
        %v2748 = vld [vmem:[%s2213 + $0x9] sm:$0xff]
        %v2749 = vstv %s2746
        %v2750 = vmul.f32 %v2749, %v2747
        %v2751 = vmul.f32 %v2749, %v2748
        %v2752 = vadd.f32 %v2744, %v2750
        %v2753 = vadd.f32 %v2745, %v2751
        %s2754 = sld [smem:[#allocation6 + $0x3c]]
        %v2755 = vld [vmem:[%s2232 + $0x1] sm:$0xff]
        %v2756 = vld [vmem:[%s2232 + $0x9] sm:$0xff]
        %v2757 = vstv %s2754
        %v2758 = vmul.f32 %v2757, %v2755
        %v2759 = vmul.f32 %v2757, %v2756
        %v2760 = vadd.f32 %v2752, %v2758
        %v2761 = vadd.f32 %v2753, %v2759
        %s2762 = sld [smem:[#allocation6 + $0x3d]]
        %v2763 = vld [vmem:[%s2251 + $0x1] sm:$0xff]
        %v2764 = vld [vmem:[%s2251 + $0x9] sm:$0xff]
        %v2765 = vstv %s2762
        %v2766 = vmul.f32 %v2765, %v2763
        %v2767 = vmul.f32 %v2765, %v2764
        %v2768 = vadd.f32 %v2760, %v2766
        %v2769 = vadd.f32 %v2761, %v2767
        %s2770 = sld [smem:[#allocation6 + $0x3e]]
        %v2771 = vld [vmem:[%s2270 + $0x1] sm:$0xff]
        %v2772 = vld [vmem:[%s2270 + $0x9] sm:$0xff]
        %v2773 = vstv %s2770
        %v2774 = vmul.f32 %v2773, %v2771
        %v2775 = vmul.f32 %v2773, %v2772
        %v2776 = vadd.f32 %v2768, %v2774
        %v2777 = vadd.f32 %v2769, %v2775
        %s2778 = sld [smem:[#allocation6 + $0x3f]]
        %v2779 = vld [vmem:[%s2156 + $0x2] sm:$0xff]
        %v2780 = vld [vmem:[%s2156 + $0xa] sm:$0xff]
        %v2781 = vstv %s2778
        %v2782 = vmul.f32 %v2781, %v2779
        %v2783 = vmul.f32 %v2781, %v2780
        %v2784 = vadd.f32 %v2776, %v2782
        %v2785 = vadd.f32 %v2777, %v2783
        %s2786 = sld [smem:[#allocation6 + $0x40]]
        %v2787 = vld [vmem:[%s2175 + $0x2] sm:$0xff]
        %v2788 = vld [vmem:[%s2175 + $0xa] sm:$0xff]
        %v2789 = vstv %s2786
        %v2790 = vmul.f32 %v2789, %v2787
        %v2791 = vmul.f32 %v2789, %v2788
        %v2792 = vadd.f32 %v2784, %v2790
        %v2793 = vadd.f32 %v2785, %v2791
        %s2794 = sld [smem:[#allocation6 + $0x41]]
        %v2795 = vld [vmem:[%s2194 + $0x2] sm:$0xff]
        %v2796 = vld [vmem:[%s2194 + $0xa] sm:$0xff]
        %v2797 = vstv %s2794
        %v2798 = vmul.f32 %v2797, %v2795
        %v2799 = vmul.f32 %v2797, %v2796
        %v2800 = vadd.f32 %v2792, %v2798
        %v2801 = vadd.f32 %v2793, %v2799
        %s2802 = sld [smem:[#allocation6 + $0x42]]
        %v2803 = vld [vmem:[%s2213 + $0x2] sm:$0xff]
        %v2804 = vld [vmem:[%s2213 + $0xa] sm:$0xff]
        %v2805 = vstv %s2802
        %v2806 = vmul.f32 %v2805, %v2803
        %v2807 = vmul.f32 %v2805, %v2804
        %v2808 = vadd.f32 %v2800, %v2806
        %v2809 = vadd.f32 %v2801, %v2807
        %s2810 = sld [smem:[#allocation6 + $0x43]]
        %v2811 = vld [vmem:[%s2232 + $0x2] sm:$0xff]
        %v2812 = vld [vmem:[%s2232 + $0xa] sm:$0xff]
        %v2813 = vstv %s2810
        %v2814 = vmul.f32 %v2813, %v2811
        %v2815 = vmul.f32 %v2813, %v2812
        %v2816 = vadd.f32 %v2808, %v2814
        %v2817 = vadd.f32 %v2809, %v2815
        %s2818 = sld [smem:[#allocation6 + $0x44]]
        %v2819 = vld [vmem:[%s2251 + $0x2] sm:$0xff]
        %v2820 = vld [vmem:[%s2251 + $0xa] sm:$0xff]
        %v2821 = vstv %s2818
        %v2822 = vmul.f32 %v2821, %v2819
        %v2823 = vmul.f32 %v2821, %v2820
        %v2824 = vadd.f32 %v2816, %v2822
        %v2825 = vadd.f32 %v2817, %v2823
        %s2826 = sld [smem:[#allocation6 + $0x45]]
        %v2827 = vld [vmem:[%s2270 + $0x2] sm:$0xff]
        %v2828 = vld [vmem:[%s2270 + $0xa] sm:$0xff]
        %v2829 = vstv %s2826
        %v2830 = vmul.f32 %v2829, %v2827
        %v2831 = vmul.f32 %v2829, %v2828
        %v2832 = vadd.f32 %v2824, %v2830
        %v2833 = vadd.f32 %v2825, %v2831
        %s2834 = sld [smem:[#allocation6 + $0x46]]
        %v2835 = vld [vmem:[%s2156 + $0x3] sm:$0xff]
        %v2836 = vld [vmem:[%s2156 + $0xb] sm:$0xff]
        %v2837 = vstv %s2834
        %v2838 = vmul.f32 %v2837, %v2835
        %v2839 = vmul.f32 %v2837, %v2836
        %v2840 = vadd.f32 %v2832, %v2838
        %v2841 = vadd.f32 %v2833, %v2839
        %s2842 = sld [smem:[#allocation6 + $0x47]]
        %v2843 = vld [vmem:[%s2175 + $0x3] sm:$0xff]
        %v2844 = vld [vmem:[%s2175 + $0xb] sm:$0xff]
        %v2845 = vstv %s2842
        %v2846 = vmul.f32 %v2845, %v2843
        %v2847 = vmul.f32 %v2845, %v2844
        %v2848 = vadd.f32 %v2840, %v2846
        %v2849 = vadd.f32 %v2841, %v2847
        %s2850 = sld [smem:[#allocation6 + $0x48]]
        %v2851 = vld [vmem:[%s2194 + $0x3] sm:$0xff]
        %v2852 = vld [vmem:[%s2194 + $0xb] sm:$0xff]
        %v2853 = vstv %s2850
        %v2854 = vmul.f32 %v2853, %v2851
        %v2855 = vmul.f32 %v2853, %v2852
        %v2856 = vadd.f32 %v2848, %v2854
        %v2857 = vadd.f32 %v2849, %v2855
        %s2858 = sld [smem:[#allocation6 + $0x49]]
        %v2859 = vld [vmem:[%s2213 + $0x3] sm:$0xff]
        %v2860 = vld [vmem:[%s2213 + $0xb] sm:$0xff]
        %v2861 = vstv %s2858
        %v2862 = vmul.f32 %v2861, %v2859
        %v2863 = vmul.f32 %v2861, %v2860
        %v2864 = vadd.f32 %v2856, %v2862
        %v2865 = vadd.f32 %v2857, %v2863
        %s2866 = sld [smem:[#allocation6 + $0x4a]]
        %v2867 = vld [vmem:[%s2232 + $0x3] sm:$0xff]
        %v2868 = vld [vmem:[%s2232 + $0xb] sm:$0xff]
        %v2869 = vstv %s2866
        %v2870 = vmul.f32 %v2869, %v2867
        %v2871 = vmul.f32 %v2869, %v2868
        %v2872 = vadd.f32 %v2864, %v2870
        %v2873 = vadd.f32 %v2865, %v2871
        %s2874 = sld [smem:[#allocation6 + $0x4b]]
        %v2875 = vld [vmem:[%s2251 + $0x3] sm:$0xff]
        %v2876 = vld [vmem:[%s2251 + $0xb] sm:$0xff]
        %v2877 = vstv %s2874
        %v2878 = vmul.f32 %v2877, %v2875
        %v2879 = vmul.f32 %v2877, %v2876
        %v2880 = vadd.f32 %v2872, %v2878
        %v2881 = vadd.f32 %v2873, %v2879
        %s2882 = sld [smem:[#allocation6 + $0x4c]]
        %v2883 = vld [vmem:[%s2270 + $0x3] sm:$0xff]
        %v2884 = vld [vmem:[%s2270 + $0xb] sm:$0xff]
        %v2885 = vstv %s2882
        %v2886 = vmul.f32 %v2885, %v2883
        %v2887 = vmul.f32 %v2885, %v2884
        %v2888 = vadd.f32 %v2880, %v2886
        %v2889 = vadd.f32 %v2881, %v2887
        %s2890 = sld [smem:[#allocation6 + $0x4d]]
        %v2891 = vld [vmem:[%s2156 + $0x4] sm:$0xff]
        %v2892 = vld [vmem:[%s2156 + $0xc] sm:$0xff]
        %v2893 = vstv %s2890
        %v2894 = vmul.f32 %v2893, %v2891
        %v2895 = vmul.f32 %v2893, %v2892
        %v2896 = vadd.f32 %v2888, %v2894
        %v2897 = vadd.f32 %v2889, %v2895
        %s2898 = sld [smem:[#allocation6 + $0x4e]]
        %v2899 = vld [vmem:[%s2175 + $0x4] sm:$0xff]
        %v2900 = vld [vmem:[%s2175 + $0xc] sm:$0xff]
        %v2901 = vstv %s2898
        %v2902 = vmul.f32 %v2901, %v2899
        %v2903 = vmul.f32 %v2901, %v2900
        %v2904 = vadd.f32 %v2896, %v2902
        %v2905 = vadd.f32 %v2897, %v2903
        %s2906 = sld [smem:[#allocation6 + $0x4f]]
        %v2907 = vld [vmem:[%s2194 + $0x4] sm:$0xff]
        %v2908 = vld [vmem:[%s2194 + $0xc] sm:$0xff]
        %v2909 = vstv %s2906
        %v2910 = vmul.f32 %v2909, %v2907
        %v2911 = vmul.f32 %v2909, %v2908
        %v2912 = vadd.f32 %v2904, %v2910
        %v2913 = vadd.f32 %v2905, %v2911
        %s2914 = sld [smem:[#allocation6 + $0x50]]
        %v2915 = vld [vmem:[%s2213 + $0x4] sm:$0xff]
        %v2916 = vld [vmem:[%s2213 + $0xc] sm:$0xff]
        %v2917 = vstv %s2914
        %v2918 = vmul.f32 %v2917, %v2915
        %v2919 = vmul.f32 %v2917, %v2916
        %v2920 = vadd.f32 %v2912, %v2918
        %v2921 = vadd.f32 %v2913, %v2919
        %s2922 = sld [smem:[#allocation6 + $0x51]]
        %v2923 = vld [vmem:[%s2232 + $0x4] sm:$0xff]
        %v2924 = vld [vmem:[%s2232 + $0xc] sm:$0xff]
        %v2925 = vstv %s2922
        %v2926 = vmul.f32 %v2925, %v2923
        %v2927 = vmul.f32 %v2925, %v2924
        %v2928 = vadd.f32 %v2920, %v2926
        %v2929 = vadd.f32 %v2921, %v2927
        %s2930 = sld [smem:[#allocation6 + $0x52]]
        %v2931 = vld [vmem:[%s2251 + $0x4] sm:$0xff]
        %v2932 = vld [vmem:[%s2251 + $0xc] sm:$0xff]
        %v2933 = vstv %s2930
        %v2934 = vmul.f32 %v2933, %v2931
        %v2935 = vmul.f32 %v2933, %v2932
        %v2936 = vadd.f32 %v2928, %v2934
        %v2937 = vadd.f32 %v2929, %v2935
        %s2938 = sld [smem:[#allocation6 + $0x53]]
        %v2939 = vld [vmem:[%s2270 + $0x4] sm:$0xff]
        %v2940 = vld [vmem:[%s2270 + $0xc] sm:$0xff]
        %v2941 = vstv %s2938
        %v2942 = vmul.f32 %v2941, %v2939
        %v2943 = vmul.f32 %v2941, %v2940
        %v2944 = vadd.f32 %v2936, %v2942
        %v2945 = vadd.f32 %v2937, %v2943
        %s2946 = sld [smem:[#allocation6 + $0x54]]
        %v2947 = vld [vmem:[%s2156 + $0x5] sm:$0xff]
        %v2948 = vld [vmem:[%s2156 + $0xd] sm:$0xff]
        %v2949 = vstv %s2946
        %v2950 = vmul.f32 %v2949, %v2947
        %v2951 = vmul.f32 %v2949, %v2948
        %v2952 = vadd.f32 %v2944, %v2950
        %v2953 = vadd.f32 %v2945, %v2951
        %s2954 = sld [smem:[#allocation6 + $0x55]]
        %v2955 = vld [vmem:[%s2175 + $0x5] sm:$0xff]
        %v2956 = vld [vmem:[%s2175 + $0xd] sm:$0xff]
        %v2957 = vstv %s2954
        %v2958 = vmul.f32 %v2957, %v2955
        %v2959 = vmul.f32 %v2957, %v2956
        %v2960 = vadd.f32 %v2952, %v2958
        %v2961 = vadd.f32 %v2953, %v2959
        %s2962 = sld [smem:[#allocation6 + $0x56]]
        %v2963 = vld [vmem:[%s2194 + $0x5] sm:$0xff]
        %v2964 = vld [vmem:[%s2194 + $0xd] sm:$0xff]
        %v2965 = vstv %s2962
        %v2966 = vmul.f32 %v2965, %v2963
        %v2967 = vmul.f32 %v2965, %v2964
        %v2968 = vadd.f32 %v2960, %v2966
        %v2969 = vadd.f32 %v2961, %v2967
        %s2970 = sld [smem:[#allocation6 + $0x57]]
        %v2971 = vld [vmem:[%s2213 + $0x5] sm:$0xff]
        %v2972 = vld [vmem:[%s2213 + $0xd] sm:$0xff]
        %v2973 = vstv %s2970
        %v2974 = vmul.f32 %v2973, %v2971
        %v2975 = vmul.f32 %v2973, %v2972
        %v2976 = vadd.f32 %v2968, %v2974
        %v2977 = vadd.f32 %v2969, %v2975
        %s2978 = sld [smem:[#allocation6 + $0x58]]
        %v2979 = vld [vmem:[%s2232 + $0x5] sm:$0xff]
        %v2980 = vld [vmem:[%s2232 + $0xd] sm:$0xff]
        %v2981 = vstv %s2978
        %v2982 = vmul.f32 %v2981, %v2979
        %v2983 = vmul.f32 %v2981, %v2980
        %v2984 = vadd.f32 %v2976, %v2982
        %v2985 = vadd.f32 %v2977, %v2983
        %s2986 = sld [smem:[#allocation6 + $0x59]]
        %v2987 = vld [vmem:[%s2251 + $0x5] sm:$0xff]
        %v2988 = vld [vmem:[%s2251 + $0xd] sm:$0xff]
        %v2989 = vstv %s2986
        %v2990 = vmul.f32 %v2989, %v2987
        %v2991 = vmul.f32 %v2989, %v2988
        %v2992 = vadd.f32 %v2984, %v2990
        %v2993 = vadd.f32 %v2985, %v2991
        %s2994 = sld [smem:[#allocation6 + $0x5a]]
        %v2995 = vld [vmem:[%s2270 + $0x5] sm:$0xff]
        %v2996 = vld [vmem:[%s2270 + $0xd] sm:$0xff]
        %v2997 = vstv %s2994
        %v2998 = vmul.f32 %v2997, %v2995
        %v2999 = vmul.f32 %v2997, %v2996
        %v3000 = vadd.f32 %v2992, %v2998
        %v3001 = vadd.f32 %v2993, %v2999
        %s3002 = sld [smem:[#allocation6 + $0x5b]]
        %v3003 = vld [vmem:[%s2156 + $0x6] sm:$0xff]
        %v3004 = vld [vmem:[%s2156 + $0xe] sm:$0xff]
        %v3005 = vstv %s3002
        %v3006 = vmul.f32 %v3005, %v3003
        %v3007 = vmul.f32 %v3005, %v3004
        %v3008 = vadd.f32 %v3000, %v3006
        %v3009 = vadd.f32 %v3001, %v3007
        %s3010 = sld [smem:[#allocation6 + $0x5c]]
        %v3011 = vld [vmem:[%s2175 + $0x6] sm:$0xff]
        %v3012 = vld [vmem:[%s2175 + $0xe] sm:$0xff]
        %v3013 = vstv %s3010
        %v3014 = vmul.f32 %v3013, %v3011
        %v3015 = vmul.f32 %v3013, %v3012
        %v3016 = vadd.f32 %v3008, %v3014
        %v3017 = vadd.f32 %v3009, %v3015
        %s3018 = sld [smem:[#allocation6 + $0x5d]]
        %v3019 = vld [vmem:[%s2194 + $0x6] sm:$0xff]
        %v3020 = vld [vmem:[%s2194 + $0xe] sm:$0xff]
        %v3021 = vstv %s3018
        %v3022 = vmul.f32 %v3021, %v3019
        %v3023 = vmul.f32 %v3021, %v3020
        %v3024 = vadd.f32 %v3016, %v3022
        %v3025 = vadd.f32 %v3017, %v3023
        %s3026 = sld [smem:[#allocation6 + $0x5e]]
        %v3027 = vld [vmem:[%s2213 + $0x6] sm:$0xff]
        %v3028 = vld [vmem:[%s2213 + $0xe] sm:$0xff]
        %v3029 = vstv %s3026
        %v3030 = vmul.f32 %v3029, %v3027
        %v3031 = vmul.f32 %v3029, %v3028
        %v3032 = vadd.f32 %v3024, %v3030
        %v3033 = vadd.f32 %v3025, %v3031
        %s3034 = sld [smem:[#allocation6 + $0x5f]]
        %v3035 = vld [vmem:[%s2232 + $0x6] sm:$0xff]
        %v3036 = vld [vmem:[%s2232 + $0xe] sm:$0xff]
        %v3037 = vstv %s3034
        %v3038 = vmul.f32 %v3037, %v3035
        %v3039 = vmul.f32 %v3037, %v3036
        %v3040 = vadd.f32 %v3032, %v3038
        %v3041 = vadd.f32 %v3033, %v3039
        %s3042 = sld [smem:[#allocation6 + $0x60]]
        %v3043 = vld [vmem:[%s2251 + $0x6] sm:$0xff]
        %v3044 = vld [vmem:[%s2251 + $0xe] sm:$0xff]
        %v3045 = vstv %s3042
        %v3046 = vmul.f32 %v3045, %v3043
        %v3047 = vmul.f32 %v3045, %v3044
        %v3048 = vadd.f32 %v3040, %v3046
        %v3049 = vadd.f32 %v3041, %v3047
        %s3050 = sld [smem:[#allocation6 + $0x61]]
        %v3051 = vld [vmem:[%s2270 + $0x6] sm:$0xff]
        %v3052 = vld [vmem:[%s2270 + $0xe] sm:$0xff]
        %v3053 = vstv %s3050
        %v3054 = vmul.f32 %v3053, %v3051
        %v3055 = vmul.f32 %v3053, %v3052
        %v3056 = vadd.f32 %v3048, %v3054
        %v3057 = vadd.f32 %v3049, %v3055
        %v3058 = vxor.u32 %v3056, 2147483648
        %v3059 = vxor.u32 %v3057, 2147483648
        %v3060 = vmul.f32 %v3058, 1.442695
        %v3061 = vpow.pop %v3060
        %v3062 = vmul.f32 %v3059, 1.442695
        %v3063 = vpow.pop %v3062
        %v3064 = vadd.f32 %v3061, 1.0
        %v3065 = vadd.f32 %v3063, 1.0
        %v3066 = vrcp.pop %v3064
        %v3067 = vmul.f32 1.0, %v3066
        %v3068 = vrcp.pop %v3065
        %v3069 = vmul.f32 1.0, %v3068
        %v3070 = vld [vmem:[%s211] sm:$0xff]
        %v3071 = vld [vmem:[%s211 + $0x8] sm:$0xff]
        %v3072 = vmul.f32 %v3070, %v3067
        %v3073 = vmul.f32 %v3071, %v3069
        %3074 = vst.msk [vmem:[%s211] sm:$0xff] %vm214, %v3072
        %3075 = vst.msk [vmem:[%s211 + $0x8] sm:$0xff] %vm214, %v3073
        %v3076 = vld [vmem:[%s1488] sm:$0xff]
        %v3077 = vld [vmem:[%s1488 + $0x8] sm:$0xff]
        %v3078 = vmul.f32 %v3076, %v3067
        %v3079 = vmul.f32 %v3077, %v3069
        %3080 = vst.msk [vmem:[%s1488] sm:$0xff] %vm214, %v3078
        %3081 = vst.msk [vmem:[%s1488 + $0x8] sm:$0xff] %vm214, %v3079
        %v3082 = vld [vmem:[%s1504] sm:$0xff]
        %v3083 = vld [vmem:[%s1504 + $0x8] sm:$0xff]
        %v3084 = vmul.f32 %v3082, %v3067
        %v3085 = vmul.f32 %v3083, %v3069
        %3086 = vst.msk [vmem:[%s1504] sm:$0xff] %vm214, %v3084
        %3087 = vst.msk [vmem:[%s1504 + $0x8] sm:$0xff] %vm214, %v3085
        %v3088 = vld [vmem:[%s1520] sm:$0xff]
        %v3089 = vld [vmem:[%s1520 + $0x8] sm:$0xff]
        %v3090 = vmul.f32 %v3088, %v3067
        %v3091 = vmul.f32 %v3089, %v3069
        %3092 = vst.msk [vmem:[%s1520] sm:$0xff] %vm214, %v3090
        %3093 = vst.msk [vmem:[%s1520 + $0x8] sm:$0xff] %vm214, %v3091
        %v3094 = vld [vmem:[%s1536] sm:$0xff]
        %v3095 = vld [vmem:[%s1536 + $0x8] sm:$0xff]
        %v3096 = vmul.f32 %v3094, %v3067
        %v3097 = vmul.f32 %v3095, %v3069
        %3098 = vst.msk [vmem:[%s1536] sm:$0xff] %vm214, %v3096
        %3099 = vst.msk [vmem:[%s1536 + $0x8] sm:$0xff] %vm214, %v3097
        %v3100 = vld [vmem:[%s1552] sm:$0xff]
        %v3101 = vld [vmem:[%s1552 + $0x8] sm:$0xff]
        %v3102 = vmul.f32 %v3100, %v3067
        %v3103 = vmul.f32 %v3101, %v3069
        %3104 = vst.msk [vmem:[%s1552] sm:$0xff] %vm214, %v3102
        %3105 = vst.msk [vmem:[%s1552 + $0x8] sm:$0xff] %vm214, %v3103
        %v3106 = vld [vmem:[%s1568] sm:$0xff]
        %v3107 = vld [vmem:[%s1568 + $0x8] sm:$0xff]
        %v3108 = vmul.f32 %v3106, %v3067
        %v3109 = vmul.f32 %v3107, %v3069
        %3110 = vst.msk [vmem:[%s1568] sm:$0xff] %vm214, %v3108
        %3111 = vst.msk [vmem:[%s1568 + $0x8] sm:$0xff] %vm214, %v3109
        %v3112 = vld [vmem:[%s1584] sm:$0xff]
        %v3113 = vld [vmem:[%s1584 + $0x8] sm:$0xff]
        %v3114 = vmul.f32 %v3112, %v3067
        %v3115 = vmul.f32 %v3113, %v3069
        %3116 = vst.msk [vmem:[%s1584] sm:$0xff] %vm214, %v3114
        %3117 = vst.msk [vmem:[%s1584 + $0x8] sm:$0xff] %vm214, %v3115
        %v3118 = vld [vmem:[%s1600] sm:$0xff]
        %v3119 = vld [vmem:[%s1600 + $0x8] sm:$0xff]
        %v3120 = vmul.f32 %v3118, %v3067
        %v3121 = vmul.f32 %v3119, %v3069
        %3122 = vst.msk [vmem:[%s1600] sm:$0xff] %vm214, %v3120
        %3123 = vst.msk [vmem:[%s1600 + $0x8] sm:$0xff] %vm214, %v3121
        %v3124 = vld [vmem:[%s1616] sm:$0xff]
        %v3125 = vld [vmem:[%s1616 + $0x8] sm:$0xff]
        %v3126 = vmul.f32 %v3124, %v3067
        %v3127 = vmul.f32 %v3125, %v3069
        %3128 = vst.msk [vmem:[%s1616] sm:$0xff] %vm214, %v3126
        %3129 = vst.msk [vmem:[%s1616 + $0x8] sm:$0xff] %vm214, %v3127
        %v3130 = vld [vmem:[%s1632] sm:$0xff]
        %v3131 = vld [vmem:[%s1632 + $0x8] sm:$0xff]
        %v3132 = vmul.f32 %v3130, %v3067
        %v3133 = vmul.f32 %v3131, %v3069
        %3134 = vst.msk [vmem:[%s1632] sm:$0xff] %vm214, %v3132
        %3135 = vst.msk [vmem:[%s1632 + $0x8] sm:$0xff] %vm214, %v3133
        %v3136 = vld [vmem:[%s1648] sm:$0xff]
        %v3137 = vld [vmem:[%s1648 + $0x8] sm:$0xff]
        %v3138 = vmul.f32 %v3136, %v3067
        %v3139 = vmul.f32 %v3137, %v3069
        %3140 = vst.msk [vmem:[%s1648] sm:$0xff] %vm214, %v3138
        %3141 = vst.msk [vmem:[%s1648 + $0x8] sm:$0xff] %vm214, %v3139
        %v3142 = vld [vmem:[%s1664] sm:$0xff]
        %v3143 = vld [vmem:[%s1664 + $0x8] sm:$0xff]
        %v3144 = vmul.f32 %v3142, %v3067
        %v3145 = vmul.f32 %v3143, %v3069
        %3146 = vst.msk [vmem:[%s1664] sm:$0xff] %vm214, %v3144
        %3147 = vst.msk [vmem:[%s1664 + $0x8] sm:$0xff] %vm214, %v3145
        %v3148 = vld [vmem:[%s1680] sm:$0xff]
        %v3149 = vld [vmem:[%s1680 + $0x8] sm:$0xff]
        %v3150 = vmul.f32 %v3148, %v3067
        %v3151 = vmul.f32 %v3149, %v3069
        %3152 = vst.msk [vmem:[%s1680] sm:$0xff] %vm214, %v3150
        %3153 = vst.msk [vmem:[%s1680 + $0x8] sm:$0xff] %vm214, %v3151
        %v3154 = vld [vmem:[%s1696] sm:$0xff]
        %v3155 = vld [vmem:[%s1696 + $0x8] sm:$0xff]
        %v3156 = vmul.f32 %v3154, %v3067
        %v3157 = vmul.f32 %v3155, %v3069
        %3158 = vst.msk [vmem:[%s1696] sm:$0xff] %vm214, %v3156
        %3159 = vst.msk [vmem:[%s1696 + $0x8] sm:$0xff] %vm214, %v3157
        %v3160 = vld [vmem:[%s1712] sm:$0xff]
        %v3161 = vld [vmem:[%s1712 + $0x8] sm:$0xff]
        %v3162 = vmul.f32 %v3160, %v3067
        %v3163 = vmul.f32 %v3161, %v3069
        %3164 = vst.msk [vmem:[%s1712] sm:$0xff] %vm214, %v3162
        %3165 = vst.msk [vmem:[%s1712 + $0x8] sm:$0xff] %vm214, %v3163
        %v3166 = vld [vmem:[%s1728] sm:$0xff]
        %v3167 = vld [vmem:[%s1728 + $0x8] sm:$0xff]
        %v3168 = vmul.f32 %v3166, %v3067
        %v3169 = vmul.f32 %v3167, %v3069
        %3170 = vst.msk [vmem:[%s1728] sm:$0xff] %vm214, %v3168
        %3171 = vst.msk [vmem:[%s1728 + $0x8] sm:$0xff] %vm214, %v3169
        %v3172 = vld [vmem:[%s1744] sm:$0xff]
        %v3173 = vld [vmem:[%s1744 + $0x8] sm:$0xff]
        %v3174 = vmul.f32 %v3172, %v3067
        %v3175 = vmul.f32 %v3173, %v3069
        %3176 = vst.msk [vmem:[%s1744] sm:$0xff] %vm214, %v3174
        %3177 = vst.msk [vmem:[%s1744 + $0x8] sm:$0xff] %vm214, %v3175
        %v3178 = vld [vmem:[%s1760] sm:$0xff]
        %v3179 = vld [vmem:[%s1760 + $0x8] sm:$0xff]
        %v3180 = vmul.f32 %v3178, %v3067
        %v3181 = vmul.f32 %v3179, %v3069
        %3182 = vst.msk [vmem:[%s1760] sm:$0xff] %vm214, %v3180
        %3183 = vst.msk [vmem:[%s1760 + $0x8] sm:$0xff] %vm214, %v3181
        %v3184 = vld [vmem:[%s1776] sm:$0xff]
        %v3185 = vld [vmem:[%s1776 + $0x8] sm:$0xff]
        %v3186 = vmul.f32 %v3184, %v3067
        %v3187 = vmul.f32 %v3185, %v3069
        %3188 = vst.msk [vmem:[%s1776] sm:$0xff] %vm214, %v3186
        %3189 = vst.msk [vmem:[%s1776 + $0x8] sm:$0xff] %vm214, %v3187
        %v3190 = vld [vmem:[%s1792] sm:$0xff]
        %v3191 = vld [vmem:[%s1792 + $0x8] sm:$0xff]
        %v3192 = vmul.f32 %v3190, %v3067
        %v3193 = vmul.f32 %v3191, %v3069
        %3194 = vst.msk [vmem:[%s1792] sm:$0xff] %vm214, %v3192
        %3195 = vst.msk [vmem:[%s1792 + $0x8] sm:$0xff] %vm214, %v3193
        %v3196 = vld [vmem:[%s1808] sm:$0xff]
        %v3197 = vld [vmem:[%s1808 + $0x8] sm:$0xff]
        %v3198 = vmul.f32 %v3196, %v3067
        %v3199 = vmul.f32 %v3197, %v3069
        %3200 = vst.msk [vmem:[%s1808] sm:$0xff] %vm214, %v3198
        %3201 = vst.msk [vmem:[%s1808 + $0x8] sm:$0xff] %vm214, %v3199
        %v3202 = vld [vmem:[%s1824] sm:$0xff]
        %v3203 = vld [vmem:[%s1824 + $0x8] sm:$0xff]
        %v3204 = vmul.f32 %v3202, %v3067
        %v3205 = vmul.f32 %v3203, %v3069
        %3206 = vst.msk [vmem:[%s1824] sm:$0xff] %vm214, %v3204
        %3207 = vst.msk [vmem:[%s1824 + $0x8] sm:$0xff] %vm214, %v3205
        %v3208 = vld [vmem:[%s1840] sm:$0xff]
        %v3209 = vld [vmem:[%s1840 + $0x8] sm:$0xff]
        %v3210 = vmul.f32 %v3208, %v3067
        %v3211 = vmul.f32 %v3209, %v3069
        %3212 = vst.msk [vmem:[%s1840] sm:$0xff] %vm214, %v3210
        %3213 = vst.msk [vmem:[%s1840 + $0x8] sm:$0xff] %vm214, %v3211
        %v3214 = vld [vmem:[%s1856] sm:$0xff]
        %v3215 = vld [vmem:[%s1856 + $0x8] sm:$0xff]
        %v3216 = vmul.f32 %v3214, %v3067
        %v3217 = vmul.f32 %v3215, %v3069
        %3218 = vst.msk [vmem:[%s1856] sm:$0xff] %vm214, %v3216
        %3219 = vst.msk [vmem:[%s1856 + $0x8] sm:$0xff] %vm214, %v3217
        %v3220 = vld [vmem:[%s1872] sm:$0xff]
        %v3221 = vld [vmem:[%s1872 + $0x8] sm:$0xff]
        %v3222 = vmul.f32 %v3220, %v3067
        %v3223 = vmul.f32 %v3221, %v3069
        %3224 = vst.msk [vmem:[%s1872] sm:$0xff] %vm214, %v3222
        %3225 = vst.msk [vmem:[%s1872 + $0x8] sm:$0xff] %vm214, %v3223
        %v3226 = vld [vmem:[%s1888] sm:$0xff]
        %v3227 = vld [vmem:[%s1888 + $0x8] sm:$0xff]
        %v3228 = vmul.f32 %v3226, %v3067
        %v3229 = vmul.f32 %v3227, %v3069
        %3230 = vst.msk [vmem:[%s1888] sm:$0xff] %vm214, %v3228
        %3231 = vst.msk [vmem:[%s1888 + $0x8] sm:$0xff] %vm214, %v3229
        %v3232 = vld [vmem:[%s1904] sm:$0xff]
        %v3233 = vld [vmem:[%s1904 + $0x8] sm:$0xff]
        %v3234 = vmul.f32 %v3232, %v3067
        %v3235 = vmul.f32 %v3233, %v3069
        %3236 = vst.msk [vmem:[%s1904] sm:$0xff] %vm214, %v3234
        %3237 = vst.msk [vmem:[%s1904 + $0x8] sm:$0xff] %vm214, %v3235
        %v3238 = vld [vmem:[%s1920] sm:$0xff]
        %v3239 = vld [vmem:[%s1920 + $0x8] sm:$0xff]
        %v3240 = vmul.f32 %v3238, %v3067
        %v3241 = vmul.f32 %v3239, %v3069
        %3242 = vst.msk [vmem:[%s1920] sm:$0xff] %vm214, %v3240
        %3243 = vst.msk [vmem:[%s1920 + $0x8] sm:$0xff] %vm214, %v3241
        %v3244 = vld [vmem:[%s1936] sm:$0xff]
        %v3245 = vld [vmem:[%s1936 + $0x8] sm:$0xff]
        %v3246 = vmul.f32 %v3244, %v3067
        %v3247 = vmul.f32 %v3245, %v3069
        %3248 = vst.msk [vmem:[%s1936] sm:$0xff] %vm214, %v3246
        %3249 = vst.msk [vmem:[%s1936 + $0x8] sm:$0xff] %vm214, %v3247
        %v3250 = vld [vmem:[%s1952] sm:$0xff]
        %v3251 = vld [vmem:[%s1952 + $0x8] sm:$0xff]
        %v3252 = vmul.f32 %v3250, %v3067
        %v3253 = vmul.f32 %v3251, %v3069
        %3254 = vst.msk [vmem:[%s1952] sm:$0xff] %vm214, %v3252
        %3255 = vst.msk [vmem:[%s1952 + $0x8] sm:$0xff] %vm214, %v3253
        %v3256 = vld [vmem:[%s1968] sm:$0xff]
        %v3257 = vld [vmem:[%s1968 + $0x8] sm:$0xff]
        %v3258 = vmul.f32 %v3256, %v3067
        %v3259 = vmul.f32 %v3257, %v3069
        %3260 = vst.msk [vmem:[%s1968] sm:$0xff] %vm214, %v3258
        %3261 = vst.msk [vmem:[%s1968 + $0x8] sm:$0xff] %vm214, %v3259
        %p3262 = scmp.lt.s32.totalorder %s16, 1
        %s3263 = scalar_select %p3262, %s16, 1
        %s3264 = smul.addr %s3263, 64
        %s3265 = smul.addr %s3264, 8
        %s3266 = scalar_lea.vmem %s4, %s3265
        // Predicated region
        $region41: #{tpu_custom_call.1} parent=35 // pred_check
          %p3267 = pneg %p123
        $region42: #{tpu_custom_call.1} parent=35 // pred_check_branch
          %3269 = sbr.rel (%p3267) target = $region44
        $region43: #{tpu_custom_call.1} parent=35 // pred_region
          _
        $region44: #{tpu_custom_call.1} parent=35 // pred_fallthru
          _
      $region36: #{tpu_custom_call.1} parent=5 // pred_fallthru
        _
      %p3270 = scmp.le.s32.totalorder 2, %s11
      // Predicated region
      $region45: #{tpu_custom_call.1} parent=5 // pred_check
        %p3271 = pneg %p3270
      $region46: #{tpu_custom_call.1} parent=5 // pred_check_branch
        %3273 = sbr.rel (%p3271) target = $region48
      $region47: #{tpu_custom_call.1} parent=5 // pred_region
        %s3274 = ssub.s32 %s11, 2
        // Predicated region
        $region49: #{tpu_custom_call.1} parent=47 // pred_check
          %p3275 = pneg %p129
        $region50: #{tpu_custom_call.1} parent=47 // pred_check_branch
          %3277 = sbr.rel (%p3275) target = $region52
        $region51: #{tpu_custom_call.1} parent=47 // pred_region
          %p3278 = scmp.lt.s32.totalorder %s17, 1
          %s3279 = scalar_select %p3278, %s17, 1
          %s3280 = smul.addr %s3279, 64
          %s3281 = smul.addr %s3280, 8
          %s3282 = scalar_lea.vmem %s4, %s3281
        $region52: #{tpu_custom_call.1} parent=47 // pred_fallthru
          _
      $region48: #{tpu_custom_call.1} parent=5 // pred_fallthru
        _
    $region6: #{tpu_custom_call.1} parent=1 // loop_footer
      %s15 = sadd.s32 1, %s11
    $region7: #{tpu_custom_call.1} parent=1 // loop_footer_branch
      %10 = sbr.rel target = $region3
    $region8: #{tpu_custom_call.1} parent=1 // loop_exit
      _
    %3283 = vsyncpa [#allocation7], 1
    %s3284 = scalar_lea.sflag [#allocation7], 1
    %3285 = vsyncpa %s3284, 1

</llo_original>
